<compile_context>
chip_gen: v7x
topology: tpu7x:2x2x1
jax: 0.10.0
libtpu: 0.0.40
codegen_flags: <defaults>
</compile_context>

<pallas_src>
import jax
import jax.numpy as jnp
import numpy as np
from jax.experimental import pallas as pl
from jax.experimental.pallas import tpu as pltpu  # noqa: F401  (TPU backend)


# ----------------------------------------------------------------------------
# Pallas kernel: entire forward pass (4 conv blocks + linear + sigmoid)
# ----------------------------------------------------------------------------
def _discriminator_kernel(
        x_ref,
        s1_ref, w1_ref, b1_ref, t1_ref,
        s2_ref, w2_ref, b2_ref, t2_ref,
        s3_ref, w3_ref, b3_ref, t3_ref,
        s4_ref, w4_ref, b4_ref, t4_ref,
        wmap_ref, g_ref, lb_ref,
        o_ref):
    """All activations stay in VMEM/vregs; rows=(n, oh, ow), lanes=channels."""

    def conv_block(x, s_ref, w_ref, b_ref, shift_ref):
        # Conv2d(k=3, s=2, p=1) as 9 accumulated tap matmuls:
        #   rows_t = S_t @ x      (0/1 row selection; all-zero rows = padding)
        #   acc   += rows_t @ W_t
        # BN eval-mode scale is pre-folded into W_t / b (scale > 0), so only
        # the additive shift remains after LeakyReLU.
        acc = jnp.dot(jnp.dot(s_ref[0], x, preferred_element_type=jnp.float32),
                      w_ref[0], preferred_element_type=jnp.float32)
        for t in range(1, 9):
            rows = jnp.dot(s_ref[t], x, preferred_element_type=jnp.float32)
            acc = acc + jnp.dot(rows, w_ref[t],
                                preferred_element_type=jnp.float32)
        y = acc + b_ref[...]
        y = jnp.where(y >= 0.0, y, 0.2 * y)          # LeakyReLU(0.2)
        # TODO(synk): Dropout2d(0.25) is identity in eval mode; training-mode
        # channel dropout and batch-statistic BatchNorm are not implemented.
        return y + shift_ref[...]                    # eval-mode BatchNorm shift

    x = x_ref[...]                                   # (N*H*W, C_in) NHWC rows
    x = conv_block(x, s1_ref, w1_ref, b1_ref, t1_ref)
    x = conv_block(x, s2_ref, w2_ref, b2_ref, t2_ref)
    x = conv_block(x, s3_ref, w3_ref, b3_ref, t3_ref)
    x = conv_block(x, s4_ref, w4_ref, b4_ref, t4_ref)

    # Fused Linear(128*ds*ds -> 1) + Sigmoid.  wmap is the linear weight laid
    # out to match the (n*ds*ds rows, C lanes) activation layout; g sums the
    # per-row dot products that belong to the same batch element.
    prod = x * wmap_ref[...]
    pooled = jnp.dot(g_ref[...], prod, preferred_element_type=jnp.float32)
    logits = jnp.sum(pooled, axis=-1, keepdims=True) + lb_ref[...]
    o_ref[...] = jax.nn.sigmoid(logits)


def _full_block(shape):
    ndim = len(shape)
    return pl.BlockSpec(shape, lambda i, _n=ndim: (0,) * _n)


# ----------------------------------------------------------------------------
# Host-side, once-per-model preparation (pure shape math + weight folding)
# ----------------------------------------------------------------------------
def _selection_matrices(batch, h_in, w_in, k=3, s=2, p=1):
    """0/1 row-selection matrices S[t] with S[t] @ x_rows == im2col tap t."""
    h_out = (h_in + 2 * p - k) // s + 1
    w_out = (w_in + 2 * p - k) // s + 1
    sel = np.zeros((k * k, batch * h_out * w_out, batch * h_in * w_in),
                   np.float32)
    for n in range(batch):
        for oh in range(h_out):
            for ow in range(w_out):
                mo = (n * h_out + oh) * w_out + ow
                for kh in range(k):
                    ih = s * oh + kh - p
                    if ih < 0 or ih >= h_in:
                        continue
                    for kw in range(k):
                        iw = s * ow + kw - p
                        if iw < 0 or iw >= w_in:
                            continue
                        mi = (n * h_in + ih) * w_in + iw
                        sel[kh * k + kw, mo, mi] = 1.0
    return sel, h_out, w_out


def prepare_fused_inputs(conv_params, lin_params, batch, img_size):
    """Build all constant kernel operands (selection matrices, folded weights)."""
    inputs = []
    h = w = img_size
    for (wconv, b, scale, shift) in conv_params:
        c_out, c_in, k, _ = wconv.shape
        # Folding scale into W/b requires scale > 0 (true: gamma~N(1,0.02),
        # running_var=1, eps=0.8).
        assert float(jnp.min(scale)) > 0.0
        sel, h, w = _selection_matrices(batch, h, w, k=k)
        w_scaled = wconv * scale[:, None, None, None]
        # (C_out,C_in,kh,kw) -> (kh,kw,C_in,C_out) -> (9, C_in, C_out)
        w_taps = jnp.transpose(w_scaled, (2, 3, 1, 0)).reshape(k * k, c_in, c_out)
        inputs += [jnp.asarray(sel), w_taps,
                   (b * scale).reshape(1, c_out), shift.reshape(1, c_out)]
    lin_w, lin_b = lin_params
    ds = h                                   # spatial size after 4 stride-2 convs
    c_last = conv_params[-1][0].shape[0]
    # PyTorch flatten order is (c, h, w); kernel rows are (n, h, w) with c in
    # lanes, so re-lay the linear weight as wmap[n*ds*ds + p, c] = W[c*ds*ds+p].
    wmap = jnp.tile(lin_w[:, 0].reshape(c_last, ds * ds).T, (batch, 1))
    gather = jnp.asarray(np.kron(np.eye(batch, dtype=np.float32),
                                 np.ones((1, ds * ds), np.float32)))
    inputs += [wmap, gather, lin_b.reshape(1, 1)]
    return tuple(inputs)


# ----------------------------------------------------------------------------
# Parameter construction (deterministic, matching the module's shapes / init)
# ----------------------------------------------------------------------------
def init_params(key, channels, img_size):
    chans = [channels, 16, 32, 64, 128]
    has_bn = [False, True, True, True]
    keys = jax.random.split(key, 2 * 4 + 4 + 1)
    ki = 0
    conv_params = []
    for li in range(4):
        cin, cout = chans[li], chans[li + 1]
        # weights_init_normal: Conv weights ~ N(0, 0.02)
        w = 0.02 * jax.random.normal(keys[ki], (cout, cin, 3, 3), jnp.float32); ki += 1
        b = 0.01 * jax.random.normal(keys[ki], (cout,), jnp.float32); ki += 1
        if has_bn[li]:
            # BatchNorm2d: gamma ~ N(1, 0.02), beta = 0, running stats (0, 1), eps=0.8
            gamma = 1.0 + 0.02 * jax.random.normal(keys[ki], (cout,), jnp.float32); ki += 1
            beta = jnp.zeros((cout,), jnp.float32)
            running_mean = jnp.zeros((cout,), jnp.float32)
            running_var = jnp.ones((cout,), jnp.float32)
            eps = 0.8
            scale = gamma / jnp.sqrt(running_var + eps)
            shift = beta - running_mean * scale
        else:
            scale = jnp.ones((cout,), jnp.float32)
            shift = jnp.zeros((cout,), jnp.float32)
        conv_params.append((w, b, scale, shift))
    ds = img_size // (2 ** 4)
    lin_w = 0.02 * jax.random.normal(keys[ki], (128 * ds * ds, 1), jnp.float32); ki += 1
    lin_b = jnp.zeros((1,), jnp.float32)
    return conv_params, (lin_w, lin_b)


# ----------------------------------------------------------------------------
# Forward pass: one transpose+reshape of the NCHW input, then one Pallas call
# ----------------------------------------------------------------------------
@jax.jit
def discriminator_forward(img, fused_inputs):
    n, c, h, w = img.shape
    x_flat = jnp.transpose(img, (0, 2, 3, 1)).reshape(n * h * w, c)  # NHWC rows
    args = (x_flat,) + tuple(fused_inputs)
    return pl.pallas_call(
        _discriminator_kernel,
        out_shape=jax.ShapeDtypeStruct((n, 1), jnp.float32),
        grid=(1,),
        in_specs=[_full_block(a.shape) for a in args],
        out_specs=pl.BlockSpec((n, 1), lambda i: (0, 0)),
    )(*args)


# ----------------------------------------------------------------------------
# Pure-JAX reference (for a correctness cross-check)
# ----------------------------------------------------------------------------
def _reference_forward(img, conv_params, lin_params):
    x = img
    for (w, b, scale, shift) in conv_params:
        y = jax.lax.conv_general_dilated(
            x, w, window_strides=(2, 2), padding=((1, 1), (1, 1)),
            dimension_numbers=('NCHW', 'OIHW', 'NCHW'))
        y = y + b[None, :, None, None]
        y = jnp.where(y >= 0.0, y, 0.2 * y)
        x = y * scale[None, :, None, None] + shift[None, :, None, None]
    flat = x.reshape(x.shape[0], -1)
    lin_w, lin_b = lin_params
    return jax.nn.sigmoid(flat @ lin_w + lin_b)


if __name__ == "__main__":
    key = jax.random.PRNGKey(0)
    k_img, k_par = jax.random.split(key)

    N, C, IMG = 2, 4, 16          # batch=2, channels=4, img_size=16
    img = jax.random.normal(k_img, (N, C, IMG, IMG), jnp.float32)

    conv_params, lin_params = init_params(k_par, C, IMG)
    fused_inputs = prepare_fused_inputs(conv_params, lin_params, N, IMG)

    out = discriminator_forward(img, fused_inputs)
    out = jax.block_until_ready(out)

    assert out.shape == (N, 1)
    assert bool(jnp.all((out >= 0.0) & (out <= 1.0)))

    ref = jax.jit(_reference_forward)(img, conv_params, lin_params)
    ref = jax.block_until_ready(ref)
    assert bool(jnp.allclose(out, ref, atol=2e-3, rtol=2e-3))

    print("KERNEL_OK")
</pallas_src>

<mosaic_0001>
module attributes {stable_mosaic.version = 11 : i64} {
  func.func @_discriminator_kernel(%arg0: i32, %arg1: memref<512x4xf32, #tpu.memory_space<vmem>>, %arg2: memref<9x128x512xf32, #tpu.memory_space<vmem>>, %arg3: memref<9x4x16xf32, #tpu.memory_space<vmem>>, %arg4: memref<1x16xf32, #tpu.memory_space<vmem>>, %arg5: memref<1x16xf32, #tpu.memory_space<vmem>>, %arg6: memref<9x32x128xf32, #tpu.memory_space<vmem>>, %arg7: memref<9x16x32xf32, #tpu.memory_space<vmem>>, %arg8: memref<1x32xf32, #tpu.memory_space<vmem>>, %arg9: memref<1x32xf32, #tpu.memory_space<vmem>>, %arg10: memref<9x8x32xf32, #tpu.memory_space<vmem>>, %arg11: memref<9x32x64xf32, #tpu.memory_space<vmem>>, %arg12: memref<1x64xf32, #tpu.memory_space<vmem>>, %arg13: memref<1x64xf32, #tpu.memory_space<vmem>>, %arg14: memref<9x2x8xf32, #tpu.memory_space<vmem>>, %arg15: memref<9x64x128xf32, #tpu.memory_space<vmem>>, %arg16: memref<1x128xf32, #tpu.memory_space<vmem>>, %arg17: memref<1x128xf32, #tpu.memory_space<vmem>>, %arg18: memref<2x128xf32, #tpu.memory_space<vmem>>, %arg19: memref<2x2xf32, #tpu.memory_space<vmem>>, %arg20: memref<1x1xf32, #tpu.memory_space<vmem>>, %arg21: memref<2x1xf32, #tpu.memory_space<vmem>>) attributes {dimension_semantics = [#tpu.dimension_semantics<arbitrary>], iteration_bounds = array<i64: 1>, scalar_prefetch = 0 : i64, scratch_operands = 0 : i64, tpu.core_type = #tpu.core_type<tc>, window_params = [{pipeline_mode = #tpu.pipeline_mode<synchronous>, transform_indices = @transform_0, window_bounds = array<i64: 512, 4>}, {pipeline_mode = #tpu.pipeline_mode<synchronous>, transform_indices = @transform_1, window_bounds = array<i64: 9, 128, 512>}, {pipeline_mode = #tpu.pipeline_mode<synchronous>, transform_indices = @transform_2, window_bounds = array<i64: 9, 4, 16>}, {pipeline_mode = #tpu.pipeline_mode<synchronous>, transform_indices = @transform_3, window_bounds = array<i64: 1, 16>}, {pipeline_mode = #tpu.pipeline_mode<synchronous>, transform_indices = @transform_4, window_bounds = array<i64: 1, 16>}, {pipeline_mode = #tpu.pipeline_mode<synchronous>, transform_indices = @transform_5, window_bounds = array<i64: 9, 32, 128>}, {pipeline_mode = #tpu.pipeline_mode<synchronous>, transform_indices = @transform_6, window_bounds = array<i64: 9, 16, 32>}, {pipeline_mode = #tpu.pipeline_mode<synchronous>, transform_indices = @transform_7, window_bounds = array<i64: 1, 32>}, {pipeline_mode = #tpu.pipeline_mode<synchronous>, transform_indices = @transform_8, window_bounds = array<i64: 1, 32>}, {pipeline_mode = #tpu.pipeline_mode<synchronous>, transform_indices = @transform_9, window_bounds = array<i64: 9, 8, 32>}, {pipeline_mode = #tpu.pipeline_mode<synchronous>, transform_indices = @transform_10, window_bounds = array<i64: 9, 32, 64>}, {pipeline_mode = #tpu.pipeline_mode<synchronous>, transform_indices = @transform_11, window_bounds = array<i64: 1, 64>}, {pipeline_mode = #tpu.pipeline_mode<synchronous>, transform_indices = @transform_12, window_bounds = array<i64: 1, 64>}, {pipeline_mode = #tpu.pipeline_mode<synchronous>, transform_indices = @transform_13, window_bounds = array<i64: 9, 2, 8>}, {pipeline_mode = #tpu.pipeline_mode<synchronous>, transform_indices = @transform_14, window_bounds = array<i64: 9, 64, 128>}, {pipeline_mode = #tpu.pipeline_mode<synchronous>, transform_indices = @transform_15, window_bounds = array<i64: 1, 128>}, {pipeline_mode = #tpu.pipeline_mode<synchronous>, transform_indices = @transform_16, window_bounds = array<i64: 1, 128>}, {pipeline_mode = #tpu.pipeline_mode<synchronous>, transform_indices = @transform_17, window_bounds = array<i64: 2, 128>}, {pipeline_mode = #tpu.pipeline_mode<synchronous>, transform_indices = @transform_18, window_bounds = array<i64: 2, 2>}, {pipeline_mode = #tpu.pipeline_mode<synchronous>, transform_indices = @transform_19, window_bounds = array<i64: 1, 1>}, {pipeline_mode = #tpu.pipeline_mode<synchronous>, transform_indices = @transform_20, window_bounds = array<i64: 2, 1>}]} {
    %c0 = arith.constant 0 : index
    %c0_0 = arith.constant 0 : index
    %0 = vector.load %arg1[%c0, %c0_0] : memref<512x4xf32, #tpu.memory_space<vmem>>, vector<512x4xf32>
    %c0_1 = arith.constant 0 : index
    %c0_2 = arith.constant 0 : index
    %c0_3 = arith.constant 0 : index
    %1 = vector.load %arg2[%c0_1, %c0_2, %c0_3] : memref<9x128x512xf32, #tpu.memory_space<vmem>>, vector<1x128x512xf32>
    %2 = vector.shape_cast %1 : vector<1x128x512xf32> to vector<128x512xf32>
    %cst = arith.constant dense<0.000000e+00> : vector<128x4xf32>
    %3 = tpu.matmul %2, %0, %cst {dimension_numbers = #tpu.dot_dimension_numbers<[1], [0], [0], [1], [0, 0, 1, 1], [], []>} : vector<128x512xf32>, vector<512x4xf32>, vector<128x4xf32> -> vector<128x4xf32>
    %c0_4 = arith.constant 0 : index
    %c0_5 = arith.constant 0 : index
    %c0_6 = arith.constant 0 : index
    %4 = vector.load %arg3[%c0_4, %c0_5, %c0_6] : memref<9x4x16xf32, #tpu.memory_space<vmem>>, vector<1x4x16xf32>
    %5 = vector.shape_cast %4 : vector<1x4x16xf32> to vector<4x16xf32>
    %cst_7 = arith.constant dense<0.000000e+00> : vector<128x16xf32>
    %6 = tpu.matmul %3, %5, %cst_7 {dimension_numbers = #tpu.dot_dimension_numbers<[1], [0], [0], [1], [0, 0, 1, 1], [], []>} : vector<128x4xf32>, vector<4x16xf32>, vector<128x16xf32> -> vector<128x16xf32>
    %c1 = arith.constant 1 : index
    %c0_8 = arith.constant 0 : index
    %c0_9 = arith.constant 0 : index
    %7 = vector.load %arg2[%c1, %c0_8, %c0_9] : memref<9x128x512xf32, #tpu.memory_space<vmem>>, vector<1x128x512xf32>
    %8 = vector.shape_cast %7 : vector<1x128x512xf32> to vector<128x512xf32>
    %cst_10 = arith.constant dense<0.000000e+00> : vector<128x4xf32>
    %9 = tpu.matmul %8, %0, %cst_10 {dimension_numbers = #tpu.dot_dimension_numbers<[1], [0], [0], [1], [0, 0, 1, 1], [], []>} : vector<128x512xf32>, vector<512x4xf32>, vector<128x4xf32> -> vector<128x4xf32>
    %c1_11 = arith.constant 1 : index
    %c0_12 = arith.constant 0 : index
    %c0_13 = arith.constant 0 : index
    %10 = vector.load %arg3[%c1_11, %c0_12, %c0_13] : memref<9x4x16xf32, #tpu.memory_space<vmem>>, vector<1x4x16xf32>
    %11 = vector.shape_cast %10 : vector<1x4x16xf32> to vector<4x16xf32>
    %cst_14 = arith.constant dense<0.000000e+00> : vector<128x16xf32>
    %12 = tpu.matmul %9, %11, %cst_14 {dimension_numbers = #tpu.dot_dimension_numbers<[1], [0], [0], [1], [0, 0, 1, 1], [], []>} : vector<128x4xf32>, vector<4x16xf32>, vector<128x16xf32> -> vector<128x16xf32>
    %13 = arith.addf %6, %12 : vector<128x16xf32>
    %c2 = arith.constant 2 : index
    %c0_15 = arith.constant 0 : index
    %c0_16 = arith.constant 0 : index
    %14 = vector.load %arg2[%c2, %c0_15, %c0_16] : memref<9x128x512xf32, #tpu.memory_space<vmem>>, vector<1x128x512xf32>
    %15 = vector.shape_cast %14 : vector<1x128x512xf32> to vector<128x512xf32>
    %cst_17 = arith.constant dense<0.000000e+00> : vector<128x4xf32>
    %16 = tpu.matmul %15, %0, %cst_17 {dimension_numbers = #tpu.dot_dimension_numbers<[1], [0], [0], [1], [0, 0, 1, 1], [], []>} : vector<128x512xf32>, vector<512x4xf32>, vector<128x4xf32> -> vector<128x4xf32>
    %c2_18 = arith.constant 2 : index
    %c0_19 = arith.constant 0 : index
    %c0_20 = arith.constant 0 : index
    %17 = vector.load %arg3[%c2_18, %c0_19, %c0_20] : memref<9x4x16xf32, #tpu.memory_space<vmem>>, vector<1x4x16xf32>
    %18 = vector.shape_cast %17 : vector<1x4x16xf32> to vector<4x16xf32>
    %cst_21 = arith.constant dense<0.000000e+00> : vector<128x16xf32>
    %19 = tpu.matmul %16, %18, %cst_21 {dimension_numbers = #tpu.dot_dimension_numbers<[1], [0], [0], [1], [0, 0, 1, 1], [], []>} : vector<128x4xf32>, vector<4x16xf32>, vector<128x16xf32> -> vector<128x16xf32>
    %20 = arith.addf %13, %19 : vector<128x16xf32>
    %c3 = arith.constant 3 : index
    %c0_22 = arith.constant 0 : index
    %c0_23 = arith.constant 0 : index
    %21 = vector.load %arg2[%c3, %c0_22, %c0_23] : memref<9x128x512xf32, #tpu.memory_space<vmem>>, vector<1x128x512xf32>
    %22 = vector.shape_cast %21 : vector<1x128x512xf32> to vector<128x512xf32>
    %cst_24 = arith.constant dense<0.000000e+00> : vector<128x4xf32>
    %23 = tpu.matmul %22, %0, %cst_24 {dimension_numbers = #tpu.dot_dimension_numbers<[1], [0], [0], [1], [0, 0, 1, 1], [], []>} : vector<128x512xf32>, vector<512x4xf32>, vector<128x4xf32> -> vector<128x4xf32>
    %c3_25 = arith.constant 3 : index
    %c0_26 = arith.constant 0 : index
    %c0_27 = arith.constant 0 : index
    %24 = vector.load %arg3[%c3_25, %c0_26, %c0_27] : memref<9x4x16xf32, #tpu.memory_space<vmem>>, vector<1x4x16xf32>
    %25 = vector.shape_cast %24 : vector<1x4x16xf32> to vector<4x16xf32>
    %cst_28 = arith.constant dense<0.000000e+00> : vector<128x16xf32>
    %26 = tpu.matmul %23, %25, %cst_28 {dimension_numbers = #tpu.dot_dimension_numbers<[1], [0], [0], [1], [0, 0, 1, 1], [], []>} : vector<128x4xf32>, vector<4x16xf32>, vector<128x16xf32> -> vector<128x16xf32>
    %27 = arith.addf %20, %26 : vector<128x16xf32>
    %c4 = arith.constant 4 : index
    %c0_29 = arith.constant 0 : index
    %c0_30 = arith.constant 0 : index
    %28 = vector.load %arg2[%c4, %c0_29, %c0_30] : memref<9x128x512xf32, #tpu.memory_space<vmem>>, vector<1x128x512xf32>
    %29 = vector.shape_cast %28 : vector<1x128x512xf32> to vector<128x512xf32>
    %cst_31 = arith.constant dense<0.000000e+00> : vector<128x4xf32>
    %30 = tpu.matmul %29, %0, %cst_31 {dimension_numbers = #tpu.dot_dimension_numbers<[1], [0], [0], [1], [0, 0, 1, 1], [], []>} : vector<128x512xf32>, vector<512x4xf32>, vector<128x4xf32> -> vector<128x4xf32>
    %c4_32 = arith.constant 4 : index
    %c0_33 = arith.constant 0 : index
    %c0_34 = arith.constant 0 : index
    %31 = vector.load %arg3[%c4_32, %c0_33, %c0_34] : memref<9x4x16xf32, #tpu.memory_space<vmem>>, vector<1x4x16xf32>
    %32 = vector.shape_cast %31 : vector<1x4x16xf32> to vector<4x16xf32>
    %cst_35 = arith.constant dense<0.000000e+00> : vector<128x16xf32>
    %33 = tpu.matmul %30, %32, %cst_35 {dimension_numbers = #tpu.dot_dimension_numbers<[1], [0], [0], [1], [0, 0, 1, 1], [], []>} : vector<128x4xf32>, vector<4x16xf32>, vector<128x16xf32> -> vector<128x16xf32>
    %34 = arith.addf %27, %33 : vector<128x16xf32>
    %c5 = arith.constant 5 : index
    %c0_36 = arith.constant 0 : index
    %c0_37 = arith.constant 0 : index
    %35 = vector.load %arg2[%c5, %c0_36, %c0_37] : memref<9x128x512xf32, #tpu.memory_space<vmem>>, vector<1x128x512xf32>
    %36 = vector.shape_cast %35 : vector<1x128x512xf32> to vector<128x512xf32>
    %cst_38 = arith.constant dense<0.000000e+00> : vector<128x4xf32>
    %37 = tpu.matmul %36, %0, %cst_38 {dimension_numbers = #tpu.dot_dimension_numbers<[1], [0], [0], [1], [0, 0, 1, 1], [], []>} : vector<128x512xf32>, vector<512x4xf32>, vector<128x4xf32> -> vector<128x4xf32>
    %c5_39 = arith.constant 5 : index
    %c0_40 = arith.constant 0 : index
    %c0_41 = arith.constant 0 : index
    %38 = vector.load %arg3[%c5_39, %c0_40, %c0_41] : memref<9x4x16xf32, #tpu.memory_space<vmem>>, vector<1x4x16xf32>
    %39 = vector.shape_cast %38 : vector<1x4x16xf32> to vector<4x16xf32>
    %cst_42 = arith.constant dense<0.000000e+00> : vector<128x16xf32>
    %40 = tpu.matmul %37, %39, %cst_42 {dimension_numbers = #tpu.dot_dimension_numbers<[1], [0], [0], [1], [0, 0, 1, 1], [], []>} : vector<128x4xf32>, vector<4x16xf32>, vector<128x16xf32> -> vector<128x16xf32>
    %41 = arith.addf %34, %40 : vector<128x16xf32>
    %c6 = arith.constant 6 : index
    %c0_43 = arith.constant 0 : index
    %c0_44 = arith.constant 0 : index
    %42 = vector.load %arg2[%c6, %c0_43, %c0_44] : memref<9x128x512xf32, #tpu.memory_space<vmem>>, vector<1x128x512xf32>
    %43 = vector.shape_cast %42 : vector<1x128x512xf32> to vector<128x512xf32>
    %cst_45 = arith.constant dense<0.000000e+00> : vector<128x4xf32>
    %44 = tpu.matmul %43, %0, %cst_45 {dimension_numbers = #tpu.dot_dimension_numbers<[1], [0], [0], [1], [0, 0, 1, 1], [], []>} : vector<128x512xf32>, vector<512x4xf32>, vector<128x4xf32> -> vector<128x4xf32>
    %c6_46 = arith.constant 6 : index
    %c0_47 = arith.constant 0 : index
    %c0_48 = arith.constant 0 : index
    %45 = vector.load %arg3[%c6_46, %c0_47, %c0_48] : memref<9x4x16xf32, #tpu.memory_space<vmem>>, vector<1x4x16xf32>
    %46 = vector.shape_cast %45 : vector<1x4x16xf32> to vector<4x16xf32>
    %cst_49 = arith.constant dense<0.000000e+00> : vector<128x16xf32>
    %47 = tpu.matmul %44, %46, %cst_49 {dimension_numbers = #tpu.dot_dimension_numbers<[1], [0], [0], [1], [0, 0, 1, 1], [], []>} : vector<128x4xf32>, vector<4x16xf32>, vector<128x16xf32> -> vector<128x16xf32>
    %48 = arith.addf %41, %47 : vector<128x16xf32>
    %c7 = arith.constant 7 : index
    %c0_50 = arith.constant 0 : index
    %c0_51 = arith.constant 0 : index
    %49 = vector.load %arg2[%c7, %c0_50, %c0_51] : memref<9x128x512xf32, #tpu.memory_space<vmem>>, vector<1x128x512xf32>
    %50 = vector.shape_cast %49 : vector<1x128x512xf32> to vector<128x512xf32>
    %cst_52 = arith.constant dense<0.000000e+00> : vector<128x4xf32>
    %51 = tpu.matmul %50, %0, %cst_52 {dimension_numbers = #tpu.dot_dimension_numbers<[1], [0], [0], [1], [0, 0, 1, 1], [], []>} : vector<128x512xf32>, vector<512x4xf32>, vector<128x4xf32> -> vector<128x4xf32>
    %c7_53 = arith.constant 7 : index
    %c0_54 = arith.constant 0 : index
    %c0_55 = arith.constant 0 : index
    %52 = vector.load %arg3[%c7_53, %c0_54, %c0_55] : memref<9x4x16xf32, #tpu.memory_space<vmem>>, vector<1x4x16xf32>
    %53 = vector.shape_cast %52 : vector<1x4x16xf32> to vector<4x16xf32>
    %cst_56 = arith.constant dense<0.000000e+00> : vector<128x16xf32>
    %54 = tpu.matmul %51, %53, %cst_56 {dimension_numbers = #tpu.dot_dimension_numbers<[1], [0], [0], [1], [0, 0, 1, 1], [], []>} : vector<128x4xf32>, vector<4x16xf32>, vector<128x16xf32> -> vector<128x16xf32>
    %55 = arith.addf %48, %54 : vector<128x16xf32>
    %c8 = arith.constant 8 : index
    %c0_57 = arith.constant 0 : index
    %c0_58 = arith.constant 0 : index
    %56 = vector.load %arg2[%c8, %c0_57, %c0_58] : memref<9x128x512xf32, #tpu.memory_space<vmem>>, vector<1x128x512xf32>
    %57 = vector.shape_cast %56 : vector<1x128x512xf32> to vector<128x512xf32>
    %cst_59 = arith.constant dense<0.000000e+00> : vector<128x4xf32>
    %58 = tpu.matmul %57, %0, %cst_59 {dimension_numbers = #tpu.dot_dimension_numbers<[1], [0], [0], [1], [0, 0, 1, 1], [], []>} : vector<128x512xf32>, vector<512x4xf32>, vector<128x4xf32> -> vector<128x4xf32>
    %c8_60 = arith.constant 8 : index
    %c0_61 = arith.constant 0 : index
    %c0_62 = arith.constant 0 : index
    %59 = vector.load %arg3[%c8_60, %c0_61, %c0_62] : memref<9x4x16xf32, #tpu.memory_space<vmem>>, vector<1x4x16xf32>
    %60 = vector.shape_cast %59 : vector<1x4x16xf32> to vector<4x16xf32>
    %cst_63 = arith.constant dense<0.000000e+00> : vector<128x16xf32>
    %61 = tpu.matmul %58, %60, %cst_63 {dimension_numbers = #tpu.dot_dimension_numbers<[1], [0], [0], [1], [0, 0, 1, 1], [], []>} : vector<128x4xf32>, vector<4x16xf32>, vector<128x16xf32> -> vector<128x16xf32>
    %62 = arith.addf %55, %61 : vector<128x16xf32>
    %c0_64 = arith.constant 0 : index
    %c0_65 = arith.constant 0 : index
    %63 = vector.load %arg4[%c0_64, %c0_65] : memref<1x16xf32, #tpu.memory_space<vmem>>, vector<1x16xf32>
    %64 = vector.broadcast %63 : vector<1x16xf32> to vector<128x16xf32>
    %65 = arith.addf %62, %64 : vector<128x16xf32>
    %cst_66 = arith.constant 0.000000e+00 : f32
    %66 = vector.broadcast %cst_66 : f32 to vector<128x16xf32>
    %67 = arith.cmpf oge, %65, %66 : vector<128x16xf32>
    %cst_67 = arith.constant 2.000000e-01 : f32
    %68 = vector.broadcast %cst_67 : f32 to vector<128x16xf32>
    %69 = arith.mulf %68, %65 : vector<128x16xf32>
    %70 = arith.select %67, %65, %69 : vector<128x16xi1>, vector<128x16xf32>
    %c0_68 = arith.constant 0 : index
    %c0_69 = arith.constant 0 : index
    %71 = vector.load %arg5[%c0_68, %c0_69] : memref<1x16xf32, #tpu.memory_space<vmem>>, vector<1x16xf32>
    %72 = vector.broadcast %71 : vector<1x16xf32> to vector<128x16xf32>
    %73 = arith.addf %70, %72 : vector<128x16xf32>
    %c0_70 = arith.constant 0 : index
    %c0_71 = arith.constant 0 : index
    %c0_72 = arith.constant 0 : index
    %74 = vector.load %arg6[%c0_70, %c0_71, %c0_72] : memref<9x32x128xf32, #tpu.memory_space<vmem>>, vector<1x32x128xf32>
    %75 = vector.shape_cast %74 : vector<1x32x128xf32> to vector<32x128xf32>
    %cst_73 = arith.constant dense<0.000000e+00> : vector<32x16xf32>
    %76 = tpu.matmul %75, %73, %cst_73 {dimension_numbers = #tpu.dot_dimension_numbers<[1], [0], [0], [1], [0, 0, 1, 1], [], []>} : vector<32x128xf32>, vector<128x16xf32>, vector<32x16xf32> -> vector<32x16xf32>
    %c0_74 = arith.constant 0 : index
    %c0_75 = arith.constant 0 : index
    %c0_76 = arith.constant 0 : index
    %77 = vector.load %arg7[%c0_74, %c0_75, %c0_76] : memref<9x16x32xf32, #tpu.memory_space<vmem>>, vector<1x16x32xf32>
    %78 = vector.shape_cast %77 : vector<1x16x32xf32> to vector<16x32xf32>
    %cst_77 = arith.constant dense<0.000000e+00> : vector<32x32xf32>
    %79 = tpu.matmul %76, %78, %cst_77 {dimension_numbers = #tpu.dot_dimension_numbers<[1], [0], [0], [1], [0, 0, 1, 1], [], []>} : vector<32x16xf32>, vector<16x32xf32>, vector<32x32xf32> -> vector<32x32xf32>
    %c1_78 = arith.constant 1 : index
    %c0_79 = arith.constant 0 : index
    %c0_80 = arith.constant 0 : index
    %80 = vector.load %arg6[%c1_78, %c0_79, %c0_80] : memref<9x32x128xf32, #tpu.memory_space<vmem>>, vector<1x32x128xf32>
    %81 = vector.shape_cast %80 : vector<1x32x128xf32> to vector<32x128xf32>
    %cst_81 = arith.constant dense<0.000000e+00> : vector<32x16xf32>
    %82 = tpu.matmul %81, %73, %cst_81 {dimension_numbers = #tpu.dot_dimension_numbers<[1], [0], [0], [1], [0, 0, 1, 1], [], []>} : vector<32x128xf32>, vector<128x16xf32>, vector<32x16xf32> -> vector<32x16xf32>
    %c1_82 = arith.constant 1 : index
    %c0_83 = arith.constant 0 : index
    %c0_84 = arith.constant 0 : index
    %83 = vector.load %arg7[%c1_82, %c0_83, %c0_84] : memref<9x16x32xf32, #tpu.memory_space<vmem>>, vector<1x16x32xf32>
    %84 = vector.shape_cast %83 : vector<1x16x32xf32> to vector<16x32xf32>
    %cst_85 = arith.constant dense<0.000000e+00> : vector<32x32xf32>
    %85 = tpu.matmul %82, %84, %cst_85 {dimension_numbers = #tpu.dot_dimension_numbers<[1], [0], [0], [1], [0, 0, 1, 1], [], []>} : vector<32x16xf32>, vector<16x32xf32>, vector<32x32xf32> -> vector<32x32xf32>
    %86 = arith.addf %79, %85 : vector<32x32xf32>
    %c2_86 = arith.constant 2 : index
    %c0_87 = arith.constant 0 : index
    %c0_88 = arith.constant 0 : index
    %87 = vector.load %arg6[%c2_86, %c0_87, %c0_88] : memref<9x32x128xf32, #tpu.memory_space<vmem>>, vector<1x32x128xf32>
    %88 = vector.shape_cast %87 : vector<1x32x128xf32> to vector<32x128xf32>
    %cst_89 = arith.constant dense<0.000000e+00> : vector<32x16xf32>
    %89 = tpu.matmul %88, %73, %cst_89 {dimension_numbers = #tpu.dot_dimension_numbers<[1], [0], [0], [1], [0, 0, 1, 1], [], []>} : vector<32x128xf32>, vector<128x16xf32>, vector<32x16xf32> -> vector<32x16xf32>
    %c2_90 = arith.constant 2 : index
    %c0_91 = arith.constant 0 : index
    %c0_92 = arith.constant 0 : index
    %90 = vector.load %arg7[%c2_90, %c0_91, %c0_92] : memref<9x16x32xf32, #tpu.memory_space<vmem>>, vector<1x16x32xf32>
    %91 = vector.shape_cast %90 : vector<1x16x32xf32> to vector<16x32xf32>
    %cst_93 = arith.constant dense<0.000000e+00> : vector<32x32xf32>
    %92 = tpu.matmul %89, %91, %cst_93 {dimension_numbers = #tpu.dot_dimension_numbers<[1], [0], [0], [1], [0, 0, 1, 1], [], []>} : vector<32x16xf32>, vector<16x32xf32>, vector<32x32xf32> -> vector<32x32xf32>
    %93 = arith.addf %86, %92 : vector<32x32xf32>
    %c3_94 = arith.constant 3 : index
    %c0_95 = arith.constant 0 : index
    %c0_96 = arith.constant 0 : index
    %94 = vector.load %arg6[%c3_94, %c0_95, %c0_96] : memref<9x32x128xf32, #tpu.memory_space<vmem>>, vector<1x32x128xf32>
    %95 = vector.shape_cast %94 : vector<1x32x128xf32> to vector<32x128xf32>
    %cst_97 = arith.constant dense<0.000000e+00> : vector<32x16xf32>
    %96 = tpu.matmul %95, %73, %cst_97 {dimension_numbers = #tpu.dot_dimension_numbers<[1], [0], [0], [1], [0, 0, 1, 1], [], []>} : vector<32x128xf32>, vector<128x16xf32>, vector<32x16xf32> -> vector<32x16xf32>
    %c3_98 = arith.constant 3 : index
    %c0_99 = arith.constant 0 : index
    %c0_100 = arith.constant 0 : index
    %97 = vector.load %arg7[%c3_98, %c0_99, %c0_100] : memref<9x16x32xf32, #tpu.memory_space<vmem>>, vector<1x16x32xf32>
    %98 = vector.shape_cast %97 : vector<1x16x32xf32> to vector<16x32xf32>
    %cst_101 = arith.constant dense<0.000000e+00> : vector<32x32xf32>
    %99 = tpu.matmul %96, %98, %cst_101 {dimension_numbers = #tpu.dot_dimension_numbers<[1], [0], [0], [1], [0, 0, 1, 1], [], []>} : vector<32x16xf32>, vector<16x32xf32>, vector<32x32xf32> -> vector<32x32xf32>
    %100 = arith.addf %93, %99 : vector<32x32xf32>
    %c4_102 = arith.constant 4 : index
    %c0_103 = arith.constant 0 : index
    %c0_104 = arith.constant 0 : index
    %101 = vector.load %arg6[%c4_102, %c0_103, %c0_104] : memref<9x32x128xf32, #tpu.memory_space<vmem>>, vector<1x32x128xf32>
    %102 = vector.shape_cast %101 : vector<1x32x128xf32> to vector<32x128xf32>
    %cst_105 = arith.constant dense<0.000000e+00> : vector<32x16xf32>
    %103 = tpu.matmul %102, %73, %cst_105 {dimension_numbers = #tpu.dot_dimension_numbers<[1], [0], [0], [1], [0, 0, 1, 1], [], []>} : vector<32x128xf32>, vector<128x16xf32>, vector<32x16xf32> -> vector<32x16xf32>
    %c4_106 = arith.constant 4 : index
    %c0_107 = arith.constant 0 : index
    %c0_108 = arith.constant 0 : index
    %104 = vector.load %arg7[%c4_106, %c0_107, %c0_108] : memref<9x16x32xf32, #tpu.memory_space<vmem>>, vector<1x16x32xf32>
    %105 = vector.shape_cast %104 : vector<1x16x32xf32> to vector<16x32xf32>
    %cst_109 = arith.constant dense<0.000000e+00> : vector<32x32xf32>
    %106 = tpu.matmul %103, %105, %cst_109 {dimension_numbers = #tpu.dot_dimension_numbers<[1], [0], [0], [1], [0, 0, 1, 1], [], []>} : vector<32x16xf32>, vector<16x32xf32>, vector<32x32xf32> -> vector<32x32xf32>
    %107 = arith.addf %100, %106 : vector<32x32xf32>
    %c5_110 = arith.constant 5 : index
    %c0_111 = arith.constant 0 : index
    %c0_112 = arith.constant 0 : index
    %108 = vector.load %arg6[%c5_110, %c0_111, %c0_112] : memref<9x32x128xf32, #tpu.memory_space<vmem>>, vector<1x32x128xf32>
    %109 = vector.shape_cast %108 : vector<1x32x128xf32> to vector<32x128xf32>
    %cst_113 = arith.constant dense<0.000000e+00> : vector<32x16xf32>
    %110 = tpu.matmul %109, %73, %cst_113 {dimension_numbers = #tpu.dot_dimension_numbers<[1], [0], [0], [1], [0, 0, 1, 1], [], []>} : vector<32x128xf32>, vector<128x16xf32>, vector<32x16xf32> -> vector<32x16xf32>
    %c5_114 = arith.constant 5 : index
    %c0_115 = arith.constant 0 : index
    %c0_116 = arith.constant 0 : index
    %111 = vector.load %arg7[%c5_114, %c0_115, %c0_116] : memref<9x16x32xf32, #tpu.memory_space<vmem>>, vector<1x16x32xf32>
    %112 = vector.shape_cast %111 : vector<1x16x32xf32> to vector<16x32xf32>
    %cst_117 = arith.constant dense<0.000000e+00> : vector<32x32xf32>
    %113 = tpu.matmul %110, %112, %cst_117 {dimension_numbers = #tpu.dot_dimension_numbers<[1], [0], [0], [1], [0, 0, 1, 1], [], []>} : vector<32x16xf32>, vector<16x32xf32>, vector<32x32xf32> -> vector<32x32xf32>
    %114 = arith.addf %107, %113 : vector<32x32xf32>
    %c6_118 = arith.constant 6 : index
    %c0_119 = arith.constant 0 : index
    %c0_120 = arith.constant 0 : index
    %115 = vector.load %arg6[%c6_118, %c0_119, %c0_120] : memref<9x32x128xf32, #tpu.memory_space<vmem>>, vector<1x32x128xf32>
    %116 = vector.shape_cast %115 : vector<1x32x128xf32> to vector<32x128xf32>
    %cst_121 = arith.constant dense<0.000000e+00> : vector<32x16xf32>
    %117 = tpu.matmul %116, %73, %cst_121 {dimension_numbers = #tpu.dot_dimension_numbers<[1], [0], [0], [1], [0, 0, 1, 1], [], []>} : vector<32x128xf32>, vector<128x16xf32>, vector<32x16xf32> -> vector<32x16xf32>
    %c6_122 = arith.constant 6 : index
    %c0_123 = arith.constant 0 : index
    %c0_124 = arith.constant 0 : index
    %118 = vector.load %arg7[%c6_122, %c0_123, %c0_124] : memref<9x16x32xf32, #tpu.memory_space<vmem>>, vector<1x16x32xf32>
    %119 = vector.shape_cast %118 : vector<1x16x32xf32> to vector<16x32xf32>
    %cst_125 = arith.constant dense<0.000000e+00> : vector<32x32xf32>
    %120 = tpu.matmul %117, %119, %cst_125 {dimension_numbers = #tpu.dot_dimension_numbers<[1], [0], [0], [1], [0, 0, 1, 1], [], []>} : vector<32x16xf32>, vector<16x32xf32>, vector<32x32xf32> -> vector<32x32xf32>
    %121 = arith.addf %114, %120 : vector<32x32xf32>
    %c7_126 = arith.constant 7 : index
    %c0_127 = arith.constant 0 : index
    %c0_128 = arith.constant 0 : index
    %122 = vector.load %arg6[%c7_126, %c0_127, %c0_128] : memref<9x32x128xf32, #tpu.memory_space<vmem>>, vector<1x32x128xf32>
    %123 = vector.shape_cast %122 : vector<1x32x128xf32> to vector<32x128xf32>
    %cst_129 = arith.constant dense<0.000000e+00> : vector<32x16xf32>
    %124 = tpu.matmul %123, %73, %cst_129 {dimension_numbers = #tpu.dot_dimension_numbers<[1], [0], [0], [1], [0, 0, 1, 1], [], []>} : vector<32x128xf32>, vector<128x16xf32>, vector<32x16xf32> -> vector<32x16xf32>
    %c7_130 = arith.constant 7 : index
    %c0_131 = arith.constant 0 : index
    %c0_132 = arith.constant 0 : index
    %125 = vector.load %arg7[%c7_130, %c0_131, %c0_132] : memref<9x16x32xf32, #tpu.memory_space<vmem>>, vector<1x16x32xf32>
    %126 = vector.shape_cast %125 : vector<1x16x32xf32> to vector<16x32xf32>
    %cst_133 = arith.constant dense<0.000000e+00> : vector<32x32xf32>
    %127 = tpu.matmul %124, %126, %cst_133 {dimension_numbers = #tpu.dot_dimension_numbers<[1], [0], [0], [1], [0, 0, 1, 1], [], []>} : vector<32x16xf32>, vector<16x32xf32>, vector<32x32xf32> -> vector<32x32xf32>
    %128 = arith.addf %121, %127 : vector<32x32xf32>
    %c8_134 = arith.constant 8 : index
    %c0_135 = arith.constant 0 : index
    %c0_136 = arith.constant 0 : index
    %129 = vector.load %arg6[%c8_134, %c0_135, %c0_136] : memref<9x32x128xf32, #tpu.memory_space<vmem>>, vector<1x32x128xf32>
    %130 = vector.shape_cast %129 : vector<1x32x128xf32> to vector<32x128xf32>
    %cst_137 = arith.constant dense<0.000000e+00> : vector<32x16xf32>
    %131 = tpu.matmul %130, %73, %cst_137 {dimension_numbers = #tpu.dot_dimension_numbers<[1], [0], [0], [1], [0, 0, 1, 1], [], []>} : vector<32x128xf32>, vector<128x16xf32>, vector<32x16xf32> -> vector<32x16xf32>
    %c8_138 = arith.constant 8 : index
    %c0_139 = arith.constant 0 : index
    %c0_140 = arith.constant 0 : index
    %132 = vector.load %arg7[%c8_138, %c0_139, %c0_140] : memref<9x16x32xf32, #tpu.memory_space<vmem>>, vector<1x16x32xf32>
    %133 = vector.shape_cast %132 : vector<1x16x32xf32> to vector<16x32xf32>
    %cst_141 = arith.constant dense<0.000000e+00> : vector<32x32xf32>
    %134 = tpu.matmul %131, %133, %cst_141 {dimension_numbers = #tpu.dot_dimension_numbers<[1], [0], [0], [1], [0, 0, 1, 1], [], []>} : vector<32x16xf32>, vector<16x32xf32>, vector<32x32xf32> -> vector<32x32xf32>
    %135 = arith.addf %128, %134 : vector<32x32xf32>
    %c0_142 = arith.constant 0 : index
    %c0_143 = arith.constant 0 : index
    %136 = vector.load %arg8[%c0_142, %c0_143] : memref<1x32xf32, #tpu.memory_space<vmem>>, vector<1x32xf32>
    %137 = vector.broadcast %136 : vector<1x32xf32> to vector<32x32xf32>
    %138 = arith.addf %135, %137 : vector<32x32xf32>
    %cst_144 = arith.constant 0.000000e+00 : f32
    %139 = vector.broadcast %cst_144 : f32 to vector<32x32xf32>
    %140 = arith.cmpf oge, %138, %139 : vector<32x32xf32>
    %cst_145 = arith.constant 2.000000e-01 : f32
    %141 = vector.broadcast %cst_145 : f32 to vector<32x32xf32>
    %142 = arith.mulf %141, %138 : vector<32x32xf32>
    %143 = arith.select %140, %138, %142 : vector<32x32xi1>, vector<32x32xf32>
    %c0_146 = arith.constant 0 : index
    %c0_147 = arith.constant 0 : index
    %144 = vector.load %arg9[%c0_146, %c0_147] : memref<1x32xf32, #tpu.memory_space<vmem>>, vector<1x32xf32>
    %145 = vector.broadcast %144 : vector<1x32xf32> to vector<32x32xf32>
    %146 = arith.addf %143, %145 : vector<32x32xf32>
    %c0_148 = arith.constant 0 : index
    %c0_149 = arith.constant 0 : index
    %c0_150 = arith.constant 0 : index
    %147 = vector.load %arg10[%c0_148, %c0_149, %c0_150] : memref<9x8x32xf32, #tpu.memory_space<vmem>>, vector<1x8x32xf32>
    %148 = vector.shape_cast %147 : vector<1x8x32xf32> to vector<8x32xf32>
    %cst_151 = arith.constant dense<0.000000e+00> : vector<8x32xf32>
    %149 = tpu.matmul %148, %146, %cst_151 {dimension_numbers = #tpu.dot_dimension_numbers<[1], [0], [0], [1], [0, 0, 1, 1], [], []>} : vector<8x32xf32>, vector<32x32xf32>, vector<8x32xf32> -> vector<8x32xf32>
    %c0_152 = arith.constant 0 : index
    %c0_153 = arith.constant 0 : index
    %c0_154 = arith.constant 0 : index
    %150 = vector.load %arg11[%c0_152, %c0_153, %c0_154] : memref<9x32x64xf32, #tpu.memory_space<vmem>>, vector<1x32x64xf32>
    %151 = vector.shape_cast %150 : vector<1x32x64xf32> to vector<32x64xf32>
    %cst_155 = arith.constant dense<0.000000e+00> : vector<8x64xf32>
    %152 = tpu.matmul %149, %151, %cst_155 {dimension_numbers = #tpu.dot_dimension_numbers<[1], [0], [0], [1], [0, 0, 1, 1], [], []>} : vector<8x32xf32>, vector<32x64xf32>, vector<8x64xf32> -> vector<8x64xf32>
    %c1_156 = arith.constant 1 : index
    %c0_157 = arith.constant 0 : index
    %c0_158 = arith.constant 0 : index
    %153 = vector.load %arg10[%c1_156, %c0_157, %c0_158] : memref<9x8x32xf32, #tpu.memory_space<vmem>>, vector<1x8x32xf32>
    %154 = vector.shape_cast %153 : vector<1x8x32xf32> to vector<8x32xf32>
    %cst_159 = arith.constant dense<0.000000e+00> : vector<8x32xf32>
    %155 = tpu.matmul %154, %146, %cst_159 {dimension_numbers = #tpu.dot_dimension_numbers<[1], [0], [0], [1], [0, 0, 1, 1], [], []>} : vector<8x32xf32>, vector<32x32xf32>, vector<8x32xf32> -> vector<8x32xf32>
    %c1_160 = arith.constant 1 : index
    %c0_161 = arith.constant 0 : index
    %c0_162 = arith.constant 0 : index
    %156 = vector.load %arg11[%c1_160, %c0_161, %c0_162] : memref<9x32x64xf32, #tpu.memory_space<vmem>>, vector<1x32x64xf32>
    %157 = vector.shape_cast %156 : vector<1x32x64xf32> to vector<32x64xf32>
    %cst_163 = arith.constant dense<0.000000e+00> : vector<8x64xf32>
    %158 = tpu.matmul %155, %157, %cst_163 {dimension_numbers = #tpu.dot_dimension_numbers<[1], [0], [0], [1], [0, 0, 1, 1], [], []>} : vector<8x32xf32>, vector<32x64xf32>, vector<8x64xf32> -> vector<8x64xf32>
    %159 = arith.addf %152, %158 : vector<8x64xf32>
    %c2_164 = arith.constant 2 : index
    %c0_165 = arith.constant 0 : index
    %c0_166 = arith.constant 0 : index
    %160 = vector.load %arg10[%c2_164, %c0_165, %c0_166] : memref<9x8x32xf32, #tpu.memory_space<vmem>>, vector<1x8x32xf32>
    %161 = vector.shape_cast %160 : vector<1x8x32xf32> to vector<8x32xf32>
    %cst_167 = arith.constant dense<0.000000e+00> : vector<8x32xf32>
    %162 = tpu.matmul %161, %146, %cst_167 {dimension_numbers = #tpu.dot_dimension_numbers<[1], [0], [0], [1], [0, 0, 1, 1], [], []>} : vector<8x32xf32>, vector<32x32xf32>, vector<8x32xf32> -> vector<8x32xf32>
    %c2_168 = arith.constant 2 : index
    %c0_169 = arith.constant 0 : index
    %c0_170 = arith.constant 0 : index
    %163 = vector.load %arg11[%c2_168, %c0_169, %c0_170] : memref<9x32x64xf32, #tpu.memory_space<vmem>>, vector<1x32x64xf32>
    %164 = vector.shape_cast %163 : vector<1x32x64xf32> to vector<32x64xf32>
    %cst_171 = arith.constant dense<0.000000e+00> : vector<8x64xf32>
    %165 = tpu.matmul %162, %164, %cst_171 {dimension_numbers = #tpu.dot_dimension_numbers<[1], [0], [0], [1], [0, 0, 1, 1], [], []>} : vector<8x32xf32>, vector<32x64xf32>, vector<8x64xf32> -> vector<8x64xf32>
    %166 = arith.addf %159, %165 : vector<8x64xf32>
    %c3_172 = arith.constant 3 : index
    %c0_173 = arith.constant 0 : index
    %c0_174 = arith.constant 0 : index
    %167 = vector.load %arg10[%c3_172, %c0_173, %c0_174] : memref<9x8x32xf32, #tpu.memory_space<vmem>>, vector<1x8x32xf32>
    %168 = vector.shape_cast %167 : vector<1x8x32xf32> to vector<8x32xf32>
    %cst_175 = arith.constant dense<0.000000e+00> : vector<8x32xf32>
    %169 = tpu.matmul %168, %146, %cst_175 {dimension_numbers = #tpu.dot_dimension_numbers<[1], [0], [0], [1], [0, 0, 1, 1], [], []>} : vector<8x32xf32>, vector<32x32xf32>, vector<8x32xf32> -> vector<8x32xf32>
    %c3_176 = arith.constant 3 : index
    %c0_177 = arith.constant 0 : index
    %c0_178 = arith.constant 0 : index
    %170 = vector.load %arg11[%c3_176, %c0_177, %c0_178] : memref<9x32x64xf32, #tpu.memory_space<vmem>>, vector<1x32x64xf32>
    %171 = vector.shape_cast %170 : vector<1x32x64xf32> to vector<32x64xf32>
    %cst_179 = arith.constant dense<0.000000e+00> : vector<8x64xf32>
    %172 = tpu.matmul %169, %171, %cst_179 {dimension_numbers = #tpu.dot_dimension_numbers<[1], [0], [0], [1], [0, 0, 1, 1], [], []>} : vector<8x32xf32>, vector<32x64xf32>, vector<8x64xf32> -> vector<8x64xf32>
    %173 = arith.addf %166, %172 : vector<8x64xf32>
    %c4_180 = arith.constant 4 : index
    %c0_181 = arith.constant 0 : index
    %c0_182 = arith.constant 0 : index
    %174 = vector.load %arg10[%c4_180, %c0_181, %c0_182] : memref<9x8x32xf32, #tpu.memory_space<vmem>>, vector<1x8x32xf32>
    %175 = vector.shape_cast %174 : vector<1x8x32xf32> to vector<8x32xf32>
    %cst_183 = arith.constant dense<0.000000e+00> : vector<8x32xf32>
    %176 = tpu.matmul %175, %146, %cst_183 {dimension_numbers = #tpu.dot_dimension_numbers<[1], [0], [0], [1], [0, 0, 1, 1], [], []>} : vector<8x32xf32>, vector<32x32xf32>, vector<8x32xf32> -> vector<8x32xf32>
    %c4_184 = arith.constant 4 : index
    %c0_185 = arith.constant 0 : index
    %c0_186 = arith.constant 0 : index
    %177 = vector.load %arg11[%c4_184, %c0_185, %c0_186] : memref<9x32x64xf32, #tpu.memory_space<vmem>>, vector<1x32x64xf32>
    %178 = vector.shape_cast %177 : vector<1x32x64xf32> to vector<32x64xf32>
    %cst_187 = arith.constant dense<0.000000e+00> : vector<8x64xf32>
    %179 = tpu.matmul %176, %178, %cst_187 {dimension_numbers = #tpu.dot_dimension_numbers<[1], [0], [0], [1], [0, 0, 1, 1], [], []>} : vector<8x32xf32>, vector<32x64xf32>, vector<8x64xf32> -> vector<8x64xf32>
    %180 = arith.addf %173, %179 : vector<8x64xf32>
    %c5_188 = arith.constant 5 : index
    %c0_189 = arith.constant 0 : index
    %c0_190 = arith.constant 0 : index
    %181 = vector.load %arg10[%c5_188, %c0_189, %c0_190] : memref<9x8x32xf32, #tpu.memory_space<vmem>>, vector<1x8x32xf32>
    %182 = vector.shape_cast %181 : vector<1x8x32xf32> to vector<8x32xf32>
    %cst_191 = arith.constant dense<0.000000e+00> : vector<8x32xf32>
    %183 = tpu.matmul %182, %146, %cst_191 {dimension_numbers = #tpu.dot_dimension_numbers<[1], [0], [0], [1], [0, 0, 1, 1], [], []>} : vector<8x32xf32>, vector<32x32xf32>, vector<8x32xf32> -> vector<8x32xf32>
    %c5_192 = arith.constant 5 : index
    %c0_193 = arith.constant 0 : index
    %c0_194 = arith.constant 0 : index
    %184 = vector.load %arg11[%c5_192, %c0_193, %c0_194] : memref<9x32x64xf32, #tpu.memory_space<vmem>>, vector<1x32x64xf32>
    %185 = vector.shape_cast %184 : vector<1x32x64xf32> to vector<32x64xf32>
    %cst_195 = arith.constant dense<0.000000e+00> : vector<8x64xf32>
    %186 = tpu.matmul %183, %185, %cst_195 {dimension_numbers = #tpu.dot_dimension_numbers<[1], [0], [0], [1], [0, 0, 1, 1], [], []>} : vector<8x32xf32>, vector<32x64xf32>, vector<8x64xf32> -> vector<8x64xf32>
    %187 = arith.addf %180, %186 : vector<8x64xf32>
    %c6_196 = arith.constant 6 : index
    %c0_197 = arith.constant 0 : index
    %c0_198 = arith.constant 0 : index
    %188 = vector.load %arg10[%c6_196, %c0_197, %c0_198] : memref<9x8x32xf32, #tpu.memory_space<vmem>>, vector<1x8x32xf32>
    %189 = vector.shape_cast %188 : vector<1x8x32xf32> to vector<8x32xf32>
    %cst_199 = arith.constant dense<0.000000e+00> : vector<8x32xf32>
    %190 = tpu.matmul %189, %146, %cst_199 {dimension_numbers = #tpu.dot_dimension_numbers<[1], [0], [0], [1], [0, 0, 1, 1], [], []>} : vector<8x32xf32>, vector<32x32xf32>, vector<8x32xf32> -> vector<8x32xf32>
    %c6_200 = arith.constant 6 : index
    %c0_201 = arith.constant 0 : index
    %c0_202 = arith.constant 0 : index
    %191 = vector.load %arg11[%c6_200, %c0_201, %c0_202] : memref<9x32x64xf32, #tpu.memory_space<vmem>>, vector<1x32x64xf32>
    %192 = vector.shape_cast %191 : vector<1x32x64xf32> to vector<32x64xf32>
    %cst_203 = arith.constant dense<0.000000e+00> : vector<8x64xf32>
    %193 = tpu.matmul %190, %192, %cst_203 {dimension_numbers = #tpu.dot_dimension_numbers<[1], [0], [0], [1], [0, 0, 1, 1], [], []>} : vector<8x32xf32>, vector<32x64xf32>, vector<8x64xf32> -> vector<8x64xf32>
    %194 = arith.addf %187, %193 : vector<8x64xf32>
    %c7_204 = arith.constant 7 : index
    %c0_205 = arith.constant 0 : index
    %c0_206 = arith.constant 0 : index
    %195 = vector.load %arg10[%c7_204, %c0_205, %c0_206] : memref<9x8x32xf32, #tpu.memory_space<vmem>>, vector<1x8x32xf32>
    %196 = vector.shape_cast %195 : vector<1x8x32xf32> to vector<8x32xf32>
    %cst_207 = arith.constant dense<0.000000e+00> : vector<8x32xf32>
    %197 = tpu.matmul %196, %146, %cst_207 {dimension_numbers = #tpu.dot_dimension_numbers<[1], [0], [0], [1], [0, 0, 1, 1], [], []>} : vector<8x32xf32>, vector<32x32xf32>, vector<8x32xf32> -> vector<8x32xf32>
    %c7_208 = arith.constant 7 : index
    %c0_209 = arith.constant 0 : index
    %c0_210 = arith.constant 0 : index
    %198 = vector.load %arg11[%c7_208, %c0_209, %c0_210] : memref<9x32x64xf32, #tpu.memory_space<vmem>>, vector<1x32x64xf32>
    %199 = vector.shape_cast %198 : vector<1x32x64xf32> to vector<32x64xf32>
    %cst_211 = arith.constant dense<0.000000e+00> : vector<8x64xf32>
    %200 = tpu.matmul %197, %199, %cst_211 {dimension_numbers = #tpu.dot_dimension_numbers<[1], [0], [0], [1], [0, 0, 1, 1], [], []>} : vector<8x32xf32>, vector<32x64xf32>, vector<8x64xf32> -> vector<8x64xf32>
    %201 = arith.addf %194, %200 : vector<8x64xf32>
    %c8_212 = arith.constant 8 : index
    %c0_213 = arith.constant 0 : index
    %c0_214 = arith.constant 0 : index
    %202 = vector.load %arg10[%c8_212, %c0_213, %c0_214] : memref<9x8x32xf32, #tpu.memory_space<vmem>>, vector<1x8x32xf32>
    %203 = vector.shape_cast %202 : vector<1x8x32xf32> to vector<8x32xf32>
    %cst_215 = arith.constant dense<0.000000e+00> : vector<8x32xf32>
    %204 = tpu.matmul %203, %146, %cst_215 {dimension_numbers = #tpu.dot_dimension_numbers<[1], [0], [0], [1], [0, 0, 1, 1], [], []>} : vector<8x32xf32>, vector<32x32xf32>, vector<8x32xf32> -> vector<8x32xf32>
    %c8_216 = arith.constant 8 : index
    %c0_217 = arith.constant 0 : index
    %c0_218 = arith.constant 0 : index
    %205 = vector.load %arg11[%c8_216, %c0_217, %c0_218] : memref<9x32x64xf32, #tpu.memory_space<vmem>>, vector<1x32x64xf32>
    %206 = vector.shape_cast %205 : vector<1x32x64xf32> to vector<32x64xf32>
    %cst_219 = arith.constant dense<0.000000e+00> : vector<8x64xf32>
    %207 = tpu.matmul %204, %206, %cst_219 {dimension_numbers = #tpu.dot_dimension_numbers<[1], [0], [0], [1], [0, 0, 1, 1], [], []>} : vector<8x32xf32>, vector<32x64xf32>, vector<8x64xf32> -> vector<8x64xf32>
    %208 = arith.addf %201, %207 : vector<8x64xf32>
    %c0_220 = arith.constant 0 : index
    %c0_221 = arith.constant 0 : index
    %209 = vector.load %arg12[%c0_220, %c0_221] : memref<1x64xf32, #tpu.memory_space<vmem>>, vector<1x64xf32>
    %210 = vector.broadcast %209 : vector<1x64xf32> to vector<8x64xf32>
    %211 = arith.addf %208, %210 : vector<8x64xf32>
    %cst_222 = arith.constant 0.000000e+00 : f32
    %212 = vector.broadcast %cst_222 : f32 to vector<8x64xf32>
    %213 = arith.cmpf oge, %211, %212 : vector<8x64xf32>
    %cst_223 = arith.constant 2.000000e-01 : f32
    %214 = vector.broadcast %cst_223 : f32 to vector<8x64xf32>
    %215 = arith.mulf %214, %211 : vector<8x64xf32>
    %216 = arith.select %213, %211, %215 : vector<8x64xi1>, vector<8x64xf32>
    %c0_224 = arith.constant 0 : index
    %c0_225 = arith.constant 0 : index
    %217 = vector.load %arg13[%c0_224, %c0_225] : memref<1x64xf32, #tpu.memory_space<vmem>>, vector<1x64xf32>
    %218 = vector.broadcast %217 : vector<1x64xf32> to vector<8x64xf32>
    %219 = arith.addf %216, %218 : vector<8x64xf32>
    %c0_226 = arith.constant 0 : index
    %c0_227 = arith.constant 0 : index
    %c0_228 = arith.constant 0 : index
    %220 = vector.load %arg14[%c0_226, %c0_227, %c0_228] : memref<9x2x8xf32, #tpu.memory_space<vmem>>, vector<1x2x8xf32>
    %221 = vector.shape_cast %220 : vector<1x2x8xf32> to vector<2x8xf32>
    %cst_229 = arith.constant dense<0.000000e+00> : vector<2x64xf32>
    %222 = tpu.matmul %221, %219, %cst_229 {dimension_numbers = #tpu.dot_dimension_numbers<[1], [0], [0], [1], [0, 0, 1, 1], [], []>} : vector<2x8xf32>, vector<8x64xf32>, vector<2x64xf32> -> vector<2x64xf32>
    %c0_230 = arith.constant 0 : index
    %c0_231 = arith.constant 0 : index
    %c0_232 = arith.constant 0 : index
    %223 = vector.load %arg15[%c0_230, %c0_231, %c0_232] : memref<9x64x128xf32, #tpu.memory_space<vmem>>, vector<1x64x128xf32>
    %224 = vector.shape_cast %223 : vector<1x64x128xf32> to vector<64x128xf32>
    %cst_233 = arith.constant dense<0.000000e+00> : vector<2x128xf32>
    %225 = tpu.matmul %222, %224, %cst_233 {dimension_numbers = #tpu.dot_dimension_numbers<[1], [0], [0], [1], [0, 0, 1, 1], [], []>} : vector<2x64xf32>, vector<64x128xf32>, vector<2x128xf32> -> vector<2x128xf32>
    %c1_234 = arith.constant 1 : index
    %c0_235 = arith.constant 0 : index
    %c0_236 = arith.constant 0 : index
    %226 = vector.load %arg14[%c1_234, %c0_235, %c0_236] : memref<9x2x8xf32, #tpu.memory_space<vmem>>, vector<1x2x8xf32>
    %227 = vector.shape_cast %226 : vector<1x2x8xf32> to vector<2x8xf32>
    %cst_237 = arith.constant dense<0.000000e+00> : vector<2x64xf32>
    %228 = tpu.matmul %227, %219, %cst_237 {dimension_numbers = #tpu.dot_dimension_numbers<[1], [0], [0], [1], [0, 0, 1, 1], [], []>} : vector<2x8xf32>, vector<8x64xf32>, vector<2x64xf32> -> vector<2x64xf32>
    %c1_238 = arith.constant 1 : index
    %c0_239 = arith.constant 0 : index
    %c0_240 = arith.constant 0 : index
    %229 = vector.load %arg15[%c1_238, %c0_239, %c0_240] : memref<9x64x128xf32, #tpu.memory_space<vmem>>, vector<1x64x128xf32>
    %230 = vector.shape_cast %229 : vector<1x64x128xf32> to vector<64x128xf32>
    %cst_241 = arith.constant dense<0.000000e+00> : vector<2x128xf32>
    %231 = tpu.matmul %228, %230, %cst_241 {dimension_numbers = #tpu.dot_dimension_numbers<[1], [0], [0], [1], [0, 0, 1, 1], [], []>} : vector<2x64xf32>, vector<64x128xf32>, vector<2x128xf32> -> vector<2x128xf32>
    %232 = arith.addf %225, %231 : vector<2x128xf32>
    %c2_242 = arith.constant 2 : index
    %c0_243 = arith.constant 0 : index
    %c0_244 = arith.constant 0 : index
    %233 = vector.load %arg14[%c2_242, %c0_243, %c0_244] : memref<9x2x8xf32, #tpu.memory_space<vmem>>, vector<1x2x8xf32>
    %234 = vector.shape_cast %233 : vector<1x2x8xf32> to vector<2x8xf32>
    %cst_245 = arith.constant dense<0.000000e+00> : vector<2x64xf32>
    %235 = tpu.matmul %234, %219, %cst_245 {dimension_numbers = #tpu.dot_dimension_numbers<[1], [0], [0], [1], [0, 0, 1, 1], [], []>} : vector<2x8xf32>, vector<8x64xf32>, vector<2x64xf32> -> vector<2x64xf32>
    %c2_246 = arith.constant 2 : index
    %c0_247 = arith.constant 0 : index
    %c0_248 = arith.constant 0 : index
    %236 = vector.load %arg15[%c2_246, %c0_247, %c0_248] : memref<9x64x128xf32, #tpu.memory_space<vmem>>, vector<1x64x128xf32>
    %237 = vector.shape_cast %236 : vector<1x64x128xf32> to vector<64x128xf32>
    %cst_249 = arith.constant dense<0.000000e+00> : vector<2x128xf32>
    %238 = tpu.matmul %235, %237, %cst_249 {dimension_numbers = #tpu.dot_dimension_numbers<[1], [0], [0], [1], [0, 0, 1, 1], [], []>} : vector<2x64xf32>, vector<64x128xf32>, vector<2x128xf32> -> vector<2x128xf32>
    %239 = arith.addf %232, %238 : vector<2x128xf32>
    %c3_250 = arith.constant 3 : index
    %c0_251 = arith.constant 0 : index
    %c0_252 = arith.constant 0 : index
    %240 = vector.load %arg14[%c3_250, %c0_251, %c0_252] : memref<9x2x8xf32, #tpu.memory_space<vmem>>, vector<1x2x8xf32>
    %241 = vector.shape_cast %240 : vector<1x2x8xf32> to vector<2x8xf32>
    %cst_253 = arith.constant dense<0.000000e+00> : vector<2x64xf32>
    %242 = tpu.matmul %241, %219, %cst_253 {dimension_numbers = #tpu.dot_dimension_numbers<[1], [0], [0], [1], [0, 0, 1, 1], [], []>} : vector<2x8xf32>, vector<8x64xf32>, vector<2x64xf32> -> vector<2x64xf32>
    %c3_254 = arith.constant 3 : index
    %c0_255 = arith.constant 0 : index
    %c0_256 = arith.constant 0 : index
    %243 = vector.load %arg15[%c3_254, %c0_255, %c0_256] : memref<9x64x128xf32, #tpu.memory_space<vmem>>, vector<1x64x128xf32>
    %244 = vector.shape_cast %243 : vector<1x64x128xf32> to vector<64x128xf32>
    %cst_257 = arith.constant dense<0.000000e+00> : vector<2x128xf32>
    %245 = tpu.matmul %242, %244, %cst_257 {dimension_numbers = #tpu.dot_dimension_numbers<[1], [0], [0], [1], [0, 0, 1, 1], [], []>} : vector<2x64xf32>, vector<64x128xf32>, vector<2x128xf32> -> vector<2x128xf32>
    %246 = arith.addf %239, %245 : vector<2x128xf32>
    %c4_258 = arith.constant 4 : index
    %c0_259 = arith.constant 0 : index
    %c0_260 = arith.constant 0 : index
    %247 = vector.load %arg14[%c4_258, %c0_259, %c0_260] : memref<9x2x8xf32, #tpu.memory_space<vmem>>, vector<1x2x8xf32>
    %248 = vector.shape_cast %247 : vector<1x2x8xf32> to vector<2x8xf32>
    %cst_261 = arith.constant dense<0.000000e+00> : vector<2x64xf32>
    %249 = tpu.matmul %248, %219, %cst_261 {dimension_numbers = #tpu.dot_dimension_numbers<[1], [0], [0], [1], [0, 0, 1, 1], [], []>} : vector<2x8xf32>, vector<8x64xf32>, vector<2x64xf32> -> vector<2x64xf32>
    %c4_262 = arith.constant 4 : index
    %c0_263 = arith.constant 0 : index
    %c0_264 = arith.constant 0 : index
    %250 = vector.load %arg15[%c4_262, %c0_263, %c0_264] : memref<9x64x128xf32, #tpu.memory_space<vmem>>, vector<1x64x128xf32>
    %251 = vector.shape_cast %250 : vector<1x64x128xf32> to vector<64x128xf32>
    %cst_265 = arith.constant dense<0.000000e+00> : vector<2x128xf32>
    %252 = tpu.matmul %249, %251, %cst_265 {dimension_numbers = #tpu.dot_dimension_numbers<[1], [0], [0], [1], [0, 0, 1, 1], [], []>} : vector<2x64xf32>, vector<64x128xf32>, vector<2x128xf32> -> vector<2x128xf32>
    %253 = arith.addf %246, %252 : vector<2x128xf32>
    %c5_266 = arith.constant 5 : index
    %c0_267 = arith.constant 0 : index
    %c0_268 = arith.constant 0 : index
    %254 = vector.load %arg14[%c5_266, %c0_267, %c0_268] : memref<9x2x8xf32, #tpu.memory_space<vmem>>, vector<1x2x8xf32>
    %255 = vector.shape_cast %254 : vector<1x2x8xf32> to vector<2x8xf32>
    %cst_269 = arith.constant dense<0.000000e+00> : vector<2x64xf32>
    %256 = tpu.matmul %255, %219, %cst_269 {dimension_numbers = #tpu.dot_dimension_numbers<[1], [0], [0], [1], [0, 0, 1, 1], [], []>} : vector<2x8xf32>, vector<8x64xf32>, vector<2x64xf32> -> vector<2x64xf32>
    %c5_270 = arith.constant 5 : index
    %c0_271 = arith.constant 0 : index
    %c0_272 = arith.constant 0 : index
    %257 = vector.load %arg15[%c5_270, %c0_271, %c0_272] : memref<9x64x128xf32, #tpu.memory_space<vmem>>, vector<1x64x128xf32>
    %258 = vector.shape_cast %257 : vector<1x64x128xf32> to vector<64x128xf32>
    %cst_273 = arith.constant dense<0.000000e+00> : vector<2x128xf32>
    %259 = tpu.matmul %256, %258, %cst_273 {dimension_numbers = #tpu.dot_dimension_numbers<[1], [0], [0], [1], [0, 0, 1, 1], [], []>} : vector<2x64xf32>, vector<64x128xf32>, vector<2x128xf32> -> vector<2x128xf32>
    %260 = arith.addf %253, %259 : vector<2x128xf32>
    %c6_274 = arith.constant 6 : index
    %c0_275 = arith.constant 0 : index
    %c0_276 = arith.constant 0 : index
    %261 = vector.load %arg14[%c6_274, %c0_275, %c0_276] : memref<9x2x8xf32, #tpu.memory_space<vmem>>, vector<1x2x8xf32>
    %262 = vector.shape_cast %261 : vector<1x2x8xf32> to vector<2x8xf32>
    %cst_277 = arith.constant dense<0.000000e+00> : vector<2x64xf32>
    %263 = tpu.matmul %262, %219, %cst_277 {dimension_numbers = #tpu.dot_dimension_numbers<[1], [0], [0], [1], [0, 0, 1, 1], [], []>} : vector<2x8xf32>, vector<8x64xf32>, vector<2x64xf32> -> vector<2x64xf32>
    %c6_278 = arith.constant 6 : index
    %c0_279 = arith.constant 0 : index
    %c0_280 = arith.constant 0 : index
    %264 = vector.load %arg15[%c6_278, %c0_279, %c0_280] : memref<9x64x128xf32, #tpu.memory_space<vmem>>, vector<1x64x128xf32>
    %265 = vector.shape_cast %264 : vector<1x64x128xf32> to vector<64x128xf32>
    %cst_281 = arith.constant dense<0.000000e+00> : vector<2x128xf32>
    %266 = tpu.matmul %263, %265, %cst_281 {dimension_numbers = #tpu.dot_dimension_numbers<[1], [0], [0], [1], [0, 0, 1, 1], [], []>} : vector<2x64xf32>, vector<64x128xf32>, vector<2x128xf32> -> vector<2x128xf32>
    %267 = arith.addf %260, %266 : vector<2x128xf32>
    %c7_282 = arith.constant 7 : index
    %c0_283 = arith.constant 0 : index
    %c0_284 = arith.constant 0 : index
    %268 = vector.load %arg14[%c7_282, %c0_283, %c0_284] : memref<9x2x8xf32, #tpu.memory_space<vmem>>, vector<1x2x8xf32>
    %269 = vector.shape_cast %268 : vector<1x2x8xf32> to vector<2x8xf32>
    %cst_285 = arith.constant dense<0.000000e+00> : vector<2x64xf32>
    %270 = tpu.matmul %269, %219, %cst_285 {dimension_numbers = #tpu.dot_dimension_numbers<[1], [0], [0], [1], [0, 0, 1, 1], [], []>} : vector<2x8xf32>, vector<8x64xf32>, vector<2x64xf32> -> vector<2x64xf32>
    %c7_286 = arith.constant 7 : index
    %c0_287 = arith.constant 0 : index
    %c0_288 = arith.constant 0 : index
    %271 = vector.load %arg15[%c7_286, %c0_287, %c0_288] : memref<9x64x128xf32, #tpu.memory_space<vmem>>, vector<1x64x128xf32>
    %272 = vector.shape_cast %271 : vector<1x64x128xf32> to vector<64x128xf32>
    %cst_289 = arith.constant dense<0.000000e+00> : vector<2x128xf32>
    %273 = tpu.matmul %270, %272, %cst_289 {dimension_numbers = #tpu.dot_dimension_numbers<[1], [0], [0], [1], [0, 0, 1, 1], [], []>} : vector<2x64xf32>, vector<64x128xf32>, vector<2x128xf32> -> vector<2x128xf32>
    %274 = arith.addf %267, %273 : vector<2x128xf32>
    %c8_290 = arith.constant 8 : index
    %c0_291 = arith.constant 0 : index
    %c0_292 = arith.constant 0 : index
    %275 = vector.load %arg14[%c8_290, %c0_291, %c0_292] : memref<9x2x8xf32, #tpu.memory_space<vmem>>, vector<1x2x8xf32>
    %276 = vector.shape_cast %275 : vector<1x2x8xf32> to vector<2x8xf32>
    %cst_293 = arith.constant dense<0.000000e+00> : vector<2x64xf32>
    %277 = tpu.matmul %276, %219, %cst_293 {dimension_numbers = #tpu.dot_dimension_numbers<[1], [0], [0], [1], [0, 0, 1, 1], [], []>} : vector<2x8xf32>, vector<8x64xf32>, vector<2x64xf32> -> vector<2x64xf32>
    %c8_294 = arith.constant 8 : index
    %c0_295 = arith.constant 0 : index
    %c0_296 = arith.constant 0 : index
    %278 = vector.load %arg15[%c8_294, %c0_295, %c0_296] : memref<9x64x128xf32, #tpu.memory_space<vmem>>, vector<1x64x128xf32>
    %279 = vector.shape_cast %278 : vector<1x64x128xf32> to vector<64x128xf32>
    %cst_297 = arith.constant dense<0.000000e+00> : vector<2x128xf32>
    %280 = tpu.matmul %277, %279, %cst_297 {dimension_numbers = #tpu.dot_dimension_numbers<[1], [0], [0], [1], [0, 0, 1, 1], [], []>} : vector<2x64xf32>, vector<64x128xf32>, vector<2x128xf32> -> vector<2x128xf32>
    %281 = arith.addf %274, %280 : vector<2x128xf32>
    %c0_298 = arith.constant 0 : index
    %c0_299 = arith.constant 0 : index
    %282 = vector.load %arg16[%c0_298, %c0_299] : memref<1x128xf32, #tpu.memory_space<vmem>>, vector<1x128xf32>
    %283 = vector.broadcast %282 : vector<1x128xf32> to vector<2x128xf32>
    %284 = arith.addf %281, %283 : vector<2x128xf32>
    %cst_300 = arith.constant 0.000000e+00 : f32
    %285 = vector.broadcast %cst_300 : f32 to vector<2x128xf32>
    %286 = arith.cmpf oge, %284, %285 : vector<2x128xf32>
    %cst_301 = arith.constant 2.000000e-01 : f32
    %287 = vector.broadcast %cst_301 : f32 to vector<2x128xf32>
    %288 = arith.mulf %287, %284 : vector<2x128xf32>
    %289 = arith.select %286, %284, %288 : vector<2x128xi1>, vector<2x128xf32>
    %c0_302 = arith.constant 0 : index
    %c0_303 = arith.constant 0 : index
    %290 = vector.load %arg17[%c0_302, %c0_303] : memref<1x128xf32, #tpu.memory_space<vmem>>, vector<1x128xf32>
    %291 = vector.broadcast %290 : vector<1x128xf32> to vector<2x128xf32>
    %292 = arith.addf %289, %291 : vector<2x128xf32>
    %c0_304 = arith.constant 0 : index
    %c0_305 = arith.constant 0 : index
    %293 = vector.load %arg18[%c0_304, %c0_305] : memref<2x128xf32, #tpu.memory_space<vmem>>, vector<2x128xf32>
    %294 = arith.mulf %292, %293 : vector<2x128xf32>
    %c0_306 = arith.constant 0 : index
    %c0_307 = arith.constant 0 : index
    %295 = vector.load %arg19[%c0_306, %c0_307] : memref<2x2xf32, #tpu.memory_space<vmem>>, vector<2x2xf32>
    %cst_308 = arith.constant dense<0.000000e+00> : vector<2x128xf32>
    %296 = tpu.matmul %295, %294, %cst_308 {dimension_numbers = #tpu.dot_dimension_numbers<[1], [0], [0], [1], [0, 0, 1, 1], [], []>} : vector<2x2xf32>, vector<2x128xf32>, vector<2x128xf32> -> vector<2x128xf32>
    %cst_309 = arith.constant dense<0.000000e+00> : vector<2xf32>
    %297 = vector.multi_reduction <add>, %296, %cst_309 [1] : vector<2x128xf32> to vector<2xf32>
    %298 = vector.shape_cast %297 : vector<2xf32> to vector<2x1xf32>
    %c0_310 = arith.constant 0 : index
    %c0_311 = arith.constant 0 : index
    %299 = vector.load %arg20[%c0_310, %c0_311] : memref<1x1xf32, #tpu.memory_space<vmem>>, vector<1x1xf32>
    %300 = vector.broadcast %299 : vector<1x1xf32> to vector<2x1xf32>
    %301 = arith.addf %298, %300 : vector<2x1xf32>
    %302 = arith.negf %301 : vector<2x1xf32>
    %303 = math.exp %302 : vector<2x1xf32>
    %cst_312 = arith.constant 1.000000e+00 : f32
    %304 = vector.broadcast %cst_312 : f32 to vector<2x1xf32>
    %305 = arith.addf %304, %303 : vector<2x1xf32>
    %306 = arith.divf %304, %305 : vector<2x1xf32>
    %c0_313 = arith.constant 0 : index
    %c0_314 = arith.constant 0 : index
    %307 = vector.load %arg21[%c0_313, %c0_314] : memref<2x1xf32, #tpu.memory_space<vmem>>, vector<2x1xf32>
    tpu.vector_store %arg21[%c0_313, %c0_314], %306 {strides = array<i32>} : memref<2x1xf32, #tpu.memory_space<vmem>>, vector<2x1xf32>,
    return
  }
  func.func @transform_0(%arg0: i32) -> (i32, i32) {
    %c0_i32 = arith.constant 0 : i32
    %c0_i32_0 = arith.constant 0 : i32
    %c0_i32_1 = arith.constant 0 : i32
    return %c0_i32, %c0_i32_0 : i32, i32
  }
  func.func @transform_1(%arg0: i32) -> (i32, i32, i32) {
    %c0_i32 = arith.constant 0 : i32
    %c0_i32_0 = arith.constant 0 : i32
    %c0_i32_1 = arith.constant 0 : i32
    %c0_i32_2 = arith.constant 0 : i32
    return %c0_i32, %c0_i32_0, %c0_i32_1 : i32, i32, i32
  }
  func.func @transform_2(%arg0: i32) -> (i32, i32, i32) {
    %c0_i32 = arith.constant 0 : i32
    %c0_i32_0 = arith.constant 0 : i32
    %c0_i32_1 = arith.constant 0 : i32
    %c0_i32_2 = arith.constant 0 : i32
    return %c0_i32, %c0_i32_0, %c0_i32_1 : i32, i32, i32
  }
  func.func @transform_3(%arg0: i32) -> (i32, i32) {
    %c0_i32 = arith.constant 0 : i32
    %c0_i32_0 = arith.constant 0 : i32
    %c0_i32_1 = arith.constant 0 : i32
    return %c0_i32, %c0_i32_0 : i32, i32
  }
  func.func @transform_4(%arg0: i32) -> (i32, i32) {
    %c0_i32 = arith.constant 0 : i32
    %c0_i32_0 = arith.constant 0 : i32
    %c0_i32_1 = arith.constant 0 : i32
    return %c0_i32, %c0_i32_0 : i32, i32
  }
  func.func @transform_5(%arg0: i32) -> (i32, i32, i32) {
    %c0_i32 = arith.constant 0 : i32
    %c0_i32_0 = arith.constant 0 : i32
    %c0_i32_1 = arith.constant 0 : i32
    %c0_i32_2 = arith.constant 0 : i32
    return %c0_i32, %c0_i32_0, %c0_i32_1 : i32, i32, i32
  }
  func.func @transform_6(%arg0: i32) -> (i32, i32, i32) {
    %c0_i32 = arith.constant 0 : i32
    %c0_i32_0 = arith.constant 0 : i32
    %c0_i32_1 = arith.constant 0 : i32
    %c0_i32_2 = arith.constant 0 : i32
    return %c0_i32, %c0_i32_0, %c0_i32_1 : i32, i32, i32
  }
  func.func @transform_7(%arg0: i32) -> (i32, i32) {
    %c0_i32 = arith.constant 0 : i32
    %c0_i32_0 = arith.constant 0 : i32
    %c0_i32_1 = arith.constant 0 : i32
    return %c0_i32, %c0_i32_0 : i32, i32
  }
  func.func @transform_8(%arg0: i32) -> (i32, i32) {
    %c0_i32 = arith.constant 0 : i32
    %c0_i32_0 = arith.constant 0 : i32
    %c0_i32_1 = arith.constant 0 : i32
    return %c0_i32, %c0_i32_0 : i32, i32
  }
  func.func @transform_9(%arg0: i32) -> (i32, i32, i32) {
    %c0_i32 = arith.constant 0 : i32
    %c0_i32_0 = arith.constant 0 : i32
    %c0_i32_1 = arith.constant 0 : i32
    %c0_i32_2 = arith.constant 0 : i32
    return %c0_i32, %c0_i32_0, %c0_i32_1 : i32, i32, i32
  }
  func.func @transform_10(%arg0: i32) -> (i32, i32, i32) {
    %c0_i32 = arith.constant 0 : i32
    %c0_i32_0 = arith.constant 0 : i32
    %c0_i32_1 = arith.constant 0 : i32
    %c0_i32_2 = arith.constant 0 : i32
    return %c0_i32, %c0_i32_0, %c0_i32_1 : i32, i32, i32
  }
  func.func @transform_11(%arg0: i32) -> (i32, i32) {
    %c0_i32 = arith.constant 0 : i32
    %c0_i32_0 = arith.constant 0 : i32
    %c0_i32_1 = arith.constant 0 : i32
    return %c0_i32, %c0_i32_0 : i32, i32
  }
  func.func @transform_12(%arg0: i32) -> (i32, i32) {
    %c0_i32 = arith.constant 0 : i32
    %c0_i32_0 = arith.constant 0 : i32
    %c0_i32_1 = arith.constant 0 : i32
    return %c0_i32, %c0_i32_0 : i32, i32
  }
  func.func @transform_13(%arg0: i32) -> (i32, i32, i32) {
    %c0_i32 = arith.constant 0 : i32
    %c0_i32_0 = arith.constant 0 : i32
    %c0_i32_1 = arith.constant 0 : i32
    %c0_i32_2 = arith.constant 0 : i32
    return %c0_i32, %c0_i32_0, %c0_i32_1 : i32, i32, i32
  }
  func.func @transform_14(%arg0: i32) -> (i32, i32, i32) {
    %c0_i32 = arith.constant 0 : i32
    %c0_i32_0 = arith.constant 0 : i32
    %c0_i32_1 = arith.constant 0 : i32
    %c0_i32_2 = arith.constant 0 : i32
    return %c0_i32, %c0_i32_0, %c0_i32_1 : i32, i32, i32
  }
  func.func @transform_15(%arg0: i32) -> (i32, i32) {
    %c0_i32 = arith.constant 0 : i32
    %c0_i32_0 = arith.constant 0 : i32
    %c0_i32_1 = arith.constant 0 : i32
    return %c0_i32, %c0_i32_0 : i32, i32
  }
  func.func @transform_16(%arg0: i32) -> (i32, i32) {
    %c0_i32 = arith.constant 0 : i32
    %c0_i32_0 = arith.constant 0 : i32
    %c0_i32_1 = arith.constant 0 : i32
    return %c0_i32, %c0_i32_0 : i32, i32
  }
  func.func @transform_17(%arg0: i32) -> (i32, i32) {
    %c0_i32 = arith.constant 0 : i32
    %c0_i32_0 = arith.constant 0 : i32
    %c0_i32_1 = arith.constant 0 : i32
    return %c0_i32, %c0_i32_0 : i32, i32
  }
  func.func @transform_18(%arg0: i32) -> (i32, i32) {
    %c0_i32 = arith.constant 0 : i32
    %c0_i32_0 = arith.constant 0 : i32
    %c0_i32_1 = arith.constant 0 : i32
    return %c0_i32, %c0_i32_0 : i32, i32
  }
  func.func @transform_19(%arg0: i32) -> (i32, i32) {
    %c0_i32 = arith.constant 0 : i32
    %c0_i32_0 = arith.constant 0 : i32
    %c0_i32_1 = arith.constant 0 : i32
    return %c0_i32, %c0_i32_0 : i32, i32
  }
  func.func @transform_20(%arg0: i32) -> (i32, i32) {
    %c0_i32 = arith.constant 0 : i32
    %c0_i32_0 = arith.constant 0 : i32
    %c0_i32_1 = arith.constant 0 : i32
    return %c0_i32, %c0_i32_0 : i32, i32
  }
}

</mosaic_0001>

<llo_original>
// kernel: discriminator_forward.1
$region0: #{discriminator_forward.1}
  #allocation0 [shape = 'u32[]', space=smem, size = 0x4, offset = 0x4, fixed_abs, tag = 'smem constant byte address 0x4 - core index']
  #allocation1 [shape = 'u32[144,128]{1,0:T(1,128)}', space=vmem, size = 0x12000, scoped, tag = 'internal scratch']
  #allocation2 [shape = 'f32[1,1]{1,0:T(1,128)S(1)}', space=vmem, size = 0x200, scoped, tag = 'scoped memory for discriminator_forward.1']
  %s0 = inlined_call_operand.vmem [shape: f32[512,4], index: 0, kind: input, shape index: {}]
  %s1 = inlined_call_operand.hbm [shape: f32[9,128,512], index: 1, kind: input, shape index: {}]
  %s2 = inlined_call_operand.hbm [shape: f32[9,4,16], index: 2, kind: input, shape index: {}]
  %s3 = inlined_call_operand.hbm [shape: f32[1,16], index: 3, kind: input, shape index: {}]
  %s4 = inlined_call_operand.hbm [shape: f32[1,16], index: 4, kind: input, shape index: {}]
  %s5 = inlined_call_operand.hbm [shape: f32[9,32,128], index: 5, kind: input, shape index: {}]
  %s6 = inlined_call_operand.hbm [shape: f32[9,16,32], index: 6, kind: input, shape index: {}]
  %s7 = inlined_call_operand.hbm [shape: f32[1,32], index: 7, kind: input, shape index: {}]
  %s8 = inlined_call_operand.hbm [shape: f32[1,32], index: 8, kind: input, shape index: {}]
  %s9 = inlined_call_operand.hbm [shape: f32[9,8,32], index: 9, kind: input, shape index: {}]
  %s10 = inlined_call_operand.hbm [shape: f32[9,32,64], index: 10, kind: input, shape index: {}]
  %s11 = inlined_call_operand.hbm [shape: f32[1,64], index: 11, kind: input, shape index: {}]
  %s12 = inlined_call_operand.hbm [shape: f32[1,64], index: 12, kind: input, shape index: {}]
  %s13 = inlined_call_operand.vmem [shape: f32[9,2,8], index: 13, kind: input, shape index: {}]
  %s14 = inlined_call_operand.hbm [shape: f32[9,64,128], index: 14, kind: input, shape index: {}]
  %s15 = inlined_call_operand.hbm [shape: f32[1,128], index: 15, kind: input, shape index: {}]
  %s16 = inlined_call_operand.hbm [shape: f32[1,128], index: 16, kind: input, shape index: {}]
  %s17 = inlined_call_operand.hbm [shape: f32[2,128], index: 17, kind: input, shape index: {}]
  %s18 = inlined_call_operand.hbm [shape: f32[2,2], index: 18, kind: input, shape index: {}]
  %s19 = inlined_call_operand.<no memory space> [shape: f32[1,1], index: 19, kind: input, shape index: {}]
  %s20 = inlined_call_operand.vmem [shape: f32[2,1], index: 20, kind: output, shape index: {}]
  %s21 = sld [smem:[#allocation0]]
  $region158: #{discriminator_forward.1} parent=0
    _
  %s23 = ssub.s32 1, %s21
  %s24 = scalar_select 0, %s23, %s21
  %v25 = vstv %s19
  %26 = vst [vmem:[#allocation2] sm:$0x1] %v25
  $region1: #{discriminator_forward.1} parent=0
    #allocation3 [shape = 'u8[2359296]{0}', space=vmem, size = 0x240000, scoped, tag = 'input window, operand 1, single buffered']
    #allocation4 [shape = 's32[1]{0}', space=sflag, size = 0x4, scoped, tag = 'scoped memory for discriminator_forward.1']
    #allocation5 [shape = 'u8[18432]{0}', space=vmem, size = 0x4800, scoped, tag = 'input window, operand 2, single buffered']
    #allocation6 [shape = 's32[1]{0}', space=sflag, size = 0x4, scoped, tag = 'scoped memory for discriminator_forward.1']
    #allocation7 [shape = 'u8[512]{0}', space=vmem, size = 0x400, scoped, tag = 'input window, operand 3, single buffered']
    #allocation8 [shape = 'u8[512]{0}', space=vmem, size = 0x400, scoped, tag = 'input window, operand 4, single buffered']
    #allocation9 [shape = 's32[1]{0}', space=sflag, size = 0x4, scoped, tag = 'scoped memory for discriminator_forward.1']
    #allocation10 [shape = 'u8[147456]{0}', space=vmem, size = 0x24000, scoped, tag = 'input window, operand 5, single buffered']
    #allocation11 [shape = 'u8[73728]{0}', space=vmem, size = 0x12000, scoped, tag = 'input window, operand 6, single buffered']
    #allocation12 [shape = 's32[1]{0}', space=sflag, size = 0x4, scoped, tag = 'scoped memory for discriminator_forward.1']
    #allocation13 [shape = 'u8[512]{0}', space=vmem, size = 0x400, scoped, tag = 'input window, operand 7, single buffered']
    #allocation14 [shape = 'u8[512]{0}', space=vmem, size = 0x400, scoped, tag = 'input window, operand 8, single buffered']
    #allocation15 [shape = 's32[1]{0}', space=sflag, size = 0x4, scoped, tag = 'scoped memory for discriminator_forward.1']
    #allocation16 [shape = 'u8[36864]{0}', space=vmem, size = 0x9000, scoped, tag = 'input window, operand 9, single buffered']
    #allocation17 [shape = 'u8[147456]{0}', space=vmem, size = 0x24000, scoped, tag = 'input window, operand 10, single buffered']
    #allocation18 [shape = 's32[1]{0}', space=sflag, size = 0x4, scoped, tag = 'scoped memory for discriminator_forward.1']
    #allocation19 [shape = 'u8[512]{0}', space=vmem, size = 0x400, scoped, tag = 'input window, operand 11, single buffered']
    #allocation20 [shape = 'u8[512]{0}', space=vmem, size = 0x400, scoped, tag = 'input window, operand 12, single buffered']
    #allocation21 [shape = 's32[1]{0}', space=sflag, size = 0x4, scoped, tag = 'scoped memory for discriminator_forward.1']
    #allocation22 [shape = 'u8[294912]{0}', space=vmem, size = 0x48000, scoped, tag = 'input window, operand 14, single buffered']
    #allocation23 [shape = 'u8[512]{0}', space=vmem, size = 0x400, scoped, tag = 'input window, operand 15, single buffered']
    #allocation24 [shape = 's32[1]{0}', space=sflag, size = 0x4, scoped, tag = 'scoped memory for discriminator_forward.1']
    #allocation25 [shape = 'u8[512]{0}', space=vmem, size = 0x400, scoped, tag = 'input window, operand 16, single buffered']
    #allocation26 [shape = 'u8[1024]{0}', space=vmem, size = 0x400, scoped, tag = 'input window, operand 17, single buffered']
    #allocation27 [shape = 's32[1]{0}', space=sflag, size = 0x4, scoped, tag = 'scoped memory for discriminator_forward.1']
    #allocation28 [shape = 'u8[1024]{0}', space=vmem, size = 0x400, scoped, tag = 'input window, operand 18, single buffered']
    %27 = vsyncpa [#allocation4], 0
    %28 = vsyncpa [#allocation6], 0
    %29 = vsyncpa [#allocation9], 0
    %30 = vsyncpa [#allocation12], 0
    %31 = vsyncpa [#allocation15], 0
    %32 = vsyncpa [#allocation18], 0
    %33 = vsyncpa [#allocation21], 0
    %34 = vsyncpa [#allocation24], 0
    %35 = vsyncpa [#allocation27], 0
    // Predicated region
    $region2: #{discriminator_forward.1} parent=1 // pred_check
      _
    $region3: #{discriminator_forward.1} parent=1 // pred_check_branch
      %37 = sbr.rel (0) target = $region5
    $region4: #{discriminator_forward.1} parent=1 // pred_region
      _
    $region5: #{discriminator_forward.1} parent=1 // pred_fallthru
      _
    // Predicated region
    $region6: #{discriminator_forward.1} parent=1 // pred_check
      _
    $region7: #{discriminator_forward.1} parent=1 // pred_check_branch
      %39 = sbr.rel (0) target = $region9
    $region8: #{discriminator_forward.1} parent=1 // pred_region
      %s41 = ssub.s32 73728, 73728
      %42 = vsyncadd [#allocation4], %s41
      %s43 = sshll.u32 [#allocation3], 4
      %s44 = int_to_ptr.vmem [resolvable:$true] %s43
      %49 = dma.hbm_to_vmem [thread:$0]  %s1, 73728, %s44, [#allocation4], 512, 512, 32
    $region9: #{discriminator_forward.1} parent=1 // pred_fallthru
      _
    // Predicated region
    $region10: #{discriminator_forward.1} parent=1 // pred_check
      _
    $region11: #{discriminator_forward.1} parent=1 // pred_check_branch
      %51 = sbr.rel (0) target = $region13
    $region12: #{discriminator_forward.1} parent=1 // pred_region
      %s53 = ssub.s32 576, 576
      %54 = vsyncadd [#allocation6], %s53
      %s55 = sshll.u32 [#allocation5], 4
      %s56 = int_to_ptr.vmem [resolvable:$true] %s55
      %61 = dma.hbm_to_vmem [thread:$0]  %s2, 576, %s56, [#allocation6], 64, 64, 4
    $region13: #{discriminator_forward.1} parent=1 // pred_fallthru
      _
    // Predicated region
    $region14: #{discriminator_forward.1} parent=1 // pred_check
      _
    $region15: #{discriminator_forward.1} parent=1 // pred_check_branch
      %63 = sbr.rel (0) target = $region17
    $region16: #{discriminator_forward.1} parent=1 // pred_region
      %s65 = ssub.s32 16, 16
      %66 = vsyncadd [#allocation6], %s65
      %s68 = sshll.u32 [#allocation7], 4
      %s69 = int_to_ptr.vmem [resolvable:$true] %s68
      %71 = dma.hbm_to_vmem [thread:$0]  %s3, 16, %s69, [#allocation6]
    $region17: #{discriminator_forward.1} parent=1 // pred_fallthru
      _
    // Predicated region
    $region18: #{discriminator_forward.1} parent=1 // pred_check
      _
    $region19: #{discriminator_forward.1} parent=1 // pred_check_branch
      %73 = sbr.rel (0) target = $region21
    $region20: #{discriminator_forward.1} parent=1 // pred_region
      %s75 = ssub.s32 16, 16
      %76 = vsyncadd [#allocation9], %s75
      %s78 = sshll.u32 [#allocation8], 4
      %s79 = int_to_ptr.vmem [resolvable:$true] %s78
      %81 = dma.hbm_to_vmem [thread:$0]  %s4, 16, %s79, [#allocation9]
    $region21: #{discriminator_forward.1} parent=1 // pred_fallthru
      _
    // Predicated region
    $region22: #{discriminator_forward.1} parent=1 // pred_check
      _
    $region23: #{discriminator_forward.1} parent=1 // pred_check_branch
      %83 = sbr.rel (0) target = $region25
    $region24: #{discriminator_forward.1} parent=1 // pred_region
      %s85 = ssub.s32 4608, 4608
      %86 = vsyncadd [#allocation9], %s85
      %s87 = sshll.u32 [#allocation10], 4
      %s88 = int_to_ptr.vmem [resolvable:$true] %s87
      %93 = dma.hbm_to_vmem [thread:$0]  %s5, 4608, %s88, [#allocation9], 128, 128, 8
    $region25: #{discriminator_forward.1} parent=1 // pred_fallthru
      _
    // Predicated region
    $region26: #{discriminator_forward.1} parent=1 // pred_check
      _
    $region27: #{discriminator_forward.1} parent=1 // pred_check_branch
      %95 = sbr.rel (0) target = $region29
    $region28: #{discriminator_forward.1} parent=1 // pred_region
      %s97 = ssub.s32 2304, 2304
      %98 = vsyncadd [#allocation12], %s97
      %s99 = sshll.u32 [#allocation11], 4
      %s100 = int_to_ptr.vmem [resolvable:$true] %s99
      %105 = dma.hbm_to_vmem [thread:$0]  %s6, 2304, %s100, [#allocation12], 128, 128, 8
    $region29: #{discriminator_forward.1} parent=1 // pred_fallthru
      _
    // Predicated region
    $region30: #{discriminator_forward.1} parent=1 // pred_check
      _
    $region31: #{discriminator_forward.1} parent=1 // pred_check_branch
      %107 = sbr.rel (0) target = $region33
    $region32: #{discriminator_forward.1} parent=1 // pred_region
      %s109 = ssub.s32 16, 16
      %110 = vsyncadd [#allocation12], %s109
      %s112 = sshll.u32 [#allocation13], 4
      %s113 = int_to_ptr.vmem [resolvable:$true] %s112
      %115 = dma.hbm_to_vmem [thread:$0]  %s7, 16, %s113, [#allocation12]
    $region33: #{discriminator_forward.1} parent=1 // pred_fallthru
      _
    // Predicated region
    $region34: #{discriminator_forward.1} parent=1 // pred_check
      _
    $region35: #{discriminator_forward.1} parent=1 // pred_check_branch
      %117 = sbr.rel (0) target = $region37
    $region36: #{discriminator_forward.1} parent=1 // pred_region
      %s119 = ssub.s32 16, 16
      %120 = vsyncadd [#allocation15], %s119
      %s122 = sshll.u32 [#allocation14], 4
      %s123 = int_to_ptr.vmem [resolvable:$true] %s122
      %125 = dma.hbm_to_vmem [thread:$0]  %s8, 16, %s123, [#allocation15]
    $region37: #{discriminator_forward.1} parent=1 // pred_fallthru
      _
    // Predicated region
    $region38: #{discriminator_forward.1} parent=1 // pred_check
      _
    $region39: #{discriminator_forward.1} parent=1 // pred_check_branch
      %127 = sbr.rel (0) target = $region41
    $region40: #{discriminator_forward.1} parent=1 // pred_region
      %s129 = ssub.s32 1152, 1152
      %130 = vsyncadd [#allocation15], %s129
      %s131 = sshll.u32 [#allocation16], 4
      %s132 = int_to_ptr.vmem [resolvable:$true] %s131
      %137 = dma.hbm_to_vmem [thread:$0]  %s9, 1152, %s132, [#allocation15], 128, 128, 8
    $region41: #{discriminator_forward.1} parent=1 // pred_fallthru
      _
    // Predicated region
    $region42: #{discriminator_forward.1} parent=1 // pred_check
      _
    $region43: #{discriminator_forward.1} parent=1 // pred_check_branch
      %139 = sbr.rel (0) target = $region45
    $region44: #{discriminator_forward.1} parent=1 // pred_region
      %s141 = ssub.s32 4608, 4608
      %142 = vsyncadd [#allocation18], %s141
      %s143 = sshll.u32 [#allocation17], 4
      %s144 = int_to_ptr.vmem [resolvable:$true] %s143
      %149 = dma.hbm_to_vmem [thread:$0]  %s10, 4608, %s144, [#allocation18], 128, 128, 8
    $region45: #{discriminator_forward.1} parent=1 // pred_fallthru
      _
    // Predicated region
    $region46: #{discriminator_forward.1} parent=1 // pred_check
      _
    $region47: #{discriminator_forward.1} parent=1 // pred_check_branch
      %151 = sbr.rel (0) target = $region49
    $region48: #{discriminator_forward.1} parent=1 // pred_region
      %s153 = ssub.s32 16, 16
      %154 = vsyncadd [#allocation18], %s153
      %s156 = sshll.u32 [#allocation19], 4
      %s157 = int_to_ptr.vmem [resolvable:$true] %s156
      %159 = dma.hbm_to_vmem [thread:$0]  %s11, 16, %s157, [#allocation18]
    $region49: #{discriminator_forward.1} parent=1 // pred_fallthru
      _
    // Predicated region
    $region50: #{discriminator_forward.1} parent=1 // pred_check
      _
    $region51: #{discriminator_forward.1} parent=1 // pred_check_branch
      %161 = sbr.rel (0) target = $region53
    $region52: #{discriminator_forward.1} parent=1 // pred_region
      %s163 = ssub.s32 16, 16
      %164 = vsyncadd [#allocation21], %s163
      %s166 = sshll.u32 [#allocation20], 4
      %s167 = int_to_ptr.vmem [resolvable:$true] %s166
      %169 = dma.hbm_to_vmem [thread:$0]  %s12, 16, %s167, [#allocation21]
    $region53: #{discriminator_forward.1} parent=1 // pred_fallthru
      _
    // Predicated region
    $region54: #{discriminator_forward.1} parent=1 // pred_check
      _
    $region55: #{discriminator_forward.1} parent=1 // pred_check_branch
      %171 = sbr.rel (0) target = $region57
    $region56: #{discriminator_forward.1} parent=1 // pred_region
      _
    $region57: #{discriminator_forward.1} parent=1 // pred_fallthru
      _
    // Predicated region
    $region58: #{discriminator_forward.1} parent=1 // pred_check
      _
    $region59: #{discriminator_forward.1} parent=1 // pred_check_branch
      %173 = sbr.rel (0) target = $region61
    $region60: #{discriminator_forward.1} parent=1 // pred_region
      %s175 = ssub.s32 9216, 9216
      %176 = vsyncadd [#allocation21], %s175
      %s177 = sshll.u32 [#allocation22], 4
      %s178 = int_to_ptr.vmem [resolvable:$true] %s177
      %183 = dma.hbm_to_vmem [thread:$0]  %s14, 9216, %s178, [#allocation21], 128, 128, 8
    $region61: #{discriminator_forward.1} parent=1 // pred_fallthru
      _
    // Predicated region
    $region62: #{discriminator_forward.1} parent=1 // pred_check
      _
    $region63: #{discriminator_forward.1} parent=1 // pred_check_branch
      %185 = sbr.rel (0) target = $region65
    $region64: #{discriminator_forward.1} parent=1 // pred_region
      %s187 = ssub.s32 16, 16
      %188 = vsyncadd [#allocation24], %s187
      %s190 = sshll.u32 [#allocation23], 4
      %s191 = int_to_ptr.vmem [resolvable:$true] %s190
      %193 = dma.hbm_to_vmem [thread:$0]  %s15, 16, %s191, [#allocation24]
    $region65: #{discriminator_forward.1} parent=1 // pred_fallthru
      _
    // Predicated region
    $region66: #{discriminator_forward.1} parent=1 // pred_check
      _
    $region67: #{discriminator_forward.1} parent=1 // pred_check_branch
      %195 = sbr.rel (0) target = $region69
    $region68: #{discriminator_forward.1} parent=1 // pred_region
      %s197 = ssub.s32 16, 16
      %198 = vsyncadd [#allocation24], %s197
      %s200 = sshll.u32 [#allocation25], 4
      %s201 = int_to_ptr.vmem [resolvable:$true] %s200
      %203 = dma.hbm_to_vmem [thread:$0]  %s16, 16, %s201, [#allocation24]
    $region69: #{discriminator_forward.1} parent=1 // pred_fallthru
      _
    // Predicated region
    $region70: #{discriminator_forward.1} parent=1 // pred_check
      _
    $region71: #{discriminator_forward.1} parent=1 // pred_check_branch
      %205 = sbr.rel (0) target = $region73
    $region72: #{discriminator_forward.1} parent=1 // pred_region
      %s207 = ssub.s32 32, 32
      %208 = vsyncadd [#allocation27], %s207
      %s210 = sshll.u32 [#allocation26], 4
      %s211 = int_to_ptr.vmem [resolvable:$true] %s210
      %213 = dma.hbm_to_vmem [thread:$0]  %s17, 32, %s211, [#allocation27]
    $region73: #{discriminator_forward.1} parent=1 // pred_fallthru
      _
    // Predicated region
    $region74: #{discriminator_forward.1} parent=1 // pred_check
      _
    $region75: #{discriminator_forward.1} parent=1 // pred_check_branch
      %215 = sbr.rel (0) target = $region77
    $region76: #{discriminator_forward.1} parent=1 // pred_region
      %s217 = ssub.s32 32, 32
      %218 = vsyncadd [#allocation27], %s217
      %s220 = sshll.u32 [#allocation28], 4
      %s221 = int_to_ptr.vmem [resolvable:$true] %s220
      %223 = dma.hbm_to_vmem [thread:$0]  %s18, 32, %s221, [#allocation27]
    $region77: #{discriminator_forward.1} parent=1 // pred_fallthru
      _
    // Predicated region
    $region78: #{discriminator_forward.1} parent=1 // pred_check
      _
    $region79: #{discriminator_forward.1} parent=1 // pred_check_branch
      %225 = sbr.rel (0) target = $region81
    $region80: #{discriminator_forward.1} parent=1 // pred_region
      _
    $region81: #{discriminator_forward.1} parent=1 // pred_fallthru
      _
    // Predicated region
    $region82: #{discriminator_forward.1} parent=1 // pred_check
      _
    $region83: #{discriminator_forward.1} parent=1 // pred_check_branch
      %227 = sbr.rel (0) target = $region85
    $region84: #{discriminator_forward.1} parent=1 // pred_region
      %228 = dma.done [#allocation4], 73728
    $region85: #{discriminator_forward.1} parent=1 // pred_fallthru
      _
    // Predicated region
    $region86: #{discriminator_forward.1} parent=1 // pred_check
      _
    $region87: #{discriminator_forward.1} parent=1 // pred_check_branch
      %230 = sbr.rel (0) target = $region89
    $region88: #{discriminator_forward.1} parent=1 // pred_region
      %231 = dma.done [#allocation6], 576
    $region89: #{discriminator_forward.1} parent=1 // pred_fallthru
      _
    // Predicated region
    $region90: #{discriminator_forward.1} parent=1 // pred_check
      _
    $region91: #{discriminator_forward.1} parent=1 // pred_check_branch
      %233 = sbr.rel (0) target = $region93
    $region92: #{discriminator_forward.1} parent=1 // pred_region
      %234 = dma.done [#allocation6], 16
    $region93: #{discriminator_forward.1} parent=1 // pred_fallthru
      _
    // Predicated region
    $region94: #{discriminator_forward.1} parent=1 // pred_check
      _
    $region95: #{discriminator_forward.1} parent=1 // pred_check_branch
      %236 = sbr.rel (0) target = $region97
    $region96: #{discriminator_forward.1} parent=1 // pred_region
      %237 = dma.done [#allocation9], 16
    $region97: #{discriminator_forward.1} parent=1 // pred_fallthru
      _
    // Predicated region
    $region98: #{discriminator_forward.1} parent=1 // pred_check
      _
    $region99: #{discriminator_forward.1} parent=1 // pred_check_branch
      %239 = sbr.rel (0) target = $region101
    $region100: #{discriminator_forward.1} parent=1 // pred_region
      %240 = dma.done [#allocation9], 4608
    $region101: #{discriminator_forward.1} parent=1 // pred_fallthru
      _
    // Predicated region
    $region102: #{discriminator_forward.1} parent=1 // pred_check
      _
    $region103: #{discriminator_forward.1} parent=1 // pred_check_branch
      %242 = sbr.rel (0) target = $region105
    $region104: #{discriminator_forward.1} parent=1 // pred_region
      %243 = dma.done [#allocation12], 2304
    $region105: #{discriminator_forward.1} parent=1 // pred_fallthru
      _
    // Predicated region
    $region106: #{discriminator_forward.1} parent=1 // pred_check
      _
    $region107: #{discriminator_forward.1} parent=1 // pred_check_branch
      %245 = sbr.rel (0) target = $region109
    $region108: #{discriminator_forward.1} parent=1 // pred_region
      %246 = dma.done [#allocation12], 16
    $region109: #{discriminator_forward.1} parent=1 // pred_fallthru
      _
    // Predicated region
    $region110: #{discriminator_forward.1} parent=1 // pred_check
      _
    $region111: #{discriminator_forward.1} parent=1 // pred_check_branch
      %248 = sbr.rel (0) target = $region113
    $region112: #{discriminator_forward.1} parent=1 // pred_region
      %249 = dma.done [#allocation15], 16
    $region113: #{discriminator_forward.1} parent=1 // pred_fallthru
      _
    // Predicated region
    $region114: #{discriminator_forward.1} parent=1 // pred_check
      _
    $region115: #{discriminator_forward.1} parent=1 // pred_check_branch
      %251 = sbr.rel (0) target = $region117
    $region116: #{discriminator_forward.1} parent=1 // pred_region
      %252 = dma.done [#allocation15], 1152
    $region117: #{discriminator_forward.1} parent=1 // pred_fallthru
      _
    // Predicated region
    $region118: #{discriminator_forward.1} parent=1 // pred_check
      _
    $region119: #{discriminator_forward.1} parent=1 // pred_check_branch
      %254 = sbr.rel (0) target = $region121
    $region120: #{discriminator_forward.1} parent=1 // pred_region
      %255 = dma.done [#allocation18], 4608
    $region121: #{discriminator_forward.1} parent=1 // pred_fallthru
      _
    // Predicated region
    $region122: #{discriminator_forward.1} parent=1 // pred_check
      _
    $region123: #{discriminator_forward.1} parent=1 // pred_check_branch
      %257 = sbr.rel (0) target = $region125
    $region124: #{discriminator_forward.1} parent=1 // pred_region
      %258 = dma.done [#allocation18], 16
    $region125: #{discriminator_forward.1} parent=1 // pred_fallthru
      _
    // Predicated region
    $region126: #{discriminator_forward.1} parent=1 // pred_check
      _
    $region127: #{discriminator_forward.1} parent=1 // pred_check_branch
      %260 = sbr.rel (0) target = $region129
    $region128: #{discriminator_forward.1} parent=1 // pred_region
      %261 = dma.done [#allocation21], 16
    $region129: #{discriminator_forward.1} parent=1 // pred_fallthru
      _
    // Predicated region
    $region130: #{discriminator_forward.1} parent=1 // pred_check
      _
    $region131: #{discriminator_forward.1} parent=1 // pred_check_branch
      %263 = sbr.rel (0) target = $region133
    $region132: #{discriminator_forward.1} parent=1 // pred_region
      %264 = dma.done [#allocation21], 9216
    $region133: #{discriminator_forward.1} parent=1 // pred_fallthru
      _
    // Predicated region
    $region134: #{discriminator_forward.1} parent=1 // pred_check
      _
    $region135: #{discriminator_forward.1} parent=1 // pred_check_branch
      %266 = sbr.rel (0) target = $region137
    $region136: #{discriminator_forward.1} parent=1 // pred_region
      %267 = dma.done [#allocation24], 16
    $region137: #{discriminator_forward.1} parent=1 // pred_fallthru
      _
    // Predicated region
    $region138: #{discriminator_forward.1} parent=1 // pred_check
      _
    $region139: #{discriminator_forward.1} parent=1 // pred_check_branch
      %269 = sbr.rel (0) target = $region141
    $region140: #{discriminator_forward.1} parent=1 // pred_region
      %270 = dma.done [#allocation24], 16
    $region141: #{discriminator_forward.1} parent=1 // pred_fallthru
      _
    // Predicated region
    $region142: #{discriminator_forward.1} parent=1 // pred_check
      _
    $region143: #{discriminator_forward.1} parent=1 // pred_check_branch
      %272 = sbr.rel (0) target = $region145
    $region144: #{discriminator_forward.1} parent=1 // pred_region
      %273 = dma.done [#allocation27], 32
    $region145: #{discriminator_forward.1} parent=1 // pred_fallthru
      _
    // Predicated region
    $region146: #{discriminator_forward.1} parent=1 // pred_check
      _
    $region147: #{discriminator_forward.1} parent=1 // pred_check_branch
      %275 = sbr.rel (0) target = $region149
    $region148: #{discriminator_forward.1} parent=1 // pred_region
      %276 = dma.done [#allocation27], 32
    $region149: #{discriminator_forward.1} parent=1 // pred_fallthru
      _
    %v277 = vld [vmem:[%s0] sm:$0xff]
    %v278 = vld [vmem:[%s0 + $0x8] sm:$0xff]
    %v279 = vld [vmem:[%s0 + $0x10] sm:$0xff]
    %v280 = vld [vmem:[%s0 + $0x18] sm:$0xff]
    %v281 = vld [vmem:[%s0 + $0x20] sm:$0xff]
    %v282 = vld [vmem:[%s0 + $0x28] sm:$0xff]
    %v283 = vld [vmem:[%s0 + $0x30] sm:$0xff]
    %v284 = vld [vmem:[%s0 + $0x38] sm:$0xff]
    %v285 = vld [vmem:[%s0 + $0x40] sm:$0xff]
    %v286 = vld [vmem:[%s0 + $0x48] sm:$0xff]
    %v287 = vld [vmem:[%s0 + $0x50] sm:$0xff]
    %v288 = vld [vmem:[%s0 + $0x58] sm:$0xff]
    %v289 = vld [vmem:[%s0 + $0x60] sm:$0xff]
    %v290 = vld [vmem:[%s0 + $0x68] sm:$0xff]
    %v291 = vld [vmem:[%s0 + $0x70] sm:$0xff]
    %v292 = vld [vmem:[%s0 + $0x78] sm:$0xff]
    %v293 = vld [vmem:[%s0 + $0x80] sm:$0xff]
    %v294 = vld [vmem:[%s0 + $0x88] sm:$0xff]
    %v295 = vld [vmem:[%s0 + $0x90] sm:$0xff]
    %v296 = vld [vmem:[%s0 + $0x98] sm:$0xff]
    %v297 = vld [vmem:[%s0 + $0xa0] sm:$0xff]
    %v298 = vld [vmem:[%s0 + $0xa8] sm:$0xff]
    %v299 = vld [vmem:[%s0 + $0xb0] sm:$0xff]
    %v300 = vld [vmem:[%s0 + $0xb8] sm:$0xff]
    %v301 = vld [vmem:[%s0 + $0xc0] sm:$0xff]
    %v302 = vld [vmem:[%s0 + $0xc8] sm:$0xff]
    %v303 = vld [vmem:[%s0 + $0xd0] sm:$0xff]
    %v304 = vld [vmem:[%s0 + $0xd8] sm:$0xff]
    %v305 = vld [vmem:[%s0 + $0xe0] sm:$0xff]
    %v306 = vld [vmem:[%s0 + $0xe8] sm:$0xff]
    %v307 = vld [vmem:[%s0 + $0xf0] sm:$0xff]
    %v308 = vld [vmem:[%s0 + $0xf8] sm:$0xff]
    %v309 = vld [vmem:[%s0 + $0x100] sm:$0xff]
    %v310 = vld [vmem:[%s0 + $0x108] sm:$0xff]
    %v311 = vld [vmem:[%s0 + $0x110] sm:$0xff]
    %v312 = vld [vmem:[%s0 + $0x118] sm:$0xff]
    %v313 = vld [vmem:[%s0 + $0x120] sm:$0xff]
    %v314 = vld [vmem:[%s0 + $0x128] sm:$0xff]
    %v315 = vld [vmem:[%s0 + $0x130] sm:$0xff]
    %v316 = vld [vmem:[%s0 + $0x138] sm:$0xff]
    %v317 = vld [vmem:[%s0 + $0x140] sm:$0xff]
    %v318 = vld [vmem:[%s0 + $0x148] sm:$0xff]
    %v319 = vld [vmem:[%s0 + $0x150] sm:$0xff]
    %v320 = vld [vmem:[%s0 + $0x158] sm:$0xff]
    %v321 = vld [vmem:[%s0 + $0x160] sm:$0xff]
    %v322 = vld [vmem:[%s0 + $0x168] sm:$0xff]
    %v323 = vld [vmem:[%s0 + $0x170] sm:$0xff]
    %v324 = vld [vmem:[%s0 + $0x178] sm:$0xff]
    %v325 = vld [vmem:[%s0 + $0x180] sm:$0xff]
    %v326 = vld [vmem:[%s0 + $0x188] sm:$0xff]
    %v327 = vld [vmem:[%s0 + $0x190] sm:$0xff]
    %v328 = vld [vmem:[%s0 + $0x198] sm:$0xff]
    %v329 = vld [vmem:[%s0 + $0x1a0] sm:$0xff]
    %v330 = vld [vmem:[%s0 + $0x1a8] sm:$0xff]
    %v331 = vld [vmem:[%s0 + $0x1b0] sm:$0xff]
    %v332 = vld [vmem:[%s0 + $0x1b8] sm:$0xff]
    %v333 = vld [vmem:[%s0 + $0x1c0] sm:$0xff]
    %v334 = vld [vmem:[%s0 + $0x1c8] sm:$0xff]
    %v335 = vld [vmem:[%s0 + $0x1d0] sm:$0xff]
    %v336 = vld [vmem:[%s0 + $0x1d8] sm:$0xff]
    %v337 = vld [vmem:[%s0 + $0x1e0] sm:$0xff]
    %v338 = vld [vmem:[%s0 + $0x1e8] sm:$0xff]
    %v339 = vld [vmem:[%s0 + $0x1f0] sm:$0xff]
    %v340 = vld [vmem:[%s0 + $0x1f8] sm:$0xff]
    %v341 = vld [vmem:[#allocation3] sm:$0xff]
    %v342 = vld [vmem:[#allocation3 + $0x8] sm:$0xff]
    %v343 = vld [vmem:[#allocation3 + $0x10] sm:$0xff]
    %v344 = vld [vmem:[#allocation3 + $0x18] sm:$0xff]
    %v345 = vld [vmem:[#allocation3 + $0x20] sm:$0xff]
    %v346 = vld [vmem:[#allocation3 + $0x28] sm:$0xff]
    %v347 = vld [vmem:[#allocation3 + $0x30] sm:$0xff]
    %v348 = vld [vmem:[#allocation3 + $0x38] sm:$0xff]
    %v349 = vld [vmem:[#allocation3 + $0x40] sm:$0xff]
    %v350 = vld [vmem:[#allocation3 + $0x48] sm:$0xff]
    %v351 = vld [vmem:[#allocation3 + $0x50] sm:$0xff]
    %v352 = vld [vmem:[#allocation3 + $0x58] sm:$0xff]
    %v353 = vld [vmem:[#allocation3 + $0x60] sm:$0xff]
    %v354 = vld [vmem:[#allocation3 + $0x68] sm:$0xff]
    %v355 = vld [vmem:[#allocation3 + $0x70] sm:$0xff]
    %v356 = vld [vmem:[#allocation3 + $0x78] sm:$0xff]
    %v357 = vld [vmem:[#allocation3 + $0x80] sm:$0xff]
    %v358 = vld [vmem:[#allocation3 + $0x88] sm:$0xff]
    %v359 = vld [vmem:[#allocation3 + $0x90] sm:$0xff]
    %v360 = vld [vmem:[#allocation3 + $0x98] sm:$0xff]
    %v361 = vld [vmem:[#allocation3 + $0xa0] sm:$0xff]
    %v362 = vld [vmem:[#allocation3 + $0xa8] sm:$0xff]
    %v363 = vld [vmem:[#allocation3 + $0xb0] sm:$0xff]
    %v364 = vld [vmem:[#allocation3 + $0xb8] sm:$0xff]
    %v365 = vld [vmem:[#allocation3 + $0xc0] sm:$0xff]
    %v366 = vld [vmem:[#allocation3 + $0xc8] sm:$0xff]
    %v367 = vld [vmem:[#allocation3 + $0xd0] sm:$0xff]
    %v368 = vld [vmem:[#allocation3 + $0xd8] sm:$0xff]
    %v369 = vld [vmem:[#allocation3 + $0xe0] sm:$0xff]
    %v370 = vld [vmem:[#allocation3 + $0xe8] sm:$0xff]
    %v371 = vld [vmem:[#allocation3 + $0xf0] sm:$0xff]
    %v372 = vld [vmem:[#allocation3 + $0xf8] sm:$0xff]
    %v373 = vld [vmem:[#allocation3 + $0x100] sm:$0xff]
    %v374 = vld [vmem:[#allocation3 + $0x108] sm:$0xff]
    %v375 = vld [vmem:[#allocation3 + $0x110] sm:$0xff]
    %v376 = vld [vmem:[#allocation3 + $0x118] sm:$0xff]
    %v377 = vld [vmem:[#allocation3 + $0x120] sm:$0xff]
    %v378 = vld [vmem:[#allocation3 + $0x128] sm:$0xff]
    %v379 = vld [vmem:[#allocation3 + $0x130] sm:$0xff]
    %v380 = vld [vmem:[#allocation3 + $0x138] sm:$0xff]
    %v381 = vld [vmem:[#allocation3 + $0x140] sm:$0xff]
    %v382 = vld [vmem:[#allocation3 + $0x148] sm:$0xff]
    %v383 = vld [vmem:[#allocation3 + $0x150] sm:$0xff]
    %v384 = vld [vmem:[#allocation3 + $0x158] sm:$0xff]
    %v385 = vld [vmem:[#allocation3 + $0x160] sm:$0xff]
    %v386 = vld [vmem:[#allocation3 + $0x168] sm:$0xff]
    %v387 = vld [vmem:[#allocation3 + $0x170] sm:$0xff]
    %v388 = vld [vmem:[#allocation3 + $0x178] sm:$0xff]
    %v389 = vld [vmem:[#allocation3 + $0x180] sm:$0xff]
    %v390 = vld [vmem:[#allocation3 + $0x188] sm:$0xff]
    %v391 = vld [vmem:[#allocation3 + $0x190] sm:$0xff]
    %v392 = vld [vmem:[#allocation3 + $0x198] sm:$0xff]
    %v393 = vld [vmem:[#allocation3 + $0x1a0] sm:$0xff]
    %v394 = vld [vmem:[#allocation3 + $0x1a8] sm:$0xff]
    %v395 = vld [vmem:[#allocation3 + $0x1b0] sm:$0xff]
    %v396 = vld [vmem:[#allocation3 + $0x1b8] sm:$0xff]
    %v397 = vld [vmem:[#allocation3 + $0x1c0] sm:$0xff]
    %v398 = vld [vmem:[#allocation3 + $0x1c8] sm:$0xff]
    %v399 = vld [vmem:[#allocation3 + $0x1d0] sm:$0xff]
    %v400 = vld [vmem:[#allocation3 + $0x1d8] sm:$0xff]
    %v401 = vld [vmem:[#allocation3 + $0x1e0] sm:$0xff]
    %v402 = vld [vmem:[#allocation3 + $0x1e8] sm:$0xff]
    %v403 = vld [vmem:[#allocation3 + $0x1f0] sm:$0xff]
    %v404 = vld [vmem:[#allocation3 + $0x1f8] sm:$0xff]
    %405 = vmatprep.subr.mxu0 0.0
    %406 = vmatpush1.msra.mxu0 %v277
    %407 = vmatprep.subr.mxu0 0.0
    %408 = vmatpush1.msra.mxu0 %v278
    %409 = vmatprep.subr.mxu0 0.0
    %410 = vmatpush1.msra.mxu0 %v279
    %411 = vmatprep.subr.mxu0 0.0
    %412 = vmatpush1.msra.mxu0 %v280
    %413 = vmatprep.subr.mxu0 0.0
    %414 = vmatpush1.msra.mxu0 %v281
    %415 = vmatprep.subr.mxu0 0.0
    %416 = vmatpush1.msra.mxu0 %v282
    %417 = vmatprep.subr.mxu0 0.0
    %418 = vmatpush1.msra.mxu0 %v283
    %419 = vmatprep.subr.mxu0 0.0
    %420 = vmatpush1.msra.mxu0 %v284
    %421 = vmatprep.subr.mxu0 0.0
    %422 = vmatpush1.msra.mxu0 %v285
    %423 = vmatprep.subr.mxu0 0.0
    %424 = vmatpush1.msra.mxu0 %v286
    %425 = vmatprep.subr.mxu0 0.0
    %426 = vmatpush1.msra.mxu0 %v287
    %427 = vmatprep.subr.mxu0 0.0
    %428 = vmatpush1.msra.mxu0 %v288
    %429 = vmatprep.subr.mxu0 0.0
    %430 = vmatpush1.msra.mxu0 %v289
    %431 = vmatprep.subr.mxu0 0.0
    %432 = vmatpush1.msra.mxu0 %v290
    %433 = vmatprep.subr.mxu0 0.0
    %434 = vmatpush1.msra.mxu0 %v291
    %435 = vmatprep.subr.mxu0 0.0
    %436 = vmatpush1.msra.mxu0 %v292
    %437 = vmatprep.subr.mxu0 0.0
    %438 = vmatpush1.msra.mxu0 %v293
    %439 = vmatprep.subr.mxu0 0.0
    %440 = vmatpush1.msra.mxu0 %v294
    %441 = vmatprep.subr.mxu0 0.0
    %442 = vmatpush1.msra.mxu0 %v295
    %443 = vmatprep.subr.mxu0 0.0
    %444 = vmatpush1.msra.mxu0 %v296
    %445 = vmatprep.subr.mxu0 0.0
    %446 = vmatpush1.msra.mxu0 %v297
    %447 = vmatprep.subr.mxu0 0.0
    %448 = vmatpush1.msra.mxu0 %v298
    %449 = vmatprep.subr.mxu0 0.0
    %450 = vmatpush1.msra.mxu0 %v299
    %451 = vmatprep.subr.mxu0 0.0
    %452 = vmatpush1.msra.mxu0 %v300
    %453 = vmatprep.subr.mxu0 0.0
    %454 = vmatpush1.msra.mxu0 %v301
    %455 = vmatprep.subr.mxu0 0.0
    %456 = vmatpush1.msra.mxu0 %v302
    %457 = vmatprep.subr.mxu0 0.0
    %458 = vmatpush1.msra.mxu0 %v303
    %459 = vmatprep.subr.mxu0 0.0
    %460 = vmatpush1.msra.mxu0 %v304
    %461 = vmatprep.subr.mxu0 0.0
    %462 = vmatpush1.msra.mxu0 %v305
    %463 = vmatprep.subr.mxu0 0.0
    %464 = vmatpush1.msra.mxu0 %v306
    %465 = vmatprep.subr.mxu0 0.0
    %466 = vmatpush1.msra.mxu0 %v307
    %467 = vmatprep.subr.mxu0 0.0
    %468 = vmatpush1.msra.mxu0 %v308
    %469 = vmatprep.mubr.f32.mxu0 %v342
    %470 = vmatmul.mubr.f32.gmra.mrb[0].mxu0 %v341
    %v471 = vpop.f32.mrb[0].mxu0
    %v472 = vadd.f32 0.0, %v471
    %v473 = vpop.f32.mrb[0].mxu0
    %474 = vmatprep.mubr.f32.mxu0 %v346
    %475 = vmatmul.mubr.f32.gmra.mrb[0].mxu0 %v345
    %v476 = vpop.f32.mrb[0].mxu0
    %v477 = vadd.f32 0.0, %v476
    %v478 = vpop.f32.mrb[0].mxu0
    %479 = vmatprep.mubr.f32.mxu0 %v350
    %480 = vmatmul.mubr.f32.gmra.mrb[0].mxu0 %v349
    %v481 = vpop.f32.mrb[0].mxu0
    %v482 = vadd.f32 0.0, %v481
    %v483 = vpop.f32.mrb[0].mxu0
    %484 = vmatprep.mubr.f32.mxu0 %v354
    %485 = vmatmul.mubr.f32.gmra.mrb[0].mxu0 %v353
    %v486 = vpop.f32.mrb[0].mxu0
    %v487 = vadd.f32 0.0, %v486
    %v488 = vpop.f32.mrb[0].mxu0
    %489 = vmatprep.mubr.f32.mxu0 %v358
    %490 = vmatmul.mubr.f32.gmra.mrb[0].mxu0 %v357
    %v491 = vpop.f32.mrb[0].mxu0
    %v492 = vadd.f32 0.0, %v491
    %v493 = vpop.f32.mrb[0].mxu0
    %494 = vmatprep.mubr.f32.mxu0 %v362
    %495 = vmatmul.mubr.f32.gmra.mrb[0].mxu0 %v361
    %v496 = vpop.f32.mrb[0].mxu0
    %v497 = vadd.f32 0.0, %v496
    %v498 = vpop.f32.mrb[0].mxu0
    %499 = vmatprep.mubr.f32.mxu0 %v366
    %500 = vmatmul.mubr.f32.gmra.mrb[0].mxu0 %v365
    %v501 = vpop.f32.mrb[0].mxu0
    %v502 = vadd.f32 0.0, %v501
    %v503 = vpop.f32.mrb[0].mxu0
    %504 = vmatprep.mubr.f32.mxu0 %v370
    %505 = vmatmul.mubr.f32.gmra.mrb[0].mxu0 %v369
    %v506 = vpop.f32.mrb[0].mxu0
    %v507 = vadd.f32 0.0, %v506
    %v508 = vpop.f32.mrb[0].mxu0
    %509 = vmatprep.mubr.f32.mxu0 %v374
    %510 = vmatmul.mubr.f32.gmra.mrb[0].mxu0 %v373
    %v511 = vpop.f32.mrb[0].mxu0
    %v512 = vadd.f32 0.0, %v511
    %v513 = vpop.f32.mrb[0].mxu0
    %514 = vmatprep.mubr.f32.mxu0 %v378
    %515 = vmatmul.mubr.f32.gmra.mrb[0].mxu0 %v377
    %v516 = vpop.f32.mrb[0].mxu0
    %v517 = vadd.f32 0.0, %v516
    %v518 = vpop.f32.mrb[0].mxu0
    %519 = vmatprep.mubr.f32.mxu0 %v382
    %520 = vmatmul.mubr.f32.gmra.mrb[0].mxu0 %v381
    %v521 = vpop.f32.mrb[0].mxu0
    %v522 = vadd.f32 0.0, %v521
    %v523 = vpop.f32.mrb[0].mxu0
    %524 = vmatprep.mubr.f32.mxu0 %v386
    %525 = vmatmul.mubr.f32.gmra.mrb[0].mxu0 %v385
    %v526 = vpop.f32.mrb[0].mxu0
    %v527 = vadd.f32 0.0, %v526
    %v528 = vpop.f32.mrb[0].mxu0
    %529 = vmatprep.mubr.f32.mxu0 %v390
    %530 = vmatmul.mubr.f32.gmra.mrb[0].mxu0 %v389
    %v531 = vpop.f32.mrb[0].mxu0
    %v532 = vadd.f32 0.0, %v531
    %v533 = vpop.f32.mrb[0].mxu0
    %534 = vmatprep.mubr.f32.mxu0 %v394
    %535 = vmatmul.mubr.f32.gmra.mrb[0].mxu0 %v393
    %v536 = vpop.f32.mrb[0].mxu0
    %v537 = vadd.f32 0.0, %v536
    %v538 = vpop.f32.mrb[0].mxu0
    %539 = vmatprep.mubr.f32.mxu0 %v398
    %540 = vmatmul.mubr.f32.gmra.mrb[0].mxu0 %v397
    %v541 = vpop.f32.mrb[0].mxu0
    %v542 = vadd.f32 0.0, %v541
    %v543 = vpop.f32.mrb[0].mxu0
    %544 = vmatprep.mubr.f32.mxu0 %v402
    %545 = vmatmul.mubr.f32.gmra.mrb[0].mxu0 %v401
    %v546 = vpop.f32.mrb[0].mxu0
    %v547 = vadd.f32 0.0, %v546
    %v548 = vpop.f32.mrb[0].mxu0
    %549 = vdwg.mxu0
    %550 = vmatprep.subr.mxu0 0.0
    %551 = vmatpush1.msra.mxu0 %v309
    %552 = vmatprep.subr.mxu0 0.0
    %553 = vmatpush1.msra.mxu0 %v310
    %554 = vmatprep.subr.mxu0 0.0
    %555 = vmatpush1.msra.mxu0 %v311
    %556 = vmatprep.subr.mxu0 0.0
    %557 = vmatpush1.msra.mxu0 %v312
    %558 = vmatprep.subr.mxu0 0.0
    %559 = vmatpush1.msra.mxu0 %v313
    %560 = vmatprep.subr.mxu0 0.0
    %561 = vmatpush1.msra.mxu0 %v314
    %562 = vmatprep.subr.mxu0 0.0
    %563 = vmatpush1.msra.mxu0 %v315
    %564 = vmatprep.subr.mxu0 0.0
    %565 = vmatpush1.msra.mxu0 %v316
    %566 = vmatprep.subr.mxu0 0.0
    %567 = vmatpush1.msra.mxu0 %v317
    %568 = vmatprep.subr.mxu0 0.0
    %569 = vmatpush1.msra.mxu0 %v318
    %570 = vmatprep.subr.mxu0 0.0
    %571 = vmatpush1.msra.mxu0 %v319
    %572 = vmatprep.subr.mxu0 0.0
    %573 = vmatpush1.msra.mxu0 %v320
    %574 = vmatprep.subr.mxu0 0.0
    %575 = vmatpush1.msra.mxu0 %v321
    %576 = vmatprep.subr.mxu0 0.0
    %577 = vmatpush1.msra.mxu0 %v322
    %578 = vmatprep.subr.mxu0 0.0
    %579 = vmatpush1.msra.mxu0 %v323
    %580 = vmatprep.subr.mxu0 0.0
    %581 = vmatpush1.msra.mxu0 %v324
    %582 = vmatprep.subr.mxu0 0.0
    %583 = vmatpush1.msra.mxu0 %v325
    %584 = vmatprep.subr.mxu0 0.0
    %585 = vmatpush1.msra.mxu0 %v326
    %586 = vmatprep.subr.mxu0 0.0
    %587 = vmatpush1.msra.mxu0 %v327
    %588 = vmatprep.subr.mxu0 0.0
    %589 = vmatpush1.msra.mxu0 %v328
    %590 = vmatprep.subr.mxu0 0.0
    %591 = vmatpush1.msra.mxu0 %v329
    %592 = vmatprep.subr.mxu0 0.0
    %593 = vmatpush1.msra.mxu0 %v330
    %594 = vmatprep.subr.mxu0 0.0
    %595 = vmatpush1.msra.mxu0 %v331
    %596 = vmatprep.subr.mxu0 0.0
    %597 = vmatpush1.msra.mxu0 %v332
    %598 = vmatprep.subr.mxu0 0.0
    %599 = vmatpush1.msra.mxu0 %v333
    %600 = vmatprep.subr.mxu0 0.0
    %601 = vmatpush1.msra.mxu0 %v334
    %602 = vmatprep.subr.mxu0 0.0
    %603 = vmatpush1.msra.mxu0 %v335
    %604 = vmatprep.subr.mxu0 0.0
    %605 = vmatpush1.msra.mxu0 %v336
    %606 = vmatprep.subr.mxu0 0.0
    %607 = vmatpush1.msra.mxu0 %v337
    %608 = vmatprep.subr.mxu0 0.0
    %609 = vmatpush1.msra.mxu0 %v338
    %610 = vmatprep.subr.mxu0 0.0
    %611 = vmatpush1.msra.mxu0 %v339
    %612 = vmatprep.subr.mxu0 0.0
    %613 = vmatpush1.msra.mxu0 %v340
    %614 = vmatprep.mubr.f32.mxu0 %v344
    %615 = vmatmul.mubr.f32.gmra.mrb[0].mxu0 %v343
    %v616 = vpop.f32.mrb[0].mxu0
    %v617 = vadd.f32 %v472, %v616
    %v618 = vpop.f32.mrb[0].mxu0
    %619 = vmatprep.mubr.f32.mxu0 %v348
    %620 = vmatmul.mubr.f32.gmra.mrb[0].mxu0 %v347
    %v621 = vpop.f32.mrb[0].mxu0
    %v622 = vadd.f32 %v477, %v621
    %v623 = vpop.f32.mrb[0].mxu0
    %624 = vmatprep.mubr.f32.mxu0 %v352
    %625 = vmatmul.mubr.f32.gmra.mrb[0].mxu0 %v351
    %v626 = vpop.f32.mrb[0].mxu0
    %v627 = vadd.f32 %v482, %v626
    %v628 = vpop.f32.mrb[0].mxu0
    %629 = vmatprep.mubr.f32.mxu0 %v356
    %630 = vmatmul.mubr.f32.gmra.mrb[0].mxu0 %v355
    %v631 = vpop.f32.mrb[0].mxu0
    %v632 = vadd.f32 %v487, %v631
    %v633 = vpop.f32.mrb[0].mxu0
    %634 = vmatprep.mubr.f32.mxu0 %v360
    %635 = vmatmul.mubr.f32.gmra.mrb[0].mxu0 %v359
    %v636 = vpop.f32.mrb[0].mxu0
    %v637 = vadd.f32 %v492, %v636
    %v638 = vpop.f32.mrb[0].mxu0
    %639 = vmatprep.mubr.f32.mxu0 %v364
    %640 = vmatmul.mubr.f32.gmra.mrb[0].mxu0 %v363
    %v641 = vpop.f32.mrb[0].mxu0
    %v642 = vadd.f32 %v497, %v641
    %v643 = vpop.f32.mrb[0].mxu0
    %644 = vmatprep.mubr.f32.mxu0 %v368
    %645 = vmatmul.mubr.f32.gmra.mrb[0].mxu0 %v367
    %v646 = vpop.f32.mrb[0].mxu0
    %v647 = vadd.f32 %v502, %v646
    %v648 = vpop.f32.mrb[0].mxu0
    %649 = vmatprep.mubr.f32.mxu0 %v372
    %650 = vmatmul.mubr.f32.gmra.mrb[0].mxu0 %v371
    %v651 = vpop.f32.mrb[0].mxu0
    %v652 = vadd.f32 %v507, %v651
    %v653 = vpop.f32.mrb[0].mxu0
    %654 = vmatprep.mubr.f32.mxu0 %v376
    %655 = vmatmul.mubr.f32.gmra.mrb[0].mxu0 %v375
    %v656 = vpop.f32.mrb[0].mxu0
    %v657 = vadd.f32 %v512, %v656
    %v658 = vpop.f32.mrb[0].mxu0
    %659 = vmatprep.mubr.f32.mxu0 %v380
    %660 = vmatmul.mubr.f32.gmra.mrb[0].mxu0 %v379
    %v661 = vpop.f32.mrb[0].mxu0
    %v662 = vadd.f32 %v517, %v661
    %v663 = vpop.f32.mrb[0].mxu0
    %664 = vmatprep.mubr.f32.mxu0 %v384
    %665 = vmatmul.mubr.f32.gmra.mrb[0].mxu0 %v383
    %v666 = vpop.f32.mrb[0].mxu0
    %v667 = vadd.f32 %v522, %v666
    %v668 = vpop.f32.mrb[0].mxu0
    %669 = vmatprep.mubr.f32.mxu0 %v388
    %670 = vmatmul.mubr.f32.gmra.mrb[0].mxu0 %v387
    %v671 = vpop.f32.mrb[0].mxu0
    %v672 = vadd.f32 %v527, %v671
    %v673 = vpop.f32.mrb[0].mxu0
    %674 = vmatprep.mubr.f32.mxu0 %v392
    %675 = vmatmul.mubr.f32.gmra.mrb[0].mxu0 %v391
    %v676 = vpop.f32.mrb[0].mxu0
    %v677 = vadd.f32 %v532, %v676
    %v678 = vpop.f32.mrb[0].mxu0
    %679 = vmatprep.mubr.f32.mxu0 %v396
    %680 = vmatmul.mubr.f32.gmra.mrb[0].mxu0 %v395
    %v681 = vpop.f32.mrb[0].mxu0
    %v682 = vadd.f32 %v537, %v681
    %v683 = vpop.f32.mrb[0].mxu0
    %684 = vmatprep.mubr.f32.mxu0 %v400
    %685 = vmatmul.mubr.f32.gmra.mrb[0].mxu0 %v399
    %v686 = vpop.f32.mrb[0].mxu0
    %v687 = vadd.f32 %v542, %v686
    %v688 = vpop.f32.mrb[0].mxu0
    %689 = vmatprep.mubr.f32.mxu0 %v404
    %690 = vmatmul.mubr.f32.gmra.mrb[0].mxu0 %v403
    %v691 = vpop.f32.mrb[0].mxu0
    %v692 = vadd.f32 %v547, %v691
    %v693 = vpop.f32.mrb[0].mxu0
    %694 = vdwg.mxu0
    %v695 = vld [vmem:[#allocation5] sm:$0xf]
    %s696 = scalar_lea.vmem [#allocation3], 512
    %v697 = vld [vmem:[%s696] sm:$0xff]
    %v698 = vld [vmem:[%s696 + $0x8] sm:$0xff]
    %v699 = vld [vmem:[%s696 + $0x10] sm:$0xff]
    %v700 = vld [vmem:[%s696 + $0x18] sm:$0xff]
    %v701 = vld [vmem:[%s696 + $0x20] sm:$0xff]
    %v702 = vld [vmem:[%s696 + $0x28] sm:$0xff]
    %v703 = vld [vmem:[%s696 + $0x30] sm:$0xff]
    %v704 = vld [vmem:[%s696 + $0x38] sm:$0xff]
    %v705 = vld [vmem:[%s696 + $0x40] sm:$0xff]
    %v706 = vld [vmem:[%s696 + $0x48] sm:$0xff]
    %v707 = vld [vmem:[%s696 + $0x50] sm:$0xff]
    %v708 = vld [vmem:[%s696 + $0x58] sm:$0xff]
    %v709 = vld [vmem:[%s696 + $0x60] sm:$0xff]
    %v710 = vld [vmem:[%s696 + $0x68] sm:$0xff]
    %v711 = vld [vmem:[%s696 + $0x70] sm:$0xff]
    %v712 = vld [vmem:[%s696 + $0x78] sm:$0xff]
    %v713 = vld [vmem:[%s696 + $0x80] sm:$0xff]
    %v714 = vld [vmem:[%s696 + $0x88] sm:$0xff]
    %v715 = vld [vmem:[%s696 + $0x90] sm:$0xff]
    %v716 = vld [vmem:[%s696 + $0x98] sm:$0xff]
    %v717 = vld [vmem:[%s696 + $0xa0] sm:$0xff]
    %v718 = vld [vmem:[%s696 + $0xa8] sm:$0xff]
    %v719 = vld [vmem:[%s696 + $0xb0] sm:$0xff]
    %v720 = vld [vmem:[%s696 + $0xb8] sm:$0xff]
    %v721 = vld [vmem:[%s696 + $0xc0] sm:$0xff]
    %v722 = vld [vmem:[%s696 + $0xc8] sm:$0xff]
    %v723 = vld [vmem:[%s696 + $0xd0] sm:$0xff]
    %v724 = vld [vmem:[%s696 + $0xd8] sm:$0xff]
    %v725 = vld [vmem:[%s696 + $0xe0] sm:$0xff]
    %v726 = vld [vmem:[%s696 + $0xe8] sm:$0xff]
    %v727 = vld [vmem:[%s696 + $0xf0] sm:$0xff]
    %v728 = vld [vmem:[%s696 + $0xf8] sm:$0xff]
    %v729 = vld [vmem:[%s696 + $0x100] sm:$0xff]
    %v730 = vld [vmem:[%s696 + $0x108] sm:$0xff]
    %v731 = vld [vmem:[%s696 + $0x110] sm:$0xff]
    %v732 = vld [vmem:[%s696 + $0x118] sm:$0xff]
    %v733 = vld [vmem:[%s696 + $0x120] sm:$0xff]
    %v734 = vld [vmem:[%s696 + $0x128] sm:$0xff]
    %v735 = vld [vmem:[%s696 + $0x130] sm:$0xff]
    %v736 = vld [vmem:[%s696 + $0x138] sm:$0xff]
    %v737 = vld [vmem:[%s696 + $0x140] sm:$0xff]
    %v738 = vld [vmem:[%s696 + $0x148] sm:$0xff]
    %v739 = vld [vmem:[%s696 + $0x150] sm:$0xff]
    %v740 = vld [vmem:[%s696 + $0x158] sm:$0xff]
    %v741 = vld [vmem:[%s696 + $0x160] sm:$0xff]
    %v742 = vld [vmem:[%s696 + $0x168] sm:$0xff]
    %v743 = vld [vmem:[%s696 + $0x170] sm:$0xff]
    %v744 = vld [vmem:[%s696 + $0x178] sm:$0xff]
    %v745 = vld [vmem:[%s696 + $0x180] sm:$0xff]
    %v746 = vld [vmem:[%s696 + $0x188] sm:$0xff]
    %v747 = vld [vmem:[%s696 + $0x190] sm:$0xff]
    %v748 = vld [vmem:[%s696 + $0x198] sm:$0xff]
    %v749 = vld [vmem:[%s696 + $0x1a0] sm:$0xff]
    %v750 = vld [vmem:[%s696 + $0x1a8] sm:$0xff]
    %v751 = vld [vmem:[%s696 + $0x1b0] sm:$0xff]
    %v752 = vld [vmem:[%s696 + $0x1b8] sm:$0xff]
    %v753 = vld [vmem:[%s696 + $0x1c0] sm:$0xff]
    %v754 = vld [vmem:[%s696 + $0x1c8] sm:$0xff]
    %v755 = vld [vmem:[%s696 + $0x1d0] sm:$0xff]
    %v756 = vld [vmem:[%s696 + $0x1d8] sm:$0xff]
    %v757 = vld [vmem:[%s696 + $0x1e0] sm:$0xff]
    %v758 = vld [vmem:[%s696 + $0x1e8] sm:$0xff]
    %v759 = vld [vmem:[%s696 + $0x1f0] sm:$0xff]
    %v760 = vld [vmem:[%s696 + $0x1f8] sm:$0xff]
    %761 = vmatprep.subr.mxu0 0.0
    %762 = vmatpush1.msra.mxu0 %v277
    %763 = vmatprep.subr.mxu0 0.0
    %764 = vmatpush1.msra.mxu0 %v278
    %765 = vmatprep.subr.mxu0 0.0
    %766 = vmatpush1.msra.mxu0 %v279
    %767 = vmatprep.subr.mxu0 0.0
    %768 = vmatpush1.msra.mxu0 %v280
    %769 = vmatprep.subr.mxu0 0.0
    %770 = vmatpush1.msra.mxu0 %v281
    %771 = vmatprep.subr.mxu0 0.0
    %772 = vmatpush1.msra.mxu0 %v282
    %773 = vmatprep.subr.mxu0 0.0
    %774 = vmatpush1.msra.mxu0 %v283
    %775 = vmatprep.subr.mxu0 0.0
    %776 = vmatpush1.msra.mxu0 %v284
    %777 = vmatprep.subr.mxu0 0.0
    %778 = vmatpush1.msra.mxu0 %v285
    %779 = vmatprep.subr.mxu0 0.0
    %780 = vmatpush1.msra.mxu0 %v286
    %781 = vmatprep.subr.mxu0 0.0
    %782 = vmatpush1.msra.mxu0 %v287
    %783 = vmatprep.subr.mxu0 0.0
    %784 = vmatpush1.msra.mxu0 %v288
    %785 = vmatprep.subr.mxu0 0.0
    %786 = vmatpush1.msra.mxu0 %v289
    %787 = vmatprep.subr.mxu0 0.0
    %788 = vmatpush1.msra.mxu0 %v290
    %789 = vmatprep.subr.mxu0 0.0
    %790 = vmatpush1.msra.mxu0 %v291
    %791 = vmatprep.subr.mxu0 0.0
    %792 = vmatpush1.msra.mxu0 %v292
    %793 = vmatprep.subr.mxu0 0.0
    %794 = vmatpush1.msra.mxu0 %v293
    %795 = vmatprep.subr.mxu0 0.0
    %796 = vmatpush1.msra.mxu0 %v294
    %797 = vmatprep.subr.mxu0 0.0
    %798 = vmatpush1.msra.mxu0 %v295
    %799 = vmatprep.subr.mxu0 0.0
    %800 = vmatpush1.msra.mxu0 %v296
    %801 = vmatprep.subr.mxu0 0.0
    %802 = vmatpush1.msra.mxu0 %v297
    %803 = vmatprep.subr.mxu0 0.0
    %804 = vmatpush1.msra.mxu0 %v298
    %805 = vmatprep.subr.mxu0 0.0
    %806 = vmatpush1.msra.mxu0 %v299
    %807 = vmatprep.subr.mxu0 0.0
    %808 = vmatpush1.msra.mxu0 %v300
    %809 = vmatprep.subr.mxu0 0.0
    %810 = vmatpush1.msra.mxu0 %v301
    %811 = vmatprep.subr.mxu0 0.0
    %812 = vmatpush1.msra.mxu0 %v302
    %813 = vmatprep.subr.mxu0 0.0
    %814 = vmatpush1.msra.mxu0 %v303
    %815 = vmatprep.subr.mxu0 0.0
    %816 = vmatpush1.msra.mxu0 %v304
    %817 = vmatprep.subr.mxu0 0.0
    %818 = vmatpush1.msra.mxu0 %v305
    %819 = vmatprep.subr.mxu0 0.0
    %820 = vmatpush1.msra.mxu0 %v306
    %821 = vmatprep.subr.mxu0 0.0
    %822 = vmatpush1.msra.mxu0 %v307
    %823 = vmatprep.subr.mxu0 0.0
    %824 = vmatpush1.msra.mxu0 %v308
    %825 = vmatprep.mubr.f32.mxu0 %v698
    %826 = vmatmul.mubr.f32.gmra.mrb[0].mxu0 %v697
    %v827 = vpop.f32.mrb[0].mxu0
    %v828 = vadd.f32 0.0, %v827
    %v829 = vpop.f32.mrb[0].mxu0
    %830 = vmatprep.mubr.f32.mxu0 %v702
    %831 = vmatmul.mubr.f32.gmra.mrb[0].mxu0 %v701
    %v832 = vpop.f32.mrb[0].mxu0
    %v833 = vadd.f32 0.0, %v832
    %v834 = vpop.f32.mrb[0].mxu0
    %835 = vmatprep.mubr.f32.mxu0 %v706
    %836 = vmatmul.mubr.f32.gmra.mrb[0].mxu0 %v705
    %v837 = vpop.f32.mrb[0].mxu0
    %v838 = vadd.f32 0.0, %v837
    %v839 = vpop.f32.mrb[0].mxu0
    %840 = vmatprep.mubr.f32.mxu0 %v710
    %841 = vmatmul.mubr.f32.gmra.mrb[0].mxu0 %v709
    %v842 = vpop.f32.mrb[0].mxu0
    %v843 = vadd.f32 0.0, %v842
    %v844 = vpop.f32.mrb[0].mxu0
    %845 = vmatprep.mubr.f32.mxu0 %v714
    %846 = vmatmul.mubr.f32.gmra.mrb[0].mxu0 %v713
    %v847 = vpop.f32.mrb[0].mxu0
    %v848 = vadd.f32 0.0, %v847
    %v849 = vpop.f32.mrb[0].mxu0
    %850 = vmatprep.mubr.f32.mxu0 %v718
    %851 = vmatmul.mubr.f32.gmra.mrb[0].mxu0 %v717
    %v852 = vpop.f32.mrb[0].mxu0
    %v853 = vadd.f32 0.0, %v852
    %v854 = vpop.f32.mrb[0].mxu0
    %855 = vmatprep.mubr.f32.mxu0 %v722
    %856 = vmatmul.mubr.f32.gmra.mrb[0].mxu0 %v721
    %v857 = vpop.f32.mrb[0].mxu0
    %v858 = vadd.f32 0.0, %v857
    %v859 = vpop.f32.mrb[0].mxu0
    %860 = vmatprep.mubr.f32.mxu0 %v726
    %861 = vmatmul.mubr.f32.gmra.mrb[0].mxu0 %v725
    %v862 = vpop.f32.mrb[0].mxu0
    %v863 = vadd.f32 0.0, %v862
    %v864 = vpop.f32.mrb[0].mxu0
    %865 = vmatprep.mubr.f32.mxu0 %v730
    %866 = vmatmul.mubr.f32.gmra.mrb[0].mxu0 %v729
    %v867 = vpop.f32.mrb[0].mxu0
    %v868 = vadd.f32 0.0, %v867
    %v869 = vpop.f32.mrb[0].mxu0
    %870 = vmatprep.mubr.f32.mxu0 %v734
    %871 = vmatmul.mubr.f32.gmra.mrb[0].mxu0 %v733
    %v872 = vpop.f32.mrb[0].mxu0
    %v873 = vadd.f32 0.0, %v872
    %v874 = vpop.f32.mrb[0].mxu0
    %875 = vmatprep.mubr.f32.mxu0 %v738
    %876 = vmatmul.mubr.f32.gmra.mrb[0].mxu0 %v737
    %v877 = vpop.f32.mrb[0].mxu0
    %v878 = vadd.f32 0.0, %v877
    %v879 = vpop.f32.mrb[0].mxu0
    %880 = vmatprep.mubr.f32.mxu0 %v742
    %881 = vmatmul.mubr.f32.gmra.mrb[0].mxu0 %v741
    %v882 = vpop.f32.mrb[0].mxu0
    %v883 = vadd.f32 0.0, %v882
    %v884 = vpop.f32.mrb[0].mxu0
    %885 = vmatprep.mubr.f32.mxu0 %v746
    %886 = vmatmul.mubr.f32.gmra.mrb[0].mxu0 %v745
    %v887 = vpop.f32.mrb[0].mxu0
    %v888 = vadd.f32 0.0, %v887
    %v889 = vpop.f32.mrb[0].mxu0
    %890 = vmatprep.mubr.f32.mxu0 %v750
    %891 = vmatmul.mubr.f32.gmra.mrb[0].mxu0 %v749
    %v892 = vpop.f32.mrb[0].mxu0
    %v893 = vadd.f32 0.0, %v892
    %v894 = vpop.f32.mrb[0].mxu0
    %895 = vmatprep.mubr.f32.mxu0 %v754
    %896 = vmatmul.mubr.f32.gmra.mrb[0].mxu0 %v753
    %v897 = vpop.f32.mrb[0].mxu0
    %v898 = vadd.f32 0.0, %v897
    %v899 = vpop.f32.mrb[0].mxu0
    %900 = vmatprep.mubr.f32.mxu0 %v758
    %901 = vmatmul.mubr.f32.gmra.mrb[0].mxu0 %v757
    %v902 = vpop.f32.mrb[0].mxu0
    %v903 = vadd.f32 0.0, %v902
    %v904 = vpop.f32.mrb[0].mxu0
    %905 = vdwg.mxu0
    %906 = vmatprep.subr.mxu0 0.0
    %907 = vmatpush1.msra.mxu0 %v309
    %908 = vmatprep.subr.mxu0 0.0
    %909 = vmatpush1.msra.mxu0 %v310
    %910 = vmatprep.subr.mxu0 0.0
    %911 = vmatpush1.msra.mxu0 %v311
    %912 = vmatprep.subr.mxu0 0.0
    %913 = vmatpush1.msra.mxu0 %v312
    %914 = vmatprep.subr.mxu0 0.0
    %915 = vmatpush1.msra.mxu0 %v313
    %916 = vmatprep.subr.mxu0 0.0
    %917 = vmatpush1.msra.mxu0 %v314
    %918 = vmatprep.subr.mxu0 0.0
    %919 = vmatpush1.msra.mxu0 %v315
    %920 = vmatprep.subr.mxu0 0.0
    %921 = vmatpush1.msra.mxu0 %v316
    %922 = vmatprep.subr.mxu0 0.0
    %923 = vmatpush1.msra.mxu0 %v317
    %924 = vmatprep.subr.mxu0 0.0
    %925 = vmatpush1.msra.mxu0 %v318
    %926 = vmatprep.subr.mxu0 0.0
    %927 = vmatpush1.msra.mxu0 %v319
    %928 = vmatprep.subr.mxu0 0.0
    %929 = vmatpush1.msra.mxu0 %v320
    %930 = vmatprep.subr.mxu0 0.0
    %931 = vmatpush1.msra.mxu0 %v321
    %932 = vmatprep.subr.mxu0 0.0
    %933 = vmatpush1.msra.mxu0 %v322
    %934 = vmatprep.subr.mxu0 0.0
    %935 = vmatpush1.msra.mxu0 %v323
    %936 = vmatprep.subr.mxu0 0.0
    %937 = vmatpush1.msra.mxu0 %v324
    %938 = vmatprep.subr.mxu0 0.0
    %939 = vmatpush1.msra.mxu0 %v325
    %940 = vmatprep.subr.mxu0 0.0
    %941 = vmatpush1.msra.mxu0 %v326
    %942 = vmatprep.subr.mxu0 0.0
    %943 = vmatpush1.msra.mxu0 %v327
    %944 = vmatprep.subr.mxu0 0.0
    %945 = vmatpush1.msra.mxu0 %v328
    %946 = vmatprep.subr.mxu0 0.0
    %947 = vmatpush1.msra.mxu0 %v329
    %948 = vmatprep.subr.mxu0 0.0
    %949 = vmatpush1.msra.mxu0 %v330
    %950 = vmatprep.subr.mxu0 0.0
    %951 = vmatpush1.msra.mxu0 %v331
    %952 = vmatprep.subr.mxu0 0.0
    %953 = vmatpush1.msra.mxu0 %v332
    %954 = vmatprep.subr.mxu0 0.0
    %955 = vmatpush1.msra.mxu0 %v333
    %956 = vmatprep.subr.mxu0 0.0
    %957 = vmatpush1.msra.mxu0 %v334
    %958 = vmatprep.subr.mxu0 0.0
    %959 = vmatpush1.msra.mxu0 %v335
    %960 = vmatprep.subr.mxu0 0.0
    %961 = vmatpush1.msra.mxu0 %v336
    %962 = vmatprep.subr.mxu0 0.0
    %963 = vmatpush1.msra.mxu0 %v337
    %964 = vmatprep.subr.mxu0 0.0
    %965 = vmatpush1.msra.mxu0 %v338
    %966 = vmatprep.subr.mxu0 0.0
    %967 = vmatpush1.msra.mxu0 %v339
    %968 = vmatprep.subr.mxu0 0.0
    %969 = vmatpush1.msra.mxu0 %v340
    %970 = vmatprep.mubr.f32.mxu0 %v700
    %971 = vmatmul.mubr.f32.gmra.mrb[0].mxu0 %v699
    %v972 = vpop.f32.mrb[0].mxu0
    %v973 = vadd.f32 %v828, %v972
    %v974 = vpop.f32.mrb[0].mxu0
    %975 = vmatprep.mubr.f32.mxu0 %v704
    %976 = vmatmul.mubr.f32.gmra.mrb[0].mxu0 %v703
    %v977 = vpop.f32.mrb[0].mxu0
    %v978 = vadd.f32 %v833, %v977
    %v979 = vpop.f32.mrb[0].mxu0
    %980 = vmatprep.mubr.f32.mxu0 %v708
    %981 = vmatmul.mubr.f32.gmra.mrb[0].mxu0 %v707
    %v982 = vpop.f32.mrb[0].mxu0
    %v983 = vadd.f32 %v838, %v982
    %v984 = vpop.f32.mrb[0].mxu0
    %985 = vmatprep.mubr.f32.mxu0 %v712
    %986 = vmatmul.mubr.f32.gmra.mrb[0].mxu0 %v711
    %v987 = vpop.f32.mrb[0].mxu0
    %v988 = vadd.f32 %v843, %v987
    %v989 = vpop.f32.mrb[0].mxu0
    %990 = vmatprep.mubr.f32.mxu0 %v716
    %991 = vmatmul.mubr.f32.gmra.mrb[0].mxu0 %v715
    %v992 = vpop.f32.mrb[0].mxu0
    %v993 = vadd.f32 %v848, %v992
    %v994 = vpop.f32.mrb[0].mxu0
    %995 = vmatprep.mubr.f32.mxu0 %v720
    %996 = vmatmul.mubr.f32.gmra.mrb[0].mxu0 %v719
    %v997 = vpop.f32.mrb[0].mxu0
    %v998 = vadd.f32 %v853, %v997
    %v999 = vpop.f32.mrb[0].mxu0
    %1000 = vmatprep.mubr.f32.mxu0 %v724
    %1001 = vmatmul.mubr.f32.gmra.mrb[0].mxu0 %v723
    %v1002 = vpop.f32.mrb[0].mxu0
    %v1003 = vadd.f32 %v858, %v1002
    %v1004 = vpop.f32.mrb[0].mxu0
    %1005 = vmatprep.mubr.f32.mxu0 %v728
    %1006 = vmatmul.mubr.f32.gmra.mrb[0].mxu0 %v727
    %v1007 = vpop.f32.mrb[0].mxu0
    %v1008 = vadd.f32 %v863, %v1007
    %v1009 = vpop.f32.mrb[0].mxu0
    %1010 = vmatprep.mubr.f32.mxu0 %v732
    %1011 = vmatmul.mubr.f32.gmra.mrb[0].mxu0 %v731
    %v1012 = vpop.f32.mrb[0].mxu0
    %v1013 = vadd.f32 %v868, %v1012
    %v1014 = vpop.f32.mrb[0].mxu0
    %1015 = vmatprep.mubr.f32.mxu0 %v736
    %1016 = vmatmul.mubr.f32.gmra.mrb[0].mxu0 %v735
    %v1017 = vpop.f32.mrb[0].mxu0
    %v1018 = vadd.f32 %v873, %v1017
    %v1019 = vpop.f32.mrb[0].mxu0
    %1020 = vmatprep.mubr.f32.mxu0 %v740
    %1021 = vmatmul.mubr.f32.gmra.mrb[0].mxu0 %v739
    %v1022 = vpop.f32.mrb[0].mxu0
    %v1023 = vadd.f32 %v878, %v1022
    %v1024 = vpop.f32.mrb[0].mxu0
    %1025 = vmatprep.mubr.f32.mxu0 %v744
    %1026 = vmatmul.mubr.f32.gmra.mrb[0].mxu0 %v743
    %v1027 = vpop.f32.mrb[0].mxu0
    %v1028 = vadd.f32 %v883, %v1027
    %v1029 = vpop.f32.mrb[0].mxu0
    %1030 = vmatprep.mubr.f32.mxu0 %v748
    %1031 = vmatmul.mubr.f32.gmra.mrb[0].mxu0 %v747
    %v1032 = vpop.f32.mrb[0].mxu0
    %v1033 = vadd.f32 %v888, %v1032
    %v1034 = vpop.f32.mrb[0].mxu0
    %1035 = vmatprep.mubr.f32.mxu0 %v752
    %1036 = vmatmul.mubr.f32.gmra.mrb[0].mxu0 %v751
    %v1037 = vpop.f32.mrb[0].mxu0
    %v1038 = vadd.f32 %v893, %v1037
    %v1039 = vpop.f32.mrb[0].mxu0
    %1040 = vmatprep.mubr.f32.mxu0 %v756
    %1041 = vmatmul.mubr.f32.gmra.mrb[0].mxu0 %v755
    %v1042 = vpop.f32.mrb[0].mxu0
    %v1043 = vadd.f32 %v898, %v1042
    %v1044 = vpop.f32.mrb[0].mxu0
    %1045 = vmatprep.mubr.f32.mxu0 %v760
    %1046 = vmatmul.mubr.f32.gmra.mrb[0].mxu0 %v759
    %v1047 = vpop.f32.mrb[0].mxu0
    %v1048 = vadd.f32 %v903, %v1047
    %v1049 = vpop.f32.mrb[0].mxu0
    %1050 = vdwg.mxu0
    %s1051 = scalar_lea.vmem [#allocation5], 4
    %v1052 = vld [vmem:[%s1051] sm:$0xf]
    %vm1053 = vcmask 31744
    %v1055 = vsel %vm1053, %v973, 0
    %v1058 = vsel %vm1053, %v978, 0
    %v1061 = vsel %vm1053, %v983, 0
    %v1064 = vsel %vm1053, %v988, 0
    %v1067 = vsel %vm1053, %v993, 0
    %v1070 = vsel %vm1053, %v998, 0
    %v1073 = vsel %vm1053, %v1003, 0
    %v1076 = vsel %vm1053, %v1008, 0
    %v1079 = vsel %vm1053, %v1013, 0
    %v1082 = vsel %vm1053, %v1018, 0
    %v1085 = vsel %vm1053, %v1023, 0
    %v1088 = vsel %vm1053, %v1028, 0
    %v1091 = vsel %vm1053, %v1033, 0
    %v1094 = vsel %vm1053, %v1038, 0
    %v1097 = vsel %vm1053, %v1043, 0
    %v1100 = vsel %vm1053, %v1048, 0
    %vm1102 = vcmask 1043456
    %v1104 = vsel %vm1102, %v1052, 0
    %1106 = vmatprep.subr.mxu0 0.0
    %1107 = vmatpush1.msra.mxu0 %v1104
    %1108 = vmatprep.subr.mxu0 0.0
    %1109 = vmatpush1.msra.mxu0 0.0
    %1110 = vmatprep.subr.mxu0 0.0
    %1111 = vmatpush1.msra.mxu0 0.0
    %1112 = vmatprep.subr.mxu0 0.0
    %1113 = vmatpush1.msra.mxu0 0.0
    %1114 = vmatprep.subr.mxu0 0.0
    %1115 = vmatpush1.msra.mxu0 0.0
    %1116 = vmatprep.subr.mxu0 0.0
    %1117 = vmatpush1.msra.mxu0 0.0
    %1118 = vmatprep.subr.mxu0 0.0
    %1119 = vmatpush1.msra.mxu0 0.0
    %1120 = vmatprep.subr.mxu0 0.0
    %1121 = vmatpush1.msra.mxu0 0.0
    %1122 = vmatprep.subr.mxu0 0.0
    %1123 = vmatpush1.msra.mxu0 0.0
    %1124 = vmatprep.subr.mxu0 0.0
    %1125 = vmatpush1.msra.mxu0 0.0
    %1126 = vmatprep.subr.mxu0 0.0
    %1127 = vmatpush1.msra.mxu0 0.0
    %1128 = vmatprep.subr.mxu0 0.0
    %1129 = vmatpush1.msra.mxu0 0.0
    %1130 = vmatprep.subr.mxu0 0.0
    %1131 = vmatpush1.msra.mxu0 0.0
    %1132 = vmatprep.subr.mxu0 0.0
    %1133 = vmatpush1.msra.mxu0 0.0
    %1134 = vmatprep.subr.mxu0 0.0
    %1135 = vmatpush1.msra.mxu0 0.0
    %1136 = vmatprep.subr.mxu0 0.0
    %1137 = vmatpush1.msra.mxu0 0.0
    %1138 = vmatprep.subr.mxu0 0.0
    %1139 = vmatpush1.msra.mxu0 0.0
    %1140 = vmatprep.subr.mxu0 0.0
    %1141 = vmatpush1.msra.mxu0 0.0
    %1142 = vmatprep.subr.mxu0 0.0
    %1143 = vmatpush1.msra.mxu0 0.0
    %1144 = vmatprep.subr.mxu0 0.0
    %1145 = vmatpush1.msra.mxu0 0.0
    %1146 = vmatprep.subr.mxu0 0.0
    %1147 = vmatpush1.msra.mxu0 0.0
    %1148 = vmatprep.subr.mxu0 0.0
    %1149 = vmatpush1.msra.mxu0 0.0
    %1150 = vmatprep.subr.mxu0 0.0
    %1151 = vmatpush1.msra.mxu0 0.0
    %1152 = vmatprep.subr.mxu0 0.0
    %1153 = vmatpush1.msra.mxu0 0.0
    %1154 = vmatprep.subr.mxu0 0.0
    %1155 = vmatpush1.msra.mxu0 0.0
    %1156 = vmatprep.subr.mxu0 0.0
    %1157 = vmatpush1.msra.mxu0 0.0
    %1158 = vmatprep.subr.mxu0 0.0
    %1159 = vmatpush1.msra.mxu0 0.0
    %1160 = vmatprep.subr.mxu0 0.0
    %1161 = vmatpush1.msra.mxu0 0.0
    %1162 = vmatprep.subr.mxu0 0.0
    %1163 = vmatpush1.msra.mxu0 0.0
    %1164 = vmatprep.subr.mxu0 0.0
    %1165 = vmatpush1.msra.mxu0 0.0
    %1166 = vmatprep.subr.mxu0 0.0
    %1167 = vmatpush1.msra.mxu0 0.0
    %1168 = vmatprep.subr.mxu0 0.0
    %1169 = vmatpush1.msra.mxu0 0.0
    %1170 = vmatprep.mubr.f32.mxu0 0.0
    %1171 = vmatmul.mubr.f32.gmra.mrb[0].mxu0 %v1055
    %v1172 = vpop.f32.mrb[0].mxu0
    %v1173 = vadd.f32 0.0, %v1172
    %v1174 = vpop.f32.mrb[0].mxu0
    %1175 = vmatprep.mubr.f32.mxu0 0.0
    %1176 = vmatmul.mubr.f32.gmra.mrb[0].mxu0 %v1058
    %v1177 = vpop.f32.mrb[0].mxu0
    %v1178 = vadd.f32 0.0, %v1177
    %v1179 = vpop.f32.mrb[0].mxu0
    %1180 = vmatprep.mubr.f32.mxu0 0.0
    %1181 = vmatmul.mubr.f32.gmra.mrb[0].mxu0 %v1061
    %v1182 = vpop.f32.mrb[0].mxu0
    %v1183 = vadd.f32 0.0, %v1182
    %v1184 = vpop.f32.mrb[0].mxu0
    %1185 = vmatprep.mubr.f32.mxu0 0.0
    %1186 = vmatmul.mubr.f32.gmra.mrb[0].mxu0 %v1064
    %v1187 = vpop.f32.mrb[0].mxu0
    %v1188 = vadd.f32 0.0, %v1187
    %v1189 = vpop.f32.mrb[0].mxu0
    %1190 = vmatprep.mubr.f32.mxu0 0.0
    %1191 = vmatmul.mubr.f32.gmra.mrb[0].mxu0 %v1067
    %v1192 = vpop.f32.mrb[0].mxu0
    %v1193 = vadd.f32 0.0, %v1192
    %v1194 = vpop.f32.mrb[0].mxu0
    %1195 = vmatprep.mubr.f32.mxu0 0.0
    %1196 = vmatmul.mubr.f32.gmra.mrb[0].mxu0 %v1070
    %v1197 = vpop.f32.mrb[0].mxu0
    %v1198 = vadd.f32 0.0, %v1197
    %v1199 = vpop.f32.mrb[0].mxu0
    %1200 = vmatprep.mubr.f32.mxu0 0.0
    %1201 = vmatmul.mubr.f32.gmra.mrb[0].mxu0 %v1073
    %v1202 = vpop.f32.mrb[0].mxu0
    %v1203 = vadd.f32 0.0, %v1202
    %v1204 = vpop.f32.mrb[0].mxu0
    %1205 = vmatprep.mubr.f32.mxu0 0.0
    %1206 = vmatmul.mubr.f32.gmra.mrb[0].mxu0 %v1076
    %v1207 = vpop.f32.mrb[0].mxu0
    %v1208 = vadd.f32 0.0, %v1207
    %v1209 = vpop.f32.mrb[0].mxu0
    %1210 = vmatprep.mubr.f32.mxu0 0.0
    %1211 = vmatmul.mubr.f32.gmra.mrb[0].mxu0 %v1079
    %v1212 = vpop.f32.mrb[0].mxu0
    %v1213 = vadd.f32 0.0, %v1212
    %v1214 = vpop.f32.mrb[0].mxu0
    %1215 = vmatprep.mubr.f32.mxu0 0.0
    %1216 = vmatmul.mubr.f32.gmra.mrb[0].mxu0 %v1082
    %v1217 = vpop.f32.mrb[0].mxu0
    %v1218 = vadd.f32 0.0, %v1217
    %v1219 = vpop.f32.mrb[0].mxu0
    %1220 = vmatprep.mubr.f32.mxu0 0.0
    %1221 = vmatmul.mubr.f32.gmra.mrb[0].mxu0 %v1085
    %v1222 = vpop.f32.mrb[0].mxu0
    %v1223 = vadd.f32 0.0, %v1222
    %v1224 = vpop.f32.mrb[0].mxu0
    %1225 = vmatprep.mubr.f32.mxu0 0.0
    %1226 = vmatmul.mubr.f32.gmra.mrb[0].mxu0 %v1088
    %v1227 = vpop.f32.mrb[0].mxu0
    %v1228 = vadd.f32 0.0, %v1227
    %v1229 = vpop.f32.mrb[0].mxu0
    %1230 = vmatprep.mubr.f32.mxu0 0.0
    %1231 = vmatmul.mubr.f32.gmra.mrb[0].mxu0 %v1091
    %v1232 = vpop.f32.mrb[0].mxu0
    %v1233 = vadd.f32 0.0, %v1232
    %v1234 = vpop.f32.mrb[0].mxu0
    %1235 = vmatprep.mubr.f32.mxu0 0.0
    %1236 = vmatmul.mubr.f32.gmra.mrb[0].mxu0 %v1094
    %v1237 = vpop.f32.mrb[0].mxu0
    %v1238 = vadd.f32 0.0, %v1237
    %v1239 = vpop.f32.mrb[0].mxu0
    %1240 = vmatprep.mubr.f32.mxu0 0.0
    %1241 = vmatmul.mubr.f32.gmra.mrb[0].mxu0 %v1097
    %v1242 = vpop.f32.mrb[0].mxu0
    %v1243 = vadd.f32 0.0, %v1242
    %v1244 = vpop.f32.mrb[0].mxu0
    %1245 = vmatprep.mubr.f32.mxu0 0.0
    %1246 = vmatmul.mubr.f32.gmra.mrb[0].mxu0 %v1100
    %v1247 = vpop.f32.mrb[0].mxu0
    %v1248 = vadd.f32 0.0, %v1247
    %v1249 = vpop.f32.mrb[0].mxu0
    %1250 = vdwg.mxu0
    %v1252 = vsel %vm1053, %v617, 0
    %v1255 = vsel %vm1053, %v622, 0
    %v1258 = vsel %vm1053, %v627, 0
    %v1261 = vsel %vm1053, %v632, 0
    %v1264 = vsel %vm1053, %v637, 0
    %v1267 = vsel %vm1053, %v642, 0
    %v1270 = vsel %vm1053, %v647, 0
    %v1273 = vsel %vm1053, %v652, 0
    %v1276 = vsel %vm1053, %v657, 0
    %v1279 = vsel %vm1053, %v662, 0
    %v1282 = vsel %vm1053, %v667, 0
    %v1285 = vsel %vm1053, %v672, 0
    %v1288 = vsel %vm1053, %v677, 0
    %v1291 = vsel %vm1053, %v682, 0
    %v1294 = vsel %vm1053, %v687, 0
    %v1297 = vsel %vm1053, %v692, 0
    %v1300 = vsel %vm1102, %v695, 0
    %1302 = vmatprep.subr.mxu0 0.0
    %1303 = vmatpush1.msra.mxu0 %v1300
    %1304 = vmatprep.subr.mxu0 0.0
    %1305 = vmatpush1.msra.mxu0 0.0
    %1306 = vmatprep.subr.mxu0 0.0
    %1307 = vmatpush1.msra.mxu0 0.0
    %1308 = vmatprep.subr.mxu0 0.0
    %1309 = vmatpush1.msra.mxu0 0.0
    %1310 = vmatprep.subr.mxu0 0.0
    %1311 = vmatpush1.msra.mxu0 0.0
    %1312 = vmatprep.subr.mxu0 0.0
    %1313 = vmatpush1.msra.mxu0 0.0
    %1314 = vmatprep.subr.mxu0 0.0
    %1315 = vmatpush1.msra.mxu0 0.0
    %1316 = vmatprep.subr.mxu0 0.0
    %1317 = vmatpush1.msra.mxu0 0.0
    %1318 = vmatprep.subr.mxu0 0.0
    %1319 = vmatpush1.msra.mxu0 0.0
    %1320 = vmatprep.subr.mxu0 0.0
    %1321 = vmatpush1.msra.mxu0 0.0
    %1322 = vmatprep.subr.mxu0 0.0
    %1323 = vmatpush1.msra.mxu0 0.0
    %1324 = vmatprep.subr.mxu0 0.0
    %1325 = vmatpush1.msra.mxu0 0.0
    %1326 = vmatprep.subr.mxu0 0.0
    %1327 = vmatpush1.msra.mxu0 0.0
    %1328 = vmatprep.subr.mxu0 0.0
    %1329 = vmatpush1.msra.mxu0 0.0
    %1330 = vmatprep.subr.mxu0 0.0
    %1331 = vmatpush1.msra.mxu0 0.0
    %1332 = vmatprep.subr.mxu0 0.0
    %1333 = vmatpush1.msra.mxu0 0.0
    %1334 = vmatprep.subr.mxu0 0.0
    %1335 = vmatpush1.msra.mxu0 0.0
    %1336 = vmatprep.subr.mxu0 0.0
    %1337 = vmatpush1.msra.mxu0 0.0
    %1338 = vmatprep.subr.mxu0 0.0
    %1339 = vmatpush1.msra.mxu0 0.0
    %1340 = vmatprep.subr.mxu0 0.0
    %1341 = vmatpush1.msra.mxu0 0.0
    %1342 = vmatprep.subr.mxu0 0.0
    %1343 = vmatpush1.msra.mxu0 0.0
    %1344 = vmatprep.subr.mxu0 0.0
    %1345 = vmatpush1.msra.mxu0 0.0
    %1346 = vmatprep.subr.mxu0 0.0
    %1347 = vmatpush1.msra.mxu0 0.0
    %1348 = vmatprep.subr.mxu0 0.0
    %1349 = vmatpush1.msra.mxu0 0.0
    %1350 = vmatprep.subr.mxu0 0.0
    %1351 = vmatpush1.msra.mxu0 0.0
    %1352 = vmatprep.subr.mxu0 0.0
    %1353 = vmatpush1.msra.mxu0 0.0
    %1354 = vmatprep.subr.mxu0 0.0
    %1355 = vmatpush1.msra.mxu0 0.0
    %1356 = vmatprep.subr.mxu0 0.0
    %1357 = vmatpush1.msra.mxu0 0.0
    %1358 = vmatprep.subr.mxu0 0.0
    %1359 = vmatpush1.msra.mxu0 0.0
    %1360 = vmatprep.subr.mxu0 0.0
    %1361 = vmatpush1.msra.mxu0 0.0
    %1362 = vmatprep.subr.mxu0 0.0
    %1363 = vmatpush1.msra.mxu0 0.0
    %1364 = vmatprep.subr.mxu0 0.0
    %1365 = vmatpush1.msra.mxu0 0.0
    %1366 = vmatprep.mubr.f32.mxu0 0.0
    %1367 = vmatmul.mubr.f32.gmra.mrb[0].mxu0 %v1252
    %v1368 = vpop.f32.mrb[0].mxu0
    %v1369 = vadd.f32 %v1173, %v1368
    %v1370 = vpop.f32.mrb[0].mxu0
    %1371 = vmatprep.mubr.f32.mxu0 0.0
    %1372 = vmatmul.mubr.f32.gmra.mrb[0].mxu0 %v1255
    %v1373 = vpop.f32.mrb[0].mxu0
    %v1374 = vadd.f32 %v1178, %v1373
    %v1375 = vpop.f32.mrb[0].mxu0
    %1376 = vmatprep.mubr.f32.mxu0 0.0
    %1377 = vmatmul.mubr.f32.gmra.mrb[0].mxu0 %v1258
    %v1378 = vpop.f32.mrb[0].mxu0
    %v1379 = vadd.f32 %v1183, %v1378
    %v1380 = vpop.f32.mrb[0].mxu0
    %1381 = vmatprep.mubr.f32.mxu0 0.0
    %1382 = vmatmul.mubr.f32.gmra.mrb[0].mxu0 %v1261
    %v1383 = vpop.f32.mrb[0].mxu0
    %v1384 = vadd.f32 %v1188, %v1383
    %v1385 = vpop.f32.mrb[0].mxu0
    %1386 = vmatprep.mubr.f32.mxu0 0.0
    %1387 = vmatmul.mubr.f32.gmra.mrb[0].mxu0 %v1264
    %v1388 = vpop.f32.mrb[0].mxu0
    %v1389 = vadd.f32 %v1193, %v1388
    %v1390 = vpop.f32.mrb[0].mxu0
    %1391 = vmatprep.mubr.f32.mxu0 0.0
    %1392 = vmatmul.mubr.f32.gmra.mrb[0].mxu0 %v1267
    %v1393 = vpop.f32.mrb[0].mxu0
    %v1394 = vadd.f32 %v1198, %v1393
    %v1395 = vpop.f32.mrb[0].mxu0
    %1396 = vmatprep.mubr.f32.mxu0 0.0
    %1397 = vmatmul.mubr.f32.gmra.mrb[0].mxu0 %v1270
    %v1398 = vpop.f32.mrb[0].mxu0
    %v1399 = vadd.f32 %v1203, %v1398
    %v1400 = vpop.f32.mrb[0].mxu0
    %1401 = vmatprep.mubr.f32.mxu0 0.0
    %1402 = vmatmul.mubr.f32.gmra.mrb[0].mxu0 %v1273
    %v1403 = vpop.f32.mrb[0].mxu0
    %v1404 = vadd.f32 %v1208, %v1403
    %v1405 = vpop.f32.mrb[0].mxu0
    %1406 = vmatprep.mubr.f32.mxu0 0.0
    %1407 = vmatmul.mubr.f32.gmra.mrb[0].mxu0 %v1276
    %v1408 = vpop.f32.mrb[0].mxu0
    %v1409 = vadd.f32 %v1213, %v1408
    %v1410 = vpop.f32.mrb[0].mxu0
    %1411 = vmatprep.mubr.f32.mxu0 0.0
    %1412 = vmatmul.mubr.f32.gmra.mrb[0].mxu0 %v1279
    %v1413 = vpop.f32.mrb[0].mxu0
    %v1414 = vadd.f32 %v1218, %v1413
    %v1415 = vpop.f32.mrb[0].mxu0
    %1416 = vmatprep.mubr.f32.mxu0 0.0
    %1417 = vmatmul.mubr.f32.gmra.mrb[0].mxu0 %v1282
    %v1418 = vpop.f32.mrb[0].mxu0
    %v1419 = vadd.f32 %v1223, %v1418
    %v1420 = vpop.f32.mrb[0].mxu0
    %1421 = vmatprep.mubr.f32.mxu0 0.0
    %1422 = vmatmul.mubr.f32.gmra.mrb[0].mxu0 %v1285
    %v1423 = vpop.f32.mrb[0].mxu0
    %v1424 = vadd.f32 %v1228, %v1423
    %v1425 = vpop.f32.mrb[0].mxu0
    %1426 = vmatprep.mubr.f32.mxu0 0.0
    %1427 = vmatmul.mubr.f32.gmra.mrb[0].mxu0 %v1288
    %v1428 = vpop.f32.mrb[0].mxu0
    %v1429 = vadd.f32 %v1233, %v1428
    %v1430 = vpop.f32.mrb[0].mxu0
    %1431 = vmatprep.mubr.f32.mxu0 0.0
    %1432 = vmatmul.mubr.f32.gmra.mrb[0].mxu0 %v1291
    %v1433 = vpop.f32.mrb[0].mxu0
    %v1434 = vadd.f32 %v1238, %v1433
    %v1435 = vpop.f32.mrb[0].mxu0
    %1436 = vmatprep.mubr.f32.mxu0 0.0
    %1437 = vmatmul.mubr.f32.gmra.mrb[0].mxu0 %v1294
    %v1438 = vpop.f32.mrb[0].mxu0
    %v1439 = vadd.f32 %v1243, %v1438
    %v1440 = vpop.f32.mrb[0].mxu0
    %1441 = vmatprep.mubr.f32.mxu0 0.0
    %1442 = vmatmul.mubr.f32.gmra.mrb[0].mxu0 %v1297
    %v1443 = vpop.f32.mrb[0].mxu0
    %v1444 = vadd.f32 %v1248, %v1443
    %v1445 = vpop.f32.mrb[0].mxu0
    %1446 = vdwg.mxu0
    %s1447 = scalar_lea.vmem [#allocation3], 1024
    %v1448 = vld [vmem:[%s1447] sm:$0xff]
    %v1449 = vld [vmem:[%s1447 + $0x8] sm:$0xff]
    %v1450 = vld [vmem:[%s1447 + $0x10] sm:$0xff]
    %v1451 = vld [vmem:[%s1447 + $0x18] sm:$0xff]
    %v1452 = vld [vmem:[%s1447 + $0x20] sm:$0xff]
    %v1453 = vld [vmem:[%s1447 + $0x28] sm:$0xff]
    %v1454 = vld [vmem:[%s1447 + $0x30] sm:$0xff]
    %v1455 = vld [vmem:[%s1447 + $0x38] sm:$0xff]
    %v1456 = vld [vmem:[%s1447 + $0x40] sm:$0xff]
    %v1457 = vld [vmem:[%s1447 + $0x48] sm:$0xff]
    %v1458 = vld [vmem:[%s1447 + $0x50] sm:$0xff]
    %v1459 = vld [vmem:[%s1447 + $0x58] sm:$0xff]
    %v1460 = vld [vmem:[%s1447 + $0x60] sm:$0xff]
    %v1461 = vld [vmem:[%s1447 + $0x68] sm:$0xff]
    %v1462 = vld [vmem:[%s1447 + $0x70] sm:$0xff]
    %v1463 = vld [vmem:[%s1447 + $0x78] sm:$0xff]
    %v1464 = vld [vmem:[%s1447 + $0x80] sm:$0xff]
    %v1465 = vld [vmem:[%s1447 + $0x88] sm:$0xff]
    %v1466 = vld [vmem:[%s1447 + $0x90] sm:$0xff]
    %v1467 = vld [vmem:[%s1447 + $0x98] sm:$0xff]
    %v1468 = vld [vmem:[%s1447 + $0xa0] sm:$0xff]
    %v1469 = vld [vmem:[%s1447 + $0xa8] sm:$0xff]
    %v1470 = vld [vmem:[%s1447 + $0xb0] sm:$0xff]
    %v1471 = vld [vmem:[%s1447 + $0xb8] sm:$0xff]
    %v1472 = vld [vmem:[%s1447 + $0xc0] sm:$0xff]
    %v1473 = vld [vmem:[%s1447 + $0xc8] sm:$0xff]
    %v1474 = vld [vmem:[%s1447 + $0xd0] sm:$0xff]
    %v1475 = vld [vmem:[%s1447 + $0xd8] sm:$0xff]
    %v1476 = vld [vmem:[%s1447 + $0xe0] sm:$0xff]
    %v1477 = vld [vmem:[%s1447 + $0xe8] sm:$0xff]
    %v1478 = vld [vmem:[%s1447 + $0xf0] sm:$0xff]
    %v1479 = vld [vmem:[%s1447 + $0xf8] sm:$0xff]
    %v1480 = vld [vmem:[%s1447 + $0x100] sm:$0xff]
    %v1481 = vld [vmem:[%s1447 + $0x108] sm:$0xff]
    %v1482 = vld [vmem:[%s1447 + $0x110] sm:$0xff]
    %v1483 = vld [vmem:[%s1447 + $0x118] sm:$0xff]
    %v1484 = vld [vmem:[%s1447 + $0x120] sm:$0xff]
    %v1485 = vld [vmem:[%s1447 + $0x128] sm:$0xff]
    %v1486 = vld [vmem:[%s1447 + $0x130] sm:$0xff]
    %v1487 = vld [vmem:[%s1447 + $0x138] sm:$0xff]
    %v1488 = vld [vmem:[%s1447 + $0x140] sm:$0xff]
    %v1489 = vld [vmem:[%s1447 + $0x148] sm:$0xff]
    %v1490 = vld [vmem:[%s1447 + $0x150] sm:$0xff]
    %v1491 = vld [vmem:[%s1447 + $0x158] sm:$0xff]
    %v1492 = vld [vmem:[%s1447 + $0x160] sm:$0xff]
    %v1493 = vld [vmem:[%s1447 + $0x168] sm:$0xff]
    %v1494 = vld [vmem:[%s1447 + $0x170] sm:$0xff]
    %v1495 = vld [vmem:[%s1447 + $0x178] sm:$0xff]
    %v1496 = vld [vmem:[%s1447 + $0x180] sm:$0xff]
    %v1497 = vld [vmem:[%s1447 + $0x188] sm:$0xff]
    %v1498 = vld [vmem:[%s1447 + $0x190] sm:$0xff]
    %v1499 = vld [vmem:[%s1447 + $0x198] sm:$0xff]
    %v1500 = vld [vmem:[%s1447 + $0x1a0] sm:$0xff]
    %v1501 = vld [vmem:[%s1447 + $0x1a8] sm:$0xff]
    %v1502 = vld [vmem:[%s1447 + $0x1b0] sm:$0xff]
    %v1503 = vld [vmem:[%s1447 + $0x1b8] sm:$0xff]
    %v1504 = vld [vmem:[%s1447 + $0x1c0] sm:$0xff]
    %v1505 = vld [vmem:[%s1447 + $0x1c8] sm:$0xff]
    %v1506 = vld [vmem:[%s1447 + $0x1d0] sm:$0xff]
    %v1507 = vld [vmem:[%s1447 + $0x1d8] sm:$0xff]
    %v1508 = vld [vmem:[%s1447 + $0x1e0] sm:$0xff]
    %v1509 = vld [vmem:[%s1447 + $0x1e8] sm:$0xff]
    %v1510 = vld [vmem:[%s1447 + $0x1f0] sm:$0xff]
    %v1511 = vld [vmem:[%s1447 + $0x1f8] sm:$0xff]
    %1512 = vmatprep.subr.mxu0 0.0
    %1513 = vmatpush1.msra.mxu0 %v277
    %1514 = vmatprep.subr.mxu0 0.0
    %1515 = vmatpush1.msra.mxu0 %v278
    %1516 = vmatprep.subr.mxu0 0.0
    %1517 = vmatpush1.msra.mxu0 %v279
    %1518 = vmatprep.subr.mxu0 0.0
    %1519 = vmatpush1.msra.mxu0 %v280
    %1520 = vmatprep.subr.mxu0 0.0
    %1521 = vmatpush1.msra.mxu0 %v281
    %1522 = vmatprep.subr.mxu0 0.0
    %1523 = vmatpush1.msra.mxu0 %v282
    %1524 = vmatprep.subr.mxu0 0.0
    %1525 = vmatpush1.msra.mxu0 %v283
    %1526 = vmatprep.subr.mxu0 0.0
    %1527 = vmatpush1.msra.mxu0 %v284
    %1528 = vmatprep.subr.mxu0 0.0
    %1529 = vmatpush1.msra.mxu0 %v285
    %1530 = vmatprep.subr.mxu0 0.0
    %1531 = vmatpush1.msra.mxu0 %v286
    %1532 = vmatprep.subr.mxu0 0.0
    %1533 = vmatpush1.msra.mxu0 %v287
    %1534 = vmatprep.subr.mxu0 0.0
    %1535 = vmatpush1.msra.mxu0 %v288
    %1536 = vmatprep.subr.mxu0 0.0
    %1537 = vmatpush1.msra.mxu0 %v289
    %1538 = vmatprep.subr.mxu0 0.0
    %1539 = vmatpush1.msra.mxu0 %v290
    %1540 = vmatprep.subr.mxu0 0.0
    %1541 = vmatpush1.msra.mxu0 %v291
    %1542 = vmatprep.subr.mxu0 0.0
    %1543 = vmatpush1.msra.mxu0 %v292
    %1544 = vmatprep.subr.mxu0 0.0
    %1545 = vmatpush1.msra.mxu0 %v293
    %1546 = vmatprep.subr.mxu0 0.0
    %1547 = vmatpush1.msra.mxu0 %v294
    %1548 = vmatprep.subr.mxu0 0.0
    %1549 = vmatpush1.msra.mxu0 %v295
    %1550 = vmatprep.subr.mxu0 0.0
    %1551 = vmatpush1.msra.mxu0 %v296
    %1552 = vmatprep.subr.mxu0 0.0
    %1553 = vmatpush1.msra.mxu0 %v297
    %1554 = vmatprep.subr.mxu0 0.0
    %1555 = vmatpush1.msra.mxu0 %v298
    %1556 = vmatprep.subr.mxu0 0.0
    %1557 = vmatpush1.msra.mxu0 %v299
    %1558 = vmatprep.subr.mxu0 0.0
    %1559 = vmatpush1.msra.mxu0 %v300
    %1560 = vmatprep.subr.mxu0 0.0
    %1561 = vmatpush1.msra.mxu0 %v301
    %1562 = vmatprep.subr.mxu0 0.0
    %1563 = vmatpush1.msra.mxu0 %v302
    %1564 = vmatprep.subr.mxu0 0.0
    %1565 = vmatpush1.msra.mxu0 %v303
    %1566 = vmatprep.subr.mxu0 0.0
    %1567 = vmatpush1.msra.mxu0 %v304
    %1568 = vmatprep.subr.mxu0 0.0
    %1569 = vmatpush1.msra.mxu0 %v305
    %1570 = vmatprep.subr.mxu0 0.0
    %1571 = vmatpush1.msra.mxu0 %v306
    %1572 = vmatprep.subr.mxu0 0.0
    %1573 = vmatpush1.msra.mxu0 %v307
    %1574 = vmatprep.subr.mxu0 0.0
    %1575 = vmatpush1.msra.mxu0 %v308
    %1576 = vmatprep.mubr.f32.mxu0 %v1449
    %1577 = vmatmul.mubr.f32.gmra.mrb[0].mxu0 %v1448
    %v1578 = vpop.f32.mrb[0].mxu0
    %v1579 = vadd.f32 0.0, %v1578
    %v1580 = vpop.f32.mrb[0].mxu0
    %1581 = vmatprep.mubr.f32.mxu0 %v1453
    %1582 = vmatmul.mubr.f32.gmra.mrb[0].mxu0 %v1452
    %v1583 = vpop.f32.mrb[0].mxu0
    %v1584 = vadd.f32 0.0, %v1583
    %v1585 = vpop.f32.mrb[0].mxu0
    %1586 = vmatprep.mubr.f32.mxu0 %v1457
    %1587 = vmatmul.mubr.f32.gmra.mrb[0].mxu0 %v1456
    %v1588 = vpop.f32.mrb[0].mxu0
    %v1589 = vadd.f32 0.0, %v1588
    %v1590 = vpop.f32.mrb[0].mxu0
    %1591 = vmatprep.mubr.f32.mxu0 %v1461
    %1592 = vmatmul.mubr.f32.gmra.mrb[0].mxu0 %v1460
    %v1593 = vpop.f32.mrb[0].mxu0
    %v1594 = vadd.f32 0.0, %v1593
    %v1595 = vpop.f32.mrb[0].mxu0
    %1596 = vmatprep.mubr.f32.mxu0 %v1465
    %1597 = vmatmul.mubr.f32.gmra.mrb[0].mxu0 %v1464
    %v1598 = vpop.f32.mrb[0].mxu0
    %v1599 = vadd.f32 0.0, %v1598
    %v1600 = vpop.f32.mrb[0].mxu0
    %1601 = vmatprep.mubr.f32.mxu0 %v1469
    %1602 = vmatmul.mubr.f32.gmra.mrb[0].mxu0 %v1468
    %v1603 = vpop.f32.mrb[0].mxu0
    %v1604 = vadd.f32 0.0, %v1603
    %v1605 = vpop.f32.mrb[0].mxu0
    %1606 = vmatprep.mubr.f32.mxu0 %v1473
    %1607 = vmatmul.mubr.f32.gmra.mrb[0].mxu0 %v1472
    %v1608 = vpop.f32.mrb[0].mxu0
    %v1609 = vadd.f32 0.0, %v1608
    %v1610 = vpop.f32.mrb[0].mxu0
    %1611 = vmatprep.mubr.f32.mxu0 %v1477
    %1612 = vmatmul.mubr.f32.gmra.mrb[0].mxu0 %v1476
    %v1613 = vpop.f32.mrb[0].mxu0
    %v1614 = vadd.f32 0.0, %v1613
    %v1615 = vpop.f32.mrb[0].mxu0
    %1616 = vmatprep.mubr.f32.mxu0 %v1481
    %1617 = vmatmul.mubr.f32.gmra.mrb[0].mxu0 %v1480
    %v1618 = vpop.f32.mrb[0].mxu0
    %v1619 = vadd.f32 0.0, %v1618
    %v1620 = vpop.f32.mrb[0].mxu0
    %1621 = vmatprep.mubr.f32.mxu0 %v1485
    %1622 = vmatmul.mubr.f32.gmra.mrb[0].mxu0 %v1484
    %v1623 = vpop.f32.mrb[0].mxu0
    %v1624 = vadd.f32 0.0, %v1623
    %v1625 = vpop.f32.mrb[0].mxu0
    %1626 = vmatprep.mubr.f32.mxu0 %v1489
    %1627 = vmatmul.mubr.f32.gmra.mrb[0].mxu0 %v1488
    %v1628 = vpop.f32.mrb[0].mxu0
    %v1629 = vadd.f32 0.0, %v1628
    %v1630 = vpop.f32.mrb[0].mxu0
    %1631 = vmatprep.mubr.f32.mxu0 %v1493
    %1632 = vmatmul.mubr.f32.gmra.mrb[0].mxu0 %v1492
    %v1633 = vpop.f32.mrb[0].mxu0
    %v1634 = vadd.f32 0.0, %v1633
    %v1635 = vpop.f32.mrb[0].mxu0
    %1636 = vmatprep.mubr.f32.mxu0 %v1497
    %1637 = vmatmul.mubr.f32.gmra.mrb[0].mxu0 %v1496
    %v1638 = vpop.f32.mrb[0].mxu0
    %v1639 = vadd.f32 0.0, %v1638
    %v1640 = vpop.f32.mrb[0].mxu0
    %1641 = vmatprep.mubr.f32.mxu0 %v1501
    %1642 = vmatmul.mubr.f32.gmra.mrb[0].mxu0 %v1500
    %v1643 = vpop.f32.mrb[0].mxu0
    %v1644 = vadd.f32 0.0, %v1643
    %v1645 = vpop.f32.mrb[0].mxu0
    %1646 = vmatprep.mubr.f32.mxu0 %v1505
    %1647 = vmatmul.mubr.f32.gmra.mrb[0].mxu0 %v1504
    %v1648 = vpop.f32.mrb[0].mxu0
    %v1649 = vadd.f32 0.0, %v1648
    %v1650 = vpop.f32.mrb[0].mxu0
    %1651 = vmatprep.mubr.f32.mxu0 %v1509
    %1652 = vmatmul.mubr.f32.gmra.mrb[0].mxu0 %v1508
    %v1653 = vpop.f32.mrb[0].mxu0
    %v1654 = vadd.f32 0.0, %v1653
    %v1655 = vpop.f32.mrb[0].mxu0
    %1656 = vdwg.mxu0
    %1657 = vmatprep.subr.mxu0 0.0
    %1658 = vmatpush1.msra.mxu0 %v309
    %1659 = vmatprep.subr.mxu0 0.0
    %1660 = vmatpush1.msra.mxu0 %v310
    %1661 = vmatprep.subr.mxu0 0.0
    %1662 = vmatpush1.msra.mxu0 %v311
    %1663 = vmatprep.subr.mxu0 0.0
    %1664 = vmatpush1.msra.mxu0 %v312
    %1665 = vmatprep.subr.mxu0 0.0
    %1666 = vmatpush1.msra.mxu0 %v313
    %1667 = vmatprep.subr.mxu0 0.0
    %1668 = vmatpush1.msra.mxu0 %v314
    %1669 = vmatprep.subr.mxu0 0.0
    %1670 = vmatpush1.msra.mxu0 %v315
    %1671 = vmatprep.subr.mxu0 0.0
    %1672 = vmatpush1.msra.mxu0 %v316
    %1673 = vmatprep.subr.mxu0 0.0
    %1674 = vmatpush1.msra.mxu0 %v317
    %1675 = vmatprep.subr.mxu0 0.0
    %1676 = vmatpush1.msra.mxu0 %v318
    %1677 = vmatprep.subr.mxu0 0.0
    %1678 = vmatpush1.msra.mxu0 %v319
    %1679 = vmatprep.subr.mxu0 0.0
    %1680 = vmatpush1.msra.mxu0 %v320
    %1681 = vmatprep.subr.mxu0 0.0
    %1682 = vmatpush1.msra.mxu0 %v321
    %1683 = vmatprep.subr.mxu0 0.0
    %1684 = vmatpush1.msra.mxu0 %v322
    %1685 = vmatprep.subr.mxu0 0.0
    %1686 = vmatpush1.msra.mxu0 %v323
    %1687 = vmatprep.subr.mxu0 0.0
    %1688 = vmatpush1.msra.mxu0 %v324
    %1689 = vmatprep.subr.mxu0 0.0
    %1690 = vmatpush1.msra.mxu0 %v325
    %1691 = vmatprep.subr.mxu0 0.0
    %1692 = vmatpush1.msra.mxu0 %v326
    %1693 = vmatprep.subr.mxu0 0.0
    %1694 = vmatpush1.msra.mxu0 %v327
    %1695 = vmatprep.subr.mxu0 0.0
    %1696 = vmatpush1.msra.mxu0 %v328
    %1697 = vmatprep.subr.mxu0 0.0
    %1698 = vmatpush1.msra.mxu0 %v329
    %1699 = vmatprep.subr.mxu0 0.0
    %1700 = vmatpush1.msra.mxu0 %v330
    %1701 = vmatprep.subr.mxu0 0.0
    %1702 = vmatpush1.msra.mxu0 %v331
    %1703 = vmatprep.subr.mxu0 0.0
    %1704 = vmatpush1.msra.mxu0 %v332
    %1705 = vmatprep.subr.mxu0 0.0
    %1706 = vmatpush1.msra.mxu0 %v333
    %1707 = vmatprep.subr.mxu0 0.0
    %1708 = vmatpush1.msra.mxu0 %v334
    %1709 = vmatprep.subr.mxu0 0.0
    %1710 = vmatpush1.msra.mxu0 %v335
    %1711 = vmatprep.subr.mxu0 0.0
    %1712 = vmatpush1.msra.mxu0 %v336
    %1713 = vmatprep.subr.mxu0 0.0
    %1714 = vmatpush1.msra.mxu0 %v337
    %1715 = vmatprep.subr.mxu0 0.0
    %1716 = vmatpush1.msra.mxu0 %v338
    %1717 = vmatprep.subr.mxu0 0.0
    %1718 = vmatpush1.msra.mxu0 %v339
    %1719 = vmatprep.subr.mxu0 0.0
    %1720 = vmatpush1.msra.mxu0 %v340
    %1721 = vmatprep.mubr.f32.mxu0 %v1451
    %1722 = vmatmul.mubr.f32.gmra.mrb[0].mxu0 %v1450
    %v1723 = vpop.f32.mrb[0].mxu0
    %v1724 = vadd.f32 %v1579, %v1723
    %v1725 = vpop.f32.mrb[0].mxu0
    %1726 = vmatprep.mubr.f32.mxu0 %v1455
    %1727 = vmatmul.mubr.f32.gmra.mrb[0].mxu0 %v1454
    %v1728 = vpop.f32.mrb[0].mxu0
    %v1729 = vadd.f32 %v1584, %v1728
    %v1730 = vpop.f32.mrb[0].mxu0
    %1731 = vmatprep.mubr.f32.mxu0 %v1459
    %1732 = vmatmul.mubr.f32.gmra.mrb[0].mxu0 %v1458
    %v1733 = vpop.f32.mrb[0].mxu0
    %v1734 = vadd.f32 %v1589, %v1733
    %v1735 = vpop.f32.mrb[0].mxu0
    %1736 = vmatprep.mubr.f32.mxu0 %v1463
    %1737 = vmatmul.mubr.f32.gmra.mrb[0].mxu0 %v1462
    %v1738 = vpop.f32.mrb[0].mxu0
    %v1739 = vadd.f32 %v1594, %v1738
    %v1740 = vpop.f32.mrb[0].mxu0
    %1741 = vmatprep.mubr.f32.mxu0 %v1467
    %1742 = vmatmul.mubr.f32.gmra.mrb[0].mxu0 %v1466
    %v1743 = vpop.f32.mrb[0].mxu0
    %v1744 = vadd.f32 %v1599, %v1743
    %v1745 = vpop.f32.mrb[0].mxu0
    %1746 = vmatprep.mubr.f32.mxu0 %v1471
    %1747 = vmatmul.mubr.f32.gmra.mrb[0].mxu0 %v1470
    %v1748 = vpop.f32.mrb[0].mxu0
    %v1749 = vadd.f32 %v1604, %v1748
    %v1750 = vpop.f32.mrb[0].mxu0
    %1751 = vmatprep.mubr.f32.mxu0 %v1475
    %1752 = vmatmul.mubr.f32.gmra.mrb[0].mxu0 %v1474
    %v1753 = vpop.f32.mrb[0].mxu0
    %v1754 = vadd.f32 %v1609, %v1753
    %v1755 = vpop.f32.mrb[0].mxu0
    %1756 = vmatprep.mubr.f32.mxu0 %v1479
    %1757 = vmatmul.mubr.f32.gmra.mrb[0].mxu0 %v1478
    %v1758 = vpop.f32.mrb[0].mxu0
    %v1759 = vadd.f32 %v1614, %v1758
    %v1760 = vpop.f32.mrb[0].mxu0
    %1761 = vmatprep.mubr.f32.mxu0 %v1483
    %1762 = vmatmul.mubr.f32.gmra.mrb[0].mxu0 %v1482
    %v1763 = vpop.f32.mrb[0].mxu0
    %v1764 = vadd.f32 %v1619, %v1763
    %v1765 = vpop.f32.mrb[0].mxu0
    %1766 = vmatprep.mubr.f32.mxu0 %v1487
    %1767 = vmatmul.mubr.f32.gmra.mrb[0].mxu0 %v1486
    %v1768 = vpop.f32.mrb[0].mxu0
    %v1769 = vadd.f32 %v1624, %v1768
    %v1770 = vpop.f32.mrb[0].mxu0
    %1771 = vmatprep.mubr.f32.mxu0 %v1491
    %1772 = vmatmul.mubr.f32.gmra.mrb[0].mxu0 %v1490
    %v1773 = vpop.f32.mrb[0].mxu0
    %v1774 = vadd.f32 %v1629, %v1773
    %v1775 = vpop.f32.mrb[0].mxu0
    %1776 = vmatprep.mubr.f32.mxu0 %v1495
    %1777 = vmatmul.mubr.f32.gmra.mrb[0].mxu0 %v1494
    %v1778 = vpop.f32.mrb[0].mxu0
    %v1779 = vadd.f32 %v1634, %v1778
    %v1780 = vpop.f32.mrb[0].mxu0
    %1781 = vmatprep.mubr.f32.mxu0 %v1499
    %1782 = vmatmul.mubr.f32.gmra.mrb[0].mxu0 %v1498
    %v1783 = vpop.f32.mrb[0].mxu0
    %v1784 = vadd.f32 %v1639, %v1783
    %v1785 = vpop.f32.mrb[0].mxu0
    %1786 = vmatprep.mubr.f32.mxu0 %v1503
    %1787 = vmatmul.mubr.f32.gmra.mrb[0].mxu0 %v1502
    %v1788 = vpop.f32.mrb[0].mxu0
    %v1789 = vadd.f32 %v1644, %v1788
    %v1790 = vpop.f32.mrb[0].mxu0
    %1791 = vmatprep.mubr.f32.mxu0 %v1507
    %1792 = vmatmul.mubr.f32.gmra.mrb[0].mxu0 %v1506
    %v1793 = vpop.f32.mrb[0].mxu0
    %v1794 = vadd.f32 %v1649, %v1793
    %v1795 = vpop.f32.mrb[0].mxu0
    %1796 = vmatprep.mubr.f32.mxu0 %v1511
    %1797 = vmatmul.mubr.f32.gmra.mrb[0].mxu0 %v1510
    %v1798 = vpop.f32.mrb[0].mxu0
    %v1799 = vadd.f32 %v1654, %v1798
    %v1800 = vpop.f32.mrb[0].mxu0
    %1801 = vdwg.mxu0
    %s1802 = scalar_lea.vmem [#allocation5], 8
    %v1803 = vld [vmem:[%s1802] sm:$0xf]
    %v1805 = vsel %vm1053, %v1724, 0
    %v1808 = vsel %vm1053, %v1729, 0
    %v1811 = vsel %vm1053, %v1734, 0
    %v1814 = vsel %vm1053, %v1739, 0
    %v1817 = vsel %vm1053, %v1744, 0
    %v1820 = vsel %vm1053, %v1749, 0
    %v1823 = vsel %vm1053, %v1754, 0
    %v1826 = vsel %vm1053, %v1759, 0
    %v1829 = vsel %vm1053, %v1764, 0
    %v1832 = vsel %vm1053, %v1769, 0
    %v1835 = vsel %vm1053, %v1774, 0
    %v1838 = vsel %vm1053, %v1779, 0
    %v1841 = vsel %vm1053, %v1784, 0
    %v1844 = vsel %vm1053, %v1789, 0
    %v1847 = vsel %vm1053, %v1794, 0
    %v1850 = vsel %vm1053, %v1799, 0
    %v1853 = vsel %vm1102, %v1803, 0
    %1855 = vmatprep.subr.mxu0 0.0
    %1856 = vmatpush1.msra.mxu0 %v1853
    %1857 = vmatprep.subr.mxu0 0.0
    %1858 = vmatpush1.msra.mxu0 0.0
    %1859 = vmatprep.subr.mxu0 0.0
    %1860 = vmatpush1.msra.mxu0 0.0
    %1861 = vmatprep.subr.mxu0 0.0
    %1862 = vmatpush1.msra.mxu0 0.0
    %1863 = vmatprep.subr.mxu0 0.0
    %1864 = vmatpush1.msra.mxu0 0.0
    %1865 = vmatprep.subr.mxu0 0.0
    %1866 = vmatpush1.msra.mxu0 0.0
    %1867 = vmatprep.subr.mxu0 0.0
    %1868 = vmatpush1.msra.mxu0 0.0
    %1869 = vmatprep.subr.mxu0 0.0
    %1870 = vmatpush1.msra.mxu0 0.0
    %1871 = vmatprep.subr.mxu0 0.0
    %1872 = vmatpush1.msra.mxu0 0.0
    %1873 = vmatprep.subr.mxu0 0.0
    %1874 = vmatpush1.msra.mxu0 0.0
    %1875 = vmatprep.subr.mxu0 0.0
    %1876 = vmatpush1.msra.mxu0 0.0
    %1877 = vmatprep.subr.mxu0 0.0
    %1878 = vmatpush1.msra.mxu0 0.0
    %1879 = vmatprep.subr.mxu0 0.0
    %1880 = vmatpush1.msra.mxu0 0.0
    %1881 = vmatprep.subr.mxu0 0.0
    %1882 = vmatpush1.msra.mxu0 0.0
    %1883 = vmatprep.subr.mxu0 0.0
    %1884 = vmatpush1.msra.mxu0 0.0
    %1885 = vmatprep.subr.mxu0 0.0
    %1886 = vmatpush1.msra.mxu0 0.0
    %1887 = vmatprep.subr.mxu0 0.0
    %1888 = vmatpush1.msra.mxu0 0.0
    %1889 = vmatprep.subr.mxu0 0.0
    %1890 = vmatpush1.msra.mxu0 0.0
    %1891 = vmatprep.subr.mxu0 0.0
    %1892 = vmatpush1.msra.mxu0 0.0
    %1893 = vmatprep.subr.mxu0 0.0
    %1894 = vmatpush1.msra.mxu0 0.0
    %1895 = vmatprep.subr.mxu0 0.0
    %1896 = vmatpush1.msra.mxu0 0.0
    %1897 = vmatprep.subr.mxu0 0.0
    %1898 = vmatpush1.msra.mxu0 0.0
    %1899 = vmatprep.subr.mxu0 0.0
    %1900 = vmatpush1.msra.mxu0 0.0
    %1901 = vmatprep.subr.mxu0 0.0
    %1902 = vmatpush1.msra.mxu0 0.0
    %1903 = vmatprep.subr.mxu0 0.0
    %1904 = vmatpush1.msra.mxu0 0.0
    %1905 = vmatprep.subr.mxu0 0.0
    %1906 = vmatpush1.msra.mxu0 0.0
    %1907 = vmatprep.subr.mxu0 0.0
    %1908 = vmatpush1.msra.mxu0 0.0
    %1909 = vmatprep.subr.mxu0 0.0
    %1910 = vmatpush1.msra.mxu0 0.0
    %1911 = vmatprep.subr.mxu0 0.0
    %1912 = vmatpush1.msra.mxu0 0.0
    %1913 = vmatprep.subr.mxu0 0.0
    %1914 = vmatpush1.msra.mxu0 0.0
    %1915 = vmatprep.subr.mxu0 0.0
    %1916 = vmatpush1.msra.mxu0 0.0
    %1917 = vmatprep.subr.mxu0 0.0
    %1918 = vmatpush1.msra.mxu0 0.0
    %1919 = vmatprep.mubr.f32.mxu0 0.0
    %1920 = vmatmul.mubr.f32.gmra.mrb[0].mxu0 %v1805
    %v1921 = vpop.f32.mrb[0].mxu0
    %v1922 = vadd.f32 0.0, %v1921
    %v1923 = vpop.f32.mrb[0].mxu0
    %1924 = vmatprep.mubr.f32.mxu0 0.0
    %1925 = vmatmul.mubr.f32.gmra.mrb[0].mxu0 %v1808
    %v1926 = vpop.f32.mrb[0].mxu0
    %v1927 = vadd.f32 0.0, %v1926
    %v1928 = vpop.f32.mrb[0].mxu0
    %1929 = vmatprep.mubr.f32.mxu0 0.0
    %1930 = vmatmul.mubr.f32.gmra.mrb[0].mxu0 %v1811
    %v1931 = vpop.f32.mrb[0].mxu0
    %v1932 = vadd.f32 0.0, %v1931
    %v1933 = vpop.f32.mrb[0].mxu0
    %1934 = vmatprep.mubr.f32.mxu0 0.0
    %1935 = vmatmul.mubr.f32.gmra.mrb[0].mxu0 %v1814
    %v1936 = vpop.f32.mrb[0].mxu0
    %v1937 = vadd.f32 0.0, %v1936
    %v1938 = vpop.f32.mrb[0].mxu0
    %1939 = vmatprep.mubr.f32.mxu0 0.0
    %1940 = vmatmul.mubr.f32.gmra.mrb[0].mxu0 %v1817
    %v1941 = vpop.f32.mrb[0].mxu0
    %v1942 = vadd.f32 0.0, %v1941
    %v1943 = vpop.f32.mrb[0].mxu0
    %1944 = vmatprep.mubr.f32.mxu0 0.0
    %1945 = vmatmul.mubr.f32.gmra.mrb[0].mxu0 %v1820
    %v1946 = vpop.f32.mrb[0].mxu0
    %v1947 = vadd.f32 0.0, %v1946
    %v1948 = vpop.f32.mrb[0].mxu0
    %1949 = vmatprep.mubr.f32.mxu0 0.0
    %1950 = vmatmul.mubr.f32.gmra.mrb[0].mxu0 %v1823
    %v1951 = vpop.f32.mrb[0].mxu0
    %v1952 = vadd.f32 0.0, %v1951
    %v1953 = vpop.f32.mrb[0].mxu0
    %1954 = vmatprep.mubr.f32.mxu0 0.0
    %1955 = vmatmul.mubr.f32.gmra.mrb[0].mxu0 %v1826
    %v1956 = vpop.f32.mrb[0].mxu0
    %v1957 = vadd.f32 0.0, %v1956
    %v1958 = vpop.f32.mrb[0].mxu0
    %1959 = vmatprep.mubr.f32.mxu0 0.0
    %1960 = vmatmul.mubr.f32.gmra.mrb[0].mxu0 %v1829
    %v1961 = vpop.f32.mrb[0].mxu0
    %v1962 = vadd.f32 0.0, %v1961
    %v1963 = vpop.f32.mrb[0].mxu0
    %1964 = vmatprep.mubr.f32.mxu0 0.0
    %1965 = vmatmul.mubr.f32.gmra.mrb[0].mxu0 %v1832
    %v1966 = vpop.f32.mrb[0].mxu0
    %v1967 = vadd.f32 0.0, %v1966
    %v1968 = vpop.f32.mrb[0].mxu0
    %1969 = vmatprep.mubr.f32.mxu0 0.0
    %1970 = vmatmul.mubr.f32.gmra.mrb[0].mxu0 %v1835
    %v1971 = vpop.f32.mrb[0].mxu0
    %v1972 = vadd.f32 0.0, %v1971
    %v1973 = vpop.f32.mrb[0].mxu0
    %1974 = vmatprep.mubr.f32.mxu0 0.0
    %1975 = vmatmul.mubr.f32.gmra.mrb[0].mxu0 %v1838
    %v1976 = vpop.f32.mrb[0].mxu0
    %v1977 = vadd.f32 0.0, %v1976
    %v1978 = vpop.f32.mrb[0].mxu0
    %1979 = vmatprep.mubr.f32.mxu0 0.0
    %1980 = vmatmul.mubr.f32.gmra.mrb[0].mxu0 %v1841
    %v1981 = vpop.f32.mrb[0].mxu0
    %v1982 = vadd.f32 0.0, %v1981
    %v1983 = vpop.f32.mrb[0].mxu0
    %1984 = vmatprep.mubr.f32.mxu0 0.0
    %1985 = vmatmul.mubr.f32.gmra.mrb[0].mxu0 %v1844
    %v1986 = vpop.f32.mrb[0].mxu0
    %v1987 = vadd.f32 0.0, %v1986
    %v1988 = vpop.f32.mrb[0].mxu0
    %1989 = vmatprep.mubr.f32.mxu0 0.0
    %1990 = vmatmul.mubr.f32.gmra.mrb[0].mxu0 %v1847
    %v1991 = vpop.f32.mrb[0].mxu0
    %v1992 = vadd.f32 0.0, %v1991
    %v1993 = vpop.f32.mrb[0].mxu0
    %1994 = vmatprep.mubr.f32.mxu0 0.0
    %1995 = vmatmul.mubr.f32.gmra.mrb[0].mxu0 %v1850
    %v1996 = vpop.f32.mrb[0].mxu0
    %v1997 = vadd.f32 0.0, %v1996
    %v1998 = vpop.f32.mrb[0].mxu0
    %1999 = vdwg.mxu0
    %v2000 = vadd.f32 %v1369, %v1922
    %v2001 = vadd.f32 %v1374, %v1927
    %v2002 = vadd.f32 %v1379, %v1932
    %v2003 = vadd.f32 %v1384, %v1937
    %v2004 = vadd.f32 %v1389, %v1942
    %v2005 = vadd.f32 %v1394, %v1947
    %v2006 = vadd.f32 %v1399, %v1952
    %v2007 = vadd.f32 %v1404, %v1957
    %v2008 = vadd.f32 %v1409, %v1962
    %v2009 = vadd.f32 %v1414, %v1967
    %v2010 = vadd.f32 %v1419, %v1972
    %v2011 = vadd.f32 %v1424, %v1977
    %v2012 = vadd.f32 %v1429, %v1982
    %v2013 = vadd.f32 %v1434, %v1987
    %v2014 = vadd.f32 %v1439, %v1992
    %v2015 = vadd.f32 %v1444, %v1997
    %s2016 = scalar_lea.vmem [#allocation3], 1536
    %v2017 = vld [vmem:[%s2016] sm:$0xff]
    %v2018 = vld [vmem:[%s2016 + $0x8] sm:$0xff]
    %v2019 = vld [vmem:[%s2016 + $0x10] sm:$0xff]
    %v2020 = vld [vmem:[%s2016 + $0x18] sm:$0xff]
    %v2021 = vld [vmem:[%s2016 + $0x20] sm:$0xff]
    %v2022 = vld [vmem:[%s2016 + $0x28] sm:$0xff]
    %v2023 = vld [vmem:[%s2016 + $0x30] sm:$0xff]
    %v2024 = vld [vmem:[%s2016 + $0x38] sm:$0xff]
    %v2025 = vld [vmem:[%s2016 + $0x40] sm:$0xff]
    %v2026 = vld [vmem:[%s2016 + $0x48] sm:$0xff]
    %v2027 = vld [vmem:[%s2016 + $0x50] sm:$0xff]
    %v2028 = vld [vmem:[%s2016 + $0x58] sm:$0xff]
    %v2029 = vld [vmem:[%s2016 + $0x60] sm:$0xff]
    %v2030 = vld [vmem:[%s2016 + $0x68] sm:$0xff]
    %v2031 = vld [vmem:[%s2016 + $0x70] sm:$0xff]
    %v2032 = vld [vmem:[%s2016 + $0x78] sm:$0xff]
    %v2033 = vld [vmem:[%s2016 + $0x80] sm:$0xff]
    %v2034 = vld [vmem:[%s2016 + $0x88] sm:$0xff]
    %v2035 = vld [vmem:[%s2016 + $0x90] sm:$0xff]
    %v2036 = vld [vmem:[%s2016 + $0x98] sm:$0xff]
    %v2037 = vld [vmem:[%s2016 + $0xa0] sm:$0xff]
    %v2038 = vld [vmem:[%s2016 + $0xa8] sm:$0xff]
    %v2039 = vld [vmem:[%s2016 + $0xb0] sm:$0xff]
    %v2040 = vld [vmem:[%s2016 + $0xb8] sm:$0xff]
    %v2041 = vld [vmem:[%s2016 + $0xc0] sm:$0xff]
    %v2042 = vld [vmem:[%s2016 + $0xc8] sm:$0xff]
    %v2043 = vld [vmem:[%s2016 + $0xd0] sm:$0xff]
    %v2044 = vld [vmem:[%s2016 + $0xd8] sm:$0xff]
    %v2045 = vld [vmem:[%s2016 + $0xe0] sm:$0xff]
    %v2046 = vld [vmem:[%s2016 + $0xe8] sm:$0xff]
    %v2047 = vld [vmem:[%s2016 + $0xf0] sm:$0xff]
    %v2048 = vld [vmem:[%s2016 + $0xf8] sm:$0xff]
    %v2049 = vld [vmem:[%s2016 + $0x100] sm:$0xff]
    %v2050 = vld [vmem:[%s2016 + $0x108] sm:$0xff]
    %v2051 = vld [vmem:[%s2016 + $0x110] sm:$0xff]
    %v2052 = vld [vmem:[%s2016 + $0x118] sm:$0xff]
    %v2053 = vld [vmem:[%s2016 + $0x120] sm:$0xff]
    %v2054 = vld [vmem:[%s2016 + $0x128] sm:$0xff]
    %v2055 = vld [vmem:[%s2016 + $0x130] sm:$0xff]
    %v2056 = vld [vmem:[%s2016 + $0x138] sm:$0xff]
    %v2057 = vld [vmem:[%s2016 + $0x140] sm:$0xff]
    %v2058 = vld [vmem:[%s2016 + $0x148] sm:$0xff]
    %v2059 = vld [vmem:[%s2016 + $0x150] sm:$0xff]
    %v2060 = vld [vmem:[%s2016 + $0x158] sm:$0xff]
    %v2061 = vld [vmem:[%s2016 + $0x160] sm:$0xff]
    %v2062 = vld [vmem:[%s2016 + $0x168] sm:$0xff]
    %v2063 = vld [vmem:[%s2016 + $0x170] sm:$0xff]
    %v2064 = vld [vmem:[%s2016 + $0x178] sm:$0xff]
    %v2065 = vld [vmem:[%s2016 + $0x180] sm:$0xff]
    %v2066 = vld [vmem:[%s2016 + $0x188] sm:$0xff]
    %v2067 = vld [vmem:[%s2016 + $0x190] sm:$0xff]
    %v2068 = vld [vmem:[%s2016 + $0x198] sm:$0xff]
    %v2069 = vld [vmem:[%s2016 + $0x1a0] sm:$0xff]
    %v2070 = vld [vmem:[%s2016 + $0x1a8] sm:$0xff]
    %v2071 = vld [vmem:[%s2016 + $0x1b0] sm:$0xff]
    %v2072 = vld [vmem:[%s2016 + $0x1b8] sm:$0xff]
    %v2073 = vld [vmem:[%s2016 + $0x1c0] sm:$0xff]
    %v2074 = vld [vmem:[%s2016 + $0x1c8] sm:$0xff]
    %v2075 = vld [vmem:[%s2016 + $0x1d0] sm:$0xff]
    %v2076 = vld [vmem:[%s2016 + $0x1d8] sm:$0xff]
    %v2077 = vld [vmem:[%s2016 + $0x1e0] sm:$0xff]
    %v2078 = vld [vmem:[%s2016 + $0x1e8] sm:$0xff]
    %v2079 = vld [vmem:[%s2016 + $0x1f0] sm:$0xff]
    %v2080 = vld [vmem:[%s2016 + $0x1f8] sm:$0xff]
    %2081 = vmatprep.subr.mxu0 0.0
    %2082 = vmatpush1.msra.mxu0 %v277
    %2083 = vmatprep.subr.mxu0 0.0
    %2084 = vmatpush1.msra.mxu0 %v278
    %2085 = vmatprep.subr.mxu0 0.0
    %2086 = vmatpush1.msra.mxu0 %v279
    %2087 = vmatprep.subr.mxu0 0.0
    %2088 = vmatpush1.msra.mxu0 %v280
    %2089 = vmatprep.subr.mxu0 0.0
    %2090 = vmatpush1.msra.mxu0 %v281
    %2091 = vmatprep.subr.mxu0 0.0
    %2092 = vmatpush1.msra.mxu0 %v282
    %2093 = vmatprep.subr.mxu0 0.0
    %2094 = vmatpush1.msra.mxu0 %v283
    %2095 = vmatprep.subr.mxu0 0.0
    %2096 = vmatpush1.msra.mxu0 %v284
    %2097 = vmatprep.subr.mxu0 0.0
    %2098 = vmatpush1.msra.mxu0 %v285
    %2099 = vmatprep.subr.mxu0 0.0
    %2100 = vmatpush1.msra.mxu0 %v286
    %2101 = vmatprep.subr.mxu0 0.0
    %2102 = vmatpush1.msra.mxu0 %v287
    %2103 = vmatprep.subr.mxu0 0.0
    %2104 = vmatpush1.msra.mxu0 %v288
    %2105 = vmatprep.subr.mxu0 0.0
    %2106 = vmatpush1.msra.mxu0 %v289
    %2107 = vmatprep.subr.mxu0 0.0
    %2108 = vmatpush1.msra.mxu0 %v290
    %2109 = vmatprep.subr.mxu0 0.0
    %2110 = vmatpush1.msra.mxu0 %v291
    %2111 = vmatprep.subr.mxu0 0.0
    %2112 = vmatpush1.msra.mxu0 %v292
    %2113 = vmatprep.subr.mxu0 0.0
    %2114 = vmatpush1.msra.mxu0 %v293
    %2115 = vmatprep.subr.mxu0 0.0
    %2116 = vmatpush1.msra.mxu0 %v294
    %2117 = vmatprep.subr.mxu0 0.0
    %2118 = vmatpush1.msra.mxu0 %v295
    %2119 = vmatprep.subr.mxu0 0.0
    %2120 = vmatpush1.msra.mxu0 %v296
    %2121 = vmatprep.subr.mxu0 0.0
    %2122 = vmatpush1.msra.mxu0 %v297
    %2123 = vmatprep.subr.mxu0 0.0
    %2124 = vmatpush1.msra.mxu0 %v298
    %2125 = vmatprep.subr.mxu0 0.0
    %2126 = vmatpush1.msra.mxu0 %v299
    %2127 = vmatprep.subr.mxu0 0.0
    %2128 = vmatpush1.msra.mxu0 %v300
    %2129 = vmatprep.subr.mxu0 0.0
    %2130 = vmatpush1.msra.mxu0 %v301
    %2131 = vmatprep.subr.mxu0 0.0
    %2132 = vmatpush1.msra.mxu0 %v302
    %2133 = vmatprep.subr.mxu0 0.0
    %2134 = vmatpush1.msra.mxu0 %v303
    %2135 = vmatprep.subr.mxu0 0.0
    %2136 = vmatpush1.msra.mxu0 %v304
    %2137 = vmatprep.subr.mxu0 0.0
    %2138 = vmatpush1.msra.mxu0 %v305
    %2139 = vmatprep.subr.mxu0 0.0
    %2140 = vmatpush1.msra.mxu0 %v306
    %2141 = vmatprep.subr.mxu0 0.0
    %2142 = vmatpush1.msra.mxu0 %v307
    %2143 = vmatprep.subr.mxu0 0.0
    %2144 = vmatpush1.msra.mxu0 %v308
    %2145 = vmatprep.mubr.f32.mxu0 %v2018
    %2146 = vmatmul.mubr.f32.gmra.mrb[0].mxu0 %v2017
    %v2147 = vpop.f32.mrb[0].mxu0
    %v2148 = vadd.f32 0.0, %v2147
    %v2149 = vpop.f32.mrb[0].mxu0
    %2150 = vmatprep.mubr.f32.mxu0 %v2022
    %2151 = vmatmul.mubr.f32.gmra.mrb[0].mxu0 %v2021
    %v2152 = vpop.f32.mrb[0].mxu0
    %v2153 = vadd.f32 0.0, %v2152
    %v2154 = vpop.f32.mrb[0].mxu0
    %2155 = vmatprep.mubr.f32.mxu0 %v2026
    %2156 = vmatmul.mubr.f32.gmra.mrb[0].mxu0 %v2025
    %v2157 = vpop.f32.mrb[0].mxu0
    %v2158 = vadd.f32 0.0, %v2157
    %v2159 = vpop.f32.mrb[0].mxu0
    %2160 = vmatprep.mubr.f32.mxu0 %v2030
    %2161 = vmatmul.mubr.f32.gmra.mrb[0].mxu0 %v2029
    %v2162 = vpop.f32.mrb[0].mxu0
    %v2163 = vadd.f32 0.0, %v2162
    %v2164 = vpop.f32.mrb[0].mxu0
    %2165 = vmatprep.mubr.f32.mxu0 %v2034
    %2166 = vmatmul.mubr.f32.gmra.mrb[0].mxu0 %v2033
    %v2167 = vpop.f32.mrb[0].mxu0
    %v2168 = vadd.f32 0.0, %v2167
    %v2169 = vpop.f32.mrb[0].mxu0
    %2170 = vmatprep.mubr.f32.mxu0 %v2038
    %2171 = vmatmul.mubr.f32.gmra.mrb[0].mxu0 %v2037
    %v2172 = vpop.f32.mrb[0].mxu0
    %v2173 = vadd.f32 0.0, %v2172
    %v2174 = vpop.f32.mrb[0].mxu0
    %2175 = vmatprep.mubr.f32.mxu0 %v2042
    %2176 = vmatmul.mubr.f32.gmra.mrb[0].mxu0 %v2041
    %v2177 = vpop.f32.mrb[0].mxu0
    %v2178 = vadd.f32 0.0, %v2177
    %v2179 = vpop.f32.mrb[0].mxu0
    %2180 = vmatprep.mubr.f32.mxu0 %v2046
    %2181 = vmatmul.mubr.f32.gmra.mrb[0].mxu0 %v2045
    %v2182 = vpop.f32.mrb[0].mxu0
    %v2183 = vadd.f32 0.0, %v2182
    %v2184 = vpop.f32.mrb[0].mxu0
    %2185 = vmatprep.mubr.f32.mxu0 %v2050
    %2186 = vmatmul.mubr.f32.gmra.mrb[0].mxu0 %v2049
    %v2187 = vpop.f32.mrb[0].mxu0
    %v2188 = vadd.f32 0.0, %v2187
    %v2189 = vpop.f32.mrb[0].mxu0
    %2190 = vmatprep.mubr.f32.mxu0 %v2054
    %2191 = vmatmul.mubr.f32.gmra.mrb[0].mxu0 %v2053
    %v2192 = vpop.f32.mrb[0].mxu0
    %v2193 = vadd.f32 0.0, %v2192
    %v2194 = vpop.f32.mrb[0].mxu0
    %2195 = vmatprep.mubr.f32.mxu0 %v2058
    %2196 = vmatmul.mubr.f32.gmra.mrb[0].mxu0 %v2057
    %v2197 = vpop.f32.mrb[0].mxu0
    %v2198 = vadd.f32 0.0, %v2197
    %v2199 = vpop.f32.mrb[0].mxu0
    %2200 = vmatprep.mubr.f32.mxu0 %v2062
    %2201 = vmatmul.mubr.f32.gmra.mrb[0].mxu0 %v2061
    %v2202 = vpop.f32.mrb[0].mxu0
    %v2203 = vadd.f32 0.0, %v2202
    %v2204 = vpop.f32.mrb[0].mxu0
    %2205 = vmatprep.mubr.f32.mxu0 %v2066
    %2206 = vmatmul.mubr.f32.gmra.mrb[0].mxu0 %v2065
    %v2207 = vpop.f32.mrb[0].mxu0
    %v2208 = vadd.f32 0.0, %v2207
    %v2209 = vpop.f32.mrb[0].mxu0
    %2210 = vmatprep.mubr.f32.mxu0 %v2070
    %2211 = vmatmul.mubr.f32.gmra.mrb[0].mxu0 %v2069
    %v2212 = vpop.f32.mrb[0].mxu0
    %v2213 = vadd.f32 0.0, %v2212
    %v2214 = vpop.f32.mrb[0].mxu0
    %2215 = vmatprep.mubr.f32.mxu0 %v2074
    %2216 = vmatmul.mubr.f32.gmra.mrb[0].mxu0 %v2073
    %v2217 = vpop.f32.mrb[0].mxu0
    %v2218 = vadd.f32 0.0, %v2217
    %v2219 = vpop.f32.mrb[0].mxu0
    %2220 = vmatprep.mubr.f32.mxu0 %v2078
    %2221 = vmatmul.mubr.f32.gmra.mrb[0].mxu0 %v2077
    %v2222 = vpop.f32.mrb[0].mxu0
    %v2223 = vadd.f32 0.0, %v2222
    %v2224 = vpop.f32.mrb[0].mxu0
    %2225 = vdwg.mxu0
    %2226 = vmatprep.subr.mxu0 0.0
    %2227 = vmatpush1.msra.mxu0 %v309
    %2228 = vmatprep.subr.mxu0 0.0
    %2229 = vmatpush1.msra.mxu0 %v310
    %2230 = vmatprep.subr.mxu0 0.0
    %2231 = vmatpush1.msra.mxu0 %v311
    %2232 = vmatprep.subr.mxu0 0.0
    %2233 = vmatpush1.msra.mxu0 %v312
    %2234 = vmatprep.subr.mxu0 0.0
    %2235 = vmatpush1.msra.mxu0 %v313
    %2236 = vmatprep.subr.mxu0 0.0
    %2237 = vmatpush1.msra.mxu0 %v314
    %2238 = vmatprep.subr.mxu0 0.0
    %2239 = vmatpush1.msra.mxu0 %v315
    %2240 = vmatprep.subr.mxu0 0.0
    %2241 = vmatpush1.msra.mxu0 %v316
    %2242 = vmatprep.subr.mxu0 0.0
    %2243 = vmatpush1.msra.mxu0 %v317
    %2244 = vmatprep.subr.mxu0 0.0
    %2245 = vmatpush1.msra.mxu0 %v318
    %2246 = vmatprep.subr.mxu0 0.0
    %2247 = vmatpush1.msra.mxu0 %v319
    %2248 = vmatprep.subr.mxu0 0.0
    %2249 = vmatpush1.msra.mxu0 %v320
    %2250 = vmatprep.subr.mxu0 0.0
    %2251 = vmatpush1.msra.mxu0 %v321
    %2252 = vmatprep.subr.mxu0 0.0
    %2253 = vmatpush1.msra.mxu0 %v322
    %2254 = vmatprep.subr.mxu0 0.0
    %2255 = vmatpush1.msra.mxu0 %v323
    %2256 = vmatprep.subr.mxu0 0.0
    %2257 = vmatpush1.msra.mxu0 %v324
    %2258 = vmatprep.subr.mxu0 0.0
    %2259 = vmatpush1.msra.mxu0 %v325
    %2260 = vmatprep.subr.mxu0 0.0
    %2261 = vmatpush1.msra.mxu0 %v326
    %2262 = vmatprep.subr.mxu0 0.0
    %2263 = vmatpush1.msra.mxu0 %v327
    %2264 = vmatprep.subr.mxu0 0.0
    %2265 = vmatpush1.msra.mxu0 %v328
    %2266 = vmatprep.subr.mxu0 0.0
    %2267 = vmatpush1.msra.mxu0 %v329
    %2268 = vmatprep.subr.mxu0 0.0
    %2269 = vmatpush1.msra.mxu0 %v330
    %2270 = vmatprep.subr.mxu0 0.0
    %2271 = vmatpush1.msra.mxu0 %v331
    %2272 = vmatprep.subr.mxu0 0.0
    %2273 = vmatpush1.msra.mxu0 %v332
    %2274 = vmatprep.subr.mxu0 0.0
    %2275 = vmatpush1.msra.mxu0 %v333
    %2276 = vmatprep.subr.mxu0 0.0
    %2277 = vmatpush1.msra.mxu0 %v334
    %2278 = vmatprep.subr.mxu0 0.0
    %2279 = vmatpush1.msra.mxu0 %v335
    %2280 = vmatprep.subr.mxu0 0.0
    %2281 = vmatpush1.msra.mxu0 %v336
    %2282 = vmatprep.subr.mxu0 0.0
    %2283 = vmatpush1.msra.mxu0 %v337
    %2284 = vmatprep.subr.mxu0 0.0
    %2285 = vmatpush1.msra.mxu0 %v338
    %2286 = vmatprep.subr.mxu0 0.0
    %2287 = vmatpush1.msra.mxu0 %v339
    %2288 = vmatprep.subr.mxu0 0.0
    %2289 = vmatpush1.msra.mxu0 %v340
    %2290 = vmatprep.mubr.f32.mxu0 %v2020
    %2291 = vmatmul.mubr.f32.gmra.mrb[0].mxu0 %v2019
    %v2292 = vpop.f32.mrb[0].mxu0
    %v2293 = vadd.f32 %v2148, %v2292
    %v2294 = vpop.f32.mrb[0].mxu0
    %2295 = vmatprep.mubr.f32.mxu0 %v2024
    %2296 = vmatmul.mubr.f32.gmra.mrb[0].mxu0 %v2023
    %v2297 = vpop.f32.mrb[0].mxu0
    %v2298 = vadd.f32 %v2153, %v2297
    %v2299 = vpop.f32.mrb[0].mxu0
    %2300 = vmatprep.mubr.f32.mxu0 %v2028
    %2301 = vmatmul.mubr.f32.gmra.mrb[0].mxu0 %v2027
    %v2302 = vpop.f32.mrb[0].mxu0
    %v2303 = vadd.f32 %v2158, %v2302
    %v2304 = vpop.f32.mrb[0].mxu0
    %2305 = vmatprep.mubr.f32.mxu0 %v2032
    %2306 = vmatmul.mubr.f32.gmra.mrb[0].mxu0 %v2031
    %v2307 = vpop.f32.mrb[0].mxu0
    %v2308 = vadd.f32 %v2163, %v2307
    %v2309 = vpop.f32.mrb[0].mxu0
    %2310 = vmatprep.mubr.f32.mxu0 %v2036
    %2311 = vmatmul.mubr.f32.gmra.mrb[0].mxu0 %v2035
    %v2312 = vpop.f32.mrb[0].mxu0
    %v2313 = vadd.f32 %v2168, %v2312
    %v2314 = vpop.f32.mrb[0].mxu0
    %2315 = vmatprep.mubr.f32.mxu0 %v2040
    %2316 = vmatmul.mubr.f32.gmra.mrb[0].mxu0 %v2039
    %v2317 = vpop.f32.mrb[0].mxu0
    %v2318 = vadd.f32 %v2173, %v2317
    %v2319 = vpop.f32.mrb[0].mxu0
    %2320 = vmatprep.mubr.f32.mxu0 %v2044
    %2321 = vmatmul.mubr.f32.gmra.mrb[0].mxu0 %v2043
    %v2322 = vpop.f32.mrb[0].mxu0
    %v2323 = vadd.f32 %v2178, %v2322
    %v2324 = vpop.f32.mrb[0].mxu0
    %2325 = vmatprep.mubr.f32.mxu0 %v2048
    %2326 = vmatmul.mubr.f32.gmra.mrb[0].mxu0 %v2047
    %v2327 = vpop.f32.mrb[0].mxu0
    %v2328 = vadd.f32 %v2183, %v2327
    %v2329 = vpop.f32.mrb[0].mxu0
    %2330 = vmatprep.mubr.f32.mxu0 %v2052
    %2331 = vmatmul.mubr.f32.gmra.mrb[0].mxu0 %v2051
    %v2332 = vpop.f32.mrb[0].mxu0
    %v2333 = vadd.f32 %v2188, %v2332
    %v2334 = vpop.f32.mrb[0].mxu0
    %2335 = vmatprep.mubr.f32.mxu0 %v2056
    %2336 = vmatmul.mubr.f32.gmra.mrb[0].mxu0 %v2055
    %v2337 = vpop.f32.mrb[0].mxu0
    %v2338 = vadd.f32 %v2193, %v2337
    %v2339 = vpop.f32.mrb[0].mxu0
    %2340 = vmatprep.mubr.f32.mxu0 %v2060
    %2341 = vmatmul.mubr.f32.gmra.mrb[0].mxu0 %v2059
    %v2342 = vpop.f32.mrb[0].mxu0
    %v2343 = vadd.f32 %v2198, %v2342
    %v2344 = vpop.f32.mrb[0].mxu0
    %2345 = vmatprep.mubr.f32.mxu0 %v2064
    %2346 = vmatmul.mubr.f32.gmra.mrb[0].mxu0 %v2063
    %v2347 = vpop.f32.mrb[0].mxu0
    %v2348 = vadd.f32 %v2203, %v2347
    %v2349 = vpop.f32.mrb[0].mxu0
    %2350 = vmatprep.mubr.f32.mxu0 %v2068
    %2351 = vmatmul.mubr.f32.gmra.mrb[0].mxu0 %v2067
    %v2352 = vpop.f32.mrb[0].mxu0
    %v2353 = vadd.f32 %v2208, %v2352
    %v2354 = vpop.f32.mrb[0].mxu0
    %2355 = vmatprep.mubr.f32.mxu0 %v2072
    %2356 = vmatmul.mubr.f32.gmra.mrb[0].mxu0 %v2071
    %v2357 = vpop.f32.mrb[0].mxu0
    %v2358 = vadd.f32 %v2213, %v2357
    %v2359 = vpop.f32.mrb[0].mxu0
    %2360 = vmatprep.mubr.f32.mxu0 %v2076
    %2361 = vmatmul.mubr.f32.gmra.mrb[0].mxu0 %v2075
    %v2362 = vpop.f32.mrb[0].mxu0
    %v2363 = vadd.f32 %v2218, %v2362
    %v2364 = vpop.f32.mrb[0].mxu0
    %2365 = vmatprep.mubr.f32.mxu0 %v2080
    %2366 = vmatmul.mubr.f32.gmra.mrb[0].mxu0 %v2079
    %v2367 = vpop.f32.mrb[0].mxu0
    %v2368 = vadd.f32 %v2223, %v2367
    %v2369 = vpop.f32.mrb[0].mxu0
    %2370 = vdwg.mxu0
    %s2371 = scalar_lea.vmem [#allocation5], 12
    %v2372 = vld [vmem:[%s2371] sm:$0xf]
    %v2374 = vsel %vm1053, %v2293, 0
    %v2377 = vsel %vm1053, %v2298, 0
    %v2380 = vsel %vm1053, %v2303, 0
    %v2383 = vsel %vm1053, %v2308, 0
    %v2386 = vsel %vm1053, %v2313, 0
    %v2389 = vsel %vm1053, %v2318, 0
    %v2392 = vsel %vm1053, %v2323, 0
    %v2395 = vsel %vm1053, %v2328, 0
    %v2398 = vsel %vm1053, %v2333, 0
    %v2401 = vsel %vm1053, %v2338, 0
    %v2404 = vsel %vm1053, %v2343, 0
    %v2407 = vsel %vm1053, %v2348, 0
    %v2410 = vsel %vm1053, %v2353, 0
    %v2413 = vsel %vm1053, %v2358, 0
    %v2416 = vsel %vm1053, %v2363, 0
    %v2419 = vsel %vm1053, %v2368, 0
    %v2422 = vsel %vm1102, %v2372, 0
    %2424 = vmatprep.subr.mxu0 0.0
    %2425 = vmatpush1.msra.mxu0 %v2422
    %2426 = vmatprep.subr.mxu0 0.0
    %2427 = vmatpush1.msra.mxu0 0.0
    %2428 = vmatprep.subr.mxu0 0.0
    %2429 = vmatpush1.msra.mxu0 0.0
    %2430 = vmatprep.subr.mxu0 0.0
    %2431 = vmatpush1.msra.mxu0 0.0
    %2432 = vmatprep.subr.mxu0 0.0
    %2433 = vmatpush1.msra.mxu0 0.0
    %2434 = vmatprep.subr.mxu0 0.0
    %2435 = vmatpush1.msra.mxu0 0.0
    %2436 = vmatprep.subr.mxu0 0.0
    %2437 = vmatpush1.msra.mxu0 0.0
    %2438 = vmatprep.subr.mxu0 0.0
    %2439 = vmatpush1.msra.mxu0 0.0
    %2440 = vmatprep.subr.mxu0 0.0
    %2441 = vmatpush1.msra.mxu0 0.0
    %2442 = vmatprep.subr.mxu0 0.0
    %2443 = vmatpush1.msra.mxu0 0.0
    %2444 = vmatprep.subr.mxu0 0.0
    %2445 = vmatpush1.msra.mxu0 0.0
    %2446 = vmatprep.subr.mxu0 0.0
    %2447 = vmatpush1.msra.mxu0 0.0
    %2448 = vmatprep.subr.mxu0 0.0
    %2449 = vmatpush1.msra.mxu0 0.0
    %2450 = vmatprep.subr.mxu0 0.0
    %2451 = vmatpush1.msra.mxu0 0.0
    %2452 = vmatprep.subr.mxu0 0.0
    %2453 = vmatpush1.msra.mxu0 0.0
    %2454 = vmatprep.subr.mxu0 0.0
    %2455 = vmatpush1.msra.mxu0 0.0
    %2456 = vmatprep.subr.mxu0 0.0
    %2457 = vmatpush1.msra.mxu0 0.0
    %2458 = vmatprep.subr.mxu0 0.0
    %2459 = vmatpush1.msra.mxu0 0.0
    %2460 = vmatprep.subr.mxu0 0.0
    %2461 = vmatpush1.msra.mxu0 0.0
    %2462 = vmatprep.subr.mxu0 0.0
    %2463 = vmatpush1.msra.mxu0 0.0
    %2464 = vmatprep.subr.mxu0 0.0
    %2465 = vmatpush1.msra.mxu0 0.0
    %2466 = vmatprep.subr.mxu0 0.0
    %2467 = vmatpush1.msra.mxu0 0.0
    %2468 = vmatprep.subr.mxu0 0.0
    %2469 = vmatpush1.msra.mxu0 0.0
    %2470 = vmatprep.subr.mxu0 0.0
    %2471 = vmatpush1.msra.mxu0 0.0
    %2472 = vmatprep.subr.mxu0 0.0
    %2473 = vmatpush1.msra.mxu0 0.0
    %2474 = vmatprep.subr.mxu0 0.0
    %2475 = vmatpush1.msra.mxu0 0.0
    %2476 = vmatprep.subr.mxu0 0.0
    %2477 = vmatpush1.msra.mxu0 0.0
    %2478 = vmatprep.subr.mxu0 0.0
    %2479 = vmatpush1.msra.mxu0 0.0
    %2480 = vmatprep.subr.mxu0 0.0
    %2481 = vmatpush1.msra.mxu0 0.0
    %2482 = vmatprep.subr.mxu0 0.0
    %2483 = vmatpush1.msra.mxu0 0.0
    %2484 = vmatprep.subr.mxu0 0.0
    %2485 = vmatpush1.msra.mxu0 0.0
    %2486 = vmatprep.subr.mxu0 0.0
    %2487 = vmatpush1.msra.mxu0 0.0
    %2488 = vmatprep.mubr.f32.mxu0 0.0
    %2489 = vmatmul.mubr.f32.gmra.mrb[0].mxu0 %v2374
    %v2490 = vpop.f32.mrb[0].mxu0
    %v2491 = vadd.f32 0.0, %v2490
    %v2492 = vpop.f32.mrb[0].mxu0
    %2493 = vmatprep.mubr.f32.mxu0 0.0
    %2494 = vmatmul.mubr.f32.gmra.mrb[0].mxu0 %v2377
    %v2495 = vpop.f32.mrb[0].mxu0
    %v2496 = vadd.f32 0.0, %v2495
    %v2497 = vpop.f32.mrb[0].mxu0
    %2498 = vmatprep.mubr.f32.mxu0 0.0
    %2499 = vmatmul.mubr.f32.gmra.mrb[0].mxu0 %v2380
    %v2500 = vpop.f32.mrb[0].mxu0
    %v2501 = vadd.f32 0.0, %v2500
    %v2502 = vpop.f32.mrb[0].mxu0
    %2503 = vmatprep.mubr.f32.mxu0 0.0
    %2504 = vmatmul.mubr.f32.gmra.mrb[0].mxu0 %v2383
    %v2505 = vpop.f32.mrb[0].mxu0
    %v2506 = vadd.f32 0.0, %v2505
    %v2507 = vpop.f32.mrb[0].mxu0
    %2508 = vmatprep.mubr.f32.mxu0 0.0
    %2509 = vmatmul.mubr.f32.gmra.mrb[0].mxu0 %v2386
    %v2510 = vpop.f32.mrb[0].mxu0
    %v2511 = vadd.f32 0.0, %v2510
    %v2512 = vpop.f32.mrb[0].mxu0
    %2513 = vmatprep.mubr.f32.mxu0 0.0
    %2514 = vmatmul.mubr.f32.gmra.mrb[0].mxu0 %v2389
    %v2515 = vpop.f32.mrb[0].mxu0
    %v2516 = vadd.f32 0.0, %v2515
    %v2517 = vpop.f32.mrb[0].mxu0
    %2518 = vmatprep.mubr.f32.mxu0 0.0
    %2519 = vmatmul.mubr.f32.gmra.mrb[0].mxu0 %v2392
    %v2520 = vpop.f32.mrb[0].mxu0
    %v2521 = vadd.f32 0.0, %v2520
    %v2522 = vpop.f32.mrb[0].mxu0
    %2523 = vmatprep.mubr.f32.mxu0 0.0
    %2524 = vmatmul.mubr.f32.gmra.mrb[0].mxu0 %v2395
    %v2525 = vpop.f32.mrb[0].mxu0
    %v2526 = vadd.f32 0.0, %v2525
    %v2527 = vpop.f32.mrb[0].mxu0
    %2528 = vmatprep.mubr.f32.mxu0 0.0
    %2529 = vmatmul.mubr.f32.gmra.mrb[0].mxu0 %v2398
    %v2530 = vpop.f32.mrb[0].mxu0
    %v2531 = vadd.f32 0.0, %v2530
    %v2532 = vpop.f32.mrb[0].mxu0
    %2533 = vmatprep.mubr.f32.mxu0 0.0
    %2534 = vmatmul.mubr.f32.gmra.mrb[0].mxu0 %v2401
    %v2535 = vpop.f32.mrb[0].mxu0
    %v2536 = vadd.f32 0.0, %v2535
    %v2537 = vpop.f32.mrb[0].mxu0
    %2538 = vmatprep.mubr.f32.mxu0 0.0
    %2539 = vmatmul.mubr.f32.gmra.mrb[0].mxu0 %v2404
    %v2540 = vpop.f32.mrb[0].mxu0
    %v2541 = vadd.f32 0.0, %v2540
    %v2542 = vpop.f32.mrb[0].mxu0
    %2543 = vmatprep.mubr.f32.mxu0 0.0
    %2544 = vmatmul.mubr.f32.gmra.mrb[0].mxu0 %v2407
    %v2545 = vpop.f32.mrb[0].mxu0
    %v2546 = vadd.f32 0.0, %v2545
    %v2547 = vpop.f32.mrb[0].mxu0
    %2548 = vmatprep.mubr.f32.mxu0 0.0
    %2549 = vmatmul.mubr.f32.gmra.mrb[0].mxu0 %v2410
    %v2550 = vpop.f32.mrb[0].mxu0
    %v2551 = vadd.f32 0.0, %v2550
    %v2552 = vpop.f32.mrb[0].mxu0
    %2553 = vmatprep.mubr.f32.mxu0 0.0
    %2554 = vmatmul.mubr.f32.gmra.mrb[0].mxu0 %v2413
    %v2555 = vpop.f32.mrb[0].mxu0
    %v2556 = vadd.f32 0.0, %v2555
    %v2557 = vpop.f32.mrb[0].mxu0
    %2558 = vmatprep.mubr.f32.mxu0 0.0
    %2559 = vmatmul.mubr.f32.gmra.mrb[0].mxu0 %v2416
    %v2560 = vpop.f32.mrb[0].mxu0
    %v2561 = vadd.f32 0.0, %v2560
    %v2562 = vpop.f32.mrb[0].mxu0
    %2563 = vmatprep.mubr.f32.mxu0 0.0
    %2564 = vmatmul.mubr.f32.gmra.mrb[0].mxu0 %v2419
    %v2565 = vpop.f32.mrb[0].mxu0
    %v2566 = vadd.f32 0.0, %v2565
    %v2567 = vpop.f32.mrb[0].mxu0
    %2568 = vdwg.mxu0
    %v2569 = vadd.f32 %v2000, %v2491
    %v2570 = vadd.f32 %v2001, %v2496
    %v2571 = vadd.f32 %v2002, %v2501
    %v2572 = vadd.f32 %v2003, %v2506
    %v2573 = vadd.f32 %v2004, %v2511
    %v2574 = vadd.f32 %v2005, %v2516
    %v2575 = vadd.f32 %v2006, %v2521
    %v2576 = vadd.f32 %v2007, %v2526
    %v2577 = vadd.f32 %v2008, %v2531
    %v2578 = vadd.f32 %v2009, %v2536
    %v2579 = vadd.f32 %v2010, %v2541
    %v2580 = vadd.f32 %v2011, %v2546
    %v2581 = vadd.f32 %v2012, %v2551
    %v2582 = vadd.f32 %v2013, %v2556
    %v2583 = vadd.f32 %v2014, %v2561
    %v2584 = vadd.f32 %v2015, %v2566
    %s2585 = scalar_lea.vmem [#allocation3], 2048
    %v2586 = vld [vmem:[%s2585] sm:$0xff]
    %v2587 = vld [vmem:[%s2585 + $0x8] sm:$0xff]
    %v2588 = vld [vmem:[%s2585 + $0x10] sm:$0xff]
    %v2589 = vld [vmem:[%s2585 + $0x18] sm:$0xff]
    %v2590 = vld [vmem:[%s2585 + $0x20] sm:$0xff]
    %v2591 = vld [vmem:[%s2585 + $0x28] sm:$0xff]
    %v2592 = vld [vmem:[%s2585 + $0x30] sm:$0xff]
    %v2593 = vld [vmem:[%s2585 + $0x38] sm:$0xff]
    %v2594 = vld [vmem:[%s2585 + $0x40] sm:$0xff]
    %v2595 = vld [vmem:[%s2585 + $0x48] sm:$0xff]
    %v2596 = vld [vmem:[%s2585 + $0x50] sm:$0xff]
    %v2597 = vld [vmem:[%s2585 + $0x58] sm:$0xff]
    %v2598 = vld [vmem:[%s2585 + $0x60] sm:$0xff]
    %v2599 = vld [vmem:[%s2585 + $0x68] sm:$0xff]
    %v2600 = vld [vmem:[%s2585 + $0x70] sm:$0xff]
    %v2601 = vld [vmem:[%s2585 + $0x78] sm:$0xff]
    %v2602 = vld [vmem:[%s2585 + $0x80] sm:$0xff]
    %v2603 = vld [vmem:[%s2585 + $0x88] sm:$0xff]
    %v2604 = vld [vmem:[%s2585 + $0x90] sm:$0xff]
    %v2605 = vld [vmem:[%s2585 + $0x98] sm:$0xff]
    %v2606 = vld [vmem:[%s2585 + $0xa0] sm:$0xff]
    %v2607 = vld [vmem:[%s2585 + $0xa8] sm:$0xff]
    %v2608 = vld [vmem:[%s2585 + $0xb0] sm:$0xff]
    %v2609 = vld [vmem:[%s2585 + $0xb8] sm:$0xff]
    %v2610 = vld [vmem:[%s2585 + $0xc0] sm:$0xff]
    %v2611 = vld [vmem:[%s2585 + $0xc8] sm:$0xff]
    %v2612 = vld [vmem:[%s2585 + $0xd0] sm:$0xff]
    %v2613 = vld [vmem:[%s2585 + $0xd8] sm:$0xff]
    %v2614 = vld [vmem:[%s2585 + $0xe0] sm:$0xff]
    %v2615 = vld [vmem:[%s2585 + $0xe8] sm:$0xff]
    %v2616 = vld [vmem:[%s2585 + $0xf0] sm:$0xff]
    %v2617 = vld [vmem:[%s2585 + $0xf8] sm:$0xff]
    %v2618 = vld [vmem:[%s2585 + $0x100] sm:$0xff]
    %v2619 = vld [vmem:[%s2585 + $0x108] sm:$0xff]
    %v2620 = vld [vmem:[%s2585 + $0x110] sm:$0xff]
    %v2621 = vld [vmem:[%s2585 + $0x118] sm:$0xff]
    %v2622 = vld [vmem:[%s2585 + $0x120] sm:$0xff]
    %v2623 = vld [vmem:[%s2585 + $0x128] sm:$0xff]
    %v2624 = vld [vmem:[%s2585 + $0x130] sm:$0xff]
    %v2625 = vld [vmem:[%s2585 + $0x138] sm:$0xff]
    %v2626 = vld [vmem:[%s2585 + $0x140] sm:$0xff]
    %v2627 = vld [vmem:[%s2585 + $0x148] sm:$0xff]
    %v2628 = vld [vmem:[%s2585 + $0x150] sm:$0xff]
    %v2629 = vld [vmem:[%s2585 + $0x158] sm:$0xff]
    %v2630 = vld [vmem:[%s2585 + $0x160] sm:$0xff]
    %v2631 = vld [vmem:[%s2585 + $0x168] sm:$0xff]
    %v2632 = vld [vmem:[%s2585 + $0x170] sm:$0xff]
    %v2633 = vld [vmem:[%s2585 + $0x178] sm:$0xff]
    %v2634 = vld [vmem:[%s2585 + $0x180] sm:$0xff]
    %v2635 = vld [vmem:[%s2585 + $0x188] sm:$0xff]
    %v2636 = vld [vmem:[%s2585 + $0x190] sm:$0xff]
    %v2637 = vld [vmem:[%s2585 + $0x198] sm:$0xff]
    %v2638 = vld [vmem:[%s2585 + $0x1a0] sm:$0xff]
    %v2639 = vld [vmem:[%s2585 + $0x1a8] sm:$0xff]
    %v2640 = vld [vmem:[%s2585 + $0x1b0] sm:$0xff]
    %v2641 = vld [vmem:[%s2585 + $0x1b8] sm:$0xff]
    %v2642 = vld [vmem:[%s2585 + $0x1c0] sm:$0xff]
    %v2643 = vld [vmem:[%s2585 + $0x1c8] sm:$0xff]
    %v2644 = vld [vmem:[%s2585 + $0x1d0] sm:$0xff]
    %v2645 = vld [vmem:[%s2585 + $0x1d8] sm:$0xff]
    %v2646 = vld [vmem:[%s2585 + $0x1e0] sm:$0xff]
    %v2647 = vld [vmem:[%s2585 + $0x1e8] sm:$0xff]
    %v2648 = vld [vmem:[%s2585 + $0x1f0] sm:$0xff]
    %v2649 = vld [vmem:[%s2585 + $0x1f8] sm:$0xff]
    %2650 = vmatprep.subr.mxu0 0.0
    %2651 = vmatpush1.msra.mxu0 %v277
    %2652 = vmatprep.subr.mxu0 0.0
    %2653 = vmatpush1.msra.mxu0 %v278
    %2654 = vmatprep.subr.mxu0 0.0
    %2655 = vmatpush1.msra.mxu0 %v279
    %2656 = vmatprep.subr.mxu0 0.0
    %2657 = vmatpush1.msra.mxu0 %v280
    %2658 = vmatprep.subr.mxu0 0.0
    %2659 = vmatpush1.msra.mxu0 %v281
    %2660 = vmatprep.subr.mxu0 0.0
    %2661 = vmatpush1.msra.mxu0 %v282
    %2662 = vmatprep.subr.mxu0 0.0
    %2663 = vmatpush1.msra.mxu0 %v283
    %2664 = vmatprep.subr.mxu0 0.0
    %2665 = vmatpush1.msra.mxu0 %v284
    %2666 = vmatprep.subr.mxu0 0.0
    %2667 = vmatpush1.msra.mxu0 %v285
    %2668 = vmatprep.subr.mxu0 0.0
    %2669 = vmatpush1.msra.mxu0 %v286
    %2670 = vmatprep.subr.mxu0 0.0
    %2671 = vmatpush1.msra.mxu0 %v287
    %2672 = vmatprep.subr.mxu0 0.0
    %2673 = vmatpush1.msra.mxu0 %v288
    %2674 = vmatprep.subr.mxu0 0.0
    %2675 = vmatpush1.msra.mxu0 %v289
    %2676 = vmatprep.subr.mxu0 0.0
    %2677 = vmatpush1.msra.mxu0 %v290
    %2678 = vmatprep.subr.mxu0 0.0
    %2679 = vmatpush1.msra.mxu0 %v291
    %2680 = vmatprep.subr.mxu0 0.0
    %2681 = vmatpush1.msra.mxu0 %v292
    %2682 = vmatprep.subr.mxu0 0.0
    %2683 = vmatpush1.msra.mxu0 %v293
    %2684 = vmatprep.subr.mxu0 0.0
    %2685 = vmatpush1.msra.mxu0 %v294
    %2686 = vmatprep.subr.mxu0 0.0
    %2687 = vmatpush1.msra.mxu0 %v295
    %2688 = vmatprep.subr.mxu0 0.0
    %2689 = vmatpush1.msra.mxu0 %v296
    %2690 = vmatprep.subr.mxu0 0.0
    %2691 = vmatpush1.msra.mxu0 %v297
    %2692 = vmatprep.subr.mxu0 0.0
    %2693 = vmatpush1.msra.mxu0 %v298
    %2694 = vmatprep.subr.mxu0 0.0
    %2695 = vmatpush1.msra.mxu0 %v299
    %2696 = vmatprep.subr.mxu0 0.0
    %2697 = vmatpush1.msra.mxu0 %v300
    %2698 = vmatprep.subr.mxu0 0.0
    %2699 = vmatpush1.msra.mxu0 %v301
    %2700 = vmatprep.subr.mxu0 0.0
    %2701 = vmatpush1.msra.mxu0 %v302
    %2702 = vmatprep.subr.mxu0 0.0
    %2703 = vmatpush1.msra.mxu0 %v303
    %2704 = vmatprep.subr.mxu0 0.0
    %2705 = vmatpush1.msra.mxu0 %v304
    %2706 = vmatprep.subr.mxu0 0.0
    %2707 = vmatpush1.msra.mxu0 %v305
    %2708 = vmatprep.subr.mxu0 0.0
    %2709 = vmatpush1.msra.mxu0 %v306
    %2710 = vmatprep.subr.mxu0 0.0
    %2711 = vmatpush1.msra.mxu0 %v307
    %2712 = vmatprep.subr.mxu0 0.0
    %2713 = vmatpush1.msra.mxu0 %v308
    %2714 = vmatprep.mubr.f32.mxu0 %v2587
    %2715 = vmatmul.mubr.f32.gmra.mrb[0].mxu0 %v2586
    %v2716 = vpop.f32.mrb[0].mxu0
    %v2717 = vadd.f32 0.0, %v2716
    %v2718 = vpop.f32.mrb[0].mxu0
    %2719 = vmatprep.mubr.f32.mxu0 %v2591
    %2720 = vmatmul.mubr.f32.gmra.mrb[0].mxu0 %v2590
    %v2721 = vpop.f32.mrb[0].mxu0
    %v2722 = vadd.f32 0.0, %v2721
    %v2723 = vpop.f32.mrb[0].mxu0
    %2724 = vmatprep.mubr.f32.mxu0 %v2595
    %2725 = vmatmul.mubr.f32.gmra.mrb[0].mxu0 %v2594
    %v2726 = vpop.f32.mrb[0].mxu0
    %v2727 = vadd.f32 0.0, %v2726
    %v2728 = vpop.f32.mrb[0].mxu0
    %2729 = vmatprep.mubr.f32.mxu0 %v2599
    %2730 = vmatmul.mubr.f32.gmra.mrb[0].mxu0 %v2598
    %v2731 = vpop.f32.mrb[0].mxu0
    %v2732 = vadd.f32 0.0, %v2731
    %v2733 = vpop.f32.mrb[0].mxu0
    %2734 = vmatprep.mubr.f32.mxu0 %v2603
    %2735 = vmatmul.mubr.f32.gmra.mrb[0].mxu0 %v2602
    %v2736 = vpop.f32.mrb[0].mxu0
    %v2737 = vadd.f32 0.0, %v2736
    %v2738 = vpop.f32.mrb[0].mxu0
    %2739 = vmatprep.mubr.f32.mxu0 %v2607
    %2740 = vmatmul.mubr.f32.gmra.mrb[0].mxu0 %v2606
    %v2741 = vpop.f32.mrb[0].mxu0
    %v2742 = vadd.f32 0.0, %v2741
    %v2743 = vpop.f32.mrb[0].mxu0
    %2744 = vmatprep.mubr.f32.mxu0 %v2611
    %2745 = vmatmul.mubr.f32.gmra.mrb[0].mxu0 %v2610
    %v2746 = vpop.f32.mrb[0].mxu0
    %v2747 = vadd.f32 0.0, %v2746
    %v2748 = vpop.f32.mrb[0].mxu0
    %2749 = vmatprep.mubr.f32.mxu0 %v2615
    %2750 = vmatmul.mubr.f32.gmra.mrb[0].mxu0 %v2614
    %v2751 = vpop.f32.mrb[0].mxu0
    %v2752 = vadd.f32 0.0, %v2751
    %v2753 = vpop.f32.mrb[0].mxu0
    %2754 = vmatprep.mubr.f32.mxu0 %v2619
    %2755 = vmatmul.mubr.f32.gmra.mrb[0].mxu0 %v2618
    %v2756 = vpop.f32.mrb[0].mxu0
    %v2757 = vadd.f32 0.0, %v2756
    %v2758 = vpop.f32.mrb[0].mxu0
    %2759 = vmatprep.mubr.f32.mxu0 %v2623
    %2760 = vmatmul.mubr.f32.gmra.mrb[0].mxu0 %v2622
    %v2761 = vpop.f32.mrb[0].mxu0
    %v2762 = vadd.f32 0.0, %v2761
    %v2763 = vpop.f32.mrb[0].mxu0
    %2764 = vmatprep.mubr.f32.mxu0 %v2627
    %2765 = vmatmul.mubr.f32.gmra.mrb[0].mxu0 %v2626
    %v2766 = vpop.f32.mrb[0].mxu0
    %v2767 = vadd.f32 0.0, %v2766
    %v2768 = vpop.f32.mrb[0].mxu0
    %2769 = vmatprep.mubr.f32.mxu0 %v2631
    %2770 = vmatmul.mubr.f32.gmra.mrb[0].mxu0 %v2630
    %v2771 = vpop.f32.mrb[0].mxu0
    %v2772 = vadd.f32 0.0, %v2771
    %v2773 = vpop.f32.mrb[0].mxu0
    %2774 = vmatprep.mubr.f32.mxu0 %v2635
    %2775 = vmatmul.mubr.f32.gmra.mrb[0].mxu0 %v2634
    %v2776 = vpop.f32.mrb[0].mxu0
    %v2777 = vadd.f32 0.0, %v2776
    %v2778 = vpop.f32.mrb[0].mxu0
    %2779 = vmatprep.mubr.f32.mxu0 %v2639
    %2780 = vmatmul.mubr.f32.gmra.mrb[0].mxu0 %v2638
    %v2781 = vpop.f32.mrb[0].mxu0
    %v2782 = vadd.f32 0.0, %v2781
    %v2783 = vpop.f32.mrb[0].mxu0
    %2784 = vmatprep.mubr.f32.mxu0 %v2643
    %2785 = vmatmul.mubr.f32.gmra.mrb[0].mxu0 %v2642
    %v2786 = vpop.f32.mrb[0].mxu0
    %v2787 = vadd.f32 0.0, %v2786
    %v2788 = vpop.f32.mrb[0].mxu0
    %2789 = vmatprep.mubr.f32.mxu0 %v2647
    %2790 = vmatmul.mubr.f32.gmra.mrb[0].mxu0 %v2646
    %v2791 = vpop.f32.mrb[0].mxu0
    %v2792 = vadd.f32 0.0, %v2791
    %v2793 = vpop.f32.mrb[0].mxu0
    %2794 = vdwg.mxu0
    %2795 = vmatprep.subr.mxu0 0.0
    %2796 = vmatpush1.msra.mxu0 %v309
    %2797 = vmatprep.subr.mxu0 0.0
    %2798 = vmatpush1.msra.mxu0 %v310
    %2799 = vmatprep.subr.mxu0 0.0
    %2800 = vmatpush1.msra.mxu0 %v311
    %2801 = vmatprep.subr.mxu0 0.0
    %2802 = vmatpush1.msra.mxu0 %v312
    %2803 = vmatprep.subr.mxu0 0.0
    %2804 = vmatpush1.msra.mxu0 %v313
    %2805 = vmatprep.subr.mxu0 0.0
    %2806 = vmatpush1.msra.mxu0 %v314
    %2807 = vmatprep.subr.mxu0 0.0
    %2808 = vmatpush1.msra.mxu0 %v315
    %2809 = vmatprep.subr.mxu0 0.0
    %2810 = vmatpush1.msra.mxu0 %v316
    %2811 = vmatprep.subr.mxu0 0.0
    %2812 = vmatpush1.msra.mxu0 %v317
    %2813 = vmatprep.subr.mxu0 0.0
    %2814 = vmatpush1.msra.mxu0 %v318
    %2815 = vmatprep.subr.mxu0 0.0
    %2816 = vmatpush1.msra.mxu0 %v319
    %2817 = vmatprep.subr.mxu0 0.0
    %2818 = vmatpush1.msra.mxu0 %v320
    %2819 = vmatprep.subr.mxu0 0.0
    %2820 = vmatpush1.msra.mxu0 %v321
    %2821 = vmatprep.subr.mxu0 0.0
    %2822 = vmatpush1.msra.mxu0 %v322
    %2823 = vmatprep.subr.mxu0 0.0
    %2824 = vmatpush1.msra.mxu0 %v323
    %2825 = vmatprep.subr.mxu0 0.0
    %2826 = vmatpush1.msra.mxu0 %v324
    %2827 = vmatprep.subr.mxu0 0.0
    %2828 = vmatpush1.msra.mxu0 %v325
    %2829 = vmatprep.subr.mxu0 0.0
    %2830 = vmatpush1.msra.mxu0 %v326
    %2831 = vmatprep.subr.mxu0 0.0
    %2832 = vmatpush1.msra.mxu0 %v327
    %2833 = vmatprep.subr.mxu0 0.0
    %2834 = vmatpush1.msra.mxu0 %v328
    %2835 = vmatprep.subr.mxu0 0.0
    %2836 = vmatpush1.msra.mxu0 %v329
    %2837 = vmatprep.subr.mxu0 0.0
    %2838 = vmatpush1.msra.mxu0 %v330
    %2839 = vmatprep.subr.mxu0 0.0
    %2840 = vmatpush1.msra.mxu0 %v331
    %2841 = vmatprep.subr.mxu0 0.0
    %2842 = vmatpush1.msra.mxu0 %v332
    %2843 = vmatprep.subr.mxu0 0.0
    %2844 = vmatpush1.msra.mxu0 %v333
    %2845 = vmatprep.subr.mxu0 0.0
    %2846 = vmatpush1.msra.mxu0 %v334
    %2847 = vmatprep.subr.mxu0 0.0
    %2848 = vmatpush1.msra.mxu0 %v335
    %2849 = vmatprep.subr.mxu0 0.0
    %2850 = vmatpush1.msra.mxu0 %v336
    %2851 = vmatprep.subr.mxu0 0.0
    %2852 = vmatpush1.msra.mxu0 %v337
    %2853 = vmatprep.subr.mxu0 0.0
    %2854 = vmatpush1.msra.mxu0 %v338
    %2855 = vmatprep.subr.mxu0 0.0
    %2856 = vmatpush1.msra.mxu0 %v339
    %2857 = vmatprep.subr.mxu0 0.0
    %2858 = vmatpush1.msra.mxu0 %v340
    %2859 = vmatprep.mubr.f32.mxu0 %v2589
    %2860 = vmatmul.mubr.f32.gmra.mrb[0].mxu0 %v2588
    %v2861 = vpop.f32.mrb[0].mxu0
    %v2862 = vadd.f32 %v2717, %v2861
    %v2863 = vpop.f32.mrb[0].mxu0
    %2864 = vmatprep.mubr.f32.mxu0 %v2593
    %2865 = vmatmul.mubr.f32.gmra.mrb[0].mxu0 %v2592
    %v2866 = vpop.f32.mrb[0].mxu0
    %v2867 = vadd.f32 %v2722, %v2866
    %v2868 = vpop.f32.mrb[0].mxu0
    %2869 = vmatprep.mubr.f32.mxu0 %v2597
    %2870 = vmatmul.mubr.f32.gmra.mrb[0].mxu0 %v2596
    %v2871 = vpop.f32.mrb[0].mxu0
    %v2872 = vadd.f32 %v2727, %v2871
    %v2873 = vpop.f32.mrb[0].mxu0
    %2874 = vmatprep.mubr.f32.mxu0 %v2601
    %2875 = vmatmul.mubr.f32.gmra.mrb[0].mxu0 %v2600
    %v2876 = vpop.f32.mrb[0].mxu0
    %v2877 = vadd.f32 %v2732, %v2876
    %v2878 = vpop.f32.mrb[0].mxu0
    %2879 = vmatprep.mubr.f32.mxu0 %v2605
    %2880 = vmatmul.mubr.f32.gmra.mrb[0].mxu0 %v2604
    %v2881 = vpop.f32.mrb[0].mxu0
    %v2882 = vadd.f32 %v2737, %v2881
    %v2883 = vpop.f32.mrb[0].mxu0
    %2884 = vmatprep.mubr.f32.mxu0 %v2609
    %2885 = vmatmul.mubr.f32.gmra.mrb[0].mxu0 %v2608
    %v2886 = vpop.f32.mrb[0].mxu0
    %v2887 = vadd.f32 %v2742, %v2886
    %v2888 = vpop.f32.mrb[0].mxu0
    %2889 = vmatprep.mubr.f32.mxu0 %v2613
    %2890 = vmatmul.mubr.f32.gmra.mrb[0].mxu0 %v2612
    %v2891 = vpop.f32.mrb[0].mxu0
    %v2892 = vadd.f32 %v2747, %v2891
    %v2893 = vpop.f32.mrb[0].mxu0
    %2894 = vmatprep.mubr.f32.mxu0 %v2617
    %2895 = vmatmul.mubr.f32.gmra.mrb[0].mxu0 %v2616
    %v2896 = vpop.f32.mrb[0].mxu0
    %v2897 = vadd.f32 %v2752, %v2896
    %v2898 = vpop.f32.mrb[0].mxu0
    %2899 = vmatprep.mubr.f32.mxu0 %v2621
    %2900 = vmatmul.mubr.f32.gmra.mrb[0].mxu0 %v2620
    %v2901 = vpop.f32.mrb[0].mxu0
    %v2902 = vadd.f32 %v2757, %v2901
    %v2903 = vpop.f32.mrb[0].mxu0
    %2904 = vmatprep.mubr.f32.mxu0 %v2625
    %2905 = vmatmul.mubr.f32.gmra.mrb[0].mxu0 %v2624
    %v2906 = vpop.f32.mrb[0].mxu0
    %v2907 = vadd.f32 %v2762, %v2906
    %v2908 = vpop.f32.mrb[0].mxu0
    %2909 = vmatprep.mubr.f32.mxu0 %v2629
    %2910 = vmatmul.mubr.f32.gmra.mrb[0].mxu0 %v2628
    %v2911 = vpop.f32.mrb[0].mxu0
    %v2912 = vadd.f32 %v2767, %v2911
    %v2913 = vpop.f32.mrb[0].mxu0
    %2914 = vmatprep.mubr.f32.mxu0 %v2633
    %2915 = vmatmul.mubr.f32.gmra.mrb[0].mxu0 %v2632
    %v2916 = vpop.f32.mrb[0].mxu0
    %v2917 = vadd.f32 %v2772, %v2916
    %v2918 = vpop.f32.mrb[0].mxu0
    %2919 = vmatprep.mubr.f32.mxu0 %v2637
    %2920 = vmatmul.mubr.f32.gmra.mrb[0].mxu0 %v2636
    %v2921 = vpop.f32.mrb[0].mxu0
    %v2922 = vadd.f32 %v2777, %v2921
    %v2923 = vpop.f32.mrb[0].mxu0
    %2924 = vmatprep.mubr.f32.mxu0 %v2641
    %2925 = vmatmul.mubr.f32.gmra.mrb[0].mxu0 %v2640
    %v2926 = vpop.f32.mrb[0].mxu0
    %v2927 = vadd.f32 %v2782, %v2926
    %v2928 = vpop.f32.mrb[0].mxu0
    %2929 = vmatprep.mubr.f32.mxu0 %v2645
    %2930 = vmatmul.mubr.f32.gmra.mrb[0].mxu0 %v2644
    %v2931 = vpop.f32.mrb[0].mxu0
    %v2932 = vadd.f32 %v2787, %v2931
    %v2933 = vpop.f32.mrb[0].mxu0
    %2934 = vmatprep.mubr.f32.mxu0 %v2649
    %2935 = vmatmul.mubr.f32.gmra.mrb[0].mxu0 %v2648
    %v2936 = vpop.f32.mrb[0].mxu0
    %v2937 = vadd.f32 %v2792, %v2936
    %v2938 = vpop.f32.mrb[0].mxu0
    %2939 = vdwg.mxu0
    %s2940 = scalar_lea.vmem [#allocation5], 16
    %v2941 = vld [vmem:[%s2940] sm:$0xf]
    %v2943 = vsel %vm1053, %v2862, 0
    %v2946 = vsel %vm1053, %v2867, 0
    %v2949 = vsel %vm1053, %v2872, 0
    %v2952 = vsel %vm1053, %v2877, 0
    %v2955 = vsel %vm1053, %v2882, 0
    %v2958 = vsel %vm1053, %v2887, 0
    %v2961 = vsel %vm1053, %v2892, 0
    %v2964 = vsel %vm1053, %v2897, 0
    %v2967 = vsel %vm1053, %v2902, 0
    %v2970 = vsel %vm1053, %v2907, 0
    %v2973 = vsel %vm1053, %v2912, 0
    %v2976 = vsel %vm1053, %v2917, 0
    %v2979 = vsel %vm1053, %v2922, 0
    %v2982 = vsel %vm1053, %v2927, 0
    %v2985 = vsel %vm1053, %v2932, 0
    %v2988 = vsel %vm1053, %v2937, 0
    %v2991 = vsel %vm1102, %v2941, 0
    %2993 = vmatprep.subr.mxu0 0.0
    %2994 = vmatpush1.msra.mxu0 %v2991
    %2995 = vmatprep.subr.mxu0 0.0
    %2996 = vmatpush1.msra.mxu0 0.0
    %2997 = vmatprep.subr.mxu0 0.0
    %2998 = vmatpush1.msra.mxu0 0.0
    %2999 = vmatprep.subr.mxu0 0.0
    %3000 = vmatpush1.msra.mxu0 0.0
    %3001 = vmatprep.subr.mxu0 0.0
    %3002 = vmatpush1.msra.mxu0 0.0
    %3003 = vmatprep.subr.mxu0 0.0
    %3004 = vmatpush1.msra.mxu0 0.0
    %3005 = vmatprep.subr.mxu0 0.0
    %3006 = vmatpush1.msra.mxu0 0.0
    %3007 = vmatprep.subr.mxu0 0.0
    %3008 = vmatpush1.msra.mxu0 0.0
    %3009 = vmatprep.subr.mxu0 0.0
    %3010 = vmatpush1.msra.mxu0 0.0
    %3011 = vmatprep.subr.mxu0 0.0
    %3012 = vmatpush1.msra.mxu0 0.0
    %3013 = vmatprep.subr.mxu0 0.0
    %3014 = vmatpush1.msra.mxu0 0.0
    %3015 = vmatprep.subr.mxu0 0.0
    %3016 = vmatpush1.msra.mxu0 0.0
    %3017 = vmatprep.subr.mxu0 0.0
    %3018 = vmatpush1.msra.mxu0 0.0
    %3019 = vmatprep.subr.mxu0 0.0
    %3020 = vmatpush1.msra.mxu0 0.0
    %3021 = vmatprep.subr.mxu0 0.0
    %3022 = vmatpush1.msra.mxu0 0.0
    %3023 = vmatprep.subr.mxu0 0.0
    %3024 = vmatpush1.msra.mxu0 0.0
    %3025 = vmatprep.subr.mxu0 0.0
    %3026 = vmatpush1.msra.mxu0 0.0
    %3027 = vmatprep.subr.mxu0 0.0
    %3028 = vmatpush1.msra.mxu0 0.0
    %3029 = vmatprep.subr.mxu0 0.0
    %3030 = vmatpush1.msra.mxu0 0.0
    %3031 = vmatprep.subr.mxu0 0.0
    %3032 = vmatpush1.msra.mxu0 0.0
    %3033 = vmatprep.subr.mxu0 0.0
    %3034 = vmatpush1.msra.mxu0 0.0
    %3035 = vmatprep.subr.mxu0 0.0
    %3036 = vmatpush1.msra.mxu0 0.0
    %3037 = vmatprep.subr.mxu0 0.0
    %3038 = vmatpush1.msra.mxu0 0.0
    %3039 = vmatprep.subr.mxu0 0.0
    %3040 = vmatpush1.msra.mxu0 0.0
    %3041 = vmatprep.subr.mxu0 0.0
    %3042 = vmatpush1.msra.mxu0 0.0
    %3043 = vmatprep.subr.mxu0 0.0
    %3044 = vmatpush1.msra.mxu0 0.0
    %3045 = vmatprep.subr.mxu0 0.0
    %3046 = vmatpush1.msra.mxu0 0.0
    %3047 = vmatprep.subr.mxu0 0.0
    %3048 = vmatpush1.msra.mxu0 0.0
    %3049 = vmatprep.subr.mxu0 0.0
    %3050 = vmatpush1.msra.mxu0 0.0
    %3051 = vmatprep.subr.mxu0 0.0
    %3052 = vmatpush1.msra.mxu0 0.0
    %3053 = vmatprep.subr.mxu0 0.0
    %3054 = vmatpush1.msra.mxu0 0.0
    %3055 = vmatprep.subr.mxu0 0.0
    %3056 = vmatpush1.msra.mxu0 0.0
    %3057 = vmatprep.mubr.f32.mxu0 0.0
    %3058 = vmatmul.mubr.f32.gmra.mrb[0].mxu0 %v2943
    %v3059 = vpop.f32.mrb[0].mxu0
    %v3060 = vadd.f32 0.0, %v3059
    %v3061 = vpop.f32.mrb[0].mxu0
    %3062 = vmatprep.mubr.f32.mxu0 0.0
    %3063 = vmatmul.mubr.f32.gmra.mrb[0].mxu0 %v2946
    %v3064 = vpop.f32.mrb[0].mxu0
    %v3065 = vadd.f32 0.0, %v3064
    %v3066 = vpop.f32.mrb[0].mxu0
    %3067 = vmatprep.mubr.f32.mxu0 0.0
    %3068 = vmatmul.mubr.f32.gmra.mrb[0].mxu0 %v2949
    %v3069 = vpop.f32.mrb[0].mxu0
    %v3070 = vadd.f32 0.0, %v3069
    %v3071 = vpop.f32.mrb[0].mxu0
    %3072 = vmatprep.mubr.f32.mxu0 0.0
    %3073 = vmatmul.mubr.f32.gmra.mrb[0].mxu0 %v2952
    %v3074 = vpop.f32.mrb[0].mxu0
    %v3075 = vadd.f32 0.0, %v3074
    %v3076 = vpop.f32.mrb[0].mxu0
    %3077 = vmatprep.mubr.f32.mxu0 0.0
    %3078 = vmatmul.mubr.f32.gmra.mrb[0].mxu0 %v2955
    %v3079 = vpop.f32.mrb[0].mxu0
    %v3080 = vadd.f32 0.0, %v3079
    %v3081 = vpop.f32.mrb[0].mxu0
    %3082 = vmatprep.mubr.f32.mxu0 0.0
    %3083 = vmatmul.mubr.f32.gmra.mrb[0].mxu0 %v2958
    %v3084 = vpop.f32.mrb[0].mxu0
    %v3085 = vadd.f32 0.0, %v3084
    %v3086 = vpop.f32.mrb[0].mxu0
    %3087 = vmatprep.mubr.f32.mxu0 0.0
    %3088 = vmatmul.mubr.f32.gmra.mrb[0].mxu0 %v2961
    %v3089 = vpop.f32.mrb[0].mxu0
    %v3090 = vadd.f32 0.0, %v3089
    %v3091 = vpop.f32.mrb[0].mxu0
    %3092 = vmatprep.mubr.f32.mxu0 0.0
    %3093 = vmatmul.mubr.f32.gmra.mrb[0].mxu0 %v2964
    %v3094 = vpop.f32.mrb[0].mxu0
    %v3095 = vadd.f32 0.0, %v3094
    %v3096 = vpop.f32.mrb[0].mxu0
    %3097 = vmatprep.mubr.f32.mxu0 0.0
    %3098 = vmatmul.mubr.f32.gmra.mrb[0].mxu0 %v2967
    %v3099 = vpop.f32.mrb[0].mxu0
    %v3100 = vadd.f32 0.0, %v3099
    %v3101 = vpop.f32.mrb[0].mxu0
    %3102 = vmatprep.mubr.f32.mxu0 0.0
    %3103 = vmatmul.mubr.f32.gmra.mrb[0].mxu0 %v2970
    %v3104 = vpop.f32.mrb[0].mxu0
    %v3105 = vadd.f32 0.0, %v3104
    %v3106 = vpop.f32.mrb[0].mxu0
    %3107 = vmatprep.mubr.f32.mxu0 0.0
    %3108 = vmatmul.mubr.f32.gmra.mrb[0].mxu0 %v2973
    %v3109 = vpop.f32.mrb[0].mxu0
    %v3110 = vadd.f32 0.0, %v3109
    %v3111 = vpop.f32.mrb[0].mxu0
    %3112 = vmatprep.mubr.f32.mxu0 0.0
    %3113 = vmatmul.mubr.f32.gmra.mrb[0].mxu0 %v2976
    %v3114 = vpop.f32.mrb[0].mxu0
    %v3115 = vadd.f32 0.0, %v3114
    %v3116 = vpop.f32.mrb[0].mxu0
    %3117 = vmatprep.mubr.f32.mxu0 0.0
    %3118 = vmatmul.mubr.f32.gmra.mrb[0].mxu0 %v2979
    %v3119 = vpop.f32.mrb[0].mxu0
    %v3120 = vadd.f32 0.0, %v3119
    %v3121 = vpop.f32.mrb[0].mxu0
    %3122 = vmatprep.mubr.f32.mxu0 0.0
    %3123 = vmatmul.mubr.f32.gmra.mrb[0].mxu0 %v2982
    %v3124 = vpop.f32.mrb[0].mxu0
    %v3125 = vadd.f32 0.0, %v3124
    %v3126 = vpop.f32.mrb[0].mxu0
    %3127 = vmatprep.mubr.f32.mxu0 0.0
    %3128 = vmatmul.mubr.f32.gmra.mrb[0].mxu0 %v2985
    %v3129 = vpop.f32.mrb[0].mxu0
    %v3130 = vadd.f32 0.0, %v3129
    %v3131 = vpop.f32.mrb[0].mxu0
    %3132 = vmatprep.mubr.f32.mxu0 0.0
    %3133 = vmatmul.mubr.f32.gmra.mrb[0].mxu0 %v2988
    %v3134 = vpop.f32.mrb[0].mxu0
    %v3135 = vadd.f32 0.0, %v3134
    %v3136 = vpop.f32.mrb[0].mxu0
    %3137 = vdwg.mxu0
    %v3138 = vadd.f32 %v2569, %v3060
    %v3139 = vadd.f32 %v2570, %v3065
    %v3140 = vadd.f32 %v2571, %v3070
    %v3141 = vadd.f32 %v2572, %v3075
    %v3142 = vadd.f32 %v2573, %v3080
    %v3143 = vadd.f32 %v2574, %v3085
    %v3144 = vadd.f32 %v2575, %v3090
    %v3145 = vadd.f32 %v2576, %v3095
    %v3146 = vadd.f32 %v2577, %v3100
    %v3147 = vadd.f32 %v2578, %v3105
    %v3148 = vadd.f32 %v2579, %v3110
    %v3149 = vadd.f32 %v2580, %v3115
    %v3150 = vadd.f32 %v2581, %v3120
    %v3151 = vadd.f32 %v2582, %v3125
    %v3152 = vadd.f32 %v2583, %v3130
    %v3153 = vadd.f32 %v2584, %v3135
    %s3154 = scalar_lea.vmem [#allocation3], 2560
    %v3155 = vld [vmem:[%s3154] sm:$0xff]
    %v3156 = vld [vmem:[%s3154 + $0x8] sm:$0xff]
    %v3157 = vld [vmem:[%s3154 + $0x10] sm:$0xff]
    %v3158 = vld [vmem:[%s3154 + $0x18] sm:$0xff]
    %v3159 = vld [vmem:[%s3154 + $0x20] sm:$0xff]
    %v3160 = vld [vmem:[%s3154 + $0x28] sm:$0xff]
    %v3161 = vld [vmem:[%s3154 + $0x30] sm:$0xff]
    %v3162 = vld [vmem:[%s3154 + $0x38] sm:$0xff]
    %v3163 = vld [vmem:[%s3154 + $0x40] sm:$0xff]
    %v3164 = vld [vmem:[%s3154 + $0x48] sm:$0xff]
    %v3165 = vld [vmem:[%s3154 + $0x50] sm:$0xff]
    %v3166 = vld [vmem:[%s3154 + $0x58] sm:$0xff]
    %v3167 = vld [vmem:[%s3154 + $0x60] sm:$0xff]
    %v3168 = vld [vmem:[%s3154 + $0x68] sm:$0xff]
    %v3169 = vld [vmem:[%s3154 + $0x70] sm:$0xff]
    %v3170 = vld [vmem:[%s3154 + $0x78] sm:$0xff]
    %v3171 = vld [vmem:[%s3154 + $0x80] sm:$0xff]
    %v3172 = vld [vmem:[%s3154 + $0x88] sm:$0xff]
    %v3173 = vld [vmem:[%s3154 + $0x90] sm:$0xff]
    %v3174 = vld [vmem:[%s3154 + $0x98] sm:$0xff]
    %v3175 = vld [vmem:[%s3154 + $0xa0] sm:$0xff]
    %v3176 = vld [vmem:[%s3154 + $0xa8] sm:$0xff]
    %v3177 = vld [vmem:[%s3154 + $0xb0] sm:$0xff]
    %v3178 = vld [vmem:[%s3154 + $0xb8] sm:$0xff]
    %v3179 = vld [vmem:[%s3154 + $0xc0] sm:$0xff]
    %v3180 = vld [vmem:[%s3154 + $0xc8] sm:$0xff]
    %v3181 = vld [vmem:[%s3154 + $0xd0] sm:$0xff]
    %v3182 = vld [vmem:[%s3154 + $0xd8] sm:$0xff]
    %v3183 = vld [vmem:[%s3154 + $0xe0] sm:$0xff]
    %v3184 = vld [vmem:[%s3154 + $0xe8] sm:$0xff]
    %v3185 = vld [vmem:[%s3154 + $0xf0] sm:$0xff]
    %v3186 = vld [vmem:[%s3154 + $0xf8] sm:$0xff]
    %v3187 = vld [vmem:[%s3154 + $0x100] sm:$0xff]
    %v3188 = vld [vmem:[%s3154 + $0x108] sm:$0xff]
    %v3189 = vld [vmem:[%s3154 + $0x110] sm:$0xff]
    %v3190 = vld [vmem:[%s3154 + $0x118] sm:$0xff]
    %v3191 = vld [vmem:[%s3154 + $0x120] sm:$0xff]
    %v3192 = vld [vmem:[%s3154 + $0x128] sm:$0xff]
    %v3193 = vld [vmem:[%s3154 + $0x130] sm:$0xff]
    %v3194 = vld [vmem:[%s3154 + $0x138] sm:$0xff]
    %v3195 = vld [vmem:[%s3154 + $0x140] sm:$0xff]
    %v3196 = vld [vmem:[%s3154 + $0x148] sm:$0xff]
    %v3197 = vld [vmem:[%s3154 + $0x150] sm:$0xff]
    %v3198 = vld [vmem:[%s3154 + $0x158] sm:$0xff]
    %v3199 = vld [vmem:[%s3154 + $0x160] sm:$0xff]
    %v3200 = vld [vmem:[%s3154 + $0x168] sm:$0xff]
    %v3201 = vld [vmem:[%s3154 + $0x170] sm:$0xff]
    %v3202 = vld [vmem:[%s3154 + $0x178] sm:$0xff]
    %v3203 = vld [vmem:[%s3154 + $0x180] sm:$0xff]
    %v3204 = vld [vmem:[%s3154 + $0x188] sm:$0xff]
    %v3205 = vld [vmem:[%s3154 + $0x190] sm:$0xff]
    %v3206 = vld [vmem:[%s3154 + $0x198] sm:$0xff]
    %v3207 = vld [vmem:[%s3154 + $0x1a0] sm:$0xff]
    %v3208 = vld [vmem:[%s3154 + $0x1a8] sm:$0xff]
    %v3209 = vld [vmem:[%s3154 + $0x1b0] sm:$0xff]
    %v3210 = vld [vmem:[%s3154 + $0x1b8] sm:$0xff]
    %v3211 = vld [vmem:[%s3154 + $0x1c0] sm:$0xff]
    %v3212 = vld [vmem:[%s3154 + $0x1c8] sm:$0xff]
    %v3213 = vld [vmem:[%s3154 + $0x1d0] sm:$0xff]
    %v3214 = vld [vmem:[%s3154 + $0x1d8] sm:$0xff]
    %v3215 = vld [vmem:[%s3154 + $0x1e0] sm:$0xff]
    %v3216 = vld [vmem:[%s3154 + $0x1e8] sm:$0xff]
    %v3217 = vld [vmem:[%s3154 + $0x1f0] sm:$0xff]
    %v3218 = vld [vmem:[%s3154 + $0x1f8] sm:$0xff]
    %3219 = vmatprep.subr.mxu0 0.0
    %3220 = vmatpush1.msra.mxu0 %v277
    %3221 = vmatprep.subr.mxu0 0.0
    %3222 = vmatpush1.msra.mxu0 %v278
    %3223 = vmatprep.subr.mxu0 0.0
    %3224 = vmatpush1.msra.mxu0 %v279
    %3225 = vmatprep.subr.mxu0 0.0
    %3226 = vmatpush1.msra.mxu0 %v280
    %3227 = vmatprep.subr.mxu0 0.0
    %3228 = vmatpush1.msra.mxu0 %v281
    %3229 = vmatprep.subr.mxu0 0.0
    %3230 = vmatpush1.msra.mxu0 %v282
    %3231 = vmatprep.subr.mxu0 0.0
    %3232 = vmatpush1.msra.mxu0 %v283
    %3233 = vmatprep.subr.mxu0 0.0
    %3234 = vmatpush1.msra.mxu0 %v284
    %3235 = vmatprep.subr.mxu0 0.0
    %3236 = vmatpush1.msra.mxu0 %v285
    %3237 = vmatprep.subr.mxu0 0.0
    %3238 = vmatpush1.msra.mxu0 %v286
    %3239 = vmatprep.subr.mxu0 0.0
    %3240 = vmatpush1.msra.mxu0 %v287
    %3241 = vmatprep.subr.mxu0 0.0
    %3242 = vmatpush1.msra.mxu0 %v288
    %3243 = vmatprep.subr.mxu0 0.0
    %3244 = vmatpush1.msra.mxu0 %v289
    %3245 = vmatprep.subr.mxu0 0.0
    %3246 = vmatpush1.msra.mxu0 %v290
    %3247 = vmatprep.subr.mxu0 0.0
    %3248 = vmatpush1.msra.mxu0 %v291
    %3249 = vmatprep.subr.mxu0 0.0
    %3250 = vmatpush1.msra.mxu0 %v292
    %3251 = vmatprep.subr.mxu0 0.0
    %3252 = vmatpush1.msra.mxu0 %v293
    %3253 = vmatprep.subr.mxu0 0.0
    %3254 = vmatpush1.msra.mxu0 %v294
    %3255 = vmatprep.subr.mxu0 0.0
    %3256 = vmatpush1.msra.mxu0 %v295
    %3257 = vmatprep.subr.mxu0 0.0
    %3258 = vmatpush1.msra.mxu0 %v296
    %3259 = vmatprep.subr.mxu0 0.0
    %3260 = vmatpush1.msra.mxu0 %v297
    %3261 = vmatprep.subr.mxu0 0.0
    %3262 = vmatpush1.msra.mxu0 %v298
    %3263 = vmatprep.subr.mxu0 0.0
    %3264 = vmatpush1.msra.mxu0 %v299
    %3265 = vmatprep.subr.mxu0 0.0
    %3266 = vmatpush1.msra.mxu0 %v300
    %3267 = vmatprep.subr.mxu0 0.0
    %3268 = vmatpush1.msra.mxu0 %v301
    %3269 = vmatprep.subr.mxu0 0.0
    %3270 = vmatpush1.msra.mxu0 %v302
    %3271 = vmatprep.subr.mxu0 0.0
    %3272 = vmatpush1.msra.mxu0 %v303
    %3273 = vmatprep.subr.mxu0 0.0
    %3274 = vmatpush1.msra.mxu0 %v304
    %3275 = vmatprep.subr.mxu0 0.0
    %3276 = vmatpush1.msra.mxu0 %v305
    %3277 = vmatprep.subr.mxu0 0.0
    %3278 = vmatpush1.msra.mxu0 %v306
    %3279 = vmatprep.subr.mxu0 0.0
    %3280 = vmatpush1.msra.mxu0 %v307
    %3281 = vmatprep.subr.mxu0 0.0
    %3282 = vmatpush1.msra.mxu0 %v308
    %3283 = vmatprep.mubr.f32.mxu0 %v3156
    %3284 = vmatmul.mubr.f32.gmra.mrb[0].mxu0 %v3155
    %v3285 = vpop.f32.mrb[0].mxu0
    %v3286 = vadd.f32 0.0, %v3285
    %v3287 = vpop.f32.mrb[0].mxu0
    %3288 = vmatprep.mubr.f32.mxu0 %v3160
    %3289 = vmatmul.mubr.f32.gmra.mrb[0].mxu0 %v3159
    %v3290 = vpop.f32.mrb[0].mxu0
    %v3291 = vadd.f32 0.0, %v3290
    %v3292 = vpop.f32.mrb[0].mxu0
    %3293 = vmatprep.mubr.f32.mxu0 %v3164
    %3294 = vmatmul.mubr.f32.gmra.mrb[0].mxu0 %v3163
    %v3295 = vpop.f32.mrb[0].mxu0
    %v3296 = vadd.f32 0.0, %v3295
    %v3297 = vpop.f32.mrb[0].mxu0
    %3298 = vmatprep.mubr.f32.mxu0 %v3168
    %3299 = vmatmul.mubr.f32.gmra.mrb[0].mxu0 %v3167
    %v3300 = vpop.f32.mrb[0].mxu0
    %v3301 = vadd.f32 0.0, %v3300
    %v3302 = vpop.f32.mrb[0].mxu0
    %3303 = vmatprep.mubr.f32.mxu0 %v3172
    %3304 = vmatmul.mubr.f32.gmra.mrb[0].mxu0 %v3171
    %v3305 = vpop.f32.mrb[0].mxu0
    %v3306 = vadd.f32 0.0, %v3305
    %v3307 = vpop.f32.mrb[0].mxu0
    %3308 = vmatprep.mubr.f32.mxu0 %v3176
    %3309 = vmatmul.mubr.f32.gmra.mrb[0].mxu0 %v3175
    %v3310 = vpop.f32.mrb[0].mxu0
    %v3311 = vadd.f32 0.0, %v3310
    %v3312 = vpop.f32.mrb[0].mxu0
    %3313 = vmatprep.mubr.f32.mxu0 %v3180
    %3314 = vmatmul.mubr.f32.gmra.mrb[0].mxu0 %v3179
    %v3315 = vpop.f32.mrb[0].mxu0
    %v3316 = vadd.f32 0.0, %v3315
    %v3317 = vpop.f32.mrb[0].mxu0
    %3318 = vmatprep.mubr.f32.mxu0 %v3184
    %3319 = vmatmul.mubr.f32.gmra.mrb[0].mxu0 %v3183
    %v3320 = vpop.f32.mrb[0].mxu0
    %v3321 = vadd.f32 0.0, %v3320
    %v3322 = vpop.f32.mrb[0].mxu0
    %3323 = vmatprep.mubr.f32.mxu0 %v3188
    %3324 = vmatmul.mubr.f32.gmra.mrb[0].mxu0 %v3187
    %v3325 = vpop.f32.mrb[0].mxu0
    %v3326 = vadd.f32 0.0, %v3325
    %v3327 = vpop.f32.mrb[0].mxu0
    %3328 = vmatprep.mubr.f32.mxu0 %v3192
    %3329 = vmatmul.mubr.f32.gmra.mrb[0].mxu0 %v3191
    %v3330 = vpop.f32.mrb[0].mxu0
    %v3331 = vadd.f32 0.0, %v3330
    %v3332 = vpop.f32.mrb[0].mxu0
    %3333 = vmatprep.mubr.f32.mxu0 %v3196
    %3334 = vmatmul.mubr.f32.gmra.mrb[0].mxu0 %v3195
    %v3335 = vpop.f32.mrb[0].mxu0
    %v3336 = vadd.f32 0.0, %v3335
    %v3337 = vpop.f32.mrb[0].mxu0
    %3338 = vmatprep.mubr.f32.mxu0 %v3200
    %3339 = vmatmul.mubr.f32.gmra.mrb[0].mxu0 %v3199
    %v3340 = vpop.f32.mrb[0].mxu0
    %v3341 = vadd.f32 0.0, %v3340
    %v3342 = vpop.f32.mrb[0].mxu0
    %3343 = vmatprep.mubr.f32.mxu0 %v3204
    %3344 = vmatmul.mubr.f32.gmra.mrb[0].mxu0 %v3203
    %v3345 = vpop.f32.mrb[0].mxu0
    %v3346 = vadd.f32 0.0, %v3345
    %v3347 = vpop.f32.mrb[0].mxu0
    %3348 = vmatprep.mubr.f32.mxu0 %v3208
    %3349 = vmatmul.mubr.f32.gmra.mrb[0].mxu0 %v3207
    %v3350 = vpop.f32.mrb[0].mxu0
    %v3351 = vadd.f32 0.0, %v3350
    %v3352 = vpop.f32.mrb[0].mxu0
    %3353 = vmatprep.mubr.f32.mxu0 %v3212
    %3354 = vmatmul.mubr.f32.gmra.mrb[0].mxu0 %v3211
    %v3355 = vpop.f32.mrb[0].mxu0
    %v3356 = vadd.f32 0.0, %v3355
    %v3357 = vpop.f32.mrb[0].mxu0
    %3358 = vmatprep.mubr.f32.mxu0 %v3216
    %3359 = vmatmul.mubr.f32.gmra.mrb[0].mxu0 %v3215
    %v3360 = vpop.f32.mrb[0].mxu0
    %v3361 = vadd.f32 0.0, %v3360
    %v3362 = vpop.f32.mrb[0].mxu0
    %3363 = vdwg.mxu0
    %3364 = vmatprep.subr.mxu0 0.0
    %3365 = vmatpush1.msra.mxu0 %v309
    %3366 = vmatprep.subr.mxu0 0.0
    %3367 = vmatpush1.msra.mxu0 %v310
    %3368 = vmatprep.subr.mxu0 0.0
    %3369 = vmatpush1.msra.mxu0 %v311
    %3370 = vmatprep.subr.mxu0 0.0
    %3371 = vmatpush1.msra.mxu0 %v312
    %3372 = vmatprep.subr.mxu0 0.0
    %3373 = vmatpush1.msra.mxu0 %v313
    %3374 = vmatprep.subr.mxu0 0.0
    %3375 = vmatpush1.msra.mxu0 %v314
    %3376 = vmatprep.subr.mxu0 0.0
    %3377 = vmatpush1.msra.mxu0 %v315
    %3378 = vmatprep.subr.mxu0 0.0
    %3379 = vmatpush1.msra.mxu0 %v316
    %3380 = vmatprep.subr.mxu0 0.0
    %3381 = vmatpush1.msra.mxu0 %v317
    %3382 = vmatprep.subr.mxu0 0.0
    %3383 = vmatpush1.msra.mxu0 %v318
    %3384 = vmatprep.subr.mxu0 0.0
    %3385 = vmatpush1.msra.mxu0 %v319
    %3386 = vmatprep.subr.mxu0 0.0
    %3387 = vmatpush1.msra.mxu0 %v320
    %3388 = vmatprep.subr.mxu0 0.0
    %3389 = vmatpush1.msra.mxu0 %v321
    %3390 = vmatprep.subr.mxu0 0.0
    %3391 = vmatpush1.msra.mxu0 %v322
    %3392 = vmatprep.subr.mxu0 0.0
    %3393 = vmatpush1.msra.mxu0 %v323
    %3394 = vmatprep.subr.mxu0 0.0
    %3395 = vmatpush1.msra.mxu0 %v324
    %3396 = vmatprep.subr.mxu0 0.0
    %3397 = vmatpush1.msra.mxu0 %v325
    %3398 = vmatprep.subr.mxu0 0.0
    %3399 = vmatpush1.msra.mxu0 %v326
    %3400 = vmatprep.subr.mxu0 0.0
    %3401 = vmatpush1.msra.mxu0 %v327
    %3402 = vmatprep.subr.mxu0 0.0
    %3403 = vmatpush1.msra.mxu0 %v328
    %3404 = vmatprep.subr.mxu0 0.0
    %3405 = vmatpush1.msra.mxu0 %v329
    %3406 = vmatprep.subr.mxu0 0.0
    %3407 = vmatpush1.msra.mxu0 %v330
    %3408 = vmatprep.subr.mxu0 0.0
    %3409 = vmatpush1.msra.mxu0 %v331
    %3410 = vmatprep.subr.mxu0 0.0
    %3411 = vmatpush1.msra.mxu0 %v332
    %3412 = vmatprep.subr.mxu0 0.0
    %3413 = vmatpush1.msra.mxu0 %v333
    %3414 = vmatprep.subr.mxu0 0.0
    %3415 = vmatpush1.msra.mxu0 %v334
    %3416 = vmatprep.subr.mxu0 0.0
    %3417 = vmatpush1.msra.mxu0 %v335
    %3418 = vmatprep.subr.mxu0 0.0
    %3419 = vmatpush1.msra.mxu0 %v336
    %3420 = vmatprep.subr.mxu0 0.0
    %3421 = vmatpush1.msra.mxu0 %v337
    %3422 = vmatprep.subr.mxu0 0.0
    %3423 = vmatpush1.msra.mxu0 %v338
    %3424 = vmatprep.subr.mxu0 0.0
    %3425 = vmatpush1.msra.mxu0 %v339
    %3426 = vmatprep.subr.mxu0 0.0
    %3427 = vmatpush1.msra.mxu0 %v340
    %3428 = vmatprep.mubr.f32.mxu0 %v3158
    %3429 = vmatmul.mubr.f32.gmra.mrb[0].mxu0 %v3157
    %v3430 = vpop.f32.mrb[0].mxu0
    %v3431 = vadd.f32 %v3286, %v3430
    %v3432 = vpop.f32.mrb[0].mxu0
    %3433 = vmatprep.mubr.f32.mxu0 %v3162
    %3434 = vmatmul.mubr.f32.gmra.mrb[0].mxu0 %v3161
    %v3435 = vpop.f32.mrb[0].mxu0
    %v3436 = vadd.f32 %v3291, %v3435
    %v3437 = vpop.f32.mrb[0].mxu0
    %3438 = vmatprep.mubr.f32.mxu0 %v3166
    %3439 = vmatmul.mubr.f32.gmra.mrb[0].mxu0 %v3165
    %v3440 = vpop.f32.mrb[0].mxu0
    %v3441 = vadd.f32 %v3296, %v3440
    %v3442 = vpop.f32.mrb[0].mxu0
    %3443 = vmatprep.mubr.f32.mxu0 %v3170
    %3444 = vmatmul.mubr.f32.gmra.mrb[0].mxu0 %v3169
    %v3445 = vpop.f32.mrb[0].mxu0
    %v3446 = vadd.f32 %v3301, %v3445
    %v3447 = vpop.f32.mrb[0].mxu0
    %3448 = vmatprep.mubr.f32.mxu0 %v3174
    %3449 = vmatmul.mubr.f32.gmra.mrb[0].mxu0 %v3173
    %v3450 = vpop.f32.mrb[0].mxu0
    %v3451 = vadd.f32 %v3306, %v3450
    %v3452 = vpop.f32.mrb[0].mxu0
    %3453 = vmatprep.mubr.f32.mxu0 %v3178
    %3454 = vmatmul.mubr.f32.gmra.mrb[0].mxu0 %v3177
    %v3455 = vpop.f32.mrb[0].mxu0
    %v3456 = vadd.f32 %v3311, %v3455
    %v3457 = vpop.f32.mrb[0].mxu0
    %3458 = vmatprep.mubr.f32.mxu0 %v3182
    %3459 = vmatmul.mubr.f32.gmra.mrb[0].mxu0 %v3181
    %v3460 = vpop.f32.mrb[0].mxu0
    %v3461 = vadd.f32 %v3316, %v3460
    %v3462 = vpop.f32.mrb[0].mxu0
    %3463 = vmatprep.mubr.f32.mxu0 %v3186
    %3464 = vmatmul.mubr.f32.gmra.mrb[0].mxu0 %v3185
    %v3465 = vpop.f32.mrb[0].mxu0
    %v3466 = vadd.f32 %v3321, %v3465
    %v3467 = vpop.f32.mrb[0].mxu0
    %3468 = vmatprep.mubr.f32.mxu0 %v3190
    %3469 = vmatmul.mubr.f32.gmra.mrb[0].mxu0 %v3189
    %v3470 = vpop.f32.mrb[0].mxu0
    %v3471 = vadd.f32 %v3326, %v3470
    %v3472 = vpop.f32.mrb[0].mxu0
    %3473 = vmatprep.mubr.f32.mxu0 %v3194
    %3474 = vmatmul.mubr.f32.gmra.mrb[0].mxu0 %v3193
    %v3475 = vpop.f32.mrb[0].mxu0
    %v3476 = vadd.f32 %v3331, %v3475
    %v3477 = vpop.f32.mrb[0].mxu0
    %3478 = vmatprep.mubr.f32.mxu0 %v3198
    %3479 = vmatmul.mubr.f32.gmra.mrb[0].mxu0 %v3197
    %v3480 = vpop.f32.mrb[0].mxu0
    %v3481 = vadd.f32 %v3336, %v3480
    %v3482 = vpop.f32.mrb[0].mxu0
    %3483 = vmatprep.mubr.f32.mxu0 %v3202
    %3484 = vmatmul.mubr.f32.gmra.mrb[0].mxu0 %v3201
    %v3485 = vpop.f32.mrb[0].mxu0
    %v3486 = vadd.f32 %v3341, %v3485
    %v3487 = vpop.f32.mrb[0].mxu0
    %3488 = vmatprep.mubr.f32.mxu0 %v3206
    %3489 = vmatmul.mubr.f32.gmra.mrb[0].mxu0 %v3205
    %v3490 = vpop.f32.mrb[0].mxu0
    %v3491 = vadd.f32 %v3346, %v3490
    %v3492 = vpop.f32.mrb[0].mxu0
    %3493 = vmatprep.mubr.f32.mxu0 %v3210
    %3494 = vmatmul.mubr.f32.gmra.mrb[0].mxu0 %v3209
    %v3495 = vpop.f32.mrb[0].mxu0
    %v3496 = vadd.f32 %v3351, %v3495
    %v3497 = vpop.f32.mrb[0].mxu0
    %3498 = vmatprep.mubr.f32.mxu0 %v3214
    %3499 = vmatmul.mubr.f32.gmra.mrb[0].mxu0 %v3213
    %v3500 = vpop.f32.mrb[0].mxu0
    %v3501 = vadd.f32 %v3356, %v3500
    %v3502 = vpop.f32.mrb[0].mxu0
    %3503 = vmatprep.mubr.f32.mxu0 %v3218
    %3504 = vmatmul.mubr.f32.gmra.mrb[0].mxu0 %v3217
    %v3505 = vpop.f32.mrb[0].mxu0
    %v3506 = vadd.f32 %v3361, %v3505
    %v3507 = vpop.f32.mrb[0].mxu0
    %3508 = vdwg.mxu0
    %s3509 = scalar_lea.vmem [#allocation5], 20
    %v3510 = vld [vmem:[%s3509] sm:$0xf]
    %v3512 = vsel %vm1053, %v3431, 0
    %v3515 = vsel %vm1053, %v3436, 0
    %v3518 = vsel %vm1053, %v3441, 0
    %v3521 = vsel %vm1053, %v3446, 0
    %v3524 = vsel %vm1053, %v3451, 0
    %v3527 = vsel %vm1053, %v3456, 0
    %v3530 = vsel %vm1053, %v3461, 0
    %v3533 = vsel %vm1053, %v3466, 0
    %v3536 = vsel %vm1053, %v3471, 0
    %v3539 = vsel %vm1053, %v3476, 0
    %v3542 = vsel %vm1053, %v3481, 0
    %v3545 = vsel %vm1053, %v3486, 0
    %v3548 = vsel %vm1053, %v3491, 0
    %v3551 = vsel %vm1053, %v3496, 0
    %v3554 = vsel %vm1053, %v3501, 0
    %v3557 = vsel %vm1053, %v3506, 0
    %v3560 = vsel %vm1102, %v3510, 0
    %3562 = vmatprep.subr.mxu0 0.0
    %3563 = vmatpush1.msra.mxu0 %v3560
    %3564 = vmatprep.subr.mxu0 0.0
    %3565 = vmatpush1.msra.mxu0 0.0
    %3566 = vmatprep.subr.mxu0 0.0
    %3567 = vmatpush1.msra.mxu0 0.0
    %3568 = vmatprep.subr.mxu0 0.0
    %3569 = vmatpush1.msra.mxu0 0.0
    %3570 = vmatprep.subr.mxu0 0.0
    %3571 = vmatpush1.msra.mxu0 0.0
    %3572 = vmatprep.subr.mxu0 0.0
    %3573 = vmatpush1.msra.mxu0 0.0
    %3574 = vmatprep.subr.mxu0 0.0
    %3575 = vmatpush1.msra.mxu0 0.0
    %3576 = vmatprep.subr.mxu0 0.0
    %3577 = vmatpush1.msra.mxu0 0.0
    %3578 = vmatprep.subr.mxu0 0.0
    %3579 = vmatpush1.msra.mxu0 0.0
    %3580 = vmatprep.subr.mxu0 0.0
    %3581 = vmatpush1.msra.mxu0 0.0
    %3582 = vmatprep.subr.mxu0 0.0
    %3583 = vmatpush1.msra.mxu0 0.0
    %3584 = vmatprep.subr.mxu0 0.0
    %3585 = vmatpush1.msra.mxu0 0.0
    %3586 = vmatprep.subr.mxu0 0.0
    %3587 = vmatpush1.msra.mxu0 0.0
    %3588 = vmatprep.subr.mxu0 0.0
    %3589 = vmatpush1.msra.mxu0 0.0
    %3590 = vmatprep.subr.mxu0 0.0
    %3591 = vmatpush1.msra.mxu0 0.0
    %3592 = vmatprep.subr.mxu0 0.0
    %3593 = vmatpush1.msra.mxu0 0.0
    %3594 = vmatprep.subr.mxu0 0.0
    %3595 = vmatpush1.msra.mxu0 0.0
    %3596 = vmatprep.subr.mxu0 0.0
    %3597 = vmatpush1.msra.mxu0 0.0
    %3598 = vmatprep.subr.mxu0 0.0
    %3599 = vmatpush1.msra.mxu0 0.0
    %3600 = vmatprep.subr.mxu0 0.0
    %3601 = vmatpush1.msra.mxu0 0.0
    %3602 = vmatprep.subr.mxu0 0.0
    %3603 = vmatpush1.msra.mxu0 0.0
    %3604 = vmatprep.subr.mxu0 0.0
    %3605 = vmatpush1.msra.mxu0 0.0
    %3606 = vmatprep.subr.mxu0 0.0
    %3607 = vmatpush1.msra.mxu0 0.0
    %3608 = vmatprep.subr.mxu0 0.0
    %3609 = vmatpush1.msra.mxu0 0.0
    %3610 = vmatprep.subr.mxu0 0.0
    %3611 = vmatpush1.msra.mxu0 0.0
    %3612 = vmatprep.subr.mxu0 0.0
    %3613 = vmatpush1.msra.mxu0 0.0
    %3614 = vmatprep.subr.mxu0 0.0
    %3615 = vmatpush1.msra.mxu0 0.0
    %3616 = vmatprep.subr.mxu0 0.0
    %3617 = vmatpush1.msra.mxu0 0.0
    %3618 = vmatprep.subr.mxu0 0.0
    %3619 = vmatpush1.msra.mxu0 0.0
    %3620 = vmatprep.subr.mxu0 0.0
    %3621 = vmatpush1.msra.mxu0 0.0
    %3622 = vmatprep.subr.mxu0 0.0
    %3623 = vmatpush1.msra.mxu0 0.0
    %3624 = vmatprep.subr.mxu0 0.0
    %3625 = vmatpush1.msra.mxu0 0.0
    %3626 = vmatprep.mubr.f32.mxu0 0.0
    %3627 = vmatmul.mubr.f32.gmra.mrb[0].mxu0 %v3512
    %v3628 = vpop.f32.mrb[0].mxu0
    %v3629 = vadd.f32 0.0, %v3628
    %v3630 = vpop.f32.mrb[0].mxu0
    %3631 = vmatprep.mubr.f32.mxu0 0.0
    %3632 = vmatmul.mubr.f32.gmra.mrb[0].mxu0 %v3515
    %v3633 = vpop.f32.mrb[0].mxu0
    %v3634 = vadd.f32 0.0, %v3633
    %v3635 = vpop.f32.mrb[0].mxu0
    %3636 = vmatprep.mubr.f32.mxu0 0.0
    %3637 = vmatmul.mubr.f32.gmra.mrb[0].mxu0 %v3518
    %v3638 = vpop.f32.mrb[0].mxu0
    %v3639 = vadd.f32 0.0, %v3638
    %v3640 = vpop.f32.mrb[0].mxu0
    %3641 = vmatprep.mubr.f32.mxu0 0.0
    %3642 = vmatmul.mubr.f32.gmra.mrb[0].mxu0 %v3521
    %v3643 = vpop.f32.mrb[0].mxu0
    %v3644 = vadd.f32 0.0, %v3643
    %v3645 = vpop.f32.mrb[0].mxu0
    %3646 = vmatprep.mubr.f32.mxu0 0.0
    %3647 = vmatmul.mubr.f32.gmra.mrb[0].mxu0 %v3524
    %v3648 = vpop.f32.mrb[0].mxu0
    %v3649 = vadd.f32 0.0, %v3648
    %v3650 = vpop.f32.mrb[0].mxu0
    %3651 = vmatprep.mubr.f32.mxu0 0.0
    %3652 = vmatmul.mubr.f32.gmra.mrb[0].mxu0 %v3527
    %v3653 = vpop.f32.mrb[0].mxu0
    %v3654 = vadd.f32 0.0, %v3653
    %v3655 = vpop.f32.mrb[0].mxu0
    %3656 = vmatprep.mubr.f32.mxu0 0.0
    %3657 = vmatmul.mubr.f32.gmra.mrb[0].mxu0 %v3530
    %v3658 = vpop.f32.mrb[0].mxu0
    %v3659 = vadd.f32 0.0, %v3658
    %v3660 = vpop.f32.mrb[0].mxu0
    %3661 = vmatprep.mubr.f32.mxu0 0.0
    %3662 = vmatmul.mubr.f32.gmra.mrb[0].mxu0 %v3533
    %v3663 = vpop.f32.mrb[0].mxu0
    %v3664 = vadd.f32 0.0, %v3663
    %v3665 = vpop.f32.mrb[0].mxu0
    %3666 = vmatprep.mubr.f32.mxu0 0.0
    %3667 = vmatmul.mubr.f32.gmra.mrb[0].mxu0 %v3536
    %v3668 = vpop.f32.mrb[0].mxu0
    %v3669 = vadd.f32 0.0, %v3668
    %v3670 = vpop.f32.mrb[0].mxu0
    %3671 = vmatprep.mubr.f32.mxu0 0.0
    %3672 = vmatmul.mubr.f32.gmra.mrb[0].mxu0 %v3539
    %v3673 = vpop.f32.mrb[0].mxu0
    %v3674 = vadd.f32 0.0, %v3673
    %v3675 = vpop.f32.mrb[0].mxu0
    %3676 = vmatprep.mubr.f32.mxu0 0.0
    %3677 = vmatmul.mubr.f32.gmra.mrb[0].mxu0 %v3542
    %v3678 = vpop.f32.mrb[0].mxu0
    %v3679 = vadd.f32 0.0, %v3678
    %v3680 = vpop.f32.mrb[0].mxu0
    %3681 = vmatprep.mubr.f32.mxu0 0.0
    %3682 = vmatmul.mubr.f32.gmra.mrb[0].mxu0 %v3545
    %v3683 = vpop.f32.mrb[0].mxu0
    %v3684 = vadd.f32 0.0, %v3683
    %v3685 = vpop.f32.mrb[0].mxu0
    %3686 = vmatprep.mubr.f32.mxu0 0.0
    %3687 = vmatmul.mubr.f32.gmra.mrb[0].mxu0 %v3548
    %v3688 = vpop.f32.mrb[0].mxu0
    %v3689 = vadd.f32 0.0, %v3688
    %v3690 = vpop.f32.mrb[0].mxu0
    %3691 = vmatprep.mubr.f32.mxu0 0.0
    %3692 = vmatmul.mubr.f32.gmra.mrb[0].mxu0 %v3551
    %v3693 = vpop.f32.mrb[0].mxu0
    %v3694 = vadd.f32 0.0, %v3693
    %v3695 = vpop.f32.mrb[0].mxu0
    %3696 = vmatprep.mubr.f32.mxu0 0.0
    %3697 = vmatmul.mubr.f32.gmra.mrb[0].mxu0 %v3554
    %v3698 = vpop.f32.mrb[0].mxu0
    %v3699 = vadd.f32 0.0, %v3698
    %v3700 = vpop.f32.mrb[0].mxu0
    %3701 = vmatprep.mubr.f32.mxu0 0.0
    %3702 = vmatmul.mubr.f32.gmra.mrb[0].mxu0 %v3557
    %v3703 = vpop.f32.mrb[0].mxu0
    %v3704 = vadd.f32 0.0, %v3703
    %v3705 = vpop.f32.mrb[0].mxu0
    %3706 = vdwg.mxu0
    %v3707 = vadd.f32 %v3138, %v3629
    %v3708 = vadd.f32 %v3139, %v3634
    %v3709 = vadd.f32 %v3140, %v3639
    %v3710 = vadd.f32 %v3141, %v3644
    %v3711 = vadd.f32 %v3142, %v3649
    %v3712 = vadd.f32 %v3143, %v3654
    %v3713 = vadd.f32 %v3144, %v3659
    %v3714 = vadd.f32 %v3145, %v3664
    %v3715 = vadd.f32 %v3146, %v3669
    %v3716 = vadd.f32 %v3147, %v3674
    %v3717 = vadd.f32 %v3148, %v3679
    %v3718 = vadd.f32 %v3149, %v3684
    %v3719 = vadd.f32 %v3150, %v3689
    %v3720 = vadd.f32 %v3151, %v3694
    %v3721 = vadd.f32 %v3152, %v3699
    %v3722 = vadd.f32 %v3153, %v3704
    %s3723 = scalar_lea.vmem [#allocation3], 3072
    %v3724 = vld [vmem:[%s3723] sm:$0xff]
    %v3725 = vld [vmem:[%s3723 + $0x8] sm:$0xff]
    %v3726 = vld [vmem:[%s3723 + $0x10] sm:$0xff]
    %v3727 = vld [vmem:[%s3723 + $0x18] sm:$0xff]
    %v3728 = vld [vmem:[%s3723 + $0x20] sm:$0xff]
    %v3729 = vld [vmem:[%s3723 + $0x28] sm:$0xff]
    %v3730 = vld [vmem:[%s3723 + $0x30] sm:$0xff]
    %v3731 = vld [vmem:[%s3723 + $0x38] sm:$0xff]
    %v3732 = vld [vmem:[%s3723 + $0x40] sm:$0xff]
    %v3733 = vld [vmem:[%s3723 + $0x48] sm:$0xff]
    %v3734 = vld [vmem:[%s3723 + $0x50] sm:$0xff]
    %v3735 = vld [vmem:[%s3723 + $0x58] sm:$0xff]
    %v3736 = vld [vmem:[%s3723 + $0x60] sm:$0xff]
    %v3737 = vld [vmem:[%s3723 + $0x68] sm:$0xff]
    %v3738 = vld [vmem:[%s3723 + $0x70] sm:$0xff]
    %v3739 = vld [vmem:[%s3723 + $0x78] sm:$0xff]
    %v3740 = vld [vmem:[%s3723 + $0x80] sm:$0xff]
    %v3741 = vld [vmem:[%s3723 + $0x88] sm:$0xff]
    %v3742 = vld [vmem:[%s3723 + $0x90] sm:$0xff]
    %v3743 = vld [vmem:[%s3723 + $0x98] sm:$0xff]
    %v3744 = vld [vmem:[%s3723 + $0xa0] sm:$0xff]
    %v3745 = vld [vmem:[%s3723 + $0xa8] sm:$0xff]
    %v3746 = vld [vmem:[%s3723 + $0xb0] sm:$0xff]
    %v3747 = vld [vmem:[%s3723 + $0xb8] sm:$0xff]
    %v3748 = vld [vmem:[%s3723 + $0xc0] sm:$0xff]
    %v3749 = vld [vmem:[%s3723 + $0xc8] sm:$0xff]
    %v3750 = vld [vmem:[%s3723 + $0xd0] sm:$0xff]
    %v3751 = vld [vmem:[%s3723 + $0xd8] sm:$0xff]
    %v3752 = vld [vmem:[%s3723 + $0xe0] sm:$0xff]
    %v3753 = vld [vmem:[%s3723 + $0xe8] sm:$0xff]
    %v3754 = vld [vmem:[%s3723 + $0xf0] sm:$0xff]
    %v3755 = vld [vmem:[%s3723 + $0xf8] sm:$0xff]
    %v3756 = vld [vmem:[%s3723 + $0x100] sm:$0xff]
    %v3757 = vld [vmem:[%s3723 + $0x108] sm:$0xff]
    %v3758 = vld [vmem:[%s3723 + $0x110] sm:$0xff]
    %v3759 = vld [vmem:[%s3723 + $0x118] sm:$0xff]
    %v3760 = vld [vmem:[%s3723 + $0x120] sm:$0xff]
    %v3761 = vld [vmem:[%s3723 + $0x128] sm:$0xff]
    %v3762 = vld [vmem:[%s3723 + $0x130] sm:$0xff]
    %v3763 = vld [vmem:[%s3723 + $0x138] sm:$0xff]
    %v3764 = vld [vmem:[%s3723 + $0x140] sm:$0xff]
    %v3765 = vld [vmem:[%s3723 + $0x148] sm:$0xff]
    %v3766 = vld [vmem:[%s3723 + $0x150] sm:$0xff]
    %v3767 = vld [vmem:[%s3723 + $0x158] sm:$0xff]
    %v3768 = vld [vmem:[%s3723 + $0x160] sm:$0xff]
    %v3769 = vld [vmem:[%s3723 + $0x168] sm:$0xff]
    %v3770 = vld [vmem:[%s3723 + $0x170] sm:$0xff]
    %v3771 = vld [vmem:[%s3723 + $0x178] sm:$0xff]
    %v3772 = vld [vmem:[%s3723 + $0x180] sm:$0xff]
    %v3773 = vld [vmem:[%s3723 + $0x188] sm:$0xff]
    %v3774 = vld [vmem:[%s3723 + $0x190] sm:$0xff]
    %v3775 = vld [vmem:[%s3723 + $0x198] sm:$0xff]
    %v3776 = vld [vmem:[%s3723 + $0x1a0] sm:$0xff]
    %v3777 = vld [vmem:[%s3723 + $0x1a8] sm:$0xff]
    %v3778 = vld [vmem:[%s3723 + $0x1b0] sm:$0xff]
    %v3779 = vld [vmem:[%s3723 + $0x1b8] sm:$0xff]
    %v3780 = vld [vmem:[%s3723 + $0x1c0] sm:$0xff]
    %v3781 = vld [vmem:[%s3723 + $0x1c8] sm:$0xff]
    %v3782 = vld [vmem:[%s3723 + $0x1d0] sm:$0xff]
    %v3783 = vld [vmem:[%s3723 + $0x1d8] sm:$0xff]
    %v3784 = vld [vmem:[%s3723 + $0x1e0] sm:$0xff]
    %v3785 = vld [vmem:[%s3723 + $0x1e8] sm:$0xff]
    %v3786 = vld [vmem:[%s3723 + $0x1f0] sm:$0xff]
    %v3787 = vld [vmem:[%s3723 + $0x1f8] sm:$0xff]
    %3788 = vmatprep.subr.mxu0 0.0
    %3789 = vmatpush1.msra.mxu0 %v277
    %3790 = vmatprep.subr.mxu0 0.0
    %3791 = vmatpush1.msra.mxu0 %v278
    %3792 = vmatprep.subr.mxu0 0.0
    %3793 = vmatpush1.msra.mxu0 %v279
    %3794 = vmatprep.subr.mxu0 0.0
    %3795 = vmatpush1.msra.mxu0 %v280
    %3796 = vmatprep.subr.mxu0 0.0
    %3797 = vmatpush1.msra.mxu0 %v281
    %3798 = vmatprep.subr.mxu0 0.0
    %3799 = vmatpush1.msra.mxu0 %v282
    %3800 = vmatprep.subr.mxu0 0.0
    %3801 = vmatpush1.msra.mxu0 %v283
    %3802 = vmatprep.subr.mxu0 0.0
    %3803 = vmatpush1.msra.mxu0 %v284
    %3804 = vmatprep.subr.mxu0 0.0
    %3805 = vmatpush1.msra.mxu0 %v285
    %3806 = vmatprep.subr.mxu0 0.0
    %3807 = vmatpush1.msra.mxu0 %v286
    %3808 = vmatprep.subr.mxu0 0.0
    %3809 = vmatpush1.msra.mxu0 %v287
    %3810 = vmatprep.subr.mxu0 0.0
    %3811 = vmatpush1.msra.mxu0 %v288
    %3812 = vmatprep.subr.mxu0 0.0
    %3813 = vmatpush1.msra.mxu0 %v289
    %3814 = vmatprep.subr.mxu0 0.0
    %3815 = vmatpush1.msra.mxu0 %v290
    %3816 = vmatprep.subr.mxu0 0.0
    %3817 = vmatpush1.msra.mxu0 %v291
    %3818 = vmatprep.subr.mxu0 0.0
    %3819 = vmatpush1.msra.mxu0 %v292
    %3820 = vmatprep.subr.mxu0 0.0
    %3821 = vmatpush1.msra.mxu0 %v293
    %3822 = vmatprep.subr.mxu0 0.0
    %3823 = vmatpush1.msra.mxu0 %v294
    %3824 = vmatprep.subr.mxu0 0.0
    %3825 = vmatpush1.msra.mxu0 %v295
    %3826 = vmatprep.subr.mxu0 0.0
    %3827 = vmatpush1.msra.mxu0 %v296
    %3828 = vmatprep.subr.mxu0 0.0
    %3829 = vmatpush1.msra.mxu0 %v297
    %3830 = vmatprep.subr.mxu0 0.0
    %3831 = vmatpush1.msra.mxu0 %v298
    %3832 = vmatprep.subr.mxu0 0.0
    %3833 = vmatpush1.msra.mxu0 %v299
    %3834 = vmatprep.subr.mxu0 0.0
    %3835 = vmatpush1.msra.mxu0 %v300
    %3836 = vmatprep.subr.mxu0 0.0
    %3837 = vmatpush1.msra.mxu0 %v301
    %3838 = vmatprep.subr.mxu0 0.0
    %3839 = vmatpush1.msra.mxu0 %v302
    %3840 = vmatprep.subr.mxu0 0.0
    %3841 = vmatpush1.msra.mxu0 %v303
    %3842 = vmatprep.subr.mxu0 0.0
    %3843 = vmatpush1.msra.mxu0 %v304
    %3844 = vmatprep.subr.mxu0 0.0
    %3845 = vmatpush1.msra.mxu0 %v305
    %3846 = vmatprep.subr.mxu0 0.0
    %3847 = vmatpush1.msra.mxu0 %v306
    %3848 = vmatprep.subr.mxu0 0.0
    %3849 = vmatpush1.msra.mxu0 %v307
    %3850 = vmatprep.subr.mxu0 0.0
    %3851 = vmatpush1.msra.mxu0 %v308
    %3852 = vmatprep.mubr.f32.mxu0 %v3725
    %3853 = vmatmul.mubr.f32.gmra.mrb[0].mxu0 %v3724
    %v3854 = vpop.f32.mrb[0].mxu0
    %v3855 = vadd.f32 0.0, %v3854
    %v3856 = vpop.f32.mrb[0].mxu0
    %3857 = vmatprep.mubr.f32.mxu0 %v3729
    %3858 = vmatmul.mubr.f32.gmra.mrb[0].mxu0 %v3728
    %v3859 = vpop.f32.mrb[0].mxu0
    %v3860 = vadd.f32 0.0, %v3859
    %v3861 = vpop.f32.mrb[0].mxu0
    %3862 = vmatprep.mubr.f32.mxu0 %v3733
    %3863 = vmatmul.mubr.f32.gmra.mrb[0].mxu0 %v3732
    %v3864 = vpop.f32.mrb[0].mxu0
    %v3865 = vadd.f32 0.0, %v3864
    %v3866 = vpop.f32.mrb[0].mxu0
    %3867 = vmatprep.mubr.f32.mxu0 %v3737
    %3868 = vmatmul.mubr.f32.gmra.mrb[0].mxu0 %v3736
    %v3869 = vpop.f32.mrb[0].mxu0
    %v3870 = vadd.f32 0.0, %v3869
    %v3871 = vpop.f32.mrb[0].mxu0
    %3872 = vmatprep.mubr.f32.mxu0 %v3741
    %3873 = vmatmul.mubr.f32.gmra.mrb[0].mxu0 %v3740
    %v3874 = vpop.f32.mrb[0].mxu0
    %v3875 = vadd.f32 0.0, %v3874
    %v3876 = vpop.f32.mrb[0].mxu0
    %3877 = vmatprep.mubr.f32.mxu0 %v3745
    %3878 = vmatmul.mubr.f32.gmra.mrb[0].mxu0 %v3744
    %v3879 = vpop.f32.mrb[0].mxu0
    %v3880 = vadd.f32 0.0, %v3879
    %v3881 = vpop.f32.mrb[0].mxu0
    %3882 = vmatprep.mubr.f32.mxu0 %v3749
    %3883 = vmatmul.mubr.f32.gmra.mrb[0].mxu0 %v3748
    %v3884 = vpop.f32.mrb[0].mxu0
    %v3885 = vadd.f32 0.0, %v3884
    %v3886 = vpop.f32.mrb[0].mxu0
    %3887 = vmatprep.mubr.f32.mxu0 %v3753
    %3888 = vmatmul.mubr.f32.gmra.mrb[0].mxu0 %v3752
    %v3889 = vpop.f32.mrb[0].mxu0
    %v3890 = vadd.f32 0.0, %v3889
    %v3891 = vpop.f32.mrb[0].mxu0
    %3892 = vmatprep.mubr.f32.mxu0 %v3757
    %3893 = vmatmul.mubr.f32.gmra.mrb[0].mxu0 %v3756
    %v3894 = vpop.f32.mrb[0].mxu0
    %v3895 = vadd.f32 0.0, %v3894
    %v3896 = vpop.f32.mrb[0].mxu0
    %3897 = vmatprep.mubr.f32.mxu0 %v3761
    %3898 = vmatmul.mubr.f32.gmra.mrb[0].mxu0 %v3760
    %v3899 = vpop.f32.mrb[0].mxu0
    %v3900 = vadd.f32 0.0, %v3899
    %v3901 = vpop.f32.mrb[0].mxu0
    %3902 = vmatprep.mubr.f32.mxu0 %v3765
    %3903 = vmatmul.mubr.f32.gmra.mrb[0].mxu0 %v3764
    %v3904 = vpop.f32.mrb[0].mxu0
    %v3905 = vadd.f32 0.0, %v3904
    %v3906 = vpop.f32.mrb[0].mxu0
    %3907 = vmatprep.mubr.f32.mxu0 %v3769
    %3908 = vmatmul.mubr.f32.gmra.mrb[0].mxu0 %v3768
    %v3909 = vpop.f32.mrb[0].mxu0
    %v3910 = vadd.f32 0.0, %v3909
    %v3911 = vpop.f32.mrb[0].mxu0
    %3912 = vmatprep.mubr.f32.mxu0 %v3773
    %3913 = vmatmul.mubr.f32.gmra.mrb[0].mxu0 %v3772
    %v3914 = vpop.f32.mrb[0].mxu0
    %v3915 = vadd.f32 0.0, %v3914
    %v3916 = vpop.f32.mrb[0].mxu0
    %3917 = vmatprep.mubr.f32.mxu0 %v3777
    %3918 = vmatmul.mubr.f32.gmra.mrb[0].mxu0 %v3776
    %v3919 = vpop.f32.mrb[0].mxu0
    %v3920 = vadd.f32 0.0, %v3919
    %v3921 = vpop.f32.mrb[0].mxu0
    %3922 = vmatprep.mubr.f32.mxu0 %v3781
    %3923 = vmatmul.mubr.f32.gmra.mrb[0].mxu0 %v3780
    %v3924 = vpop.f32.mrb[0].mxu0
    %v3925 = vadd.f32 0.0, %v3924
    %v3926 = vpop.f32.mrb[0].mxu0
    %3927 = vmatprep.mubr.f32.mxu0 %v3785
    %3928 = vmatmul.mubr.f32.gmra.mrb[0].mxu0 %v3784
    %v3929 = vpop.f32.mrb[0].mxu0
    %v3930 = vadd.f32 0.0, %v3929
    %v3931 = vpop.f32.mrb[0].mxu0
    %3932 = vdwg.mxu0
    %3933 = vmatprep.subr.mxu0 0.0
    %3934 = vmatpush1.msra.mxu0 %v309
    %3935 = vmatprep.subr.mxu0 0.0
    %3936 = vmatpush1.msra.mxu0 %v310
    %3937 = vmatprep.subr.mxu0 0.0
    %3938 = vmatpush1.msra.mxu0 %v311
    %3939 = vmatprep.subr.mxu0 0.0
    %3940 = vmatpush1.msra.mxu0 %v312
    %3941 = vmatprep.subr.mxu0 0.0
    %3942 = vmatpush1.msra.mxu0 %v313
    %3943 = vmatprep.subr.mxu0 0.0
    %3944 = vmatpush1.msra.mxu0 %v314
    %3945 = vmatprep.subr.mxu0 0.0
    %3946 = vmatpush1.msra.mxu0 %v315
    %3947 = vmatprep.subr.mxu0 0.0
    %3948 = vmatpush1.msra.mxu0 %v316
    %3949 = vmatprep.subr.mxu0 0.0
    %3950 = vmatpush1.msra.mxu0 %v317
    %3951 = vmatprep.subr.mxu0 0.0
    %3952 = vmatpush1.msra.mxu0 %v318
    %3953 = vmatprep.subr.mxu0 0.0
    %3954 = vmatpush1.msra.mxu0 %v319
    %3955 = vmatprep.subr.mxu0 0.0
    %3956 = vmatpush1.msra.mxu0 %v320
    %3957 = vmatprep.subr.mxu0 0.0
    %3958 = vmatpush1.msra.mxu0 %v321
    %3959 = vmatprep.subr.mxu0 0.0
    %3960 = vmatpush1.msra.mxu0 %v322
    %3961 = vmatprep.subr.mxu0 0.0
    %3962 = vmatpush1.msra.mxu0 %v323
    %3963 = vmatprep.subr.mxu0 0.0
    %3964 = vmatpush1.msra.mxu0 %v324
    %3965 = vmatprep.subr.mxu0 0.0
    %3966 = vmatpush1.msra.mxu0 %v325
    %3967 = vmatprep.subr.mxu0 0.0
    %3968 = vmatpush1.msra.mxu0 %v326
    %3969 = vmatprep.subr.mxu0 0.0
    %3970 = vmatpush1.msra.mxu0 %v327
    %3971 = vmatprep.subr.mxu0 0.0
    %3972 = vmatpush1.msra.mxu0 %v328
    %3973 = vmatprep.subr.mxu0 0.0
    %3974 = vmatpush1.msra.mxu0 %v329
    %3975 = vmatprep.subr.mxu0 0.0
    %3976 = vmatpush1.msra.mxu0 %v330
    %3977 = vmatprep.subr.mxu0 0.0
    %3978 = vmatpush1.msra.mxu0 %v331
    %3979 = vmatprep.subr.mxu0 0.0
    %3980 = vmatpush1.msra.mxu0 %v332
    %3981 = vmatprep.subr.mxu0 0.0
    %3982 = vmatpush1.msra.mxu0 %v333
    %3983 = vmatprep.subr.mxu0 0.0
    %3984 = vmatpush1.msra.mxu0 %v334
    %3985 = vmatprep.subr.mxu0 0.0
    %3986 = vmatpush1.msra.mxu0 %v335
    %3987 = vmatprep.subr.mxu0 0.0
    %3988 = vmatpush1.msra.mxu0 %v336
    %3989 = vmatprep.subr.mxu0 0.0
    %3990 = vmatpush1.msra.mxu0 %v337
    %3991 = vmatprep.subr.mxu0 0.0
    %3992 = vmatpush1.msra.mxu0 %v338
    %3993 = vmatprep.subr.mxu0 0.0
    %3994 = vmatpush1.msra.mxu0 %v339
    %3995 = vmatprep.subr.mxu0 0.0
    %3996 = vmatpush1.msra.mxu0 %v340
    %3997 = vmatprep.mubr.f32.mxu0 %v3727
    %3998 = vmatmul.mubr.f32.gmra.mrb[0].mxu0 %v3726
    %v3999 = vpop.f32.mrb[0].mxu0
    %v4000 = vadd.f32 %v3855, %v3999
    %v4001 = vpop.f32.mrb[0].mxu0
    %4002 = vmatprep.mubr.f32.mxu0 %v3731
    %4003 = vmatmul.mubr.f32.gmra.mrb[0].mxu0 %v3730
    %v4004 = vpop.f32.mrb[0].mxu0
    %v4005 = vadd.f32 %v3860, %v4004
    %v4006 = vpop.f32.mrb[0].mxu0
    %4007 = vmatprep.mubr.f32.mxu0 %v3735
    %4008 = vmatmul.mubr.f32.gmra.mrb[0].mxu0 %v3734
    %v4009 = vpop.f32.mrb[0].mxu0
    %v4010 = vadd.f32 %v3865, %v4009
    %v4011 = vpop.f32.mrb[0].mxu0
    %4012 = vmatprep.mubr.f32.mxu0 %v3739
    %4013 = vmatmul.mubr.f32.gmra.mrb[0].mxu0 %v3738
    %v4014 = vpop.f32.mrb[0].mxu0
    %v4015 = vadd.f32 %v3870, %v4014
    %v4016 = vpop.f32.mrb[0].mxu0
    %4017 = vmatprep.mubr.f32.mxu0 %v3743
    %4018 = vmatmul.mubr.f32.gmra.mrb[0].mxu0 %v3742
    %v4019 = vpop.f32.mrb[0].mxu0
    %v4020 = vadd.f32 %v3875, %v4019
    %v4021 = vpop.f32.mrb[0].mxu0
    %4022 = vmatprep.mubr.f32.mxu0 %v3747
    %4023 = vmatmul.mubr.f32.gmra.mrb[0].mxu0 %v3746
    %v4024 = vpop.f32.mrb[0].mxu0
    %v4025 = vadd.f32 %v3880, %v4024
    %v4026 = vpop.f32.mrb[0].mxu0
    %4027 = vmatprep.mubr.f32.mxu0 %v3751
    %4028 = vmatmul.mubr.f32.gmra.mrb[0].mxu0 %v3750
    %v4029 = vpop.f32.mrb[0].mxu0
    %v4030 = vadd.f32 %v3885, %v4029
    %v4031 = vpop.f32.mrb[0].mxu0
    %4032 = vmatprep.mubr.f32.mxu0 %v3755
    %4033 = vmatmul.mubr.f32.gmra.mrb[0].mxu0 %v3754
    %v4034 = vpop.f32.mrb[0].mxu0
    %v4035 = vadd.f32 %v3890, %v4034
    %v4036 = vpop.f32.mrb[0].mxu0
    %4037 = vmatprep.mubr.f32.mxu0 %v3759
    %4038 = vmatmul.mubr.f32.gmra.mrb[0].mxu0 %v3758
    %v4039 = vpop.f32.mrb[0].mxu0
    %v4040 = vadd.f32 %v3895, %v4039
    %v4041 = vpop.f32.mrb[0].mxu0
    %4042 = vmatprep.mubr.f32.mxu0 %v3763
    %4043 = vmatmul.mubr.f32.gmra.mrb[0].mxu0 %v3762
    %v4044 = vpop.f32.mrb[0].mxu0
    %v4045 = vadd.f32 %v3900, %v4044
    %v4046 = vpop.f32.mrb[0].mxu0
    %4047 = vmatprep.mubr.f32.mxu0 %v3767
    %4048 = vmatmul.mubr.f32.gmra.mrb[0].mxu0 %v3766
    %v4049 = vpop.f32.mrb[0].mxu0
    %v4050 = vadd.f32 %v3905, %v4049
    %v4051 = vpop.f32.mrb[0].mxu0
    %4052 = vmatprep.mubr.f32.mxu0 %v3771
    %4053 = vmatmul.mubr.f32.gmra.mrb[0].mxu0 %v3770
    %v4054 = vpop.f32.mrb[0].mxu0
    %v4055 = vadd.f32 %v3910, %v4054
    %v4056 = vpop.f32.mrb[0].mxu0
    %4057 = vmatprep.mubr.f32.mxu0 %v3775
    %4058 = vmatmul.mubr.f32.gmra.mrb[0].mxu0 %v3774
    %v4059 = vpop.f32.mrb[0].mxu0
    %v4060 = vadd.f32 %v3915, %v4059
    %v4061 = vpop.f32.mrb[0].mxu0
    %4062 = vmatprep.mubr.f32.mxu0 %v3779
    %4063 = vmatmul.mubr.f32.gmra.mrb[0].mxu0 %v3778
    %v4064 = vpop.f32.mrb[0].mxu0
    %v4065 = vadd.f32 %v3920, %v4064
    %v4066 = vpop.f32.mrb[0].mxu0
    %4067 = vmatprep.mubr.f32.mxu0 %v3783
    %4068 = vmatmul.mubr.f32.gmra.mrb[0].mxu0 %v3782
    %v4069 = vpop.f32.mrb[0].mxu0
    %v4070 = vadd.f32 %v3925, %v4069
    %v4071 = vpop.f32.mrb[0].mxu0
    %4072 = vmatprep.mubr.f32.mxu0 %v3787
    %4073 = vmatmul.mubr.f32.gmra.mrb[0].mxu0 %v3786
    %v4074 = vpop.f32.mrb[0].mxu0
    %v4075 = vadd.f32 %v3930, %v4074
    %v4076 = vpop.f32.mrb[0].mxu0
    %4077 = vdwg.mxu0
    %s4078 = scalar_lea.vmem [#allocation5], 24
    %v4079 = vld [vmem:[%s4078] sm:$0xf]
    %v4081 = vsel %vm1053, %v4000, 0
    %v4084 = vsel %vm1053, %v4005, 0
    %v4087 = vsel %vm1053, %v4010, 0
    %v4090 = vsel %vm1053, %v4015, 0
    %v4093 = vsel %vm1053, %v4020, 0
    %v4096 = vsel %vm1053, %v4025, 0
    %v4099 = vsel %vm1053, %v4030, 0
    %v4102 = vsel %vm1053, %v4035, 0
    %v4105 = vsel %vm1053, %v4040, 0
    %v4108 = vsel %vm1053, %v4045, 0
    %v4111 = vsel %vm1053, %v4050, 0
    %v4114 = vsel %vm1053, %v4055, 0
    %v4117 = vsel %vm1053, %v4060, 0
    %v4120 = vsel %vm1053, %v4065, 0
    %v4123 = vsel %vm1053, %v4070, 0
    %v4126 = vsel %vm1053, %v4075, 0
    %v4129 = vsel %vm1102, %v4079, 0
    %4131 = vmatprep.subr.mxu0 0.0
    %4132 = vmatpush1.msra.mxu0 %v4129
    %4133 = vmatprep.subr.mxu0 0.0
    %4134 = vmatpush1.msra.mxu0 0.0
    %4135 = vmatprep.subr.mxu0 0.0
    %4136 = vmatpush1.msra.mxu0 0.0
    %4137 = vmatprep.subr.mxu0 0.0
    %4138 = vmatpush1.msra.mxu0 0.0
    %4139 = vmatprep.subr.mxu0 0.0
    %4140 = vmatpush1.msra.mxu0 0.0
    %4141 = vmatprep.subr.mxu0 0.0
    %4142 = vmatpush1.msra.mxu0 0.0
    %4143 = vmatprep.subr.mxu0 0.0
    %4144 = vmatpush1.msra.mxu0 0.0
    %4145 = vmatprep.subr.mxu0 0.0
    %4146 = vmatpush1.msra.mxu0 0.0
    %4147 = vmatprep.subr.mxu0 0.0
    %4148 = vmatpush1.msra.mxu0 0.0
    %4149 = vmatprep.subr.mxu0 0.0
    %4150 = vmatpush1.msra.mxu0 0.0
    %4151 = vmatprep.subr.mxu0 0.0
    %4152 = vmatpush1.msra.mxu0 0.0
    %4153 = vmatprep.subr.mxu0 0.0
    %4154 = vmatpush1.msra.mxu0 0.0
    %4155 = vmatprep.subr.mxu0 0.0
    %4156 = vmatpush1.msra.mxu0 0.0
    %4157 = vmatprep.subr.mxu0 0.0
    %4158 = vmatpush1.msra.mxu0 0.0
    %4159 = vmatprep.subr.mxu0 0.0
    %4160 = vmatpush1.msra.mxu0 0.0
    %4161 = vmatprep.subr.mxu0 0.0
    %4162 = vmatpush1.msra.mxu0 0.0
    %4163 = vmatprep.subr.mxu0 0.0
    %4164 = vmatpush1.msra.mxu0 0.0
    %4165 = vmatprep.subr.mxu0 0.0
    %4166 = vmatpush1.msra.mxu0 0.0
    %4167 = vmatprep.subr.mxu0 0.0
    %4168 = vmatpush1.msra.mxu0 0.0
    %4169 = vmatprep.subr.mxu0 0.0
    %4170 = vmatpush1.msra.mxu0 0.0
    %4171 = vmatprep.subr.mxu0 0.0
    %4172 = vmatpush1.msra.mxu0 0.0
    %4173 = vmatprep.subr.mxu0 0.0
    %4174 = vmatpush1.msra.mxu0 0.0
    %4175 = vmatprep.subr.mxu0 0.0
    %4176 = vmatpush1.msra.mxu0 0.0
    %4177 = vmatprep.subr.mxu0 0.0
    %4178 = vmatpush1.msra.mxu0 0.0
    %4179 = vmatprep.subr.mxu0 0.0
    %4180 = vmatpush1.msra.mxu0 0.0
    %4181 = vmatprep.subr.mxu0 0.0
    %4182 = vmatpush1.msra.mxu0 0.0
    %4183 = vmatprep.subr.mxu0 0.0
    %4184 = vmatpush1.msra.mxu0 0.0
    %4185 = vmatprep.subr.mxu0 0.0
    %4186 = vmatpush1.msra.mxu0 0.0
    %4187 = vmatprep.subr.mxu0 0.0
    %4188 = vmatpush1.msra.mxu0 0.0
    %4189 = vmatprep.subr.mxu0 0.0
    %4190 = vmatpush1.msra.mxu0 0.0
    %4191 = vmatprep.subr.mxu0 0.0
    %4192 = vmatpush1.msra.mxu0 0.0
    %4193 = vmatprep.subr.mxu0 0.0
    %4194 = vmatpush1.msra.mxu0 0.0
    %4195 = vmatprep.mubr.f32.mxu0 0.0
    %4196 = vmatmul.mubr.f32.gmra.mrb[0].mxu0 %v4081
    %v4197 = vpop.f32.mrb[0].mxu0
    %v4198 = vadd.f32 0.0, %v4197
    %v4199 = vpop.f32.mrb[0].mxu0
    %4200 = vmatprep.mubr.f32.mxu0 0.0
    %4201 = vmatmul.mubr.f32.gmra.mrb[0].mxu0 %v4084
    %v4202 = vpop.f32.mrb[0].mxu0
    %v4203 = vadd.f32 0.0, %v4202
    %v4204 = vpop.f32.mrb[0].mxu0
    %4205 = vmatprep.mubr.f32.mxu0 0.0
    %4206 = vmatmul.mubr.f32.gmra.mrb[0].mxu0 %v4087
    %v4207 = vpop.f32.mrb[0].mxu0
    %v4208 = vadd.f32 0.0, %v4207
    %v4209 = vpop.f32.mrb[0].mxu0
    %4210 = vmatprep.mubr.f32.mxu0 0.0
    %4211 = vmatmul.mubr.f32.gmra.mrb[0].mxu0 %v4090
    %v4212 = vpop.f32.mrb[0].mxu0
    %v4213 = vadd.f32 0.0, %v4212
    %v4214 = vpop.f32.mrb[0].mxu0
    %4215 = vmatprep.mubr.f32.mxu0 0.0
    %4216 = vmatmul.mubr.f32.gmra.mrb[0].mxu0 %v4093
    %v4217 = vpop.f32.mrb[0].mxu0
    %v4218 = vadd.f32 0.0, %v4217
    %v4219 = vpop.f32.mrb[0].mxu0
    %4220 = vmatprep.mubr.f32.mxu0 0.0
    %4221 = vmatmul.mubr.f32.gmra.mrb[0].mxu0 %v4096
    %v4222 = vpop.f32.mrb[0].mxu0
    %v4223 = vadd.f32 0.0, %v4222
    %v4224 = vpop.f32.mrb[0].mxu0
    %4225 = vmatprep.mubr.f32.mxu0 0.0
    %4226 = vmatmul.mubr.f32.gmra.mrb[0].mxu0 %v4099
    %v4227 = vpop.f32.mrb[0].mxu0
    %v4228 = vadd.f32 0.0, %v4227
    %v4229 = vpop.f32.mrb[0].mxu0
    %4230 = vmatprep.mubr.f32.mxu0 0.0
    %4231 = vmatmul.mubr.f32.gmra.mrb[0].mxu0 %v4102
    %v4232 = vpop.f32.mrb[0].mxu0
    %v4233 = vadd.f32 0.0, %v4232
    %v4234 = vpop.f32.mrb[0].mxu0
    %4235 = vmatprep.mubr.f32.mxu0 0.0
    %4236 = vmatmul.mubr.f32.gmra.mrb[0].mxu0 %v4105
    %v4237 = vpop.f32.mrb[0].mxu0
    %v4238 = vadd.f32 0.0, %v4237
    %v4239 = vpop.f32.mrb[0].mxu0
    %4240 = vmatprep.mubr.f32.mxu0 0.0
    %4241 = vmatmul.mubr.f32.gmra.mrb[0].mxu0 %v4108
    %v4242 = vpop.f32.mrb[0].mxu0
    %v4243 = vadd.f32 0.0, %v4242
    %v4244 = vpop.f32.mrb[0].mxu0
    %4245 = vmatprep.mubr.f32.mxu0 0.0
    %4246 = vmatmul.mubr.f32.gmra.mrb[0].mxu0 %v4111
    %v4247 = vpop.f32.mrb[0].mxu0
    %v4248 = vadd.f32 0.0, %v4247
    %v4249 = vpop.f32.mrb[0].mxu0
    %4250 = vmatprep.mubr.f32.mxu0 0.0
    %4251 = vmatmul.mubr.f32.gmra.mrb[0].mxu0 %v4114
    %v4252 = vpop.f32.mrb[0].mxu0
    %v4253 = vadd.f32 0.0, %v4252
    %v4254 = vpop.f32.mrb[0].mxu0
    %4255 = vmatprep.mubr.f32.mxu0 0.0
    %4256 = vmatmul.mubr.f32.gmra.mrb[0].mxu0 %v4117
    %v4257 = vpop.f32.mrb[0].mxu0
    %v4258 = vadd.f32 0.0, %v4257
    %v4259 = vpop.f32.mrb[0].mxu0
    %4260 = vmatprep.mubr.f32.mxu0 0.0
    %4261 = vmatmul.mubr.f32.gmra.mrb[0].mxu0 %v4120
    %v4262 = vpop.f32.mrb[0].mxu0
    %v4263 = vadd.f32 0.0, %v4262
    %v4264 = vpop.f32.mrb[0].mxu0
    %4265 = vmatprep.mubr.f32.mxu0 0.0
    %4266 = vmatmul.mubr.f32.gmra.mrb[0].mxu0 %v4123
    %v4267 = vpop.f32.mrb[0].mxu0
    %v4268 = vadd.f32 0.0, %v4267
    %v4269 = vpop.f32.mrb[0].mxu0
    %4270 = vmatprep.mubr.f32.mxu0 0.0
    %4271 = vmatmul.mubr.f32.gmra.mrb[0].mxu0 %v4126
    %v4272 = vpop.f32.mrb[0].mxu0
    %v4273 = vadd.f32 0.0, %v4272
    %v4274 = vpop.f32.mrb[0].mxu0
    %4275 = vdwg.mxu0
    %v4276 = vadd.f32 %v3707, %v4198
    %v4277 = vadd.f32 %v3708, %v4203
    %v4278 = vadd.f32 %v3709, %v4208
    %v4279 = vadd.f32 %v3710, %v4213
    %v4280 = vadd.f32 %v3711, %v4218
    %v4281 = vadd.f32 %v3712, %v4223
    %v4282 = vadd.f32 %v3713, %v4228
    %v4283 = vadd.f32 %v3714, %v4233
    %v4284 = vadd.f32 %v3715, %v4238
    %v4285 = vadd.f32 %v3716, %v4243
    %v4286 = vadd.f32 %v3717, %v4248
    %v4287 = vadd.f32 %v3718, %v4253
    %v4288 = vadd.f32 %v3719, %v4258
    %v4289 = vadd.f32 %v3720, %v4263
    %v4290 = vadd.f32 %v3721, %v4268
    %v4291 = vadd.f32 %v3722, %v4273
    %s4292 = scalar_lea.vmem [#allocation3], 3584
    %v4293 = vld [vmem:[%s4292] sm:$0xff]
    %v4294 = vld [vmem:[%s4292 + $0x8] sm:$0xff]
    %v4295 = vld [vmem:[%s4292 + $0x10] sm:$0xff]
    %v4296 = vld [vmem:[%s4292 + $0x18] sm:$0xff]
    %v4297 = vld [vmem:[%s4292 + $0x20] sm:$0xff]
    %v4298 = vld [vmem:[%s4292 + $0x28] sm:$0xff]
    %v4299 = vld [vmem:[%s4292 + $0x30] sm:$0xff]
    %v4300 = vld [vmem:[%s4292 + $0x38] sm:$0xff]
    %v4301 = vld [vmem:[%s4292 + $0x40] sm:$0xff]
    %v4302 = vld [vmem:[%s4292 + $0x48] sm:$0xff]
    %v4303 = vld [vmem:[%s4292 + $0x50] sm:$0xff]
    %v4304 = vld [vmem:[%s4292 + $0x58] sm:$0xff]
    %v4305 = vld [vmem:[%s4292 + $0x60] sm:$0xff]
    %v4306 = vld [vmem:[%s4292 + $0x68] sm:$0xff]
    %v4307 = vld [vmem:[%s4292 + $0x70] sm:$0xff]
    %v4308 = vld [vmem:[%s4292 + $0x78] sm:$0xff]
    %v4309 = vld [vmem:[%s4292 + $0x80] sm:$0xff]
    %v4310 = vld [vmem:[%s4292 + $0x88] sm:$0xff]
    %v4311 = vld [vmem:[%s4292 + $0x90] sm:$0xff]
    %v4312 = vld [vmem:[%s4292 + $0x98] sm:$0xff]
    %v4313 = vld [vmem:[%s4292 + $0xa0] sm:$0xff]
    %v4314 = vld [vmem:[%s4292 + $0xa8] sm:$0xff]
    %v4315 = vld [vmem:[%s4292 + $0xb0] sm:$0xff]
    %v4316 = vld [vmem:[%s4292 + $0xb8] sm:$0xff]
    %v4317 = vld [vmem:[%s4292 + $0xc0] sm:$0xff]
    %v4318 = vld [vmem:[%s4292 + $0xc8] sm:$0xff]
    %v4319 = vld [vmem:[%s4292 + $0xd0] sm:$0xff]
    %v4320 = vld [vmem:[%s4292 + $0xd8] sm:$0xff]
    %v4321 = vld [vmem:[%s4292 + $0xe0] sm:$0xff]
    %v4322 = vld [vmem:[%s4292 + $0xe8] sm:$0xff]
    %v4323 = vld [vmem:[%s4292 + $0xf0] sm:$0xff]
    %v4324 = vld [vmem:[%s4292 + $0xf8] sm:$0xff]
    %v4325 = vld [vmem:[%s4292 + $0x100] sm:$0xff]
    %v4326 = vld [vmem:[%s4292 + $0x108] sm:$0xff]
    %v4327 = vld [vmem:[%s4292 + $0x110] sm:$0xff]
    %v4328 = vld [vmem:[%s4292 + $0x118] sm:$0xff]
    %v4329 = vld [vmem:[%s4292 + $0x120] sm:$0xff]
    %v4330 = vld [vmem:[%s4292 + $0x128] sm:$0xff]
    %v4331 = vld [vmem:[%s4292 + $0x130] sm:$0xff]
    %v4332 = vld [vmem:[%s4292 + $0x138] sm:$0xff]
    %v4333 = vld [vmem:[%s4292 + $0x140] sm:$0xff]
    %v4334 = vld [vmem:[%s4292 + $0x148] sm:$0xff]
    %v4335 = vld [vmem:[%s4292 + $0x150] sm:$0xff]
    %v4336 = vld [vmem:[%s4292 + $0x158] sm:$0xff]
    %v4337 = vld [vmem:[%s4292 + $0x160] sm:$0xff]
    %v4338 = vld [vmem:[%s4292 + $0x168] sm:$0xff]
    %v4339 = vld [vmem:[%s4292 + $0x170] sm:$0xff]
    %v4340 = vld [vmem:[%s4292 + $0x178] sm:$0xff]
    %v4341 = vld [vmem:[%s4292 + $0x180] sm:$0xff]
    %v4342 = vld [vmem:[%s4292 + $0x188] sm:$0xff]
    %v4343 = vld [vmem:[%s4292 + $0x190] sm:$0xff]
    %v4344 = vld [vmem:[%s4292 + $0x198] sm:$0xff]
    %v4345 = vld [vmem:[%s4292 + $0x1a0] sm:$0xff]
    %v4346 = vld [vmem:[%s4292 + $0x1a8] sm:$0xff]
    %v4347 = vld [vmem:[%s4292 + $0x1b0] sm:$0xff]
    %v4348 = vld [vmem:[%s4292 + $0x1b8] sm:$0xff]
    %v4349 = vld [vmem:[%s4292 + $0x1c0] sm:$0xff]
    %v4350 = vld [vmem:[%s4292 + $0x1c8] sm:$0xff]
    %v4351 = vld [vmem:[%s4292 + $0x1d0] sm:$0xff]
    %v4352 = vld [vmem:[%s4292 + $0x1d8] sm:$0xff]
    %v4353 = vld [vmem:[%s4292 + $0x1e0] sm:$0xff]
    %v4354 = vld [vmem:[%s4292 + $0x1e8] sm:$0xff]
    %v4355 = vld [vmem:[%s4292 + $0x1f0] sm:$0xff]
    %v4356 = vld [vmem:[%s4292 + $0x1f8] sm:$0xff]
    %4357 = vmatprep.subr.mxu0 0.0
    %4358 = vmatpush1.msra.mxu0 %v277
    %4359 = vmatprep.subr.mxu0 0.0
    %4360 = vmatpush1.msra.mxu0 %v278
    %4361 = vmatprep.subr.mxu0 0.0
    %4362 = vmatpush1.msra.mxu0 %v279
    %4363 = vmatprep.subr.mxu0 0.0
    %4364 = vmatpush1.msra.mxu0 %v280
    %4365 = vmatprep.subr.mxu0 0.0
    %4366 = vmatpush1.msra.mxu0 %v281
    %4367 = vmatprep.subr.mxu0 0.0
    %4368 = vmatpush1.msra.mxu0 %v282
    %4369 = vmatprep.subr.mxu0 0.0
    %4370 = vmatpush1.msra.mxu0 %v283
    %4371 = vmatprep.subr.mxu0 0.0
    %4372 = vmatpush1.msra.mxu0 %v284
    %4373 = vmatprep.subr.mxu0 0.0
    %4374 = vmatpush1.msra.mxu0 %v285
    %4375 = vmatprep.subr.mxu0 0.0
    %4376 = vmatpush1.msra.mxu0 %v286
    %4377 = vmatprep.subr.mxu0 0.0
    %4378 = vmatpush1.msra.mxu0 %v287
    %4379 = vmatprep.subr.mxu0 0.0
    %4380 = vmatpush1.msra.mxu0 %v288
    %4381 = vmatprep.subr.mxu0 0.0
    %4382 = vmatpush1.msra.mxu0 %v289
    %4383 = vmatprep.subr.mxu0 0.0
    %4384 = vmatpush1.msra.mxu0 %v290
    %4385 = vmatprep.subr.mxu0 0.0
    %4386 = vmatpush1.msra.mxu0 %v291
    %4387 = vmatprep.subr.mxu0 0.0
    %4388 = vmatpush1.msra.mxu0 %v292
    %4389 = vmatprep.subr.mxu0 0.0
    %4390 = vmatpush1.msra.mxu0 %v293
    %4391 = vmatprep.subr.mxu0 0.0
    %4392 = vmatpush1.msra.mxu0 %v294
    %4393 = vmatprep.subr.mxu0 0.0
    %4394 = vmatpush1.msra.mxu0 %v295
    %4395 = vmatprep.subr.mxu0 0.0
    %4396 = vmatpush1.msra.mxu0 %v296
    %4397 = vmatprep.subr.mxu0 0.0
    %4398 = vmatpush1.msra.mxu0 %v297
    %4399 = vmatprep.subr.mxu0 0.0
    %4400 = vmatpush1.msra.mxu0 %v298
    %4401 = vmatprep.subr.mxu0 0.0
    %4402 = vmatpush1.msra.mxu0 %v299
    %4403 = vmatprep.subr.mxu0 0.0
    %4404 = vmatpush1.msra.mxu0 %v300
    %4405 = vmatprep.subr.mxu0 0.0
    %4406 = vmatpush1.msra.mxu0 %v301
    %4407 = vmatprep.subr.mxu0 0.0
    %4408 = vmatpush1.msra.mxu0 %v302
    %4409 = vmatprep.subr.mxu0 0.0
    %4410 = vmatpush1.msra.mxu0 %v303
    %4411 = vmatprep.subr.mxu0 0.0
    %4412 = vmatpush1.msra.mxu0 %v304
    %4413 = vmatprep.subr.mxu0 0.0
    %4414 = vmatpush1.msra.mxu0 %v305
    %4415 = vmatprep.subr.mxu0 0.0
    %4416 = vmatpush1.msra.mxu0 %v306
    %4417 = vmatprep.subr.mxu0 0.0
    %4418 = vmatpush1.msra.mxu0 %v307
    %4419 = vmatprep.subr.mxu0 0.0
    %4420 = vmatpush1.msra.mxu0 %v308
    %4421 = vmatprep.mubr.f32.mxu0 %v4294
    %4422 = vmatmul.mubr.f32.gmra.mrb[0].mxu0 %v4293
    %v4423 = vpop.f32.mrb[0].mxu0
    %v4424 = vadd.f32 0.0, %v4423
    %v4425 = vpop.f32.mrb[0].mxu0
    %4426 = vmatprep.mubr.f32.mxu0 %v4298
    %4427 = vmatmul.mubr.f32.gmra.mrb[0].mxu0 %v4297
    %v4428 = vpop.f32.mrb[0].mxu0
    %v4429 = vadd.f32 0.0, %v4428
    %v4430 = vpop.f32.mrb[0].mxu0
    %4431 = vmatprep.mubr.f32.mxu0 %v4302
    %4432 = vmatmul.mubr.f32.gmra.mrb[0].mxu0 %v4301
    %v4433 = vpop.f32.mrb[0].mxu0
    %v4434 = vadd.f32 0.0, %v4433
    %v4435 = vpop.f32.mrb[0].mxu0
    %4436 = vmatprep.mubr.f32.mxu0 %v4306
    %4437 = vmatmul.mubr.f32.gmra.mrb[0].mxu0 %v4305
    %v4438 = vpop.f32.mrb[0].mxu0
    %v4439 = vadd.f32 0.0, %v4438
    %v4440 = vpop.f32.mrb[0].mxu0
    %4441 = vmatprep.mubr.f32.mxu0 %v4310
    %4442 = vmatmul.mubr.f32.gmra.mrb[0].mxu0 %v4309
    %v4443 = vpop.f32.mrb[0].mxu0
    %v4444 = vadd.f32 0.0, %v4443
    %v4445 = vpop.f32.mrb[0].mxu0
    %4446 = vmatprep.mubr.f32.mxu0 %v4314
    %4447 = vmatmul.mubr.f32.gmra.mrb[0].mxu0 %v4313
    %v4448 = vpop.f32.mrb[0].mxu0
    %v4449 = vadd.f32 0.0, %v4448
    %v4450 = vpop.f32.mrb[0].mxu0
    %4451 = vmatprep.mubr.f32.mxu0 %v4318
    %4452 = vmatmul.mubr.f32.gmra.mrb[0].mxu0 %v4317
    %v4453 = vpop.f32.mrb[0].mxu0
    %v4454 = vadd.f32 0.0, %v4453
    %v4455 = vpop.f32.mrb[0].mxu0
    %4456 = vmatprep.mubr.f32.mxu0 %v4322
    %4457 = vmatmul.mubr.f32.gmra.mrb[0].mxu0 %v4321
    %v4458 = vpop.f32.mrb[0].mxu0
    %v4459 = vadd.f32 0.0, %v4458
    %v4460 = vpop.f32.mrb[0].mxu0
    %4461 = vmatprep.mubr.f32.mxu0 %v4326
    %4462 = vmatmul.mubr.f32.gmra.mrb[0].mxu0 %v4325
    %v4463 = vpop.f32.mrb[0].mxu0
    %v4464 = vadd.f32 0.0, %v4463
    %v4465 = vpop.f32.mrb[0].mxu0
    %4466 = vmatprep.mubr.f32.mxu0 %v4330
    %4467 = vmatmul.mubr.f32.gmra.mrb[0].mxu0 %v4329
    %v4468 = vpop.f32.mrb[0].mxu0
    %v4469 = vadd.f32 0.0, %v4468
    %v4470 = vpop.f32.mrb[0].mxu0
    %4471 = vmatprep.mubr.f32.mxu0 %v4334
    %4472 = vmatmul.mubr.f32.gmra.mrb[0].mxu0 %v4333
    %v4473 = vpop.f32.mrb[0].mxu0
    %v4474 = vadd.f32 0.0, %v4473
    %v4475 = vpop.f32.mrb[0].mxu0
    %4476 = vmatprep.mubr.f32.mxu0 %v4338
    %4477 = vmatmul.mubr.f32.gmra.mrb[0].mxu0 %v4337
    %v4478 = vpop.f32.mrb[0].mxu0
    %v4479 = vadd.f32 0.0, %v4478
    %v4480 = vpop.f32.mrb[0].mxu0
    %4481 = vmatprep.mubr.f32.mxu0 %v4342
    %4482 = vmatmul.mubr.f32.gmra.mrb[0].mxu0 %v4341
    %v4483 = vpop.f32.mrb[0].mxu0
    %v4484 = vadd.f32 0.0, %v4483
    %v4485 = vpop.f32.mrb[0].mxu0
    %4486 = vmatprep.mubr.f32.mxu0 %v4346
    %4487 = vmatmul.mubr.f32.gmra.mrb[0].mxu0 %v4345
    %v4488 = vpop.f32.mrb[0].mxu0
    %v4489 = vadd.f32 0.0, %v4488
    %v4490 = vpop.f32.mrb[0].mxu0
    %4491 = vmatprep.mubr.f32.mxu0 %v4350
    %4492 = vmatmul.mubr.f32.gmra.mrb[0].mxu0 %v4349
    %v4493 = vpop.f32.mrb[0].mxu0
    %v4494 = vadd.f32 0.0, %v4493
    %v4495 = vpop.f32.mrb[0].mxu0
    %4496 = vmatprep.mubr.f32.mxu0 %v4354
    %4497 = vmatmul.mubr.f32.gmra.mrb[0].mxu0 %v4353
    %v4498 = vpop.f32.mrb[0].mxu0
    %v4499 = vadd.f32 0.0, %v4498
    %v4500 = vpop.f32.mrb[0].mxu0
    %4501 = vdwg.mxu0
    %4502 = vmatprep.subr.mxu0 0.0
    %4503 = vmatpush1.msra.mxu0 %v309
    %4504 = vmatprep.subr.mxu0 0.0
    %4505 = vmatpush1.msra.mxu0 %v310
    %4506 = vmatprep.subr.mxu0 0.0
    %4507 = vmatpush1.msra.mxu0 %v311
    %4508 = vmatprep.subr.mxu0 0.0
    %4509 = vmatpush1.msra.mxu0 %v312
    %4510 = vmatprep.subr.mxu0 0.0
    %4511 = vmatpush1.msra.mxu0 %v313
    %4512 = vmatprep.subr.mxu0 0.0
    %4513 = vmatpush1.msra.mxu0 %v314
    %4514 = vmatprep.subr.mxu0 0.0
    %4515 = vmatpush1.msra.mxu0 %v315
    %4516 = vmatprep.subr.mxu0 0.0
    %4517 = vmatpush1.msra.mxu0 %v316
    %4518 = vmatprep.subr.mxu0 0.0
    %4519 = vmatpush1.msra.mxu0 %v317
    %4520 = vmatprep.subr.mxu0 0.0
    %4521 = vmatpush1.msra.mxu0 %v318
    %4522 = vmatprep.subr.mxu0 0.0
    %4523 = vmatpush1.msra.mxu0 %v319
    %4524 = vmatprep.subr.mxu0 0.0
    %4525 = vmatpush1.msra.mxu0 %v320
    %4526 = vmatprep.subr.mxu0 0.0
    %4527 = vmatpush1.msra.mxu0 %v321
    %4528 = vmatprep.subr.mxu0 0.0
    %4529 = vmatpush1.msra.mxu0 %v322
    %4530 = vmatprep.subr.mxu0 0.0
    %4531 = vmatpush1.msra.mxu0 %v323
    %4532 = vmatprep.subr.mxu0 0.0
    %4533 = vmatpush1.msra.mxu0 %v324
    %4534 = vmatprep.subr.mxu0 0.0
    %4535 = vmatpush1.msra.mxu0 %v325
    %4536 = vmatprep.subr.mxu0 0.0
    %4537 = vmatpush1.msra.mxu0 %v326
    %4538 = vmatprep.subr.mxu0 0.0
    %4539 = vmatpush1.msra.mxu0 %v327
    %4540 = vmatprep.subr.mxu0 0.0
    %4541 = vmatpush1.msra.mxu0 %v328
    %4542 = vmatprep.subr.mxu0 0.0
    %4543 = vmatpush1.msra.mxu0 %v329
    %4544 = vmatprep.subr.mxu0 0.0
    %4545 = vmatpush1.msra.mxu0 %v330
    %4546 = vmatprep.subr.mxu0 0.0
    %4547 = vmatpush1.msra.mxu0 %v331
    %4548 = vmatprep.subr.mxu0 0.0
    %4549 = vmatpush1.msra.mxu0 %v332
    %4550 = vmatprep.subr.mxu0 0.0
    %4551 = vmatpush1.msra.mxu0 %v333
    %4552 = vmatprep.subr.mxu0 0.0
    %4553 = vmatpush1.msra.mxu0 %v334
    %4554 = vmatprep.subr.mxu0 0.0
    %4555 = vmatpush1.msra.mxu0 %v335
    %4556 = vmatprep.subr.mxu0 0.0
    %4557 = vmatpush1.msra.mxu0 %v336
    %4558 = vmatprep.subr.mxu0 0.0
    %4559 = vmatpush1.msra.mxu0 %v337
    %4560 = vmatprep.subr.mxu0 0.0
    %4561 = vmatpush1.msra.mxu0 %v338
    %4562 = vmatprep.subr.mxu0 0.0
    %4563 = vmatpush1.msra.mxu0 %v339
    %4564 = vmatprep.subr.mxu0 0.0
    %4565 = vmatpush1.msra.mxu0 %v340
    %4566 = vmatprep.mubr.f32.mxu0 %v4296
    %4567 = vmatmul.mubr.f32.gmra.mrb[0].mxu0 %v4295
    %v4568 = vpop.f32.mrb[0].mxu0
    %v4569 = vadd.f32 %v4424, %v4568
    %v4570 = vpop.f32.mrb[0].mxu0
    %4571 = vmatprep.mubr.f32.mxu0 %v4300
    %4572 = vmatmul.mubr.f32.gmra.mrb[0].mxu0 %v4299
    %v4573 = vpop.f32.mrb[0].mxu0
    %v4574 = vadd.f32 %v4429, %v4573
    %v4575 = vpop.f32.mrb[0].mxu0
    %4576 = vmatprep.mubr.f32.mxu0 %v4304
    %4577 = vmatmul.mubr.f32.gmra.mrb[0].mxu0 %v4303
    %v4578 = vpop.f32.mrb[0].mxu0
    %v4579 = vadd.f32 %v4434, %v4578
    %v4580 = vpop.f32.mrb[0].mxu0
    %4581 = vmatprep.mubr.f32.mxu0 %v4308
    %4582 = vmatmul.mubr.f32.gmra.mrb[0].mxu0 %v4307
    %v4583 = vpop.f32.mrb[0].mxu0
    %v4584 = vadd.f32 %v4439, %v4583
    %v4585 = vpop.f32.mrb[0].mxu0
    %4586 = vmatprep.mubr.f32.mxu0 %v4312
    %4587 = vmatmul.mubr.f32.gmra.mrb[0].mxu0 %v4311
    %v4588 = vpop.f32.mrb[0].mxu0
    %v4589 = vadd.f32 %v4444, %v4588
    %v4590 = vpop.f32.mrb[0].mxu0
    %4591 = vmatprep.mubr.f32.mxu0 %v4316
    %4592 = vmatmul.mubr.f32.gmra.mrb[0].mxu0 %v4315
    %v4593 = vpop.f32.mrb[0].mxu0
    %v4594 = vadd.f32 %v4449, %v4593
    %v4595 = vpop.f32.mrb[0].mxu0
    %4596 = vmatprep.mubr.f32.mxu0 %v4320
    %4597 = vmatmul.mubr.f32.gmra.mrb[0].mxu0 %v4319
    %v4598 = vpop.f32.mrb[0].mxu0
    %v4599 = vadd.f32 %v4454, %v4598
    %v4600 = vpop.f32.mrb[0].mxu0
    %4601 = vmatprep.mubr.f32.mxu0 %v4324
    %4602 = vmatmul.mubr.f32.gmra.mrb[0].mxu0 %v4323
    %v4603 = vpop.f32.mrb[0].mxu0
    %v4604 = vadd.f32 %v4459, %v4603
    %v4605 = vpop.f32.mrb[0].mxu0
    %4606 = vmatprep.mubr.f32.mxu0 %v4328
    %4607 = vmatmul.mubr.f32.gmra.mrb[0].mxu0 %v4327
    %v4608 = vpop.f32.mrb[0].mxu0
    %v4609 = vadd.f32 %v4464, %v4608
    %v4610 = vpop.f32.mrb[0].mxu0
    %4611 = vmatprep.mubr.f32.mxu0 %v4332
    %4612 = vmatmul.mubr.f32.gmra.mrb[0].mxu0 %v4331
    %v4613 = vpop.f32.mrb[0].mxu0
    %v4614 = vadd.f32 %v4469, %v4613
    %v4615 = vpop.f32.mrb[0].mxu0
    %4616 = vmatprep.mubr.f32.mxu0 %v4336
    %4617 = vmatmul.mubr.f32.gmra.mrb[0].mxu0 %v4335
    %v4618 = vpop.f32.mrb[0].mxu0
    %v4619 = vadd.f32 %v4474, %v4618
    %v4620 = vpop.f32.mrb[0].mxu0
    %4621 = vmatprep.mubr.f32.mxu0 %v4340
    %4622 = vmatmul.mubr.f32.gmra.mrb[0].mxu0 %v4339
    %v4623 = vpop.f32.mrb[0].mxu0
    %v4624 = vadd.f32 %v4479, %v4623
    %v4625 = vpop.f32.mrb[0].mxu0
    %4626 = vmatprep.mubr.f32.mxu0 %v4344
    %4627 = vmatmul.mubr.f32.gmra.mrb[0].mxu0 %v4343
    %v4628 = vpop.f32.mrb[0].mxu0
    %v4629 = vadd.f32 %v4484, %v4628
    %v4630 = vpop.f32.mrb[0].mxu0
    %4631 = vmatprep.mubr.f32.mxu0 %v4348
    %4632 = vmatmul.mubr.f32.gmra.mrb[0].mxu0 %v4347
    %v4633 = vpop.f32.mrb[0].mxu0
    %v4634 = vadd.f32 %v4489, %v4633
    %v4635 = vpop.f32.mrb[0].mxu0
    %4636 = vmatprep.mubr.f32.mxu0 %v4352
    %4637 = vmatmul.mubr.f32.gmra.mrb[0].mxu0 %v4351
    %v4638 = vpop.f32.mrb[0].mxu0
    %v4639 = vadd.f32 %v4494, %v4638
    %v4640 = vpop.f32.mrb[0].mxu0
    %4641 = vmatprep.mubr.f32.mxu0 %v4356
    %4642 = vmatmul.mubr.f32.gmra.mrb[0].mxu0 %v4355
    %v4643 = vpop.f32.mrb[0].mxu0
    %v4644 = vadd.f32 %v4499, %v4643
    %v4645 = vpop.f32.mrb[0].mxu0
    %4646 = vdwg.mxu0
    %s4647 = scalar_lea.vmem [#allocation5], 28
    %v4648 = vld [vmem:[%s4647] sm:$0xf]
    %v4650 = vsel %vm1053, %v4569, 0
    %v4653 = vsel %vm1053, %v4574, 0
    %v4656 = vsel %vm1053, %v4579, 0
    %v4659 = vsel %vm1053, %v4584, 0
    %v4662 = vsel %vm1053, %v4589, 0
    %v4665 = vsel %vm1053, %v4594, 0
    %v4668 = vsel %vm1053, %v4599, 0
    %v4671 = vsel %vm1053, %v4604, 0
    %v4674 = vsel %vm1053, %v4609, 0
    %v4677 = vsel %vm1053, %v4614, 0
    %v4680 = vsel %vm1053, %v4619, 0
    %v4683 = vsel %vm1053, %v4624, 0
    %v4686 = vsel %vm1053, %v4629, 0
    %v4689 = vsel %vm1053, %v4634, 0
    %v4692 = vsel %vm1053, %v4639, 0
    %v4695 = vsel %vm1053, %v4644, 0
    %v4698 = vsel %vm1102, %v4648, 0
    %4700 = vmatprep.subr.mxu0 0.0
    %4701 = vmatpush1.msra.mxu0 %v4698
    %4702 = vmatprep.subr.mxu0 0.0
    %4703 = vmatpush1.msra.mxu0 0.0
    %4704 = vmatprep.subr.mxu0 0.0
    %4705 = vmatpush1.msra.mxu0 0.0
    %4706 = vmatprep.subr.mxu0 0.0
    %4707 = vmatpush1.msra.mxu0 0.0
    %4708 = vmatprep.subr.mxu0 0.0
    %4709 = vmatpush1.msra.mxu0 0.0
    %4710 = vmatprep.subr.mxu0 0.0
    %4711 = vmatpush1.msra.mxu0 0.0
    %4712 = vmatprep.subr.mxu0 0.0
    %4713 = vmatpush1.msra.mxu0 0.0
    %4714 = vmatprep.subr.mxu0 0.0
    %4715 = vmatpush1.msra.mxu0 0.0
    %4716 = vmatprep.subr.mxu0 0.0
    %4717 = vmatpush1.msra.mxu0 0.0
    %4718 = vmatprep.subr.mxu0 0.0
    %4719 = vmatpush1.msra.mxu0 0.0
    %4720 = vmatprep.subr.mxu0 0.0
    %4721 = vmatpush1.msra.mxu0 0.0
    %4722 = vmatprep.subr.mxu0 0.0
    %4723 = vmatpush1.msra.mxu0 0.0
    %4724 = vmatprep.subr.mxu0 0.0
    %4725 = vmatpush1.msra.mxu0 0.0
    %4726 = vmatprep.subr.mxu0 0.0
    %4727 = vmatpush1.msra.mxu0 0.0
    %4728 = vmatprep.subr.mxu0 0.0
    %4729 = vmatpush1.msra.mxu0 0.0
    %4730 = vmatprep.subr.mxu0 0.0
    %4731 = vmatpush1.msra.mxu0 0.0
    %4732 = vmatprep.subr.mxu0 0.0
    %4733 = vmatpush1.msra.mxu0 0.0
    %4734 = vmatprep.subr.mxu0 0.0
    %4735 = vmatpush1.msra.mxu0 0.0
    %4736 = vmatprep.subr.mxu0 0.0
    %4737 = vmatpush1.msra.mxu0 0.0
    %4738 = vmatprep.subr.mxu0 0.0
    %4739 = vmatpush1.msra.mxu0 0.0
    %4740 = vmatprep.subr.mxu0 0.0
    %4741 = vmatpush1.msra.mxu0 0.0
    %4742 = vmatprep.subr.mxu0 0.0
    %4743 = vmatpush1.msra.mxu0 0.0
    %4744 = vmatprep.subr.mxu0 0.0
    %4745 = vmatpush1.msra.mxu0 0.0
    %4746 = vmatprep.subr.mxu0 0.0
    %4747 = vmatpush1.msra.mxu0 0.0
    %4748 = vmatprep.subr.mxu0 0.0
    %4749 = vmatpush1.msra.mxu0 0.0
    %4750 = vmatprep.subr.mxu0 0.0
    %4751 = vmatpush1.msra.mxu0 0.0
    %4752 = vmatprep.subr.mxu0 0.0
    %4753 = vmatpush1.msra.mxu0 0.0
    %4754 = vmatprep.subr.mxu0 0.0
    %4755 = vmatpush1.msra.mxu0 0.0
    %4756 = vmatprep.subr.mxu0 0.0
    %4757 = vmatpush1.msra.mxu0 0.0
    %4758 = vmatprep.subr.mxu0 0.0
    %4759 = vmatpush1.msra.mxu0 0.0
    %4760 = vmatprep.subr.mxu0 0.0
    %4761 = vmatpush1.msra.mxu0 0.0
    %4762 = vmatprep.subr.mxu0 0.0
    %4763 = vmatpush1.msra.mxu0 0.0
    %4764 = vmatprep.mubr.f32.mxu0 0.0
    %4765 = vmatmul.mubr.f32.gmra.mrb[0].mxu0 %v4650
    %v4766 = vpop.f32.mrb[0].mxu0
    %v4767 = vadd.f32 0.0, %v4766
    %v4768 = vpop.f32.mrb[0].mxu0
    %4769 = vmatprep.mubr.f32.mxu0 0.0
    %4770 = vmatmul.mubr.f32.gmra.mrb[0].mxu0 %v4653
    %v4771 = vpop.f32.mrb[0].mxu0
    %v4772 = vadd.f32 0.0, %v4771
    %v4773 = vpop.f32.mrb[0].mxu0
    %4774 = vmatprep.mubr.f32.mxu0 0.0
    %4775 = vmatmul.mubr.f32.gmra.mrb[0].mxu0 %v4656
    %v4776 = vpop.f32.mrb[0].mxu0
    %v4777 = vadd.f32 0.0, %v4776
    %v4778 = vpop.f32.mrb[0].mxu0
    %4779 = vmatprep.mubr.f32.mxu0 0.0
    %4780 = vmatmul.mubr.f32.gmra.mrb[0].mxu0 %v4659
    %v4781 = vpop.f32.mrb[0].mxu0
    %v4782 = vadd.f32 0.0, %v4781
    %v4783 = vpop.f32.mrb[0].mxu0
    %4784 = vmatprep.mubr.f32.mxu0 0.0
    %4785 = vmatmul.mubr.f32.gmra.mrb[0].mxu0 %v4662
    %v4786 = vpop.f32.mrb[0].mxu0
    %v4787 = vadd.f32 0.0, %v4786
    %v4788 = vpop.f32.mrb[0].mxu0
    %4789 = vmatprep.mubr.f32.mxu0 0.0
    %4790 = vmatmul.mubr.f32.gmra.mrb[0].mxu0 %v4665
    %v4791 = vpop.f32.mrb[0].mxu0
    %v4792 = vadd.f32 0.0, %v4791
    %v4793 = vpop.f32.mrb[0].mxu0
    %4794 = vmatprep.mubr.f32.mxu0 0.0
    %4795 = vmatmul.mubr.f32.gmra.mrb[0].mxu0 %v4668
    %v4796 = vpop.f32.mrb[0].mxu0
    %v4797 = vadd.f32 0.0, %v4796
    %v4798 = vpop.f32.mrb[0].mxu0
    %4799 = vmatprep.mubr.f32.mxu0 0.0
    %4800 = vmatmul.mubr.f32.gmra.mrb[0].mxu0 %v4671
    %v4801 = vpop.f32.mrb[0].mxu0
    %v4802 = vadd.f32 0.0, %v4801
    %v4803 = vpop.f32.mrb[0].mxu0
    %4804 = vmatprep.mubr.f32.mxu0 0.0
    %4805 = vmatmul.mubr.f32.gmra.mrb[0].mxu0 %v4674
    %v4806 = vpop.f32.mrb[0].mxu0
    %v4807 = vadd.f32 0.0, %v4806
    %v4808 = vpop.f32.mrb[0].mxu0
    %4809 = vmatprep.mubr.f32.mxu0 0.0
    %4810 = vmatmul.mubr.f32.gmra.mrb[0].mxu0 %v4677
    %v4811 = vpop.f32.mrb[0].mxu0
    %v4812 = vadd.f32 0.0, %v4811
    %v4813 = vpop.f32.mrb[0].mxu0
    %4814 = vmatprep.mubr.f32.mxu0 0.0
    %4815 = vmatmul.mubr.f32.gmra.mrb[0].mxu0 %v4680
    %v4816 = vpop.f32.mrb[0].mxu0
    %v4817 = vadd.f32 0.0, %v4816
    %v4818 = vpop.f32.mrb[0].mxu0
    %4819 = vmatprep.mubr.f32.mxu0 0.0
    %4820 = vmatmul.mubr.f32.gmra.mrb[0].mxu0 %v4683
    %v4821 = vpop.f32.mrb[0].mxu0
    %v4822 = vadd.f32 0.0, %v4821
    %v4823 = vpop.f32.mrb[0].mxu0
    %4824 = vmatprep.mubr.f32.mxu0 0.0
    %4825 = vmatmul.mubr.f32.gmra.mrb[0].mxu0 %v4686
    %v4826 = vpop.f32.mrb[0].mxu0
    %v4827 = vadd.f32 0.0, %v4826
    %v4828 = vpop.f32.mrb[0].mxu0
    %4829 = vmatprep.mubr.f32.mxu0 0.0
    %4830 = vmatmul.mubr.f32.gmra.mrb[0].mxu0 %v4689
    %v4831 = vpop.f32.mrb[0].mxu0
    %v4832 = vadd.f32 0.0, %v4831
    %v4833 = vpop.f32.mrb[0].mxu0
    %4834 = vmatprep.mubr.f32.mxu0 0.0
    %4835 = vmatmul.mubr.f32.gmra.mrb[0].mxu0 %v4692
    %v4836 = vpop.f32.mrb[0].mxu0
    %v4837 = vadd.f32 0.0, %v4836
    %v4838 = vpop.f32.mrb[0].mxu0
    %4839 = vmatprep.mubr.f32.mxu0 0.0
    %4840 = vmatmul.mubr.f32.gmra.mrb[0].mxu0 %v4695
    %v4841 = vpop.f32.mrb[0].mxu0
    %v4842 = vadd.f32 0.0, %v4841
    %v4843 = vpop.f32.mrb[0].mxu0
    %4844 = vdwg.mxu0
    %v4845 = vadd.f32 %v4276, %v4767
    %v4846 = vadd.f32 %v4277, %v4772
    %v4847 = vadd.f32 %v4278, %v4777
    %v4848 = vadd.f32 %v4279, %v4782
    %v4849 = vadd.f32 %v4280, %v4787
    %v4850 = vadd.f32 %v4281, %v4792
    %v4851 = vadd.f32 %v4282, %v4797
    %v4852 = vadd.f32 %v4283, %v4802
    %v4853 = vadd.f32 %v4284, %v4807
    %v4854 = vadd.f32 %v4285, %v4812
    %v4855 = vadd.f32 %v4286, %v4817
    %v4856 = vadd.f32 %v4287, %v4822
    %v4857 = vadd.f32 %v4288, %v4827
    %v4858 = vadd.f32 %v4289, %v4832
    %v4859 = vadd.f32 %v4290, %v4837
    %v4860 = vadd.f32 %v4291, %v4842
    %s4861 = scalar_lea.vmem [#allocation3], 4096
    %v4862 = vld [vmem:[%s4861] sm:$0xff]
    %v4863 = vld [vmem:[%s4861 + $0x8] sm:$0xff]
    %v4864 = vld [vmem:[%s4861 + $0x10] sm:$0xff]
    %v4865 = vld [vmem:[%s4861 + $0x18] sm:$0xff]
    %v4866 = vld [vmem:[%s4861 + $0x20] sm:$0xff]
    %v4867 = vld [vmem:[%s4861 + $0x28] sm:$0xff]
    %v4868 = vld [vmem:[%s4861 + $0x30] sm:$0xff]
    %v4869 = vld [vmem:[%s4861 + $0x38] sm:$0xff]
    %v4870 = vld [vmem:[%s4861 + $0x40] sm:$0xff]
    %v4871 = vld [vmem:[%s4861 + $0x48] sm:$0xff]
    %v4872 = vld [vmem:[%s4861 + $0x50] sm:$0xff]
    %v4873 = vld [vmem:[%s4861 + $0x58] sm:$0xff]
    %v4874 = vld [vmem:[%s4861 + $0x60] sm:$0xff]
    %v4875 = vld [vmem:[%s4861 + $0x68] sm:$0xff]
    %v4876 = vld [vmem:[%s4861 + $0x70] sm:$0xff]
    %v4877 = vld [vmem:[%s4861 + $0x78] sm:$0xff]
    %v4878 = vld [vmem:[%s4861 + $0x80] sm:$0xff]
    %v4879 = vld [vmem:[%s4861 + $0x88] sm:$0xff]
    %v4880 = vld [vmem:[%s4861 + $0x90] sm:$0xff]
    %v4881 = vld [vmem:[%s4861 + $0x98] sm:$0xff]
    %v4882 = vld [vmem:[%s4861 + $0xa0] sm:$0xff]
    %v4883 = vld [vmem:[%s4861 + $0xa8] sm:$0xff]
    %v4884 = vld [vmem:[%s4861 + $0xb0] sm:$0xff]
    %v4885 = vld [vmem:[%s4861 + $0xb8] sm:$0xff]
    %v4886 = vld [vmem:[%s4861 + $0xc0] sm:$0xff]
    %v4887 = vld [vmem:[%s4861 + $0xc8] sm:$0xff]
    %v4888 = vld [vmem:[%s4861 + $0xd0] sm:$0xff]
    %v4889 = vld [vmem:[%s4861 + $0xd8] sm:$0xff]
    %v4890 = vld [vmem:[%s4861 + $0xe0] sm:$0xff]
    %v4891 = vld [vmem:[%s4861 + $0xe8] sm:$0xff]
    %v4892 = vld [vmem:[%s4861 + $0xf0] sm:$0xff]
    %v4893 = vld [vmem:[%s4861 + $0xf8] sm:$0xff]
    %v4894 = vld [vmem:[%s4861 + $0x100] sm:$0xff]
    %v4895 = vld [vmem:[%s4861 + $0x108] sm:$0xff]
    %v4896 = vld [vmem:[%s4861 + $0x110] sm:$0xff]
    %v4897 = vld [vmem:[%s4861 + $0x118] sm:$0xff]
    %v4898 = vld [vmem:[%s4861 + $0x120] sm:$0xff]
    %v4899 = vld [vmem:[%s4861 + $0x128] sm:$0xff]
    %v4900 = vld [vmem:[%s4861 + $0x130] sm:$0xff]
    %v4901 = vld [vmem:[%s4861 + $0x138] sm:$0xff]
    %v4902 = vld [vmem:[%s4861 + $0x140] sm:$0xff]
    %v4903 = vld [vmem:[%s4861 + $0x148] sm:$0xff]
    %v4904 = vld [vmem:[%s4861 + $0x150] sm:$0xff]
    %v4905 = vld [vmem:[%s4861 + $0x158] sm:$0xff]
    %v4906 = vld [vmem:[%s4861 + $0x160] sm:$0xff]
    %v4907 = vld [vmem:[%s4861 + $0x168] sm:$0xff]
    %v4908 = vld [vmem:[%s4861 + $0x170] sm:$0xff]
    %v4909 = vld [vmem:[%s4861 + $0x178] sm:$0xff]
    %v4910 = vld [vmem:[%s4861 + $0x180] sm:$0xff]
    %v4911 = vld [vmem:[%s4861 + $0x188] sm:$0xff]
    %v4912 = vld [vmem:[%s4861 + $0x190] sm:$0xff]
    %v4913 = vld [vmem:[%s4861 + $0x198] sm:$0xff]
    %v4914 = vld [vmem:[%s4861 + $0x1a0] sm:$0xff]
    %v4915 = vld [vmem:[%s4861 + $0x1a8] sm:$0xff]
    %v4916 = vld [vmem:[%s4861 + $0x1b0] sm:$0xff]
    %v4917 = vld [vmem:[%s4861 + $0x1b8] sm:$0xff]
    %v4918 = vld [vmem:[%s4861 + $0x1c0] sm:$0xff]
    %v4919 = vld [vmem:[%s4861 + $0x1c8] sm:$0xff]
    %v4920 = vld [vmem:[%s4861 + $0x1d0] sm:$0xff]
    %v4921 = vld [vmem:[%s4861 + $0x1d8] sm:$0xff]
    %v4922 = vld [vmem:[%s4861 + $0x1e0] sm:$0xff]
    %v4923 = vld [vmem:[%s4861 + $0x1e8] sm:$0xff]
    %v4924 = vld [vmem:[%s4861 + $0x1f0] sm:$0xff]
    %v4925 = vld [vmem:[%s4861 + $0x1f8] sm:$0xff]
    %4926 = vmatprep.subr.mxu0 0.0
    %4927 = vmatpush1.msra.mxu0 %v277
    %4928 = vmatprep.subr.mxu0 0.0
    %4929 = vmatpush1.msra.mxu0 %v278
    %4930 = vmatprep.subr.mxu0 0.0
    %4931 = vmatpush1.msra.mxu0 %v279
    %4932 = vmatprep.subr.mxu0 0.0
    %4933 = vmatpush1.msra.mxu0 %v280
    %4934 = vmatprep.subr.mxu0 0.0
    %4935 = vmatpush1.msra.mxu0 %v281
    %4936 = vmatprep.subr.mxu0 0.0
    %4937 = vmatpush1.msra.mxu0 %v282
    %4938 = vmatprep.subr.mxu0 0.0
    %4939 = vmatpush1.msra.mxu0 %v283
    %4940 = vmatprep.subr.mxu0 0.0
    %4941 = vmatpush1.msra.mxu0 %v284
    %4942 = vmatprep.subr.mxu0 0.0
    %4943 = vmatpush1.msra.mxu0 %v285
    %4944 = vmatprep.subr.mxu0 0.0
    %4945 = vmatpush1.msra.mxu0 %v286
    %4946 = vmatprep.subr.mxu0 0.0
    %4947 = vmatpush1.msra.mxu0 %v287
    %4948 = vmatprep.subr.mxu0 0.0
    %4949 = vmatpush1.msra.mxu0 %v288
    %4950 = vmatprep.subr.mxu0 0.0
    %4951 = vmatpush1.msra.mxu0 %v289
    %4952 = vmatprep.subr.mxu0 0.0
    %4953 = vmatpush1.msra.mxu0 %v290
    %4954 = vmatprep.subr.mxu0 0.0
    %4955 = vmatpush1.msra.mxu0 %v291
    %4956 = vmatprep.subr.mxu0 0.0
    %4957 = vmatpush1.msra.mxu0 %v292
    %4958 = vmatprep.subr.mxu0 0.0
    %4959 = vmatpush1.msra.mxu0 %v293
    %4960 = vmatprep.subr.mxu0 0.0
    %4961 = vmatpush1.msra.mxu0 %v294
    %4962 = vmatprep.subr.mxu0 0.0
    %4963 = vmatpush1.msra.mxu0 %v295
    %4964 = vmatprep.subr.mxu0 0.0
    %4965 = vmatpush1.msra.mxu0 %v296
    %4966 = vmatprep.subr.mxu0 0.0
    %4967 = vmatpush1.msra.mxu0 %v297
    %4968 = vmatprep.subr.mxu0 0.0
    %4969 = vmatpush1.msra.mxu0 %v298
    %4970 = vmatprep.subr.mxu0 0.0
    %4971 = vmatpush1.msra.mxu0 %v299
    %4972 = vmatprep.subr.mxu0 0.0
    %4973 = vmatpush1.msra.mxu0 %v300
    %4974 = vmatprep.subr.mxu0 0.0
    %4975 = vmatpush1.msra.mxu0 %v301
    %4976 = vmatprep.subr.mxu0 0.0
    %4977 = vmatpush1.msra.mxu0 %v302
    %4978 = vmatprep.subr.mxu0 0.0
    %4979 = vmatpush1.msra.mxu0 %v303
    %4980 = vmatprep.subr.mxu0 0.0
    %4981 = vmatpush1.msra.mxu0 %v304
    %4982 = vmatprep.subr.mxu0 0.0
    %4983 = vmatpush1.msra.mxu0 %v305
    %4984 = vmatprep.subr.mxu0 0.0
    %4985 = vmatpush1.msra.mxu0 %v306
    %4986 = vmatprep.subr.mxu0 0.0
    %4987 = vmatpush1.msra.mxu0 %v307
    %4988 = vmatprep.subr.mxu0 0.0
    %4989 = vmatpush1.msra.mxu0 %v308
    %4990 = vmatprep.mubr.f32.mxu0 %v4863
    %4991 = vmatmul.mubr.f32.gmra.mrb[0].mxu0 %v4862
    %v4992 = vpop.f32.mrb[0].mxu0
    %v4993 = vadd.f32 0.0, %v4992
    %v4994 = vpop.f32.mrb[0].mxu0
    %4995 = vmatprep.mubr.f32.mxu0 %v4867
    %4996 = vmatmul.mubr.f32.gmra.mrb[0].mxu0 %v4866
    %v4997 = vpop.f32.mrb[0].mxu0
    %v4998 = vadd.f32 0.0, %v4997
    %v4999 = vpop.f32.mrb[0].mxu0
    %5000 = vmatprep.mubr.f32.mxu0 %v4871
    %5001 = vmatmul.mubr.f32.gmra.mrb[0].mxu0 %v4870
    %v5002 = vpop.f32.mrb[0].mxu0
    %v5003 = vadd.f32 0.0, %v5002
    %v5004 = vpop.f32.mrb[0].mxu0
    %5005 = vmatprep.mubr.f32.mxu0 %v4875
    %5006 = vmatmul.mubr.f32.gmra.mrb[0].mxu0 %v4874
    %v5007 = vpop.f32.mrb[0].mxu0
    %v5008 = vadd.f32 0.0, %v5007
    %v5009 = vpop.f32.mrb[0].mxu0
    %5010 = vmatprep.mubr.f32.mxu0 %v4879
    %5011 = vmatmul.mubr.f32.gmra.mrb[0].mxu0 %v4878
    %v5012 = vpop.f32.mrb[0].mxu0
    %v5013 = vadd.f32 0.0, %v5012
    %v5014 = vpop.f32.mrb[0].mxu0
    %5015 = vmatprep.mubr.f32.mxu0 %v4883
    %5016 = vmatmul.mubr.f32.gmra.mrb[0].mxu0 %v4882
    %v5017 = vpop.f32.mrb[0].mxu0
    %v5018 = vadd.f32 0.0, %v5017
    %v5019 = vpop.f32.mrb[0].mxu0
    %5020 = vmatprep.mubr.f32.mxu0 %v4887
    %5021 = vmatmul.mubr.f32.gmra.mrb[0].mxu0 %v4886
    %v5022 = vpop.f32.mrb[0].mxu0
    %v5023 = vadd.f32 0.0, %v5022
    %v5024 = vpop.f32.mrb[0].mxu0
    %5025 = vmatprep.mubr.f32.mxu0 %v4891
    %5026 = vmatmul.mubr.f32.gmra.mrb[0].mxu0 %v4890
    %v5027 = vpop.f32.mrb[0].mxu0
    %v5028 = vadd.f32 0.0, %v5027
    %v5029 = vpop.f32.mrb[0].mxu0
    %5030 = vmatprep.mubr.f32.mxu0 %v4895
    %5031 = vmatmul.mubr.f32.gmra.mrb[0].mxu0 %v4894
    %v5032 = vpop.f32.mrb[0].mxu0
    %v5033 = vadd.f32 0.0, %v5032
    %v5034 = vpop.f32.mrb[0].mxu0
    %5035 = vmatprep.mubr.f32.mxu0 %v4899
    %5036 = vmatmul.mubr.f32.gmra.mrb[0].mxu0 %v4898
    %v5037 = vpop.f32.mrb[0].mxu0
    %v5038 = vadd.f32 0.0, %v5037
    %v5039 = vpop.f32.mrb[0].mxu0
    %5040 = vmatprep.mubr.f32.mxu0 %v4903
    %5041 = vmatmul.mubr.f32.gmra.mrb[0].mxu0 %v4902
    %v5042 = vpop.f32.mrb[0].mxu0
    %v5043 = vadd.f32 0.0, %v5042
    %v5044 = vpop.f32.mrb[0].mxu0
    %5045 = vmatprep.mubr.f32.mxu0 %v4907
    %5046 = vmatmul.mubr.f32.gmra.mrb[0].mxu0 %v4906
    %v5047 = vpop.f32.mrb[0].mxu0
    %v5048 = vadd.f32 0.0, %v5047
    %v5049 = vpop.f32.mrb[0].mxu0
    %5050 = vmatprep.mubr.f32.mxu0 %v4911
    %5051 = vmatmul.mubr.f32.gmra.mrb[0].mxu0 %v4910
    %v5052 = vpop.f32.mrb[0].mxu0
    %v5053 = vadd.f32 0.0, %v5052
    %v5054 = vpop.f32.mrb[0].mxu0
    %5055 = vmatprep.mubr.f32.mxu0 %v4915
    %5056 = vmatmul.mubr.f32.gmra.mrb[0].mxu0 %v4914
    %v5057 = vpop.f32.mrb[0].mxu0
    %v5058 = vadd.f32 0.0, %v5057
    %v5059 = vpop.f32.mrb[0].mxu0
    %5060 = vmatprep.mubr.f32.mxu0 %v4919
    %5061 = vmatmul.mubr.f32.gmra.mrb[0].mxu0 %v4918
    %v5062 = vpop.f32.mrb[0].mxu0
    %v5063 = vadd.f32 0.0, %v5062
    %v5064 = vpop.f32.mrb[0].mxu0
    %5065 = vmatprep.mubr.f32.mxu0 %v4923
    %5066 = vmatmul.mubr.f32.gmra.mrb[0].mxu0 %v4922
    %v5067 = vpop.f32.mrb[0].mxu0
    %v5068 = vadd.f32 0.0, %v5067
    %v5069 = vpop.f32.mrb[0].mxu0
    %5070 = vdwg.mxu0
    %5071 = vmatprep.subr.mxu0 0.0
    %5072 = vmatpush1.msra.mxu0 %v309
    %5073 = vmatprep.subr.mxu0 0.0
    %5074 = vmatpush1.msra.mxu0 %v310
    %5075 = vmatprep.subr.mxu0 0.0
    %5076 = vmatpush1.msra.mxu0 %v311
    %5077 = vmatprep.subr.mxu0 0.0
    %5078 = vmatpush1.msra.mxu0 %v312
    %5079 = vmatprep.subr.mxu0 0.0
    %5080 = vmatpush1.msra.mxu0 %v313
    %5081 = vmatprep.subr.mxu0 0.0
    %5082 = vmatpush1.msra.mxu0 %v314
    %5083 = vmatprep.subr.mxu0 0.0
    %5084 = vmatpush1.msra.mxu0 %v315
    %5085 = vmatprep.subr.mxu0 0.0
    %5086 = vmatpush1.msra.mxu0 %v316
    %5087 = vmatprep.subr.mxu0 0.0
    %5088 = vmatpush1.msra.mxu0 %v317
    %5089 = vmatprep.subr.mxu0 0.0
    %5090 = vmatpush1.msra.mxu0 %v318
    %5091 = vmatprep.subr.mxu0 0.0
    %5092 = vmatpush1.msra.mxu0 %v319
    %5093 = vmatprep.subr.mxu0 0.0
    %5094 = vmatpush1.msra.mxu0 %v320
    %5095 = vmatprep.subr.mxu0 0.0
    %5096 = vmatpush1.msra.mxu0 %v321
    %5097 = vmatprep.subr.mxu0 0.0
    %5098 = vmatpush1.msra.mxu0 %v322
    %5099 = vmatprep.subr.mxu0 0.0
    %5100 = vmatpush1.msra.mxu0 %v323
    %5101 = vmatprep.subr.mxu0 0.0
    %5102 = vmatpush1.msra.mxu0 %v324
    %5103 = vmatprep.subr.mxu0 0.0
    %5104 = vmatpush1.msra.mxu0 %v325
    %5105 = vmatprep.subr.mxu0 0.0
    %5106 = vmatpush1.msra.mxu0 %v326
    %5107 = vmatprep.subr.mxu0 0.0
    %5108 = vmatpush1.msra.mxu0 %v327
    %5109 = vmatprep.subr.mxu0 0.0
    %5110 = vmatpush1.msra.mxu0 %v328
    %5111 = vmatprep.subr.mxu0 0.0
    %5112 = vmatpush1.msra.mxu0 %v329
    %5113 = vmatprep.subr.mxu0 0.0
    %5114 = vmatpush1.msra.mxu0 %v330
    %5115 = vmatprep.subr.mxu0 0.0
    %5116 = vmatpush1.msra.mxu0 %v331
    %5117 = vmatprep.subr.mxu0 0.0
    %5118 = vmatpush1.msra.mxu0 %v332
    %5119 = vmatprep.subr.mxu0 0.0
    %5120 = vmatpush1.msra.mxu0 %v333
    %5121 = vmatprep.subr.mxu0 0.0
    %5122 = vmatpush1.msra.mxu0 %v334
    %5123 = vmatprep.subr.mxu0 0.0
    %5124 = vmatpush1.msra.mxu0 %v335
    %5125 = vmatprep.subr.mxu0 0.0
    %5126 = vmatpush1.msra.mxu0 %v336
    %5127 = vmatprep.subr.mxu0 0.0
    %5128 = vmatpush1.msra.mxu0 %v337
    %5129 = vmatprep.subr.mxu0 0.0
    %5130 = vmatpush1.msra.mxu0 %v338
    %5131 = vmatprep.subr.mxu0 0.0
    %5132 = vmatpush1.msra.mxu0 %v339
    %5133 = vmatprep.subr.mxu0 0.0
    %5134 = vmatpush1.msra.mxu0 %v340
    %5135 = vmatprep.mubr.f32.mxu0 %v4865
    %5136 = vmatmul.mubr.f32.gmra.mrb[0].mxu0 %v4864
    %v5137 = vpop.f32.mrb[0].mxu0
    %v5138 = vadd.f32 %v4993, %v5137
    %v5139 = vpop.f32.mrb[0].mxu0
    %5140 = vmatprep.mubr.f32.mxu0 %v4869
    %5141 = vmatmul.mubr.f32.gmra.mrb[0].mxu0 %v4868
    %v5142 = vpop.f32.mrb[0].mxu0
    %v5143 = vadd.f32 %v4998, %v5142
    %v5144 = vpop.f32.mrb[0].mxu0
    %5145 = vmatprep.mubr.f32.mxu0 %v4873
    %5146 = vmatmul.mubr.f32.gmra.mrb[0].mxu0 %v4872
    %v5147 = vpop.f32.mrb[0].mxu0
    %v5148 = vadd.f32 %v5003, %v5147
    %v5149 = vpop.f32.mrb[0].mxu0
    %5150 = vmatprep.mubr.f32.mxu0 %v4877
    %5151 = vmatmul.mubr.f32.gmra.mrb[0].mxu0 %v4876
    %v5152 = vpop.f32.mrb[0].mxu0
    %v5153 = vadd.f32 %v5008, %v5152
    %v5154 = vpop.f32.mrb[0].mxu0
    %5155 = vmatprep.mubr.f32.mxu0 %v4881
    %5156 = vmatmul.mubr.f32.gmra.mrb[0].mxu0 %v4880
    %v5157 = vpop.f32.mrb[0].mxu0
    %v5158 = vadd.f32 %v5013, %v5157
    %v5159 = vpop.f32.mrb[0].mxu0
    %5160 = vmatprep.mubr.f32.mxu0 %v4885
    %5161 = vmatmul.mubr.f32.gmra.mrb[0].mxu0 %v4884
    %v5162 = vpop.f32.mrb[0].mxu0
    %v5163 = vadd.f32 %v5018, %v5162
    %v5164 = vpop.f32.mrb[0].mxu0
    %5165 = vmatprep.mubr.f32.mxu0 %v4889
    %5166 = vmatmul.mubr.f32.gmra.mrb[0].mxu0 %v4888
    %v5167 = vpop.f32.mrb[0].mxu0
    %v5168 = vadd.f32 %v5023, %v5167
    %v5169 = vpop.f32.mrb[0].mxu0
    %5170 = vmatprep.mubr.f32.mxu0 %v4893
    %5171 = vmatmul.mubr.f32.gmra.mrb[0].mxu0 %v4892
    %v5172 = vpop.f32.mrb[0].mxu0
    %v5173 = vadd.f32 %v5028, %v5172
    %v5174 = vpop.f32.mrb[0].mxu0
    %5175 = vmatprep.mubr.f32.mxu0 %v4897
    %5176 = vmatmul.mubr.f32.gmra.mrb[0].mxu0 %v4896
    %v5177 = vpop.f32.mrb[0].mxu0
    %v5178 = vadd.f32 %v5033, %v5177
    %v5179 = vpop.f32.mrb[0].mxu0
    %5180 = vmatprep.mubr.f32.mxu0 %v4901
    %5181 = vmatmul.mubr.f32.gmra.mrb[0].mxu0 %v4900
    %v5182 = vpop.f32.mrb[0].mxu0
    %v5183 = vadd.f32 %v5038, %v5182
    %v5184 = vpop.f32.mrb[0].mxu0
    %5185 = vmatprep.mubr.f32.mxu0 %v4905
    %5186 = vmatmul.mubr.f32.gmra.mrb[0].mxu0 %v4904
    %v5187 = vpop.f32.mrb[0].mxu0
    %v5188 = vadd.f32 %v5043, %v5187
    %v5189 = vpop.f32.mrb[0].mxu0
    %5190 = vmatprep.mubr.f32.mxu0 %v4909
    %5191 = vmatmul.mubr.f32.gmra.mrb[0].mxu0 %v4908
    %v5192 = vpop.f32.mrb[0].mxu0
    %v5193 = vadd.f32 %v5048, %v5192
    %v5194 = vpop.f32.mrb[0].mxu0
    %5195 = vmatprep.mubr.f32.mxu0 %v4913
    %5196 = vmatmul.mubr.f32.gmra.mrb[0].mxu0 %v4912
    %v5197 = vpop.f32.mrb[0].mxu0
    %v5198 = vadd.f32 %v5053, %v5197
    %v5199 = vpop.f32.mrb[0].mxu0
    %5200 = vmatprep.mubr.f32.mxu0 %v4917
    %5201 = vmatmul.mubr.f32.gmra.mrb[0].mxu0 %v4916
    %v5202 = vpop.f32.mrb[0].mxu0
    %v5203 = vadd.f32 %v5058, %v5202
    %v5204 = vpop.f32.mrb[0].mxu0
    %5205 = vmatprep.mubr.f32.mxu0 %v4921
    %5206 = vmatmul.mubr.f32.gmra.mrb[0].mxu0 %v4920
    %v5207 = vpop.f32.mrb[0].mxu0
    %v5208 = vadd.f32 %v5063, %v5207
    %v5209 = vpop.f32.mrb[0].mxu0
    %5210 = vmatprep.mubr.f32.mxu0 %v4925
    %5211 = vmatmul.mubr.f32.gmra.mrb[0].mxu0 %v4924
    %v5212 = vpop.f32.mrb[0].mxu0
    %v5213 = vadd.f32 %v5068, %v5212
    %v5214 = vpop.f32.mrb[0].mxu0
    %5215 = vdwg.mxu0
    %s5216 = scalar_lea.vmem [#allocation5], 32
    %v5217 = vld [vmem:[%s5216] sm:$0xf]
    %v5219 = vsel %vm1053, %v5138, 0
    %v5222 = vsel %vm1053, %v5143, 0
    %v5225 = vsel %vm1053, %v5148, 0
    %v5228 = vsel %vm1053, %v5153, 0
    %v5231 = vsel %vm1053, %v5158, 0
    %v5234 = vsel %vm1053, %v5163, 0
    %v5237 = vsel %vm1053, %v5168, 0
    %v5240 = vsel %vm1053, %v5173, 0
    %v5243 = vsel %vm1053, %v5178, 0
    %v5246 = vsel %vm1053, %v5183, 0
    %v5249 = vsel %vm1053, %v5188, 0
    %v5252 = vsel %vm1053, %v5193, 0
    %v5255 = vsel %vm1053, %v5198, 0
    %v5258 = vsel %vm1053, %v5203, 0
    %v5261 = vsel %vm1053, %v5208, 0
    %v5264 = vsel %vm1053, %v5213, 0
    %v5267 = vsel %vm1102, %v5217, 0
    %5269 = vmatprep.subr.mxu0 0.0
    %5270 = vmatpush1.msra.mxu0 %v5267
    %5271 = vmatprep.subr.mxu0 0.0
    %5272 = vmatpush1.msra.mxu0 0.0
    %5273 = vmatprep.subr.mxu0 0.0
    %5274 = vmatpush1.msra.mxu0 0.0
    %5275 = vmatprep.subr.mxu0 0.0
    %5276 = vmatpush1.msra.mxu0 0.0
    %5277 = vmatprep.subr.mxu0 0.0
    %5278 = vmatpush1.msra.mxu0 0.0
    %5279 = vmatprep.subr.mxu0 0.0
    %5280 = vmatpush1.msra.mxu0 0.0
    %5281 = vmatprep.subr.mxu0 0.0
    %5282 = vmatpush1.msra.mxu0 0.0
    %5283 = vmatprep.subr.mxu0 0.0
    %5284 = vmatpush1.msra.mxu0 0.0
    %5285 = vmatprep.subr.mxu0 0.0
    %5286 = vmatpush1.msra.mxu0 0.0
    %5287 = vmatprep.subr.mxu0 0.0
    %5288 = vmatpush1.msra.mxu0 0.0
    %5289 = vmatprep.subr.mxu0 0.0
    %5290 = vmatpush1.msra.mxu0 0.0
    %5291 = vmatprep.subr.mxu0 0.0
    %5292 = vmatpush1.msra.mxu0 0.0
    %5293 = vmatprep.subr.mxu0 0.0
    %5294 = vmatpush1.msra.mxu0 0.0
    %5295 = vmatprep.subr.mxu0 0.0
    %5296 = vmatpush1.msra.mxu0 0.0
    %5297 = vmatprep.subr.mxu0 0.0
    %5298 = vmatpush1.msra.mxu0 0.0
    %5299 = vmatprep.subr.mxu0 0.0
    %5300 = vmatpush1.msra.mxu0 0.0
    %5301 = vmatprep.subr.mxu0 0.0
    %5302 = vmatpush1.msra.mxu0 0.0
    %5303 = vmatprep.subr.mxu0 0.0
    %5304 = vmatpush1.msra.mxu0 0.0
    %5305 = vmatprep.subr.mxu0 0.0
    %5306 = vmatpush1.msra.mxu0 0.0
    %5307 = vmatprep.subr.mxu0 0.0
    %5308 = vmatpush1.msra.mxu0 0.0
    %5309 = vmatprep.subr.mxu0 0.0
    %5310 = vmatpush1.msra.mxu0 0.0
    %5311 = vmatprep.subr.mxu0 0.0
    %5312 = vmatpush1.msra.mxu0 0.0
    %5313 = vmatprep.subr.mxu0 0.0
    %5314 = vmatpush1.msra.mxu0 0.0
    %5315 = vmatprep.subr.mxu0 0.0
    %5316 = vmatpush1.msra.mxu0 0.0
    %5317 = vmatprep.subr.mxu0 0.0
    %5318 = vmatpush1.msra.mxu0 0.0
    %5319 = vmatprep.subr.mxu0 0.0
    %5320 = vmatpush1.msra.mxu0 0.0
    %5321 = vmatprep.subr.mxu0 0.0
    %5322 = vmatpush1.msra.mxu0 0.0
    %5323 = vmatprep.subr.mxu0 0.0
    %5324 = vmatpush1.msra.mxu0 0.0
    %5325 = vmatprep.subr.mxu0 0.0
    %5326 = vmatpush1.msra.mxu0 0.0
    %5327 = vmatprep.subr.mxu0 0.0
    %5328 = vmatpush1.msra.mxu0 0.0
    %5329 = vmatprep.subr.mxu0 0.0
    %5330 = vmatpush1.msra.mxu0 0.0
    %5331 = vmatprep.subr.mxu0 0.0
    %5332 = vmatpush1.msra.mxu0 0.0
    %5333 = vmatprep.mubr.f32.mxu0 0.0
    %5334 = vmatmul.mubr.f32.gmra.mrb[0].mxu0 %v5219
    %v5335 = vpop.f32.mrb[0].mxu0
    %v5336 = vadd.f32 0.0, %v5335
    %v5337 = vpop.f32.mrb[0].mxu0
    %5338 = vmatprep.mubr.f32.mxu0 0.0
    %5339 = vmatmul.mubr.f32.gmra.mrb[0].mxu0 %v5222
    %v5340 = vpop.f32.mrb[0].mxu0
    %v5341 = vadd.f32 0.0, %v5340
    %v5342 = vpop.f32.mrb[0].mxu0
    %5343 = vmatprep.mubr.f32.mxu0 0.0
    %5344 = vmatmul.mubr.f32.gmra.mrb[0].mxu0 %v5225
    %v5345 = vpop.f32.mrb[0].mxu0
    %v5346 = vadd.f32 0.0, %v5345
    %v5347 = vpop.f32.mrb[0].mxu0
    %5348 = vmatprep.mubr.f32.mxu0 0.0
    %5349 = vmatmul.mubr.f32.gmra.mrb[0].mxu0 %v5228
    %v5350 = vpop.f32.mrb[0].mxu0
    %v5351 = vadd.f32 0.0, %v5350
    %v5352 = vpop.f32.mrb[0].mxu0
    %5353 = vmatprep.mubr.f32.mxu0 0.0
    %5354 = vmatmul.mubr.f32.gmra.mrb[0].mxu0 %v5231
    %v5355 = vpop.f32.mrb[0].mxu0
    %v5356 = vadd.f32 0.0, %v5355
    %v5357 = vpop.f32.mrb[0].mxu0
    %5358 = vmatprep.mubr.f32.mxu0 0.0
    %5359 = vmatmul.mubr.f32.gmra.mrb[0].mxu0 %v5234
    %v5360 = vpop.f32.mrb[0].mxu0
    %v5361 = vadd.f32 0.0, %v5360
    %v5362 = vpop.f32.mrb[0].mxu0
    %5363 = vmatprep.mubr.f32.mxu0 0.0
    %5364 = vmatmul.mubr.f32.gmra.mrb[0].mxu0 %v5237
    %v5365 = vpop.f32.mrb[0].mxu0
    %v5366 = vadd.f32 0.0, %v5365
    %v5367 = vpop.f32.mrb[0].mxu0
    %5368 = vmatprep.mubr.f32.mxu0 0.0
    %5369 = vmatmul.mubr.f32.gmra.mrb[0].mxu0 %v5240
    %v5370 = vpop.f32.mrb[0].mxu0
    %v5371 = vadd.f32 0.0, %v5370
    %v5372 = vpop.f32.mrb[0].mxu0
    %5373 = vmatprep.mubr.f32.mxu0 0.0
    %5374 = vmatmul.mubr.f32.gmra.mrb[0].mxu0 %v5243
    %v5375 = vpop.f32.mrb[0].mxu0
    %v5376 = vadd.f32 0.0, %v5375
    %v5377 = vpop.f32.mrb[0].mxu0
    %5378 = vmatprep.mubr.f32.mxu0 0.0
    %5379 = vmatmul.mubr.f32.gmra.mrb[0].mxu0 %v5246
    %v5380 = vpop.f32.mrb[0].mxu0
    %v5381 = vadd.f32 0.0, %v5380
    %v5382 = vpop.f32.mrb[0].mxu0
    %5383 = vmatprep.mubr.f32.mxu0 0.0
    %5384 = vmatmul.mubr.f32.gmra.mrb[0].mxu0 %v5249
    %v5385 = vpop.f32.mrb[0].mxu0
    %v5386 = vadd.f32 0.0, %v5385
    %v5387 = vpop.f32.mrb[0].mxu0
    %5388 = vmatprep.mubr.f32.mxu0 0.0
    %5389 = vmatmul.mubr.f32.gmra.mrb[0].mxu0 %v5252
    %v5390 = vpop.f32.mrb[0].mxu0
    %v5391 = vadd.f32 0.0, %v5390
    %v5392 = vpop.f32.mrb[0].mxu0
    %5393 = vmatprep.mubr.f32.mxu0 0.0
    %5394 = vmatmul.mubr.f32.gmra.mrb[0].mxu0 %v5255
    %v5395 = vpop.f32.mrb[0].mxu0
    %v5396 = vadd.f32 0.0, %v5395
    %v5397 = vpop.f32.mrb[0].mxu0
    %5398 = vmatprep.mubr.f32.mxu0 0.0
    %5399 = vmatmul.mubr.f32.gmra.mrb[0].mxu0 %v5258
    %v5400 = vpop.f32.mrb[0].mxu0
    %v5401 = vadd.f32 0.0, %v5400
    %v5402 = vpop.f32.mrb[0].mxu0
    %5403 = vmatprep.mubr.f32.mxu0 0.0
    %5404 = vmatmul.mubr.f32.gmra.mrb[0].mxu0 %v5261
    %v5405 = vpop.f32.mrb[0].mxu0
    %v5406 = vadd.f32 0.0, %v5405
    %v5407 = vpop.f32.mrb[0].mxu0
    %5408 = vmatprep.mubr.f32.mxu0 0.0
    %5409 = vmatmul.mubr.f32.gmra.mrb[0].mxu0 %v5264
    %v5410 = vpop.f32.mrb[0].mxu0
    %v5411 = vadd.f32 0.0, %v5410
    %v5412 = vpop.f32.mrb[0].mxu0
    %5413 = vdwg.mxu0
    %v5414 = vadd.f32 %v4845, %v5336
    %v5415 = vadd.f32 %v4846, %v5341
    %v5416 = vadd.f32 %v4847, %v5346
    %v5417 = vadd.f32 %v4848, %v5351
    %v5418 = vadd.f32 %v4849, %v5356
    %v5419 = vadd.f32 %v4850, %v5361
    %v5420 = vadd.f32 %v4851, %v5366
    %v5421 = vadd.f32 %v4852, %v5371
    %v5422 = vadd.f32 %v4853, %v5376
    %v5423 = vadd.f32 %v4854, %v5381
    %v5424 = vadd.f32 %v4855, %v5386
    %v5425 = vadd.f32 %v4856, %v5391
    %v5426 = vadd.f32 %v4857, %v5396
    %v5427 = vadd.f32 %v4858, %v5401
    %v5428 = vadd.f32 %v4859, %v5406
    %v5429 = vadd.f32 %v4860, %v5411
    %v5430 = vld [vmem:[#allocation7] sm:$0x1]
    %v5432 = vlaneseq
    %v5433 = vshrl.u32 %v5432, 7
    %v5434 = vsub.s32 0, %v5433
    %v5435 = vrot.slane %v5430, %v5434
    %v5437 = vadd.f32 %v5414, %v5435
    %v5438 = vadd.f32 %v5415, %v5435
    %v5439 = vadd.f32 %v5416, %v5435
    %v5440 = vadd.f32 %v5417, %v5435
    %v5441 = vadd.f32 %v5418, %v5435
    %v5442 = vadd.f32 %v5419, %v5435
    %v5443 = vadd.f32 %v5420, %v5435
    %v5444 = vadd.f32 %v5421, %v5435
    %v5445 = vadd.f32 %v5422, %v5435
    %v5446 = vadd.f32 %v5423, %v5435
    %v5447 = vadd.f32 %v5424, %v5435
    %v5448 = vadd.f32 %v5425, %v5435
    %v5449 = vadd.f32 %v5426, %v5435
    %v5450 = vadd.f32 %v5427, %v5435
    %v5451 = vadd.f32 %v5428, %v5435
    %v5452 = vadd.f32 %v5429, %v5435
    %vm5453 = vcmp.ge.f32.partialorder %v5437, 0.0
    %vm5454 = vcmp.ge.f32.partialorder %v5438, 0.0
    %vm5455 = vcmp.ge.f32.partialorder %v5439, 0.0
    %vm5456 = vcmp.ge.f32.partialorder %v5440, 0.0
    %vm5457 = vcmp.ge.f32.partialorder %v5441, 0.0
    %vm5458 = vcmp.ge.f32.partialorder %v5442, 0.0
    %vm5459 = vcmp.ge.f32.partialorder %v5443, 0.0
    %vm5460 = vcmp.ge.f32.partialorder %v5444, 0.0
    %vm5461 = vcmp.ge.f32.partialorder %v5445, 0.0
    %vm5462 = vcmp.ge.f32.partialorder %v5446, 0.0
    %vm5463 = vcmp.ge.f32.partialorder %v5447, 0.0
    %vm5464 = vcmp.ge.f32.partialorder %v5448, 0.0
    %vm5465 = vcmp.ge.f32.partialorder %v5449, 0.0
    %vm5466 = vcmp.ge.f32.partialorder %v5450, 0.0
    %vm5467 = vcmp.ge.f32.partialorder %v5451, 0.0
    %vm5468 = vcmp.ge.f32.partialorder %v5452, 0.0
    %v5469 = vmul.f32 %v5437, 0.2
    %v5470 = vmul.f32 %v5438, 0.2
    %v5471 = vmul.f32 %v5439, 0.2
    %v5472 = vmul.f32 %v5440, 0.2
    %v5473 = vmul.f32 %v5441, 0.2
    %v5474 = vmul.f32 %v5442, 0.2
    %v5475 = vmul.f32 %v5443, 0.2
    %v5476 = vmul.f32 %v5444, 0.2
    %v5477 = vmul.f32 %v5445, 0.2
    %v5478 = vmul.f32 %v5446, 0.2
    %v5479 = vmul.f32 %v5447, 0.2
    %v5480 = vmul.f32 %v5448, 0.2
    %v5481 = vmul.f32 %v5449, 0.2
    %v5482 = vmul.f32 %v5450, 0.2
    %v5483 = vmul.f32 %v5451, 0.2
    %v5484 = vmul.f32 %v5452, 0.2
    %v5485 = vsel %vm5453, %v5437, %v5469
    %v5486 = vsel %vm5454, %v5438, %v5470
    %v5487 = vsel %vm5455, %v5439, %v5471
    %v5488 = vsel %vm5456, %v5440, %v5472
    %v5489 = vsel %vm5457, %v5441, %v5473
    %v5490 = vsel %vm5458, %v5442, %v5474
    %v5491 = vsel %vm5459, %v5443, %v5475
    %v5492 = vsel %vm5460, %v5444, %v5476
    %v5493 = vsel %vm5461, %v5445, %v5477
    %v5494 = vsel %vm5462, %v5446, %v5478
    %v5495 = vsel %vm5463, %v5447, %v5479
    %v5496 = vsel %vm5464, %v5448, %v5480
    %v5497 = vsel %vm5465, %v5449, %v5481
    %v5498 = vsel %vm5466, %v5450, %v5482
    %v5499 = vsel %vm5467, %v5451, %v5483
    %v5500 = vsel %vm5468, %v5452, %v5484
    %v5501 = vld [vmem:[#allocation8] sm:$0x1]
    %v5503 = vlaneseq
    %v5504 = vshrl.u32 %v5503, 7
    %v5505 = vsub.s32 0, %v5504
    %v5506 = vrot.slane %v5501, %v5505
    %v5508 = vadd.f32 %v5485, %v5506
    %v5509 = vadd.f32 %v5486, %v5506
    %v5510 = vadd.f32 %v5487, %v5506
    %v5511 = vadd.f32 %v5488, %v5506
    %v5512 = vadd.f32 %v5489, %v5506
    %v5513 = vadd.f32 %v5490, %v5506
    %v5514 = vadd.f32 %v5491, %v5506
    %v5515 = vadd.f32 %v5492, %v5506
    %v5516 = vadd.f32 %v5493, %v5506
    %v5517 = vadd.f32 %v5494, %v5506
    %v5518 = vadd.f32 %v5495, %v5506
    %v5519 = vadd.f32 %v5496, %v5506
    %v5520 = vadd.f32 %v5497, %v5506
    %v5521 = vadd.f32 %v5498, %v5506
    %v5522 = vadd.f32 %v5499, %v5506
    %v5523 = vadd.f32 %v5500, %v5506
    %v5524 = vld [vmem:[#allocation10] sm:$0xff]
    %v5525 = vld [vmem:[#allocation10 + $0x8] sm:$0xff]
    %v5526 = vld [vmem:[#allocation10 + $0x10] sm:$0xff]
    %v5527 = vld [vmem:[#allocation10 + $0x18] sm:$0xff]
    %5528 = vmatprep.subr.mxu0 0.0
    %5529 = vmatpush1.msra.mxu0 %v5508
    %5530 = vmatprep.subr.mxu0 0.0
    %5531 = vmatpush1.msra.mxu0 %v5509
    %5532 = vmatprep.subr.mxu0 0.0
    %5533 = vmatpush1.msra.mxu0 %v5510
    %5534 = vmatprep.subr.mxu0 0.0
    %5535 = vmatpush1.msra.mxu0 %v5511
    %5536 = vmatprep.subr.mxu0 0.0
    %5537 = vmatpush1.msra.mxu0 %v5512
    %5538 = vmatprep.subr.mxu0 0.0
    %5539 = vmatpush1.msra.mxu0 %v5513
    %5540 = vmatprep.subr.mxu0 0.0
    %5541 = vmatpush1.msra.mxu0 %v5514
    %5542 = vmatprep.subr.mxu0 0.0
    %5543 = vmatpush1.msra.mxu0 %v5515
    %5544 = vmatprep.subr.mxu0 0.0
    %5545 = vmatpush1.msra.mxu0 %v5516
    %5546 = vmatprep.subr.mxu0 0.0
    %5547 = vmatpush1.msra.mxu0 %v5517
    %5548 = vmatprep.subr.mxu0 0.0
    %5549 = vmatpush1.msra.mxu0 %v5518
    %5550 = vmatprep.subr.mxu0 0.0
    %5551 = vmatpush1.msra.mxu0 %v5519
    %5552 = vmatprep.subr.mxu0 0.0
    %5553 = vmatpush1.msra.mxu0 %v5520
    %5554 = vmatprep.subr.mxu0 0.0
    %5555 = vmatpush1.msra.mxu0 %v5521
    %5556 = vmatprep.subr.mxu0 0.0
    %5557 = vmatpush1.msra.mxu0 %v5522
    %5558 = vmatprep.subr.mxu0 0.0
    %5559 = vmatpush1.msra.mxu0 %v5523
    %5560 = vmatprep.subr.mxu0 0.0
    %5561 = vmatpush1.msra.mxu0 0.0
    %5562 = vmatprep.subr.mxu0 0.0
    %5563 = vmatpush1.msra.mxu0 0.0
    %5564 = vmatprep.subr.mxu0 0.0
    %5565 = vmatpush1.msra.mxu0 0.0
    %5566 = vmatprep.subr.mxu0 0.0
    %5567 = vmatpush1.msra.mxu0 0.0
    %5568 = vmatprep.subr.mxu0 0.0
    %5569 = vmatpush1.msra.mxu0 0.0
    %5570 = vmatprep.subr.mxu0 0.0
    %5571 = vmatpush1.msra.mxu0 0.0
    %5572 = vmatprep.subr.mxu0 0.0
    %5573 = vmatpush1.msra.mxu0 0.0
    %5574 = vmatprep.subr.mxu0 0.0
    %5575 = vmatpush1.msra.mxu0 0.0
    %5576 = vmatprep.subr.mxu0 0.0
    %5577 = vmatpush1.msra.mxu0 0.0
    %5578 = vmatprep.subr.mxu0 0.0
    %5579 = vmatpush1.msra.mxu0 0.0
    %5580 = vmatprep.subr.mxu0 0.0
    %5581 = vmatpush1.msra.mxu0 0.0
    %5582 = vmatprep.subr.mxu0 0.0
    %5583 = vmatpush1.msra.mxu0 0.0
    %5584 = vmatprep.subr.mxu0 0.0
    %5585 = vmatpush1.msra.mxu0 0.0
    %5586 = vmatprep.subr.mxu0 0.0
    %5587 = vmatpush1.msra.mxu0 0.0
    %5588 = vmatprep.subr.mxu0 0.0
    %5589 = vmatpush1.msra.mxu0 0.0
    %5590 = vmatprep.subr.mxu0 0.0
    %5591 = vmatpush1.msra.mxu0 0.0
    %5592 = vmatprep.mubr.f32.mxu0 0.0
    %5593 = vmatmul.mubr.f32.gmra.mrb[0].mxu0 %v5524
    %v5594 = vpop.f32.mrb[0].mxu0
    %v5595 = vadd.f32 0.0, %v5594
    %v5596 = vpop.f32.mrb[0].mxu0
    %5597 = vmatprep.mubr.f32.mxu0 0.0
    %5598 = vmatmul.mubr.f32.gmra.mrb[0].mxu0 %v5525
    %v5599 = vpop.f32.mrb[0].mxu0
    %v5600 = vadd.f32 0.0, %v5599
    %v5601 = vpop.f32.mrb[0].mxu0
    %5602 = vmatprep.mubr.f32.mxu0 0.0
    %5603 = vmatmul.mubr.f32.gmra.mrb[0].mxu0 %v5526
    %v5604 = vpop.f32.mrb[0].mxu0
    %v5605 = vadd.f32 0.0, %v5604
    %v5606 = vpop.f32.mrb[0].mxu0
    %5607 = vmatprep.mubr.f32.mxu0 0.0
    %5608 = vmatmul.mubr.f32.gmra.mrb[0].mxu0 %v5527
    %v5609 = vpop.f32.mrb[0].mxu0
    %v5610 = vadd.f32 0.0, %v5609
    %v5611 = vpop.f32.mrb[0].mxu0
    %5612 = vdwg.mxu0
    %v5613 = vld [vmem:[#allocation11] sm:$0xff]
    %v5614 = vld [vmem:[#allocation11 + $0x8] sm:$0xff]
    %s5615 = scalar_lea.vmem [#allocation10], 32
    %v5616 = vld [vmem:[%s5615] sm:$0xff]
    %v5617 = vld [vmem:[%s5615 + $0x8] sm:$0xff]
    %v5618 = vld [vmem:[%s5615 + $0x10] sm:$0xff]
    %v5619 = vld [vmem:[%s5615 + $0x18] sm:$0xff]
    %5620 = vmatprep.subr.mxu0 0.0
    %5621 = vmatpush1.msra.mxu0 %v5508
    %5622 = vmatprep.subr.mxu0 0.0
    %5623 = vmatpush1.msra.mxu0 %v5509
    %5624 = vmatprep.subr.mxu0 0.0
    %5625 = vmatpush1.msra.mxu0 %v5510
    %5626 = vmatprep.subr.mxu0 0.0
    %5627 = vmatpush1.msra.mxu0 %v5511
    %5628 = vmatprep.subr.mxu0 0.0
    %5629 = vmatpush1.msra.mxu0 %v5512
    %5630 = vmatprep.subr.mxu0 0.0
    %5631 = vmatpush1.msra.mxu0 %v5513
    %5632 = vmatprep.subr.mxu0 0.0
    %5633 = vmatpush1.msra.mxu0 %v5514
    %5634 = vmatprep.subr.mxu0 0.0
    %5635 = vmatpush1.msra.mxu0 %v5515
    %5636 = vmatprep.subr.mxu0 0.0
    %5637 = vmatpush1.msra.mxu0 %v5516
    %5638 = vmatprep.subr.mxu0 0.0
    %5639 = vmatpush1.msra.mxu0 %v5517
    %5640 = vmatprep.subr.mxu0 0.0
    %5641 = vmatpush1.msra.mxu0 %v5518
    %5642 = vmatprep.subr.mxu0 0.0
    %5643 = vmatpush1.msra.mxu0 %v5519
    %5644 = vmatprep.subr.mxu0 0.0
    %5645 = vmatpush1.msra.mxu0 %v5520
    %5646 = vmatprep.subr.mxu0 0.0
    %5647 = vmatpush1.msra.mxu0 %v5521
    %5648 = vmatprep.subr.mxu0 0.0
    %5649 = vmatpush1.msra.mxu0 %v5522
    %5650 = vmatprep.subr.mxu0 0.0
    %5651 = vmatpush1.msra.mxu0 %v5523
    %5652 = vmatprep.subr.mxu0 0.0
    %5653 = vmatpush1.msra.mxu0 0.0
    %5654 = vmatprep.subr.mxu0 0.0
    %5655 = vmatpush1.msra.mxu0 0.0
    %5656 = vmatprep.subr.mxu0 0.0
    %5657 = vmatpush1.msra.mxu0 0.0
    %5658 = vmatprep.subr.mxu0 0.0
    %5659 = vmatpush1.msra.mxu0 0.0
    %5660 = vmatprep.subr.mxu0 0.0
    %5661 = vmatpush1.msra.mxu0 0.0
    %5662 = vmatprep.subr.mxu0 0.0
    %5663 = vmatpush1.msra.mxu0 0.0
    %5664 = vmatprep.subr.mxu0 0.0
    %5665 = vmatpush1.msra.mxu0 0.0
    %5666 = vmatprep.subr.mxu0 0.0
    %5667 = vmatpush1.msra.mxu0 0.0
    %5668 = vmatprep.subr.mxu0 0.0
    %5669 = vmatpush1.msra.mxu0 0.0
    %5670 = vmatprep.subr.mxu0 0.0
    %5671 = vmatpush1.msra.mxu0 0.0
    %5672 = vmatprep.subr.mxu0 0.0
    %5673 = vmatpush1.msra.mxu0 0.0
    %5674 = vmatprep.subr.mxu0 0.0
    %5675 = vmatpush1.msra.mxu0 0.0
    %5676 = vmatprep.subr.mxu0 0.0
    %5677 = vmatpush1.msra.mxu0 0.0
    %5678 = vmatprep.subr.mxu0 0.0
    %5679 = vmatpush1.msra.mxu0 0.0
    %5680 = vmatprep.subr.mxu0 0.0
    %5681 = vmatpush1.msra.mxu0 0.0
    %5682 = vmatprep.subr.mxu0 0.0
    %5683 = vmatpush1.msra.mxu0 0.0
    %5684 = vmatprep.mubr.f32.mxu0 0.0
    %5685 = vmatmul.mubr.f32.gmra.mrb[0].mxu0 %v5616
    %v5686 = vpop.f32.mrb[0].mxu0
    %v5687 = vadd.f32 0.0, %v5686
    %v5688 = vpop.f32.mrb[0].mxu0
    %5689 = vmatprep.mubr.f32.mxu0 0.0
    %5690 = vmatmul.mubr.f32.gmra.mrb[0].mxu0 %v5617
    %v5691 = vpop.f32.mrb[0].mxu0
    %v5692 = vadd.f32 0.0, %v5691
    %v5693 = vpop.f32.mrb[0].mxu0
    %5694 = vmatprep.mubr.f32.mxu0 0.0
    %5695 = vmatmul.mubr.f32.gmra.mrb[0].mxu0 %v5618
    %v5696 = vpop.f32.mrb[0].mxu0
    %v5697 = vadd.f32 0.0, %v5696
    %v5698 = vpop.f32.mrb[0].mxu0
    %5699 = vmatprep.mubr.f32.mxu0 0.0
    %5700 = vmatmul.mubr.f32.gmra.mrb[0].mxu0 %v5619
    %v5701 = vpop.f32.mrb[0].mxu0
    %v5702 = vadd.f32 0.0, %v5701
    %v5703 = vpop.f32.mrb[0].mxu0
    %5704 = vdwg.mxu0
    %s5705 = scalar_lea.vmem [#allocation11], 16
    %v5706 = vld [vmem:[%s5705] sm:$0xff]
    %v5707 = vld [vmem:[%s5705 + $0x8] sm:$0xff]
    %vm5708 = vcmask 130048
    %v5710 = vsel %vm5708, %v5687, 0
    %v5713 = vsel %vm5708, %v5692, 0
    %v5716 = vsel %vm5708, %v5697, 0
    %v5719 = vsel %vm5708, %v5702, 0
    %5721 = vmatprep.subr.mxu0 0.0
    %5722 = vmatpush1.msra.mxu0 %v5706
    %5723 = vmatprep.subr.mxu0 0.0
    %5724 = vmatpush1.msra.mxu0 %v5707
    %5725 = vmatprep.subr.mxu0 0.0
    %5726 = vmatpush1.msra.mxu0 0.0
    %5727 = vmatprep.subr.mxu0 0.0
    %5728 = vmatpush1.msra.mxu0 0.0
    %5729 = vmatprep.subr.mxu0 0.0
    %5730 = vmatpush1.msra.mxu0 0.0
    %5731 = vmatprep.subr.mxu0 0.0
    %5732 = vmatpush1.msra.mxu0 0.0
    %5733 = vmatprep.subr.mxu0 0.0
    %5734 = vmatpush1.msra.mxu0 0.0
    %5735 = vmatprep.subr.mxu0 0.0
    %5736 = vmatpush1.msra.mxu0 0.0
    %5737 = vmatprep.subr.mxu0 0.0
    %5738 = vmatpush1.msra.mxu0 0.0
    %5739 = vmatprep.subr.mxu0 0.0
    %5740 = vmatpush1.msra.mxu0 0.0
    %5741 = vmatprep.subr.mxu0 0.0
    %5742 = vmatpush1.msra.mxu0 0.0
    %5743 = vmatprep.subr.mxu0 0.0
    %5744 = vmatpush1.msra.mxu0 0.0
    %5745 = vmatprep.subr.mxu0 0.0
    %5746 = vmatpush1.msra.mxu0 0.0
    %5747 = vmatprep.subr.mxu0 0.0
    %5748 = vmatpush1.msra.mxu0 0.0
    %5749 = vmatprep.subr.mxu0 0.0
    %5750 = vmatpush1.msra.mxu0 0.0
    %5751 = vmatprep.subr.mxu0 0.0
    %5752 = vmatpush1.msra.mxu0 0.0
    %5753 = vmatprep.subr.mxu0 0.0
    %5754 = vmatpush1.msra.mxu0 0.0
    %5755 = vmatprep.subr.mxu0 0.0
    %5756 = vmatpush1.msra.mxu0 0.0
    %5757 = vmatprep.subr.mxu0 0.0
    %5758 = vmatpush1.msra.mxu0 0.0
    %5759 = vmatprep.subr.mxu0 0.0
    %5760 = vmatpush1.msra.mxu0 0.0
    %5761 = vmatprep.subr.mxu0 0.0
    %5762 = vmatpush1.msra.mxu0 0.0
    %5763 = vmatprep.subr.mxu0 0.0
    %5764 = vmatpush1.msra.mxu0 0.0
    %5765 = vmatprep.subr.mxu0 0.0
    %5766 = vmatpush1.msra.mxu0 0.0
    %5767 = vmatprep.subr.mxu0 0.0
    %5768 = vmatpush1.msra.mxu0 0.0
    %5769 = vmatprep.subr.mxu0 0.0
    %5770 = vmatpush1.msra.mxu0 0.0
    %5771 = vmatprep.subr.mxu0 0.0
    %5772 = vmatpush1.msra.mxu0 0.0
    %5773 = vmatprep.subr.mxu0 0.0
    %5774 = vmatpush1.msra.mxu0 0.0
    %5775 = vmatprep.subr.mxu0 0.0
    %5776 = vmatpush1.msra.mxu0 0.0
    %5777 = vmatprep.subr.mxu0 0.0
    %5778 = vmatpush1.msra.mxu0 0.0
    %5779 = vmatprep.subr.mxu0 0.0
    %5780 = vmatpush1.msra.mxu0 0.0
    %5781 = vmatprep.subr.mxu0 0.0
    %5782 = vmatpush1.msra.mxu0 0.0
    %5783 = vmatprep.subr.mxu0 0.0
    %5784 = vmatpush1.msra.mxu0 0.0
    %5785 = vmatprep.mubr.f32.mxu0 0.0
    %5786 = vmatmul.mubr.f32.gmra.mrb[0].mxu0 %v5710
    %v5787 = vpop.f32.mrb[0].mxu0
    %v5788 = vadd.f32 0.0, %v5787
    %v5789 = vpop.f32.mrb[0].mxu0
    %5790 = vmatprep.mubr.f32.mxu0 0.0
    %5791 = vmatmul.mubr.f32.gmra.mrb[0].mxu0 %v5713
    %v5792 = vpop.f32.mrb[0].mxu0
    %v5793 = vadd.f32 0.0, %v5792
    %v5794 = vpop.f32.mrb[0].mxu0
    %5795 = vmatprep.mubr.f32.mxu0 0.0
    %5796 = vmatmul.mubr.f32.gmra.mrb[0].mxu0 %v5716
    %v5797 = vpop.f32.mrb[0].mxu0
    %v5798 = vadd.f32 0.0, %v5797
    %v5799 = vpop.f32.mrb[0].mxu0
    %5800 = vmatprep.mubr.f32.mxu0 0.0
    %5801 = vmatmul.mubr.f32.gmra.mrb[0].mxu0 %v5719
    %v5802 = vpop.f32.mrb[0].mxu0
    %v5803 = vadd.f32 0.0, %v5802
    %v5804 = vpop.f32.mrb[0].mxu0
    %5805 = vdwg.mxu0
    %v5807 = vsel %vm5708, %v5595, 0
    %v5810 = vsel %vm5708, %v5600, 0
    %v5813 = vsel %vm5708, %v5605, 0
    %v5816 = vsel %vm5708, %v5610, 0
    %5818 = vmatprep.subr.mxu0 0.0
    %5819 = vmatpush1.msra.mxu0 %v5613
    %5820 = vmatprep.subr.mxu0 0.0
    %5821 = vmatpush1.msra.mxu0 %v5614
    %5822 = vmatprep.subr.mxu0 0.0
    %5823 = vmatpush1.msra.mxu0 0.0
    %5824 = vmatprep.subr.mxu0 0.0
    %5825 = vmatpush1.msra.mxu0 0.0
    %5826 = vmatprep.subr.mxu0 0.0
    %5827 = vmatpush1.msra.mxu0 0.0
    %5828 = vmatprep.subr.mxu0 0.0
    %5829 = vmatpush1.msra.mxu0 0.0
    %5830 = vmatprep.subr.mxu0 0.0
    %5831 = vmatpush1.msra.mxu0 0.0
    %5832 = vmatprep.subr.mxu0 0.0
    %5833 = vmatpush1.msra.mxu0 0.0
    %5834 = vmatprep.subr.mxu0 0.0
    %5835 = vmatpush1.msra.mxu0 0.0
    %5836 = vmatprep.subr.mxu0 0.0
    %5837 = vmatpush1.msra.mxu0 0.0
    %5838 = vmatprep.subr.mxu0 0.0
    %5839 = vmatpush1.msra.mxu0 0.0
    %5840 = vmatprep.subr.mxu0 0.0
    %5841 = vmatpush1.msra.mxu0 0.0
    %5842 = vmatprep.subr.mxu0 0.0
    %5843 = vmatpush1.msra.mxu0 0.0
    %5844 = vmatprep.subr.mxu0 0.0
    %5845 = vmatpush1.msra.mxu0 0.0
    %5846 = vmatprep.subr.mxu0 0.0
    %5847 = vmatpush1.msra.mxu0 0.0
    %5848 = vmatprep.subr.mxu0 0.0
    %5849 = vmatpush1.msra.mxu0 0.0
    %5850 = vmatprep.subr.mxu0 0.0
    %5851 = vmatpush1.msra.mxu0 0.0
    %5852 = vmatprep.subr.mxu0 0.0
    %5853 = vmatpush1.msra.mxu0 0.0
    %5854 = vmatprep.subr.mxu0 0.0
    %5855 = vmatpush1.msra.mxu0 0.0
    %5856 = vmatprep.subr.mxu0 0.0
    %5857 = vmatpush1.msra.mxu0 0.0
    %5858 = vmatprep.subr.mxu0 0.0
    %5859 = vmatpush1.msra.mxu0 0.0
    %5860 = vmatprep.subr.mxu0 0.0
    %5861 = vmatpush1.msra.mxu0 0.0
    %5862 = vmatprep.subr.mxu0 0.0
    %5863 = vmatpush1.msra.mxu0 0.0
    %5864 = vmatprep.subr.mxu0 0.0
    %5865 = vmatpush1.msra.mxu0 0.0
    %5866 = vmatprep.subr.mxu0 0.0
    %5867 = vmatpush1.msra.mxu0 0.0
    %5868 = vmatprep.subr.mxu0 0.0
    %5869 = vmatpush1.msra.mxu0 0.0
    %5870 = vmatprep.subr.mxu0 0.0
    %5871 = vmatpush1.msra.mxu0 0.0
    %5872 = vmatprep.subr.mxu0 0.0
    %5873 = vmatpush1.msra.mxu0 0.0
    %5874 = vmatprep.subr.mxu0 0.0
    %5875 = vmatpush1.msra.mxu0 0.0
    %5876 = vmatprep.subr.mxu0 0.0
    %5877 = vmatpush1.msra.mxu0 0.0
    %5878 = vmatprep.subr.mxu0 0.0
    %5879 = vmatpush1.msra.mxu0 0.0
    %5880 = vmatprep.subr.mxu0 0.0
    %5881 = vmatpush1.msra.mxu0 0.0
    %5882 = vmatprep.mubr.f32.mxu0 0.0
    %5883 = vmatmul.mubr.f32.gmra.mrb[0].mxu0 %v5807
    %v5884 = vpop.f32.mrb[0].mxu0
    %v5885 = vadd.f32 %v5788, %v5884
    %v5886 = vpop.f32.mrb[0].mxu0
    %5887 = vmatprep.mubr.f32.mxu0 0.0
    %5888 = vmatmul.mubr.f32.gmra.mrb[0].mxu0 %v5810
    %v5889 = vpop.f32.mrb[0].mxu0
    %v5890 = vadd.f32 %v5793, %v5889
    %v5891 = vpop.f32.mrb[0].mxu0
    %5892 = vmatprep.mubr.f32.mxu0 0.0
    %5893 = vmatmul.mubr.f32.gmra.mrb[0].mxu0 %v5813
    %v5894 = vpop.f32.mrb[0].mxu0
    %v5895 = vadd.f32 %v5798, %v5894
    %v5896 = vpop.f32.mrb[0].mxu0
    %5897 = vmatprep.mubr.f32.mxu0 0.0
    %5898 = vmatmul.mubr.f32.gmra.mrb[0].mxu0 %v5816
    %v5899 = vpop.f32.mrb[0].mxu0
    %v5900 = vadd.f32 %v5803, %v5899
    %v5901 = vpop.f32.mrb[0].mxu0
    %5902 = vdwg.mxu0
    %s5903 = scalar_lea.vmem [#allocation10], 64
    %v5904 = vld [vmem:[%s5903] sm:$0xff]
    %v5905 = vld [vmem:[%s5903 + $0x8] sm:$0xff]
    %v5906 = vld [vmem:[%s5903 + $0x10] sm:$0xff]
    %v5907 = vld [vmem:[%s5903 + $0x18] sm:$0xff]
    %5908 = vmatprep.subr.mxu0 0.0
    %5909 = vmatpush1.msra.mxu0 %v5508
    %5910 = vmatprep.subr.mxu0 0.0
    %5911 = vmatpush1.msra.mxu0 %v5509
    %5912 = vmatprep.subr.mxu0 0.0
    %5913 = vmatpush1.msra.mxu0 %v5510
    %5914 = vmatprep.subr.mxu0 0.0
    %5915 = vmatpush1.msra.mxu0 %v5511
    %5916 = vmatprep.subr.mxu0 0.0
    %5917 = vmatpush1.msra.mxu0 %v5512
    %5918 = vmatprep.subr.mxu0 0.0
    %5919 = vmatpush1.msra.mxu0 %v5513
    %5920 = vmatprep.subr.mxu0 0.0
    %5921 = vmatpush1.msra.mxu0 %v5514
    %5922 = vmatprep.subr.mxu0 0.0
    %5923 = vmatpush1.msra.mxu0 %v5515
    %5924 = vmatprep.subr.mxu0 0.0
    %5925 = vmatpush1.msra.mxu0 %v5516
    %5926 = vmatprep.subr.mxu0 0.0
    %5927 = vmatpush1.msra.mxu0 %v5517
    %5928 = vmatprep.subr.mxu0 0.0
    %5929 = vmatpush1.msra.mxu0 %v5518
    %5930 = vmatprep.subr.mxu0 0.0
    %5931 = vmatpush1.msra.mxu0 %v5519
    %5932 = vmatprep.subr.mxu0 0.0
    %5933 = vmatpush1.msra.mxu0 %v5520
    %5934 = vmatprep.subr.mxu0 0.0
    %5935 = vmatpush1.msra.mxu0 %v5521
    %5936 = vmatprep.subr.mxu0 0.0
    %5937 = vmatpush1.msra.mxu0 %v5522
    %5938 = vmatprep.subr.mxu0 0.0
    %5939 = vmatpush1.msra.mxu0 %v5523
    %5940 = vmatprep.subr.mxu0 0.0
    %5941 = vmatpush1.msra.mxu0 0.0
    %5942 = vmatprep.subr.mxu0 0.0
    %5943 = vmatpush1.msra.mxu0 0.0
    %5944 = vmatprep.subr.mxu0 0.0
    %5945 = vmatpush1.msra.mxu0 0.0
    %5946 = vmatprep.subr.mxu0 0.0
    %5947 = vmatpush1.msra.mxu0 0.0
    %5948 = vmatprep.subr.mxu0 0.0
    %5949 = vmatpush1.msra.mxu0 0.0
    %5950 = vmatprep.subr.mxu0 0.0
    %5951 = vmatpush1.msra.mxu0 0.0
    %5952 = vmatprep.subr.mxu0 0.0
    %5953 = vmatpush1.msra.mxu0 0.0
    %5954 = vmatprep.subr.mxu0 0.0
    %5955 = vmatpush1.msra.mxu0 0.0
    %5956 = vmatprep.subr.mxu0 0.0
    %5957 = vmatpush1.msra.mxu0 0.0
    %5958 = vmatprep.subr.mxu0 0.0
    %5959 = vmatpush1.msra.mxu0 0.0
    %5960 = vmatprep.subr.mxu0 0.0
    %5961 = vmatpush1.msra.mxu0 0.0
    %5962 = vmatprep.subr.mxu0 0.0
    %5963 = vmatpush1.msra.mxu0 0.0
    %5964 = vmatprep.subr.mxu0 0.0
    %5965 = vmatpush1.msra.mxu0 0.0
    %5966 = vmatprep.subr.mxu0 0.0
    %5967 = vmatpush1.msra.mxu0 0.0
    %5968 = vmatprep.subr.mxu0 0.0
    %5969 = vmatpush1.msra.mxu0 0.0
    %5970 = vmatprep.subr.mxu0 0.0
    %5971 = vmatpush1.msra.mxu0 0.0
    %5972 = vmatprep.mubr.f32.mxu0 0.0
    %5973 = vmatmul.mubr.f32.gmra.mrb[0].mxu0 %v5904
    %v5974 = vpop.f32.mrb[0].mxu0
    %v5975 = vadd.f32 0.0, %v5974
    %v5976 = vpop.f32.mrb[0].mxu0
    %5977 = vmatprep.mubr.f32.mxu0 0.0
    %5978 = vmatmul.mubr.f32.gmra.mrb[0].mxu0 %v5905
    %v5979 = vpop.f32.mrb[0].mxu0
    %v5980 = vadd.f32 0.0, %v5979
    %v5981 = vpop.f32.mrb[0].mxu0
    %5982 = vmatprep.mubr.f32.mxu0 0.0
    %5983 = vmatmul.mubr.f32.gmra.mrb[0].mxu0 %v5906
    %v5984 = vpop.f32.mrb[0].mxu0
    %v5985 = vadd.f32 0.0, %v5984
    %v5986 = vpop.f32.mrb[0].mxu0
    %5987 = vmatprep.mubr.f32.mxu0 0.0
    %5988 = vmatmul.mubr.f32.gmra.mrb[0].mxu0 %v5907
    %v5989 = vpop.f32.mrb[0].mxu0
    %v5990 = vadd.f32 0.0, %v5989
    %v5991 = vpop.f32.mrb[0].mxu0
    %5992 = vdwg.mxu0
    %s5993 = scalar_lea.vmem [#allocation11], 32
    %v5994 = vld [vmem:[%s5993] sm:$0xff]
    %v5995 = vld [vmem:[%s5993 + $0x8] sm:$0xff]
    %v5997 = vsel %vm5708, %v5975, 0
    %v6000 = vsel %vm5708, %v5980, 0
    %v6003 = vsel %vm5708, %v5985, 0
    %v6006 = vsel %vm5708, %v5990, 0
    %6008 = vmatprep.subr.mxu0 0.0
    %6009 = vmatpush1.msra.mxu0 %v5994
    %6010 = vmatprep.subr.mxu0 0.0
    %6011 = vmatpush1.msra.mxu0 %v5995
    %6012 = vmatprep.subr.mxu0 0.0
    %6013 = vmatpush1.msra.mxu0 0.0
    %6014 = vmatprep.subr.mxu0 0.0
    %6015 = vmatpush1.msra.mxu0 0.0
    %6016 = vmatprep.subr.mxu0 0.0
    %6017 = vmatpush1.msra.mxu0 0.0
    %6018 = vmatprep.subr.mxu0 0.0
    %6019 = vmatpush1.msra.mxu0 0.0
    %6020 = vmatprep.subr.mxu0 0.0
    %6021 = vmatpush1.msra.mxu0 0.0
    %6022 = vmatprep.subr.mxu0 0.0
    %6023 = vmatpush1.msra.mxu0 0.0
    %6024 = vmatprep.subr.mxu0 0.0
    %6025 = vmatpush1.msra.mxu0 0.0
    %6026 = vmatprep.subr.mxu0 0.0
    %6027 = vmatpush1.msra.mxu0 0.0
    %6028 = vmatprep.subr.mxu0 0.0
    %6029 = vmatpush1.msra.mxu0 0.0
    %6030 = vmatprep.subr.mxu0 0.0
    %6031 = vmatpush1.msra.mxu0 0.0
    %6032 = vmatprep.subr.mxu0 0.0
    %6033 = vmatpush1.msra.mxu0 0.0
    %6034 = vmatprep.subr.mxu0 0.0
    %6035 = vmatpush1.msra.mxu0 0.0
    %6036 = vmatprep.subr.mxu0 0.0
    %6037 = vmatpush1.msra.mxu0 0.0
    %6038 = vmatprep.subr.mxu0 0.0
    %6039 = vmatpush1.msra.mxu0 0.0
    %6040 = vmatprep.subr.mxu0 0.0
    %6041 = vmatpush1.msra.mxu0 0.0
    %6042 = vmatprep.subr.mxu0 0.0
    %6043 = vmatpush1.msra.mxu0 0.0
    %6044 = vmatprep.subr.mxu0 0.0
    %6045 = vmatpush1.msra.mxu0 0.0
    %6046 = vmatprep.subr.mxu0 0.0
    %6047 = vmatpush1.msra.mxu0 0.0
    %6048 = vmatprep.subr.mxu0 0.0
    %6049 = vmatpush1.msra.mxu0 0.0
    %6050 = vmatprep.subr.mxu0 0.0
    %6051 = vmatpush1.msra.mxu0 0.0
    %6052 = vmatprep.subr.mxu0 0.0
    %6053 = vmatpush1.msra.mxu0 0.0
    %6054 = vmatprep.subr.mxu0 0.0
    %6055 = vmatpush1.msra.mxu0 0.0
    %6056 = vmatprep.subr.mxu0 0.0
    %6057 = vmatpush1.msra.mxu0 0.0
    %6058 = vmatprep.subr.mxu0 0.0
    %6059 = vmatpush1.msra.mxu0 0.0
    %6060 = vmatprep.subr.mxu0 0.0
    %6061 = vmatpush1.msra.mxu0 0.0
    %6062 = vmatprep.subr.mxu0 0.0
    %6063 = vmatpush1.msra.mxu0 0.0
    %6064 = vmatprep.subr.mxu0 0.0
    %6065 = vmatpush1.msra.mxu0 0.0
    %6066 = vmatprep.subr.mxu0 0.0
    %6067 = vmatpush1.msra.mxu0 0.0
    %6068 = vmatprep.subr.mxu0 0.0
    %6069 = vmatpush1.msra.mxu0 0.0
    %6070 = vmatprep.subr.mxu0 0.0
    %6071 = vmatpush1.msra.mxu0 0.0
    %6072 = vmatprep.mubr.f32.mxu0 0.0
    %6073 = vmatmul.mubr.f32.gmra.mrb[0].mxu0 %v5997
    %v6074 = vpop.f32.mrb[0].mxu0
    %v6075 = vadd.f32 0.0, %v6074
    %v6076 = vpop.f32.mrb[0].mxu0
    %6077 = vmatprep.mubr.f32.mxu0 0.0
    %6078 = vmatmul.mubr.f32.gmra.mrb[0].mxu0 %v6000
    %v6079 = vpop.f32.mrb[0].mxu0
    %v6080 = vadd.f32 0.0, %v6079
    %v6081 = vpop.f32.mrb[0].mxu0
    %6082 = vmatprep.mubr.f32.mxu0 0.0
    %6083 = vmatmul.mubr.f32.gmra.mrb[0].mxu0 %v6003
    %v6084 = vpop.f32.mrb[0].mxu0
    %v6085 = vadd.f32 0.0, %v6084
    %v6086 = vpop.f32.mrb[0].mxu0
    %6087 = vmatprep.mubr.f32.mxu0 0.0
    %6088 = vmatmul.mubr.f32.gmra.mrb[0].mxu0 %v6006
    %v6089 = vpop.f32.mrb[0].mxu0
    %v6090 = vadd.f32 0.0, %v6089
    %v6091 = vpop.f32.mrb[0].mxu0
    %6092 = vdwg.mxu0
    %v6093 = vadd.f32 %v5885, %v6075
    %v6094 = vadd.f32 %v5890, %v6080
    %v6095 = vadd.f32 %v5895, %v6085
    %v6096 = vadd.f32 %v5900, %v6090
    %s6097 = scalar_lea.vmem [#allocation10], 96
    %v6098 = vld [vmem:[%s6097] sm:$0xff]
    %v6099 = vld [vmem:[%s6097 + $0x8] sm:$0xff]
    %v6100 = vld [vmem:[%s6097 + $0x10] sm:$0xff]
    %v6101 = vld [vmem:[%s6097 + $0x18] sm:$0xff]
    %6102 = vmatprep.subr.mxu0 0.0
    %6103 = vmatpush1.msra.mxu0 %v5508
    %6104 = vmatprep.subr.mxu0 0.0
    %6105 = vmatpush1.msra.mxu0 %v5509
    %6106 = vmatprep.subr.mxu0 0.0
    %6107 = vmatpush1.msra.mxu0 %v5510
    %6108 = vmatprep.subr.mxu0 0.0
    %6109 = vmatpush1.msra.mxu0 %v5511
    %6110 = vmatprep.subr.mxu0 0.0
    %6111 = vmatpush1.msra.mxu0 %v5512
    %6112 = vmatprep.subr.mxu0 0.0
    %6113 = vmatpush1.msra.mxu0 %v5513
    %6114 = vmatprep.subr.mxu0 0.0
    %6115 = vmatpush1.msra.mxu0 %v5514
    %6116 = vmatprep.subr.mxu0 0.0
    %6117 = vmatpush1.msra.mxu0 %v5515
    %6118 = vmatprep.subr.mxu0 0.0
    %6119 = vmatpush1.msra.mxu0 %v5516
    %6120 = vmatprep.subr.mxu0 0.0
    %6121 = vmatpush1.msra.mxu0 %v5517
    %6122 = vmatprep.subr.mxu0 0.0
    %6123 = vmatpush1.msra.mxu0 %v5518
    %6124 = vmatprep.subr.mxu0 0.0
    %6125 = vmatpush1.msra.mxu0 %v5519
    %6126 = vmatprep.subr.mxu0 0.0
    %6127 = vmatpush1.msra.mxu0 %v5520
    %6128 = vmatprep.subr.mxu0 0.0
    %6129 = vmatpush1.msra.mxu0 %v5521
    %6130 = vmatprep.subr.mxu0 0.0
    %6131 = vmatpush1.msra.mxu0 %v5522
    %6132 = vmatprep.subr.mxu0 0.0
    %6133 = vmatpush1.msra.mxu0 %v5523
    %6134 = vmatprep.subr.mxu0 0.0
    %6135 = vmatpush1.msra.mxu0 0.0
    %6136 = vmatprep.subr.mxu0 0.0
    %6137 = vmatpush1.msra.mxu0 0.0
    %6138 = vmatprep.subr.mxu0 0.0
    %6139 = vmatpush1.msra.mxu0 0.0
    %6140 = vmatprep.subr.mxu0 0.0
    %6141 = vmatpush1.msra.mxu0 0.0
    %6142 = vmatprep.subr.mxu0 0.0
    %6143 = vmatpush1.msra.mxu0 0.0
    %6144 = vmatprep.subr.mxu0 0.0
    %6145 = vmatpush1.msra.mxu0 0.0
    %6146 = vmatprep.subr.mxu0 0.0
    %6147 = vmatpush1.msra.mxu0 0.0
    %6148 = vmatprep.subr.mxu0 0.0
    %6149 = vmatpush1.msra.mxu0 0.0
    %6150 = vmatprep.subr.mxu0 0.0
    %6151 = vmatpush1.msra.mxu0 0.0
    %6152 = vmatprep.subr.mxu0 0.0
    %6153 = vmatpush1.msra.mxu0 0.0
    %6154 = vmatprep.subr.mxu0 0.0
    %6155 = vmatpush1.msra.mxu0 0.0
    %6156 = vmatprep.subr.mxu0 0.0
    %6157 = vmatpush1.msra.mxu0 0.0
    %6158 = vmatprep.subr.mxu0 0.0
    %6159 = vmatpush1.msra.mxu0 0.0
    %6160 = vmatprep.subr.mxu0 0.0
    %6161 = vmatpush1.msra.mxu0 0.0
    %6162 = vmatprep.subr.mxu0 0.0
    %6163 = vmatpush1.msra.mxu0 0.0
    %6164 = vmatprep.subr.mxu0 0.0
    %6165 = vmatpush1.msra.mxu0 0.0
    %6166 = vmatprep.mubr.f32.mxu0 0.0
    %6167 = vmatmul.mubr.f32.gmra.mrb[0].mxu0 %v6098
    %v6168 = vpop.f32.mrb[0].mxu0
    %v6169 = vadd.f32 0.0, %v6168
    %v6170 = vpop.f32.mrb[0].mxu0
    %6171 = vmatprep.mubr.f32.mxu0 0.0
    %6172 = vmatmul.mubr.f32.gmra.mrb[0].mxu0 %v6099
    %v6173 = vpop.f32.mrb[0].mxu0
    %v6174 = vadd.f32 0.0, %v6173
    %v6175 = vpop.f32.mrb[0].mxu0
    %6176 = vmatprep.mubr.f32.mxu0 0.0
    %6177 = vmatmul.mubr.f32.gmra.mrb[0].mxu0 %v6100
    %v6178 = vpop.f32.mrb[0].mxu0
    %v6179 = vadd.f32 0.0, %v6178
    %v6180 = vpop.f32.mrb[0].mxu0
    %6181 = vmatprep.mubr.f32.mxu0 0.0
    %6182 = vmatmul.mubr.f32.gmra.mrb[0].mxu0 %v6101
    %v6183 = vpop.f32.mrb[0].mxu0
    %v6184 = vadd.f32 0.0, %v6183
    %v6185 = vpop.f32.mrb[0].mxu0
    %6186 = vdwg.mxu0
    %s6187 = scalar_lea.vmem [#allocation11], 48
    %v6188 = vld [vmem:[%s6187] sm:$0xff]
    %v6189 = vld [vmem:[%s6187 + $0x8] sm:$0xff]
    %v6191 = vsel %vm5708, %v6169, 0
    %v6194 = vsel %vm5708, %v6174, 0
    %v6197 = vsel %vm5708, %v6179, 0
    %v6200 = vsel %vm5708, %v6184, 0
    %6202 = vmatprep.subr.mxu0 0.0
    %6203 = vmatpush1.msra.mxu0 %v6188
    %6204 = vmatprep.subr.mxu0 0.0
    %6205 = vmatpush1.msra.mxu0 %v6189
    %6206 = vmatprep.subr.mxu0 0.0
    %6207 = vmatpush1.msra.mxu0 0.0
    %6208 = vmatprep.subr.mxu0 0.0
    %6209 = vmatpush1.msra.mxu0 0.0
    %6210 = vmatprep.subr.mxu0 0.0
    %6211 = vmatpush1.msra.mxu0 0.0
    %6212 = vmatprep.subr.mxu0 0.0
    %6213 = vmatpush1.msra.mxu0 0.0
    %6214 = vmatprep.subr.mxu0 0.0
    %6215 = vmatpush1.msra.mxu0 0.0
    %6216 = vmatprep.subr.mxu0 0.0
    %6217 = vmatpush1.msra.mxu0 0.0
    %6218 = vmatprep.subr.mxu0 0.0
    %6219 = vmatpush1.msra.mxu0 0.0
    %6220 = vmatprep.subr.mxu0 0.0
    %6221 = vmatpush1.msra.mxu0 0.0
    %6222 = vmatprep.subr.mxu0 0.0
    %6223 = vmatpush1.msra.mxu0 0.0
    %6224 = vmatprep.subr.mxu0 0.0
    %6225 = vmatpush1.msra.mxu0 0.0
    %6226 = vmatprep.subr.mxu0 0.0
    %6227 = vmatpush1.msra.mxu0 0.0
    %6228 = vmatprep.subr.mxu0 0.0
    %6229 = vmatpush1.msra.mxu0 0.0
    %6230 = vmatprep.subr.mxu0 0.0
    %6231 = vmatpush1.msra.mxu0 0.0
    %6232 = vmatprep.subr.mxu0 0.0
    %6233 = vmatpush1.msra.mxu0 0.0
    %6234 = vmatprep.subr.mxu0 0.0
    %6235 = vmatpush1.msra.mxu0 0.0
    %6236 = vmatprep.subr.mxu0 0.0
    %6237 = vmatpush1.msra.mxu0 0.0
    %6238 = vmatprep.subr.mxu0 0.0
    %6239 = vmatpush1.msra.mxu0 0.0
    %6240 = vmatprep.subr.mxu0 0.0
    %6241 = vmatpush1.msra.mxu0 0.0
    %6242 = vmatprep.subr.mxu0 0.0
    %6243 = vmatpush1.msra.mxu0 0.0
    %6244 = vmatprep.subr.mxu0 0.0
    %6245 = vmatpush1.msra.mxu0 0.0
    %6246 = vmatprep.subr.mxu0 0.0
    %6247 = vmatpush1.msra.mxu0 0.0
    %6248 = vmatprep.subr.mxu0 0.0
    %6249 = vmatpush1.msra.mxu0 0.0
    %6250 = vmatprep.subr.mxu0 0.0
    %6251 = vmatpush1.msra.mxu0 0.0
    %6252 = vmatprep.subr.mxu0 0.0
    %6253 = vmatpush1.msra.mxu0 0.0
    %6254 = vmatprep.subr.mxu0 0.0
    %6255 = vmatpush1.msra.mxu0 0.0
    %6256 = vmatprep.subr.mxu0 0.0
    %6257 = vmatpush1.msra.mxu0 0.0
    %6258 = vmatprep.subr.mxu0 0.0
    %6259 = vmatpush1.msra.mxu0 0.0
    %6260 = vmatprep.subr.mxu0 0.0
    %6261 = vmatpush1.msra.mxu0 0.0
    %6262 = vmatprep.subr.mxu0 0.0
    %6263 = vmatpush1.msra.mxu0 0.0
    %6264 = vmatprep.subr.mxu0 0.0
    %6265 = vmatpush1.msra.mxu0 0.0
    %6266 = vmatprep.mubr.f32.mxu0 0.0
    %6267 = vmatmul.mubr.f32.gmra.mrb[0].mxu0 %v6191
    %v6268 = vpop.f32.mrb[0].mxu0
    %v6269 = vadd.f32 0.0, %v6268
    %v6270 = vpop.f32.mrb[0].mxu0
    %6271 = vmatprep.mubr.f32.mxu0 0.0
    %6272 = vmatmul.mubr.f32.gmra.mrb[0].mxu0 %v6194
    %v6273 = vpop.f32.mrb[0].mxu0
    %v6274 = vadd.f32 0.0, %v6273
    %v6275 = vpop.f32.mrb[0].mxu0
    %6276 = vmatprep.mubr.f32.mxu0 0.0
    %6277 = vmatmul.mubr.f32.gmra.mrb[0].mxu0 %v6197
    %v6278 = vpop.f32.mrb[0].mxu0
    %v6279 = vadd.f32 0.0, %v6278
    %v6280 = vpop.f32.mrb[0].mxu0
    %6281 = vmatprep.mubr.f32.mxu0 0.0
    %6282 = vmatmul.mubr.f32.gmra.mrb[0].mxu0 %v6200
    %v6283 = vpop.f32.mrb[0].mxu0
    %v6284 = vadd.f32 0.0, %v6283
    %v6285 = vpop.f32.mrb[0].mxu0
    %6286 = vdwg.mxu0
    %v6287 = vadd.f32 %v6093, %v6269
    %v6288 = vadd.f32 %v6094, %v6274
    %v6289 = vadd.f32 %v6095, %v6279
    %v6290 = vadd.f32 %v6096, %v6284
    %s6291 = scalar_lea.vmem [#allocation10], 128
    %v6292 = vld [vmem:[%s6291] sm:$0xff]
    %v6293 = vld [vmem:[%s6291 + $0x8] sm:$0xff]
    %v6294 = vld [vmem:[%s6291 + $0x10] sm:$0xff]
    %v6295 = vld [vmem:[%s6291 + $0x18] sm:$0xff]
    %6296 = vmatprep.subr.mxu0 0.0
    %6297 = vmatpush1.msra.mxu0 %v5508
    %6298 = vmatprep.subr.mxu0 0.0
    %6299 = vmatpush1.msra.mxu0 %v5509
    %6300 = vmatprep.subr.mxu0 0.0
    %6301 = vmatpush1.msra.mxu0 %v5510
    %6302 = vmatprep.subr.mxu0 0.0
    %6303 = vmatpush1.msra.mxu0 %v5511
    %6304 = vmatprep.subr.mxu0 0.0
    %6305 = vmatpush1.msra.mxu0 %v5512
    %6306 = vmatprep.subr.mxu0 0.0
    %6307 = vmatpush1.msra.mxu0 %v5513
    %6308 = vmatprep.subr.mxu0 0.0
    %6309 = vmatpush1.msra.mxu0 %v5514
    %6310 = vmatprep.subr.mxu0 0.0
    %6311 = vmatpush1.msra.mxu0 %v5515
    %6312 = vmatprep.subr.mxu0 0.0
    %6313 = vmatpush1.msra.mxu0 %v5516
    %6314 = vmatprep.subr.mxu0 0.0
    %6315 = vmatpush1.msra.mxu0 %v5517
    %6316 = vmatprep.subr.mxu0 0.0
    %6317 = vmatpush1.msra.mxu0 %v5518
    %6318 = vmatprep.subr.mxu0 0.0
    %6319 = vmatpush1.msra.mxu0 %v5519
    %6320 = vmatprep.subr.mxu0 0.0
    %6321 = vmatpush1.msra.mxu0 %v5520
    %6322 = vmatprep.subr.mxu0 0.0
    %6323 = vmatpush1.msra.mxu0 %v5521
    %6324 = vmatprep.subr.mxu0 0.0
    %6325 = vmatpush1.msra.mxu0 %v5522
    %6326 = vmatprep.subr.mxu0 0.0
    %6327 = vmatpush1.msra.mxu0 %v5523
    %6328 = vmatprep.subr.mxu0 0.0
    %6329 = vmatpush1.msra.mxu0 0.0
    %6330 = vmatprep.subr.mxu0 0.0
    %6331 = vmatpush1.msra.mxu0 0.0
    %6332 = vmatprep.subr.mxu0 0.0
    %6333 = vmatpush1.msra.mxu0 0.0
    %6334 = vmatprep.subr.mxu0 0.0
    %6335 = vmatpush1.msra.mxu0 0.0
    %6336 = vmatprep.subr.mxu0 0.0
    %6337 = vmatpush1.msra.mxu0 0.0
    %6338 = vmatprep.subr.mxu0 0.0
    %6339 = vmatpush1.msra.mxu0 0.0
    %6340 = vmatprep.subr.mxu0 0.0
    %6341 = vmatpush1.msra.mxu0 0.0
    %6342 = vmatprep.subr.mxu0 0.0
    %6343 = vmatpush1.msra.mxu0 0.0
    %6344 = vmatprep.subr.mxu0 0.0
    %6345 = vmatpush1.msra.mxu0 0.0
    %6346 = vmatprep.subr.mxu0 0.0
    %6347 = vmatpush1.msra.mxu0 0.0
    %6348 = vmatprep.subr.mxu0 0.0
    %6349 = vmatpush1.msra.mxu0 0.0
    %6350 = vmatprep.subr.mxu0 0.0
    %6351 = vmatpush1.msra.mxu0 0.0
    %6352 = vmatprep.subr.mxu0 0.0
    %6353 = vmatpush1.msra.mxu0 0.0
    %6354 = vmatprep.subr.mxu0 0.0
    %6355 = vmatpush1.msra.mxu0 0.0
    %6356 = vmatprep.subr.mxu0 0.0
    %6357 = vmatpush1.msra.mxu0 0.0
    %6358 = vmatprep.subr.mxu0 0.0
    %6359 = vmatpush1.msra.mxu0 0.0
    %6360 = vmatprep.mubr.f32.mxu0 0.0
    %6361 = vmatmul.mubr.f32.gmra.mrb[0].mxu0 %v6292
    %v6362 = vpop.f32.mrb[0].mxu0
    %v6363 = vadd.f32 0.0, %v6362
    %v6364 = vpop.f32.mrb[0].mxu0
    %6365 = vmatprep.mubr.f32.mxu0 0.0
    %6366 = vmatmul.mubr.f32.gmra.mrb[0].mxu0 %v6293
    %v6367 = vpop.f32.mrb[0].mxu0
    %v6368 = vadd.f32 0.0, %v6367
    %v6369 = vpop.f32.mrb[0].mxu0
    %6370 = vmatprep.mubr.f32.mxu0 0.0
    %6371 = vmatmul.mubr.f32.gmra.mrb[0].mxu0 %v6294
    %v6372 = vpop.f32.mrb[0].mxu0
    %v6373 = vadd.f32 0.0, %v6372
    %v6374 = vpop.f32.mrb[0].mxu0
    %6375 = vmatprep.mubr.f32.mxu0 0.0
    %6376 = vmatmul.mubr.f32.gmra.mrb[0].mxu0 %v6295
    %v6377 = vpop.f32.mrb[0].mxu0
    %v6378 = vadd.f32 0.0, %v6377
    %v6379 = vpop.f32.mrb[0].mxu0
    %6380 = vdwg.mxu0
    %s6381 = scalar_lea.vmem [#allocation11], 64
    %v6382 = vld [vmem:[%s6381] sm:$0xff]
    %v6383 = vld [vmem:[%s6381 + $0x8] sm:$0xff]
    %v6385 = vsel %vm5708, %v6363, 0
    %v6388 = vsel %vm5708, %v6368, 0
    %v6391 = vsel %vm5708, %v6373, 0
    %v6394 = vsel %vm5708, %v6378, 0
    %6396 = vmatprep.subr.mxu0 0.0
    %6397 = vmatpush1.msra.mxu0 %v6382
    %6398 = vmatprep.subr.mxu0 0.0
    %6399 = vmatpush1.msra.mxu0 %v6383
    %6400 = vmatprep.subr.mxu0 0.0
    %6401 = vmatpush1.msra.mxu0 0.0
    %6402 = vmatprep.subr.mxu0 0.0
    %6403 = vmatpush1.msra.mxu0 0.0
    %6404 = vmatprep.subr.mxu0 0.0
    %6405 = vmatpush1.msra.mxu0 0.0
    %6406 = vmatprep.subr.mxu0 0.0
    %6407 = vmatpush1.msra.mxu0 0.0
    %6408 = vmatprep.subr.mxu0 0.0
    %6409 = vmatpush1.msra.mxu0 0.0
    %6410 = vmatprep.subr.mxu0 0.0
    %6411 = vmatpush1.msra.mxu0 0.0
    %6412 = vmatprep.subr.mxu0 0.0
    %6413 = vmatpush1.msra.mxu0 0.0
    %6414 = vmatprep.subr.mxu0 0.0
    %6415 = vmatpush1.msra.mxu0 0.0
    %6416 = vmatprep.subr.mxu0 0.0
    %6417 = vmatpush1.msra.mxu0 0.0
    %6418 = vmatprep.subr.mxu0 0.0
    %6419 = vmatpush1.msra.mxu0 0.0
    %6420 = vmatprep.subr.mxu0 0.0
    %6421 = vmatpush1.msra.mxu0 0.0
    %6422 = vmatprep.subr.mxu0 0.0
    %6423 = vmatpush1.msra.mxu0 0.0
    %6424 = vmatprep.subr.mxu0 0.0
    %6425 = vmatpush1.msra.mxu0 0.0
    %6426 = vmatprep.subr.mxu0 0.0
    %6427 = vmatpush1.msra.mxu0 0.0
    %6428 = vmatprep.subr.mxu0 0.0
    %6429 = vmatpush1.msra.mxu0 0.0
    %6430 = vmatprep.subr.mxu0 0.0
    %6431 = vmatpush1.msra.mxu0 0.0
    %6432 = vmatprep.subr.mxu0 0.0
    %6433 = vmatpush1.msra.mxu0 0.0
    %6434 = vmatprep.subr.mxu0 0.0
    %6435 = vmatpush1.msra.mxu0 0.0
    %6436 = vmatprep.subr.mxu0 0.0
    %6437 = vmatpush1.msra.mxu0 0.0
    %6438 = vmatprep.subr.mxu0 0.0
    %6439 = vmatpush1.msra.mxu0 0.0
    %6440 = vmatprep.subr.mxu0 0.0
    %6441 = vmatpush1.msra.mxu0 0.0
    %6442 = vmatprep.subr.mxu0 0.0
    %6443 = vmatpush1.msra.mxu0 0.0
    %6444 = vmatprep.subr.mxu0 0.0
    %6445 = vmatpush1.msra.mxu0 0.0
    %6446 = vmatprep.subr.mxu0 0.0
    %6447 = vmatpush1.msra.mxu0 0.0
    %6448 = vmatprep.subr.mxu0 0.0
    %6449 = vmatpush1.msra.mxu0 0.0
    %6450 = vmatprep.subr.mxu0 0.0
    %6451 = vmatpush1.msra.mxu0 0.0
    %6452 = vmatprep.subr.mxu0 0.0
    %6453 = vmatpush1.msra.mxu0 0.0
    %6454 = vmatprep.subr.mxu0 0.0
    %6455 = vmatpush1.msra.mxu0 0.0
    %6456 = vmatprep.subr.mxu0 0.0
    %6457 = vmatpush1.msra.mxu0 0.0
    %6458 = vmatprep.subr.mxu0 0.0
    %6459 = vmatpush1.msra.mxu0 0.0
    %6460 = vmatprep.mubr.f32.mxu0 0.0
    %6461 = vmatmul.mubr.f32.gmra.mrb[0].mxu0 %v6385
    %v6462 = vpop.f32.mrb[0].mxu0
    %v6463 = vadd.f32 0.0, %v6462
    %v6464 = vpop.f32.mrb[0].mxu0
    %6465 = vmatprep.mubr.f32.mxu0 0.0
    %6466 = vmatmul.mubr.f32.gmra.mrb[0].mxu0 %v6388
    %v6467 = vpop.f32.mrb[0].mxu0
    %v6468 = vadd.f32 0.0, %v6467
    %v6469 = vpop.f32.mrb[0].mxu0
    %6470 = vmatprep.mubr.f32.mxu0 0.0
    %6471 = vmatmul.mubr.f32.gmra.mrb[0].mxu0 %v6391
    %v6472 = vpop.f32.mrb[0].mxu0
    %v6473 = vadd.f32 0.0, %v6472
    %v6474 = vpop.f32.mrb[0].mxu0
    %6475 = vmatprep.mubr.f32.mxu0 0.0
    %6476 = vmatmul.mubr.f32.gmra.mrb[0].mxu0 %v6394
    %v6477 = vpop.f32.mrb[0].mxu0
    %v6478 = vadd.f32 0.0, %v6477
    %v6479 = vpop.f32.mrb[0].mxu0
    %6480 = vdwg.mxu0
    %v6481 = vadd.f32 %v6287, %v6463
    %v6482 = vadd.f32 %v6288, %v6468
    %v6483 = vadd.f32 %v6289, %v6473
    %v6484 = vadd.f32 %v6290, %v6478
    %s6485 = scalar_lea.vmem [#allocation10], 160
    %v6486 = vld [vmem:[%s6485] sm:$0xff]
    %v6487 = vld [vmem:[%s6485 + $0x8] sm:$0xff]
    %v6488 = vld [vmem:[%s6485 + $0x10] sm:$0xff]
    %v6489 = vld [vmem:[%s6485 + $0x18] sm:$0xff]
    %6490 = vmatprep.subr.mxu0 0.0
    %6491 = vmatpush1.msra.mxu0 %v5508
    %6492 = vmatprep.subr.mxu0 0.0
    %6493 = vmatpush1.msra.mxu0 %v5509
    %6494 = vmatprep.subr.mxu0 0.0
    %6495 = vmatpush1.msra.mxu0 %v5510
    %6496 = vmatprep.subr.mxu0 0.0
    %6497 = vmatpush1.msra.mxu0 %v5511
    %6498 = vmatprep.subr.mxu0 0.0
    %6499 = vmatpush1.msra.mxu0 %v5512
    %6500 = vmatprep.subr.mxu0 0.0
    %6501 = vmatpush1.msra.mxu0 %v5513
    %6502 = vmatprep.subr.mxu0 0.0
    %6503 = vmatpush1.msra.mxu0 %v5514
    %6504 = vmatprep.subr.mxu0 0.0
    %6505 = vmatpush1.msra.mxu0 %v5515
    %6506 = vmatprep.subr.mxu0 0.0
    %6507 = vmatpush1.msra.mxu0 %v5516
    %6508 = vmatprep.subr.mxu0 0.0
    %6509 = vmatpush1.msra.mxu0 %v5517
    %6510 = vmatprep.subr.mxu0 0.0
    %6511 = vmatpush1.msra.mxu0 %v5518
    %6512 = vmatprep.subr.mxu0 0.0
    %6513 = vmatpush1.msra.mxu0 %v5519
    %6514 = vmatprep.subr.mxu0 0.0
    %6515 = vmatpush1.msra.mxu0 %v5520
    %6516 = vmatprep.subr.mxu0 0.0
    %6517 = vmatpush1.msra.mxu0 %v5521
    %6518 = vmatprep.subr.mxu0 0.0
    %6519 = vmatpush1.msra.mxu0 %v5522
    %6520 = vmatprep.subr.mxu0 0.0
    %6521 = vmatpush1.msra.mxu0 %v5523
    %6522 = vmatprep.subr.mxu0 0.0
    %6523 = vmatpush1.msra.mxu0 0.0
    %6524 = vmatprep.subr.mxu0 0.0
    %6525 = vmatpush1.msra.mxu0 0.0
    %6526 = vmatprep.subr.mxu0 0.0
    %6527 = vmatpush1.msra.mxu0 0.0
    %6528 = vmatprep.subr.mxu0 0.0
    %6529 = vmatpush1.msra.mxu0 0.0
    %6530 = vmatprep.subr.mxu0 0.0
    %6531 = vmatpush1.msra.mxu0 0.0
    %6532 = vmatprep.subr.mxu0 0.0
    %6533 = vmatpush1.msra.mxu0 0.0
    %6534 = vmatprep.subr.mxu0 0.0
    %6535 = vmatpush1.msra.mxu0 0.0
    %6536 = vmatprep.subr.mxu0 0.0
    %6537 = vmatpush1.msra.mxu0 0.0
    %6538 = vmatprep.subr.mxu0 0.0
    %6539 = vmatpush1.msra.mxu0 0.0
    %6540 = vmatprep.subr.mxu0 0.0
    %6541 = vmatpush1.msra.mxu0 0.0
    %6542 = vmatprep.subr.mxu0 0.0
    %6543 = vmatpush1.msra.mxu0 0.0
    %6544 = vmatprep.subr.mxu0 0.0
    %6545 = vmatpush1.msra.mxu0 0.0
    %6546 = vmatprep.subr.mxu0 0.0
    %6547 = vmatpush1.msra.mxu0 0.0
    %6548 = vmatprep.subr.mxu0 0.0
    %6549 = vmatpush1.msra.mxu0 0.0
    %6550 = vmatprep.subr.mxu0 0.0
    %6551 = vmatpush1.msra.mxu0 0.0
    %6552 = vmatprep.subr.mxu0 0.0
    %6553 = vmatpush1.msra.mxu0 0.0
    %6554 = vmatprep.mubr.f32.mxu0 0.0
    %6555 = vmatmul.mubr.f32.gmra.mrb[0].mxu0 %v6486
    %v6556 = vpop.f32.mrb[0].mxu0
    %v6557 = vadd.f32 0.0, %v6556
    %v6558 = vpop.f32.mrb[0].mxu0
    %6559 = vmatprep.mubr.f32.mxu0 0.0
    %6560 = vmatmul.mubr.f32.gmra.mrb[0].mxu0 %v6487
    %v6561 = vpop.f32.mrb[0].mxu0
    %v6562 = vadd.f32 0.0, %v6561
    %v6563 = vpop.f32.mrb[0].mxu0
    %6564 = vmatprep.mubr.f32.mxu0 0.0
    %6565 = vmatmul.mubr.f32.gmra.mrb[0].mxu0 %v6488
    %v6566 = vpop.f32.mrb[0].mxu0
    %v6567 = vadd.f32 0.0, %v6566
    %v6568 = vpop.f32.mrb[0].mxu0
    %6569 = vmatprep.mubr.f32.mxu0 0.0
    %6570 = vmatmul.mubr.f32.gmra.mrb[0].mxu0 %v6489
    %v6571 = vpop.f32.mrb[0].mxu0
    %v6572 = vadd.f32 0.0, %v6571
    %v6573 = vpop.f32.mrb[0].mxu0
    %6574 = vdwg.mxu0
    %s6575 = scalar_lea.vmem [#allocation11], 80
    %v6576 = vld [vmem:[%s6575] sm:$0xff]
    %v6577 = vld [vmem:[%s6575 + $0x8] sm:$0xff]
    %v6579 = vsel %vm5708, %v6557, 0
    %v6582 = vsel %vm5708, %v6562, 0
    %v6585 = vsel %vm5708, %v6567, 0
    %v6588 = vsel %vm5708, %v6572, 0
    %6590 = vmatprep.subr.mxu0 0.0
    %6591 = vmatpush1.msra.mxu0 %v6576
    %6592 = vmatprep.subr.mxu0 0.0
    %6593 = vmatpush1.msra.mxu0 %v6577
    %6594 = vmatprep.subr.mxu0 0.0
    %6595 = vmatpush1.msra.mxu0 0.0
    %6596 = vmatprep.subr.mxu0 0.0
    %6597 = vmatpush1.msra.mxu0 0.0
    %6598 = vmatprep.subr.mxu0 0.0
    %6599 = vmatpush1.msra.mxu0 0.0
    %6600 = vmatprep.subr.mxu0 0.0
    %6601 = vmatpush1.msra.mxu0 0.0
    %6602 = vmatprep.subr.mxu0 0.0
    %6603 = vmatpush1.msra.mxu0 0.0
    %6604 = vmatprep.subr.mxu0 0.0
    %6605 = vmatpush1.msra.mxu0 0.0
    %6606 = vmatprep.subr.mxu0 0.0
    %6607 = vmatpush1.msra.mxu0 0.0
    %6608 = vmatprep.subr.mxu0 0.0
    %6609 = vmatpush1.msra.mxu0 0.0
    %6610 = vmatprep.subr.mxu0 0.0
    %6611 = vmatpush1.msra.mxu0 0.0
    %6612 = vmatprep.subr.mxu0 0.0
    %6613 = vmatpush1.msra.mxu0 0.0
    %6614 = vmatprep.subr.mxu0 0.0
    %6615 = vmatpush1.msra.mxu0 0.0
    %6616 = vmatprep.subr.mxu0 0.0
    %6617 = vmatpush1.msra.mxu0 0.0
    %6618 = vmatprep.subr.mxu0 0.0
    %6619 = vmatpush1.msra.mxu0 0.0
    %6620 = vmatprep.subr.mxu0 0.0
    %6621 = vmatpush1.msra.mxu0 0.0
    %6622 = vmatprep.subr.mxu0 0.0
    %6623 = vmatpush1.msra.mxu0 0.0
    %6624 = vmatprep.subr.mxu0 0.0
    %6625 = vmatpush1.msra.mxu0 0.0
    %6626 = vmatprep.subr.mxu0 0.0
    %6627 = vmatpush1.msra.mxu0 0.0
    %6628 = vmatprep.subr.mxu0 0.0
    %6629 = vmatpush1.msra.mxu0 0.0
    %6630 = vmatprep.subr.mxu0 0.0
    %6631 = vmatpush1.msra.mxu0 0.0
    %6632 = vmatprep.subr.mxu0 0.0
    %6633 = vmatpush1.msra.mxu0 0.0
    %6634 = vmatprep.subr.mxu0 0.0
    %6635 = vmatpush1.msra.mxu0 0.0
    %6636 = vmatprep.subr.mxu0 0.0
    %6637 = vmatpush1.msra.mxu0 0.0
    %6638 = vmatprep.subr.mxu0 0.0
    %6639 = vmatpush1.msra.mxu0 0.0
    %6640 = vmatprep.subr.mxu0 0.0
    %6641 = vmatpush1.msra.mxu0 0.0
    %6642 = vmatprep.subr.mxu0 0.0
    %6643 = vmatpush1.msra.mxu0 0.0
    %6644 = vmatprep.subr.mxu0 0.0
    %6645 = vmatpush1.msra.mxu0 0.0
    %6646 = vmatprep.subr.mxu0 0.0
    %6647 = vmatpush1.msra.mxu0 0.0
    %6648 = vmatprep.subr.mxu0 0.0
    %6649 = vmatpush1.msra.mxu0 0.0
    %6650 = vmatprep.subr.mxu0 0.0
    %6651 = vmatpush1.msra.mxu0 0.0
    %6652 = vmatprep.subr.mxu0 0.0
    %6653 = vmatpush1.msra.mxu0 0.0
    %6654 = vmatprep.mubr.f32.mxu0 0.0
    %6655 = vmatmul.mubr.f32.gmra.mrb[0].mxu0 %v6579
    %v6656 = vpop.f32.mrb[0].mxu0
    %v6657 = vadd.f32 0.0, %v6656
    %v6658 = vpop.f32.mrb[0].mxu0
    %6659 = vmatprep.mubr.f32.mxu0 0.0
    %6660 = vmatmul.mubr.f32.gmra.mrb[0].mxu0 %v6582
    %v6661 = vpop.f32.mrb[0].mxu0
    %v6662 = vadd.f32 0.0, %v6661
    %v6663 = vpop.f32.mrb[0].mxu0
    %6664 = vmatprep.mubr.f32.mxu0 0.0
    %6665 = vmatmul.mubr.f32.gmra.mrb[0].mxu0 %v6585
    %v6666 = vpop.f32.mrb[0].mxu0
    %v6667 = vadd.f32 0.0, %v6666
    %v6668 = vpop.f32.mrb[0].mxu0
    %6669 = vmatprep.mubr.f32.mxu0 0.0
    %6670 = vmatmul.mubr.f32.gmra.mrb[0].mxu0 %v6588
    %v6671 = vpop.f32.mrb[0].mxu0
    %v6672 = vadd.f32 0.0, %v6671
    %v6673 = vpop.f32.mrb[0].mxu0
    %6674 = vdwg.mxu0
    %v6675 = vadd.f32 %v6481, %v6657
    %v6676 = vadd.f32 %v6482, %v6662
    %v6677 = vadd.f32 %v6483, %v6667
    %v6678 = vadd.f32 %v6484, %v6672
    %s6679 = scalar_lea.vmem [#allocation10], 192
    %v6680 = vld [vmem:[%s6679] sm:$0xff]
    %v6681 = vld [vmem:[%s6679 + $0x8] sm:$0xff]
    %v6682 = vld [vmem:[%s6679 + $0x10] sm:$0xff]
    %v6683 = vld [vmem:[%s6679 + $0x18] sm:$0xff]
    %6684 = vmatprep.subr.mxu0 0.0
    %6685 = vmatpush1.msra.mxu0 %v5508
    %6686 = vmatprep.subr.mxu0 0.0
    %6687 = vmatpush1.msra.mxu0 %v5509
    %6688 = vmatprep.subr.mxu0 0.0
    %6689 = vmatpush1.msra.mxu0 %v5510
    %6690 = vmatprep.subr.mxu0 0.0
    %6691 = vmatpush1.msra.mxu0 %v5511
    %6692 = vmatprep.subr.mxu0 0.0
    %6693 = vmatpush1.msra.mxu0 %v5512
    %6694 = vmatprep.subr.mxu0 0.0
    %6695 = vmatpush1.msra.mxu0 %v5513
    %6696 = vmatprep.subr.mxu0 0.0
    %6697 = vmatpush1.msra.mxu0 %v5514
    %6698 = vmatprep.subr.mxu0 0.0
    %6699 = vmatpush1.msra.mxu0 %v5515
    %6700 = vmatprep.subr.mxu0 0.0
    %6701 = vmatpush1.msra.mxu0 %v5516
    %6702 = vmatprep.subr.mxu0 0.0
    %6703 = vmatpush1.msra.mxu0 %v5517
    %6704 = vmatprep.subr.mxu0 0.0
    %6705 = vmatpush1.msra.mxu0 %v5518
    %6706 = vmatprep.subr.mxu0 0.0
    %6707 = vmatpush1.msra.mxu0 %v5519
    %6708 = vmatprep.subr.mxu0 0.0
    %6709 = vmatpush1.msra.mxu0 %v5520
    %6710 = vmatprep.subr.mxu0 0.0
    %6711 = vmatpush1.msra.mxu0 %v5521
    %6712 = vmatprep.subr.mxu0 0.0
    %6713 = vmatpush1.msra.mxu0 %v5522
    %6714 = vmatprep.subr.mxu0 0.0
    %6715 = vmatpush1.msra.mxu0 %v5523
    %6716 = vmatprep.subr.mxu0 0.0
    %6717 = vmatpush1.msra.mxu0 0.0
    %6718 = vmatprep.subr.mxu0 0.0
    %6719 = vmatpush1.msra.mxu0 0.0
    %6720 = vmatprep.subr.mxu0 0.0
    %6721 = vmatpush1.msra.mxu0 0.0
    %6722 = vmatprep.subr.mxu0 0.0
    %6723 = vmatpush1.msra.mxu0 0.0
    %6724 = vmatprep.subr.mxu0 0.0
    %6725 = vmatpush1.msra.mxu0 0.0
    %6726 = vmatprep.subr.mxu0 0.0
    %6727 = vmatpush1.msra.mxu0 0.0
    %6728 = vmatprep.subr.mxu0 0.0
    %6729 = vmatpush1.msra.mxu0 0.0
    %6730 = vmatprep.subr.mxu0 0.0
    %6731 = vmatpush1.msra.mxu0 0.0
    %6732 = vmatprep.subr.mxu0 0.0
    %6733 = vmatpush1.msra.mxu0 0.0
    %6734 = vmatprep.subr.mxu0 0.0
    %6735 = vmatpush1.msra.mxu0 0.0
    %6736 = vmatprep.subr.mxu0 0.0
    %6737 = vmatpush1.msra.mxu0 0.0
    %6738 = vmatprep.subr.mxu0 0.0
    %6739 = vmatpush1.msra.mxu0 0.0
    %6740 = vmatprep.subr.mxu0 0.0
    %6741 = vmatpush1.msra.mxu0 0.0
    %6742 = vmatprep.subr.mxu0 0.0
    %6743 = vmatpush1.msra.mxu0 0.0
    %6744 = vmatprep.subr.mxu0 0.0
    %6745 = vmatpush1.msra.mxu0 0.0
    %6746 = vmatprep.subr.mxu0 0.0
    %6747 = vmatpush1.msra.mxu0 0.0
    %6748 = vmatprep.mubr.f32.mxu0 0.0
    %6749 = vmatmul.mubr.f32.gmra.mrb[0].mxu0 %v6680
    %v6750 = vpop.f32.mrb[0].mxu0
    %v6751 = vadd.f32 0.0, %v6750
    %v6752 = vpop.f32.mrb[0].mxu0
    %6753 = vmatprep.mubr.f32.mxu0 0.0
    %6754 = vmatmul.mubr.f32.gmra.mrb[0].mxu0 %v6681
    %v6755 = vpop.f32.mrb[0].mxu0
    %v6756 = vadd.f32 0.0, %v6755
    %v6757 = vpop.f32.mrb[0].mxu0
    %6758 = vmatprep.mubr.f32.mxu0 0.0
    %6759 = vmatmul.mubr.f32.gmra.mrb[0].mxu0 %v6682
    %v6760 = vpop.f32.mrb[0].mxu0
    %v6761 = vadd.f32 0.0, %v6760
    %v6762 = vpop.f32.mrb[0].mxu0
    %6763 = vmatprep.mubr.f32.mxu0 0.0
    %6764 = vmatmul.mubr.f32.gmra.mrb[0].mxu0 %v6683
    %v6765 = vpop.f32.mrb[0].mxu0
    %v6766 = vadd.f32 0.0, %v6765
    %v6767 = vpop.f32.mrb[0].mxu0
    %6768 = vdwg.mxu0
    %s6769 = scalar_lea.vmem [#allocation11], 96
    %v6770 = vld [vmem:[%s6769] sm:$0xff]
    %v6771 = vld [vmem:[%s6769 + $0x8] sm:$0xff]
    %v6773 = vsel %vm5708, %v6751, 0
    %v6776 = vsel %vm5708, %v6756, 0
    %v6779 = vsel %vm5708, %v6761, 0
    %v6782 = vsel %vm5708, %v6766, 0
    %6784 = vmatprep.subr.mxu0 0.0
    %6785 = vmatpush1.msra.mxu0 %v6770
    %6786 = vmatprep.subr.mxu0 0.0
    %6787 = vmatpush1.msra.mxu0 %v6771
    %6788 = vmatprep.subr.mxu0 0.0
    %6789 = vmatpush1.msra.mxu0 0.0
    %6790 = vmatprep.subr.mxu0 0.0
    %6791 = vmatpush1.msra.mxu0 0.0
    %6792 = vmatprep.subr.mxu0 0.0
    %6793 = vmatpush1.msra.mxu0 0.0
    %6794 = vmatprep.subr.mxu0 0.0
    %6795 = vmatpush1.msra.mxu0 0.0
    %6796 = vmatprep.subr.mxu0 0.0
    %6797 = vmatpush1.msra.mxu0 0.0
    %6798 = vmatprep.subr.mxu0 0.0
    %6799 = vmatpush1.msra.mxu0 0.0
    %6800 = vmatprep.subr.mxu0 0.0
    %6801 = vmatpush1.msra.mxu0 0.0
    %6802 = vmatprep.subr.mxu0 0.0
    %6803 = vmatpush1.msra.mxu0 0.0
    %6804 = vmatprep.subr.mxu0 0.0
    %6805 = vmatpush1.msra.mxu0 0.0
    %6806 = vmatprep.subr.mxu0 0.0
    %6807 = vmatpush1.msra.mxu0 0.0
    %6808 = vmatprep.subr.mxu0 0.0
    %6809 = vmatpush1.msra.mxu0 0.0
    %6810 = vmatprep.subr.mxu0 0.0
    %6811 = vmatpush1.msra.mxu0 0.0
    %6812 = vmatprep.subr.mxu0 0.0
    %6813 = vmatpush1.msra.mxu0 0.0
    %6814 = vmatprep.subr.mxu0 0.0
    %6815 = vmatpush1.msra.mxu0 0.0
    %6816 = vmatprep.subr.mxu0 0.0
    %6817 = vmatpush1.msra.mxu0 0.0
    %6818 = vmatprep.subr.mxu0 0.0
    %6819 = vmatpush1.msra.mxu0 0.0
    %6820 = vmatprep.subr.mxu0 0.0
    %6821 = vmatpush1.msra.mxu0 0.0
    %6822 = vmatprep.subr.mxu0 0.0
    %6823 = vmatpush1.msra.mxu0 0.0
    %6824 = vmatprep.subr.mxu0 0.0
    %6825 = vmatpush1.msra.mxu0 0.0
    %6826 = vmatprep.subr.mxu0 0.0
    %6827 = vmatpush1.msra.mxu0 0.0
    %6828 = vmatprep.subr.mxu0 0.0
    %6829 = vmatpush1.msra.mxu0 0.0
    %6830 = vmatprep.subr.mxu0 0.0
    %6831 = vmatpush1.msra.mxu0 0.0
    %6832 = vmatprep.subr.mxu0 0.0
    %6833 = vmatpush1.msra.mxu0 0.0
    %6834 = vmatprep.subr.mxu0 0.0
    %6835 = vmatpush1.msra.mxu0 0.0
    %6836 = vmatprep.subr.mxu0 0.0
    %6837 = vmatpush1.msra.mxu0 0.0
    %6838 = vmatprep.subr.mxu0 0.0
    %6839 = vmatpush1.msra.mxu0 0.0
    %6840 = vmatprep.subr.mxu0 0.0
    %6841 = vmatpush1.msra.mxu0 0.0
    %6842 = vmatprep.subr.mxu0 0.0
    %6843 = vmatpush1.msra.mxu0 0.0
    %6844 = vmatprep.subr.mxu0 0.0
    %6845 = vmatpush1.msra.mxu0 0.0
    %6846 = vmatprep.subr.mxu0 0.0
    %6847 = vmatpush1.msra.mxu0 0.0
    %6848 = vmatprep.mubr.f32.mxu0 0.0
    %6849 = vmatmul.mubr.f32.gmra.mrb[0].mxu0 %v6773
    %v6850 = vpop.f32.mrb[0].mxu0
    %v6851 = vadd.f32 0.0, %v6850
    %v6852 = vpop.f32.mrb[0].mxu0
    %6853 = vmatprep.mubr.f32.mxu0 0.0
    %6854 = vmatmul.mubr.f32.gmra.mrb[0].mxu0 %v6776
    %v6855 = vpop.f32.mrb[0].mxu0
    %v6856 = vadd.f32 0.0, %v6855
    %v6857 = vpop.f32.mrb[0].mxu0
    %6858 = vmatprep.mubr.f32.mxu0 0.0
    %6859 = vmatmul.mubr.f32.gmra.mrb[0].mxu0 %v6779
    %v6860 = vpop.f32.mrb[0].mxu0
    %v6861 = vadd.f32 0.0, %v6860
    %v6862 = vpop.f32.mrb[0].mxu0
    %6863 = vmatprep.mubr.f32.mxu0 0.0
    %6864 = vmatmul.mubr.f32.gmra.mrb[0].mxu0 %v6782
    %v6865 = vpop.f32.mrb[0].mxu0
    %v6866 = vadd.f32 0.0, %v6865
    %v6867 = vpop.f32.mrb[0].mxu0
    %6868 = vdwg.mxu0
    %v6869 = vadd.f32 %v6675, %v6851
    %v6870 = vadd.f32 %v6676, %v6856
    %v6871 = vadd.f32 %v6677, %v6861
    %v6872 = vadd.f32 %v6678, %v6866
    %s6873 = scalar_lea.vmem [#allocation10], 224
    %v6874 = vld [vmem:[%s6873] sm:$0xff]
    %v6875 = vld [vmem:[%s6873 + $0x8] sm:$0xff]
    %v6876 = vld [vmem:[%s6873 + $0x10] sm:$0xff]
    %v6877 = vld [vmem:[%s6873 + $0x18] sm:$0xff]
    %6878 = vmatprep.subr.mxu0 0.0
    %6879 = vmatpush1.msra.mxu0 %v5508
    %6880 = vmatprep.subr.mxu0 0.0
    %6881 = vmatpush1.msra.mxu0 %v5509
    %6882 = vmatprep.subr.mxu0 0.0
    %6883 = vmatpush1.msra.mxu0 %v5510
    %6884 = vmatprep.subr.mxu0 0.0
    %6885 = vmatpush1.msra.mxu0 %v5511
    %6886 = vmatprep.subr.mxu0 0.0
    %6887 = vmatpush1.msra.mxu0 %v5512
    %6888 = vmatprep.subr.mxu0 0.0
    %6889 = vmatpush1.msra.mxu0 %v5513
    %6890 = vmatprep.subr.mxu0 0.0
    %6891 = vmatpush1.msra.mxu0 %v5514
    %6892 = vmatprep.subr.mxu0 0.0
    %6893 = vmatpush1.msra.mxu0 %v5515
    %6894 = vmatprep.subr.mxu0 0.0
    %6895 = vmatpush1.msra.mxu0 %v5516
    %6896 = vmatprep.subr.mxu0 0.0
    %6897 = vmatpush1.msra.mxu0 %v5517
    %6898 = vmatprep.subr.mxu0 0.0
    %6899 = vmatpush1.msra.mxu0 %v5518
    %6900 = vmatprep.subr.mxu0 0.0
    %6901 = vmatpush1.msra.mxu0 %v5519
    %6902 = vmatprep.subr.mxu0 0.0
    %6903 = vmatpush1.msra.mxu0 %v5520
    %6904 = vmatprep.subr.mxu0 0.0
    %6905 = vmatpush1.msra.mxu0 %v5521
    %6906 = vmatprep.subr.mxu0 0.0
    %6907 = vmatpush1.msra.mxu0 %v5522
    %6908 = vmatprep.subr.mxu0 0.0
    %6909 = vmatpush1.msra.mxu0 %v5523
    %6910 = vmatprep.subr.mxu0 0.0
    %6911 = vmatpush1.msra.mxu0 0.0
    %6912 = vmatprep.subr.mxu0 0.0
    %6913 = vmatpush1.msra.mxu0 0.0
    %6914 = vmatprep.subr.mxu0 0.0
    %6915 = vmatpush1.msra.mxu0 0.0
    %6916 = vmatprep.subr.mxu0 0.0
    %6917 = vmatpush1.msra.mxu0 0.0
    %6918 = vmatprep.subr.mxu0 0.0
    %6919 = vmatpush1.msra.mxu0 0.0
    %6920 = vmatprep.subr.mxu0 0.0
    %6921 = vmatpush1.msra.mxu0 0.0
    %6922 = vmatprep.subr.mxu0 0.0
    %6923 = vmatpush1.msra.mxu0 0.0
    %6924 = vmatprep.subr.mxu0 0.0
    %6925 = vmatpush1.msra.mxu0 0.0
    %6926 = vmatprep.subr.mxu0 0.0
    %6927 = vmatpush1.msra.mxu0 0.0
    %6928 = vmatprep.subr.mxu0 0.0
    %6929 = vmatpush1.msra.mxu0 0.0
    %6930 = vmatprep.subr.mxu0 0.0
    %6931 = vmatpush1.msra.mxu0 0.0
    %6932 = vmatprep.subr.mxu0 0.0
    %6933 = vmatpush1.msra.mxu0 0.0
    %6934 = vmatprep.subr.mxu0 0.0
    %6935 = vmatpush1.msra.mxu0 0.0
    %6936 = vmatprep.subr.mxu0 0.0
    %6937 = vmatpush1.msra.mxu0 0.0
    %6938 = vmatprep.subr.mxu0 0.0
    %6939 = vmatpush1.msra.mxu0 0.0
    %6940 = vmatprep.subr.mxu0 0.0
    %6941 = vmatpush1.msra.mxu0 0.0
    %6942 = vmatprep.mubr.f32.mxu0 0.0
    %6943 = vmatmul.mubr.f32.gmra.mrb[0].mxu0 %v6874
    %v6944 = vpop.f32.mrb[0].mxu0
    %v6945 = vadd.f32 0.0, %v6944
    %v6946 = vpop.f32.mrb[0].mxu0
    %6947 = vmatprep.mubr.f32.mxu0 0.0
    %6948 = vmatmul.mubr.f32.gmra.mrb[0].mxu0 %v6875
    %v6949 = vpop.f32.mrb[0].mxu0
    %v6950 = vadd.f32 0.0, %v6949
    %v6951 = vpop.f32.mrb[0].mxu0
    %6952 = vmatprep.mubr.f32.mxu0 0.0
    %6953 = vmatmul.mubr.f32.gmra.mrb[0].mxu0 %v6876
    %v6954 = vpop.f32.mrb[0].mxu0
    %v6955 = vadd.f32 0.0, %v6954
    %v6956 = vpop.f32.mrb[0].mxu0
    %6957 = vmatprep.mubr.f32.mxu0 0.0
    %6958 = vmatmul.mubr.f32.gmra.mrb[0].mxu0 %v6877
    %v6959 = vpop.f32.mrb[0].mxu0
    %v6960 = vadd.f32 0.0, %v6959
    %v6961 = vpop.f32.mrb[0].mxu0
    %6962 = vdwg.mxu0
    %s6963 = scalar_lea.vmem [#allocation11], 112
    %v6964 = vld [vmem:[%s6963] sm:$0xff]
    %v6965 = vld [vmem:[%s6963 + $0x8] sm:$0xff]
    %v6967 = vsel %vm5708, %v6945, 0
    %v6970 = vsel %vm5708, %v6950, 0
    %v6973 = vsel %vm5708, %v6955, 0
    %v6976 = vsel %vm5708, %v6960, 0
    %6978 = vmatprep.subr.mxu0 0.0
    %6979 = vmatpush1.msra.mxu0 %v6964
    %6980 = vmatprep.subr.mxu0 0.0
    %6981 = vmatpush1.msra.mxu0 %v6965
    %6982 = vmatprep.subr.mxu0 0.0
    %6983 = vmatpush1.msra.mxu0 0.0
    %6984 = vmatprep.subr.mxu0 0.0
    %6985 = vmatpush1.msra.mxu0 0.0
    %6986 = vmatprep.subr.mxu0 0.0
    %6987 = vmatpush1.msra.mxu0 0.0
    %6988 = vmatprep.subr.mxu0 0.0
    %6989 = vmatpush1.msra.mxu0 0.0
    %6990 = vmatprep.subr.mxu0 0.0
    %6991 = vmatpush1.msra.mxu0 0.0
    %6992 = vmatprep.subr.mxu0 0.0
    %6993 = vmatpush1.msra.mxu0 0.0
    %6994 = vmatprep.subr.mxu0 0.0
    %6995 = vmatpush1.msra.mxu0 0.0
    %6996 = vmatprep.subr.mxu0 0.0
    %6997 = vmatpush1.msra.mxu0 0.0
    %6998 = vmatprep.subr.mxu0 0.0
    %6999 = vmatpush1.msra.mxu0 0.0
    %7000 = vmatprep.subr.mxu0 0.0
    %7001 = vmatpush1.msra.mxu0 0.0
    %7002 = vmatprep.subr.mxu0 0.0
    %7003 = vmatpush1.msra.mxu0 0.0
    %7004 = vmatprep.subr.mxu0 0.0
    %7005 = vmatpush1.msra.mxu0 0.0
    %7006 = vmatprep.subr.mxu0 0.0
    %7007 = vmatpush1.msra.mxu0 0.0
    %7008 = vmatprep.subr.mxu0 0.0
    %7009 = vmatpush1.msra.mxu0 0.0
    %7010 = vmatprep.subr.mxu0 0.0
    %7011 = vmatpush1.msra.mxu0 0.0
    %7012 = vmatprep.subr.mxu0 0.0
    %7013 = vmatpush1.msra.mxu0 0.0
    %7014 = vmatprep.subr.mxu0 0.0
    %7015 = vmatpush1.msra.mxu0 0.0
    %7016 = vmatprep.subr.mxu0 0.0
    %7017 = vmatpush1.msra.mxu0 0.0
    %7018 = vmatprep.subr.mxu0 0.0
    %7019 = vmatpush1.msra.mxu0 0.0
    %7020 = vmatprep.subr.mxu0 0.0
    %7021 = vmatpush1.msra.mxu0 0.0
    %7022 = vmatprep.subr.mxu0 0.0
    %7023 = vmatpush1.msra.mxu0 0.0
    %7024 = vmatprep.subr.mxu0 0.0
    %7025 = vmatpush1.msra.mxu0 0.0
    %7026 = vmatprep.subr.mxu0 0.0
    %7027 = vmatpush1.msra.mxu0 0.0
    %7028 = vmatprep.subr.mxu0 0.0
    %7029 = vmatpush1.msra.mxu0 0.0
    %7030 = vmatprep.subr.mxu0 0.0
    %7031 = vmatpush1.msra.mxu0 0.0
    %7032 = vmatprep.subr.mxu0 0.0
    %7033 = vmatpush1.msra.mxu0 0.0
    %7034 = vmatprep.subr.mxu0 0.0
    %7035 = vmatpush1.msra.mxu0 0.0
    %7036 = vmatprep.subr.mxu0 0.0
    %7037 = vmatpush1.msra.mxu0 0.0
    %7038 = vmatprep.subr.mxu0 0.0
    %7039 = vmatpush1.msra.mxu0 0.0
    %7040 = vmatprep.subr.mxu0 0.0
    %7041 = vmatpush1.msra.mxu0 0.0
    %7042 = vmatprep.mubr.f32.mxu0 0.0
    %7043 = vmatmul.mubr.f32.gmra.mrb[0].mxu0 %v6967
    %v7044 = vpop.f32.mrb[0].mxu0
    %v7045 = vadd.f32 0.0, %v7044
    %v7046 = vpop.f32.mrb[0].mxu0
    %7047 = vmatprep.mubr.f32.mxu0 0.0
    %7048 = vmatmul.mubr.f32.gmra.mrb[0].mxu0 %v6970
    %v7049 = vpop.f32.mrb[0].mxu0
    %v7050 = vadd.f32 0.0, %v7049
    %v7051 = vpop.f32.mrb[0].mxu0
    %7052 = vmatprep.mubr.f32.mxu0 0.0
    %7053 = vmatmul.mubr.f32.gmra.mrb[0].mxu0 %v6973
    %v7054 = vpop.f32.mrb[0].mxu0
    %v7055 = vadd.f32 0.0, %v7054
    %v7056 = vpop.f32.mrb[0].mxu0
    %7057 = vmatprep.mubr.f32.mxu0 0.0
    %7058 = vmatmul.mubr.f32.gmra.mrb[0].mxu0 %v6976
    %v7059 = vpop.f32.mrb[0].mxu0
    %v7060 = vadd.f32 0.0, %v7059
    %v7061 = vpop.f32.mrb[0].mxu0
    %7062 = vdwg.mxu0
    %v7063 = vadd.f32 %v6869, %v7045
    %v7064 = vadd.f32 %v6870, %v7050
    %v7065 = vadd.f32 %v6871, %v7055
    %v7066 = vadd.f32 %v6872, %v7060
    %s7067 = scalar_lea.vmem [#allocation10], 256
    %v7068 = vld [vmem:[%s7067] sm:$0xff]
    %v7069 = vld [vmem:[%s7067 + $0x8] sm:$0xff]
    %v7070 = vld [vmem:[%s7067 + $0x10] sm:$0xff]
    %v7071 = vld [vmem:[%s7067 + $0x18] sm:$0xff]
    %7072 = vmatprep.subr.mxu0 0.0
    %7073 = vmatpush1.msra.mxu0 %v5508
    %7074 = vmatprep.subr.mxu0 0.0
    %7075 = vmatpush1.msra.mxu0 %v5509
    %7076 = vmatprep.subr.mxu0 0.0
    %7077 = vmatpush1.msra.mxu0 %v5510
    %7078 = vmatprep.subr.mxu0 0.0
    %7079 = vmatpush1.msra.mxu0 %v5511
    %7080 = vmatprep.subr.mxu0 0.0
    %7081 = vmatpush1.msra.mxu0 %v5512
    %7082 = vmatprep.subr.mxu0 0.0
    %7083 = vmatpush1.msra.mxu0 %v5513
    %7084 = vmatprep.subr.mxu0 0.0
    %7085 = vmatpush1.msra.mxu0 %v5514
    %7086 = vmatprep.subr.mxu0 0.0
    %7087 = vmatpush1.msra.mxu0 %v5515
    %7088 = vmatprep.subr.mxu0 0.0
    %7089 = vmatpush1.msra.mxu0 %v5516
    %7090 = vmatprep.subr.mxu0 0.0
    %7091 = vmatpush1.msra.mxu0 %v5517
    %7092 = vmatprep.subr.mxu0 0.0
    %7093 = vmatpush1.msra.mxu0 %v5518
    %7094 = vmatprep.subr.mxu0 0.0
    %7095 = vmatpush1.msra.mxu0 %v5519
    %7096 = vmatprep.subr.mxu0 0.0
    %7097 = vmatpush1.msra.mxu0 %v5520
    %7098 = vmatprep.subr.mxu0 0.0
    %7099 = vmatpush1.msra.mxu0 %v5521
    %7100 = vmatprep.subr.mxu0 0.0
    %7101 = vmatpush1.msra.mxu0 %v5522
    %7102 = vmatprep.subr.mxu0 0.0
    %7103 = vmatpush1.msra.mxu0 %v5523
    %7104 = vmatprep.subr.mxu0 0.0
    %7105 = vmatpush1.msra.mxu0 0.0
    %7106 = vmatprep.subr.mxu0 0.0
    %7107 = vmatpush1.msra.mxu0 0.0
    %7108 = vmatprep.subr.mxu0 0.0
    %7109 = vmatpush1.msra.mxu0 0.0
    %7110 = vmatprep.subr.mxu0 0.0
    %7111 = vmatpush1.msra.mxu0 0.0
    %7112 = vmatprep.subr.mxu0 0.0
    %7113 = vmatpush1.msra.mxu0 0.0
    %7114 = vmatprep.subr.mxu0 0.0
    %7115 = vmatpush1.msra.mxu0 0.0
    %7116 = vmatprep.subr.mxu0 0.0
    %7117 = vmatpush1.msra.mxu0 0.0
    %7118 = vmatprep.subr.mxu0 0.0
    %7119 = vmatpush1.msra.mxu0 0.0
    %7120 = vmatprep.subr.mxu0 0.0
    %7121 = vmatpush1.msra.mxu0 0.0
    %7122 = vmatprep.subr.mxu0 0.0
    %7123 = vmatpush1.msra.mxu0 0.0
    %7124 = vmatprep.subr.mxu0 0.0
    %7125 = vmatpush1.msra.mxu0 0.0
    %7126 = vmatprep.subr.mxu0 0.0
    %7127 = vmatpush1.msra.mxu0 0.0
    %7128 = vmatprep.subr.mxu0 0.0
    %7129 = vmatpush1.msra.mxu0 0.0
    %7130 = vmatprep.subr.mxu0 0.0
    %7131 = vmatpush1.msra.mxu0 0.0
    %7132 = vmatprep.subr.mxu0 0.0
    %7133 = vmatpush1.msra.mxu0 0.0
    %7134 = vmatprep.subr.mxu0 0.0
    %7135 = vmatpush1.msra.mxu0 0.0
    %7136 = vmatprep.mubr.f32.mxu0 0.0
    %7137 = vmatmul.mubr.f32.gmra.mrb[0].mxu0 %v7068
    %v7138 = vpop.f32.mrb[0].mxu0
    %v7139 = vadd.f32 0.0, %v7138
    %v7140 = vpop.f32.mrb[0].mxu0
    %7141 = vmatprep.mubr.f32.mxu0 0.0
    %7142 = vmatmul.mubr.f32.gmra.mrb[0].mxu0 %v7069
    %v7143 = vpop.f32.mrb[0].mxu0
    %v7144 = vadd.f32 0.0, %v7143
    %v7145 = vpop.f32.mrb[0].mxu0
    %7146 = vmatprep.mubr.f32.mxu0 0.0
    %7147 = vmatmul.mubr.f32.gmra.mrb[0].mxu0 %v7070
    %v7148 = vpop.f32.mrb[0].mxu0
    %v7149 = vadd.f32 0.0, %v7148
    %v7150 = vpop.f32.mrb[0].mxu0
    %7151 = vmatprep.mubr.f32.mxu0 0.0
    %7152 = vmatmul.mubr.f32.gmra.mrb[0].mxu0 %v7071
    %v7153 = vpop.f32.mrb[0].mxu0
    %v7154 = vadd.f32 0.0, %v7153
    %v7155 = vpop.f32.mrb[0].mxu0
    %7156 = vdwg.mxu0
    %s7157 = scalar_lea.vmem [#allocation11], 128
    %v7158 = vld [vmem:[%s7157] sm:$0xff]
    %v7159 = vld [vmem:[%s7157 + $0x8] sm:$0xff]
    %v7161 = vsel %vm5708, %v7139, 0
    %v7164 = vsel %vm5708, %v7144, 0
    %v7167 = vsel %vm5708, %v7149, 0
    %v7170 = vsel %vm5708, %v7154, 0
    %7172 = vmatprep.subr.mxu0 0.0
    %7173 = vmatpush1.msra.mxu0 %v7158
    %7174 = vmatprep.subr.mxu0 0.0
    %7175 = vmatpush1.msra.mxu0 %v7159
    %7176 = vmatprep.subr.mxu0 0.0
    %7177 = vmatpush1.msra.mxu0 0.0
    %7178 = vmatprep.subr.mxu0 0.0
    %7179 = vmatpush1.msra.mxu0 0.0
    %7180 = vmatprep.subr.mxu0 0.0
    %7181 = vmatpush1.msra.mxu0 0.0
    %7182 = vmatprep.subr.mxu0 0.0
    %7183 = vmatpush1.msra.mxu0 0.0
    %7184 = vmatprep.subr.mxu0 0.0
    %7185 = vmatpush1.msra.mxu0 0.0
    %7186 = vmatprep.subr.mxu0 0.0
    %7187 = vmatpush1.msra.mxu0 0.0
    %7188 = vmatprep.subr.mxu0 0.0
    %7189 = vmatpush1.msra.mxu0 0.0
    %7190 = vmatprep.subr.mxu0 0.0
    %7191 = vmatpush1.msra.mxu0 0.0
    %7192 = vmatprep.subr.mxu0 0.0
    %7193 = vmatpush1.msra.mxu0 0.0
    %7194 = vmatprep.subr.mxu0 0.0
    %7195 = vmatpush1.msra.mxu0 0.0
    %7196 = vmatprep.subr.mxu0 0.0
    %7197 = vmatpush1.msra.mxu0 0.0
    %7198 = vmatprep.subr.mxu0 0.0
    %7199 = vmatpush1.msra.mxu0 0.0
    %7200 = vmatprep.subr.mxu0 0.0
    %7201 = vmatpush1.msra.mxu0 0.0
    %7202 = vmatprep.subr.mxu0 0.0
    %7203 = vmatpush1.msra.mxu0 0.0
    %7204 = vmatprep.subr.mxu0 0.0
    %7205 = vmatpush1.msra.mxu0 0.0
    %7206 = vmatprep.subr.mxu0 0.0
    %7207 = vmatpush1.msra.mxu0 0.0
    %7208 = vmatprep.subr.mxu0 0.0
    %7209 = vmatpush1.msra.mxu0 0.0
    %7210 = vmatprep.subr.mxu0 0.0
    %7211 = vmatpush1.msra.mxu0 0.0
    %7212 = vmatprep.subr.mxu0 0.0
    %7213 = vmatpush1.msra.mxu0 0.0
    %7214 = vmatprep.subr.mxu0 0.0
    %7215 = vmatpush1.msra.mxu0 0.0
    %7216 = vmatprep.subr.mxu0 0.0
    %7217 = vmatpush1.msra.mxu0 0.0
    %7218 = vmatprep.subr.mxu0 0.0
    %7219 = vmatpush1.msra.mxu0 0.0
    %7220 = vmatprep.subr.mxu0 0.0
    %7221 = vmatpush1.msra.mxu0 0.0
    %7222 = vmatprep.subr.mxu0 0.0
    %7223 = vmatpush1.msra.mxu0 0.0
    %7224 = vmatprep.subr.mxu0 0.0
    %7225 = vmatpush1.msra.mxu0 0.0
    %7226 = vmatprep.subr.mxu0 0.0
    %7227 = vmatpush1.msra.mxu0 0.0
    %7228 = vmatprep.subr.mxu0 0.0
    %7229 = vmatpush1.msra.mxu0 0.0
    %7230 = vmatprep.subr.mxu0 0.0
    %7231 = vmatpush1.msra.mxu0 0.0
    %7232 = vmatprep.subr.mxu0 0.0
    %7233 = vmatpush1.msra.mxu0 0.0
    %7234 = vmatprep.subr.mxu0 0.0
    %7235 = vmatpush1.msra.mxu0 0.0
    %7236 = vmatprep.mubr.f32.mxu0 0.0
    %7237 = vmatmul.mubr.f32.gmra.mrb[0].mxu0 %v7161
    %v7238 = vpop.f32.mrb[0].mxu0
    %v7239 = vadd.f32 0.0, %v7238
    %v7240 = vpop.f32.mrb[0].mxu0
    %7241 = vmatprep.mubr.f32.mxu0 0.0
    %7242 = vmatmul.mubr.f32.gmra.mrb[0].mxu0 %v7164
    %v7243 = vpop.f32.mrb[0].mxu0
    %v7244 = vadd.f32 0.0, %v7243
    %v7245 = vpop.f32.mrb[0].mxu0
    %7246 = vmatprep.mubr.f32.mxu0 0.0
    %7247 = vmatmul.mubr.f32.gmra.mrb[0].mxu0 %v7167
    %v7248 = vpop.f32.mrb[0].mxu0
    %v7249 = vadd.f32 0.0, %v7248
    %v7250 = vpop.f32.mrb[0].mxu0
    %7251 = vmatprep.mubr.f32.mxu0 0.0
    %7252 = vmatmul.mubr.f32.gmra.mrb[0].mxu0 %v7170
    %v7253 = vpop.f32.mrb[0].mxu0
    %v7254 = vadd.f32 0.0, %v7253
    %v7255 = vpop.f32.mrb[0].mxu0
    %7256 = vdwg.mxu0
    %v7257 = vadd.f32 %v7063, %v7239
    %v7258 = vadd.f32 %v7064, %v7244
    %v7259 = vadd.f32 %v7065, %v7249
    %v7260 = vadd.f32 %v7066, %v7254
    %v7261 = vld [vmem:[#allocation13] sm:$0x1]
    %v7263 = vlaneseq
    %v7264 = vshrl.u32 %v7263, 7
    %v7265 = vsub.s32 0, %v7264
    %v7266 = vrot.slane %v7261, %v7265
    %v7268 = vadd.f32 %v7257, %v7266
    %v7269 = vadd.f32 %v7258, %v7266
    %v7270 = vadd.f32 %v7259, %v7266
    %v7271 = vadd.f32 %v7260, %v7266
    %vm7272 = vcmp.ge.f32.partialorder %v7268, 0.0
    %vm7273 = vcmp.ge.f32.partialorder %v7269, 0.0
    %vm7274 = vcmp.ge.f32.partialorder %v7270, 0.0
    %vm7275 = vcmp.ge.f32.partialorder %v7271, 0.0
    %v7276 = vmul.f32 %v7268, 0.2
    %v7277 = vmul.f32 %v7269, 0.2
    %v7278 = vmul.f32 %v7270, 0.2
    %v7279 = vmul.f32 %v7271, 0.2
    %v7280 = vsel %vm7272, %v7268, %v7276
    %v7281 = vsel %vm7273, %v7269, %v7277
    %v7282 = vsel %vm7274, %v7270, %v7278
    %v7283 = vsel %vm7275, %v7271, %v7279
    %v7284 = vld [vmem:[#allocation14] sm:$0x1]
    %v7286 = vlaneseq
    %v7287 = vshrl.u32 %v7286, 7
    %v7288 = vsub.s32 0, %v7287
    %v7289 = vrot.slane %v7284, %v7288
    %v7291 = vadd.f32 %v7280, %v7289
    %v7292 = vadd.f32 %v7281, %v7289
    %v7293 = vadd.f32 %v7282, %v7289
    %v7294 = vadd.f32 %v7283, %v7289
    %v7295 = vld [vmem:[#allocation16] sm:$0xff]
    %vm7296 = vcmask 261120
    %v7298 = vsel %vm7296, %v7295, 0
    %7300 = vmatprep.subr.mxu0 0.0
    %7301 = vmatpush1.msra.mxu0 %v7291
    %7302 = vmatprep.subr.mxu0 0.0
    %7303 = vmatpush1.msra.mxu0 %v7292
    %7304 = vmatprep.subr.mxu0 0.0
    %7305 = vmatpush1.msra.mxu0 %v7293
    %7306 = vmatprep.subr.mxu0 0.0
    %7307 = vmatpush1.msra.mxu0 %v7294
    %7308 = vmatprep.subr.mxu0 0.0
    %7309 = vmatpush1.msra.mxu0 0.0
    %7310 = vmatprep.subr.mxu0 0.0
    %7311 = vmatpush1.msra.mxu0 0.0
    %7312 = vmatprep.subr.mxu0 0.0
    %7313 = vmatpush1.msra.mxu0 0.0
    %7314 = vmatprep.subr.mxu0 0.0
    %7315 = vmatpush1.msra.mxu0 0.0
    %7316 = vmatprep.subr.mxu0 0.0
    %7317 = vmatpush1.msra.mxu0 0.0
    %7318 = vmatprep.subr.mxu0 0.0
    %7319 = vmatpush1.msra.mxu0 0.0
    %7320 = vmatprep.subr.mxu0 0.0
    %7321 = vmatpush1.msra.mxu0 0.0
    %7322 = vmatprep.subr.mxu0 0.0
    %7323 = vmatpush1.msra.mxu0 0.0
    %7324 = vmatprep.subr.mxu0 0.0
    %7325 = vmatpush1.msra.mxu0 0.0
    %7326 = vmatprep.subr.mxu0 0.0
    %7327 = vmatpush1.msra.mxu0 0.0
    %7328 = vmatprep.subr.mxu0 0.0
    %7329 = vmatpush1.msra.mxu0 0.0
    %7330 = vmatprep.subr.mxu0 0.0
    %7331 = vmatpush1.msra.mxu0 0.0
    %7332 = vmatprep.subr.mxu0 0.0
    %7333 = vmatpush1.msra.mxu0 0.0
    %7334 = vmatprep.subr.mxu0 0.0
    %7335 = vmatpush1.msra.mxu0 0.0
    %7336 = vmatprep.subr.mxu0 0.0
    %7337 = vmatpush1.msra.mxu0 0.0
    %7338 = vmatprep.subr.mxu0 0.0
    %7339 = vmatpush1.msra.mxu0 0.0
    %7340 = vmatprep.subr.mxu0 0.0
    %7341 = vmatpush1.msra.mxu0 0.0
    %7342 = vmatprep.subr.mxu0 0.0
    %7343 = vmatpush1.msra.mxu0 0.0
    %7344 = vmatprep.subr.mxu0 0.0
    %7345 = vmatpush1.msra.mxu0 0.0
    %7346 = vmatprep.subr.mxu0 0.0
    %7347 = vmatpush1.msra.mxu0 0.0
    %7348 = vmatprep.subr.mxu0 0.0
    %7349 = vmatpush1.msra.mxu0 0.0
    %7350 = vmatprep.subr.mxu0 0.0
    %7351 = vmatpush1.msra.mxu0 0.0
    %7352 = vmatprep.subr.mxu0 0.0
    %7353 = vmatpush1.msra.mxu0 0.0
    %7354 = vmatprep.subr.mxu0 0.0
    %7355 = vmatpush1.msra.mxu0 0.0
    %7356 = vmatprep.subr.mxu0 0.0
    %7357 = vmatpush1.msra.mxu0 0.0
    %7358 = vmatprep.subr.mxu0 0.0
    %7359 = vmatpush1.msra.mxu0 0.0
    %7360 = vmatprep.subr.mxu0 0.0
    %7361 = vmatpush1.msra.mxu0 0.0
    %7362 = vmatprep.subr.mxu0 0.0
    %7363 = vmatpush1.msra.mxu0 0.0
    %7364 = vmatprep.mubr.f32.mxu0 0.0
    %7365 = vmatmul.mubr.f32.gmra.mrb[0].mxu0 %v7298
    %v7366 = vpop.f32.mrb[0].mxu0
    %v7367 = vadd.f32 0.0, %v7366
    %v7368 = vpop.f32.mrb[0].mxu0
    %7369 = vdwg.mxu0
    %v7370 = vld [vmem:[#allocation17] sm:$0xff]
    %v7371 = vld [vmem:[#allocation17 + $0x8] sm:$0xff]
    %v7372 = vld [vmem:[#allocation17 + $0x10] sm:$0xff]
    %v7373 = vld [vmem:[#allocation17 + $0x18] sm:$0xff]
    %s7374 = scalar_lea.vmem [#allocation16], 8
    %v7375 = vld [vmem:[%s7374] sm:$0xff]
    %v7377 = vsel %vm7296, %v7375, 0
    %7379 = vmatprep.subr.mxu0 0.0
    %7380 = vmatpush1.msra.mxu0 %v7291
    %7381 = vmatprep.subr.mxu0 0.0
    %7382 = vmatpush1.msra.mxu0 %v7292
    %7383 = vmatprep.subr.mxu0 0.0
    %7384 = vmatpush1.msra.mxu0 %v7293
    %7385 = vmatprep.subr.mxu0 0.0
    %7386 = vmatpush1.msra.mxu0 %v7294
    %7387 = vmatprep.subr.mxu0 0.0
    %7388 = vmatpush1.msra.mxu0 0.0
    %7389 = vmatprep.subr.mxu0 0.0
    %7390 = vmatpush1.msra.mxu0 0.0
    %7391 = vmatprep.subr.mxu0 0.0
    %7392 = vmatpush1.msra.mxu0 0.0
    %7393 = vmatprep.subr.mxu0 0.0
    %7394 = vmatpush1.msra.mxu0 0.0
    %7395 = vmatprep.subr.mxu0 0.0
    %7396 = vmatpush1.msra.mxu0 0.0
    %7397 = vmatprep.subr.mxu0 0.0
    %7398 = vmatpush1.msra.mxu0 0.0
    %7399 = vmatprep.subr.mxu0 0.0
    %7400 = vmatpush1.msra.mxu0 0.0
    %7401 = vmatprep.subr.mxu0 0.0
    %7402 = vmatpush1.msra.mxu0 0.0
    %7403 = vmatprep.subr.mxu0 0.0
    %7404 = vmatpush1.msra.mxu0 0.0
    %7405 = vmatprep.subr.mxu0 0.0
    %7406 = vmatpush1.msra.mxu0 0.0
    %7407 = vmatprep.subr.mxu0 0.0
    %7408 = vmatpush1.msra.mxu0 0.0
    %7409 = vmatprep.subr.mxu0 0.0
    %7410 = vmatpush1.msra.mxu0 0.0
    %7411 = vmatprep.subr.mxu0 0.0
    %7412 = vmatpush1.msra.mxu0 0.0
    %7413 = vmatprep.subr.mxu0 0.0
    %7414 = vmatpush1.msra.mxu0 0.0
    %7415 = vmatprep.subr.mxu0 0.0
    %7416 = vmatpush1.msra.mxu0 0.0
    %7417 = vmatprep.subr.mxu0 0.0
    %7418 = vmatpush1.msra.mxu0 0.0
    %7419 = vmatprep.subr.mxu0 0.0
    %7420 = vmatpush1.msra.mxu0 0.0
    %7421 = vmatprep.subr.mxu0 0.0
    %7422 = vmatpush1.msra.mxu0 0.0
    %7423 = vmatprep.subr.mxu0 0.0
    %7424 = vmatpush1.msra.mxu0 0.0
    %7425 = vmatprep.subr.mxu0 0.0
    %7426 = vmatpush1.msra.mxu0 0.0
    %7427 = vmatprep.subr.mxu0 0.0
    %7428 = vmatpush1.msra.mxu0 0.0
    %7429 = vmatprep.subr.mxu0 0.0
    %7430 = vmatpush1.msra.mxu0 0.0
    %7431 = vmatprep.subr.mxu0 0.0
    %7432 = vmatpush1.msra.mxu0 0.0
    %7433 = vmatprep.subr.mxu0 0.0
    %7434 = vmatpush1.msra.mxu0 0.0
    %7435 = vmatprep.subr.mxu0 0.0
    %7436 = vmatpush1.msra.mxu0 0.0
    %7437 = vmatprep.subr.mxu0 0.0
    %7438 = vmatpush1.msra.mxu0 0.0
    %7439 = vmatprep.subr.mxu0 0.0
    %7440 = vmatpush1.msra.mxu0 0.0
    %7441 = vmatprep.subr.mxu0 0.0
    %7442 = vmatpush1.msra.mxu0 0.0
    %7443 = vmatprep.mubr.f32.mxu0 0.0
    %7444 = vmatmul.mubr.f32.gmra.mrb[0].mxu0 %v7377
    %v7445 = vpop.f32.mrb[0].mxu0
    %v7446 = vadd.f32 0.0, %v7445
    %v7447 = vpop.f32.mrb[0].mxu0
    %7448 = vdwg.mxu0
    %s7449 = scalar_lea.vmem [#allocation17], 32
    %v7450 = vld [vmem:[%s7449] sm:$0xff]
    %v7451 = vld [vmem:[%s7449 + $0x8] sm:$0xff]
    %v7452 = vld [vmem:[%s7449 + $0x10] sm:$0xff]
    %v7453 = vld [vmem:[%s7449 + $0x18] sm:$0xff]
    %v7455 = vsel %vm7296, %v7446, 0
    %7457 = vmatprep.subr.mxu0 0.0
    %7458 = vmatpush1.msra.mxu0 %v7450
    %7459 = vmatprep.subr.mxu0 0.0
    %7460 = vmatpush1.msra.mxu0 %v7451
    %7461 = vmatprep.subr.mxu0 0.0
    %7462 = vmatpush1.msra.mxu0 %v7452
    %7463 = vmatprep.subr.mxu0 0.0
    %7464 = vmatpush1.msra.mxu0 %v7453
    %7465 = vmatprep.subr.mxu0 0.0
    %7466 = vmatpush1.msra.mxu0 0.0
    %7467 = vmatprep.subr.mxu0 0.0
    %7468 = vmatpush1.msra.mxu0 0.0
    %7469 = vmatprep.subr.mxu0 0.0
    %7470 = vmatpush1.msra.mxu0 0.0
    %7471 = vmatprep.subr.mxu0 0.0
    %7472 = vmatpush1.msra.mxu0 0.0
    %7473 = vmatprep.subr.mxu0 0.0
    %7474 = vmatpush1.msra.mxu0 0.0
    %7475 = vmatprep.subr.mxu0 0.0
    %7476 = vmatpush1.msra.mxu0 0.0
    %7477 = vmatprep.subr.mxu0 0.0
    %7478 = vmatpush1.msra.mxu0 0.0
    %7479 = vmatprep.subr.mxu0 0.0
    %7480 = vmatpush1.msra.mxu0 0.0
    %7481 = vmatprep.subr.mxu0 0.0
    %7482 = vmatpush1.msra.mxu0 0.0
    %7483 = vmatprep.subr.mxu0 0.0
    %7484 = vmatpush1.msra.mxu0 0.0
    %7485 = vmatprep.subr.mxu0 0.0
    %7486 = vmatpush1.msra.mxu0 0.0
    %7487 = vmatprep.subr.mxu0 0.0
    %7488 = vmatpush1.msra.mxu0 0.0
    %7489 = vmatprep.subr.mxu0 0.0
    %7490 = vmatpush1.msra.mxu0 0.0
    %7491 = vmatprep.subr.mxu0 0.0
    %7492 = vmatpush1.msra.mxu0 0.0
    %7493 = vmatprep.subr.mxu0 0.0
    %7494 = vmatpush1.msra.mxu0 0.0
    %7495 = vmatprep.subr.mxu0 0.0
    %7496 = vmatpush1.msra.mxu0 0.0
    %7497 = vmatprep.subr.mxu0 0.0
    %7498 = vmatpush1.msra.mxu0 0.0
    %7499 = vmatprep.subr.mxu0 0.0
    %7500 = vmatpush1.msra.mxu0 0.0
    %7501 = vmatprep.subr.mxu0 0.0
    %7502 = vmatpush1.msra.mxu0 0.0
    %7503 = vmatprep.subr.mxu0 0.0
    %7504 = vmatpush1.msra.mxu0 0.0
    %7505 = vmatprep.subr.mxu0 0.0
    %7506 = vmatpush1.msra.mxu0 0.0
    %7507 = vmatprep.subr.mxu0 0.0
    %7508 = vmatpush1.msra.mxu0 0.0
    %7509 = vmatprep.subr.mxu0 0.0
    %7510 = vmatpush1.msra.mxu0 0.0
    %7511 = vmatprep.subr.mxu0 0.0
    %7512 = vmatpush1.msra.mxu0 0.0
    %7513 = vmatprep.subr.mxu0 0.0
    %7514 = vmatpush1.msra.mxu0 0.0
    %7515 = vmatprep.subr.mxu0 0.0
    %7516 = vmatpush1.msra.mxu0 0.0
    %7517 = vmatprep.subr.mxu0 0.0
    %7518 = vmatpush1.msra.mxu0 0.0
    %7519 = vmatprep.subr.mxu0 0.0
    %7520 = vmatpush1.msra.mxu0 0.0
    %7521 = vmatprep.mubr.f32.mxu0 0.0
    %7522 = vmatmul.mubr.f32.gmra.mrb[0].mxu0 %v7455
    %v7523 = vpop.f32.mrb[0].mxu0
    %v7524 = vadd.f32 0.0, %v7523
    %v7525 = vpop.f32.mrb[0].mxu0
    %7526 = vdwg.mxu0
    %v7528 = vsel %vm7296, %v7367, 0
    %7530 = vmatprep.subr.mxu0 0.0
    %7531 = vmatpush1.msra.mxu0 %v7370
    %7532 = vmatprep.subr.mxu0 0.0
    %7533 = vmatpush1.msra.mxu0 %v7371
    %7534 = vmatprep.subr.mxu0 0.0
    %7535 = vmatpush1.msra.mxu0 %v7372
    %7536 = vmatprep.subr.mxu0 0.0
    %7537 = vmatpush1.msra.mxu0 %v7373
    %7538 = vmatprep.subr.mxu0 0.0
    %7539 = vmatpush1.msra.mxu0 0.0
    %7540 = vmatprep.subr.mxu0 0.0
    %7541 = vmatpush1.msra.mxu0 0.0
    %7542 = vmatprep.subr.mxu0 0.0
    %7543 = vmatpush1.msra.mxu0 0.0
    %7544 = vmatprep.subr.mxu0 0.0
    %7545 = vmatpush1.msra.mxu0 0.0
    %7546 = vmatprep.subr.mxu0 0.0
    %7547 = vmatpush1.msra.mxu0 0.0
    %7548 = vmatprep.subr.mxu0 0.0
    %7549 = vmatpush1.msra.mxu0 0.0
    %7550 = vmatprep.subr.mxu0 0.0
    %7551 = vmatpush1.msra.mxu0 0.0
    %7552 = vmatprep.subr.mxu0 0.0
    %7553 = vmatpush1.msra.mxu0 0.0
    %7554 = vmatprep.subr.mxu0 0.0
    %7555 = vmatpush1.msra.mxu0 0.0
    %7556 = vmatprep.subr.mxu0 0.0
    %7557 = vmatpush1.msra.mxu0 0.0
    %7558 = vmatprep.subr.mxu0 0.0
    %7559 = vmatpush1.msra.mxu0 0.0
    %7560 = vmatprep.subr.mxu0 0.0
    %7561 = vmatpush1.msra.mxu0 0.0
    %7562 = vmatprep.subr.mxu0 0.0
    %7563 = vmatpush1.msra.mxu0 0.0
    %7564 = vmatprep.subr.mxu0 0.0
    %7565 = vmatpush1.msra.mxu0 0.0
    %7566 = vmatprep.subr.mxu0 0.0
    %7567 = vmatpush1.msra.mxu0 0.0
    %7568 = vmatprep.subr.mxu0 0.0
    %7569 = vmatpush1.msra.mxu0 0.0
    %7570 = vmatprep.subr.mxu0 0.0
    %7571 = vmatpush1.msra.mxu0 0.0
    %7572 = vmatprep.subr.mxu0 0.0
    %7573 = vmatpush1.msra.mxu0 0.0
    %7574 = vmatprep.subr.mxu0 0.0
    %7575 = vmatpush1.msra.mxu0 0.0
    %7576 = vmatprep.subr.mxu0 0.0
    %7577 = vmatpush1.msra.mxu0 0.0
    %7578 = vmatprep.subr.mxu0 0.0
    %7579 = vmatpush1.msra.mxu0 0.0
    %7580 = vmatprep.subr.mxu0 0.0
    %7581 = vmatpush1.msra.mxu0 0.0
    %7582 = vmatprep.subr.mxu0 0.0
    %7583 = vmatpush1.msra.mxu0 0.0
    %7584 = vmatprep.subr.mxu0 0.0
    %7585 = vmatpush1.msra.mxu0 0.0
    %7586 = vmatprep.subr.mxu0 0.0
    %7587 = vmatpush1.msra.mxu0 0.0
    %7588 = vmatprep.subr.mxu0 0.0
    %7589 = vmatpush1.msra.mxu0 0.0
    %7590 = vmatprep.subr.mxu0 0.0
    %7591 = vmatpush1.msra.mxu0 0.0
    %7592 = vmatprep.subr.mxu0 0.0
    %7593 = vmatpush1.msra.mxu0 0.0
    %7594 = vmatprep.mubr.f32.mxu0 0.0
    %7595 = vmatmul.mubr.f32.gmra.mrb[0].mxu0 %v7528
    %v7596 = vpop.f32.mrb[0].mxu0
    %v7597 = vadd.f32 %v7524, %v7596
    %v7598 = vpop.f32.mrb[0].mxu0
    %7599 = vdwg.mxu0
    %s7600 = scalar_lea.vmem [#allocation16], 16
    %v7601 = vld [vmem:[%s7600] sm:$0xff]
    %v7603 = vsel %vm7296, %v7601, 0
    %7605 = vmatprep.subr.mxu0 0.0
    %7606 = vmatpush1.msra.mxu0 %v7291
    %7607 = vmatprep.subr.mxu0 0.0
    %7608 = vmatpush1.msra.mxu0 %v7292
    %7609 = vmatprep.subr.mxu0 0.0
    %7610 = vmatpush1.msra.mxu0 %v7293
    %7611 = vmatprep.subr.mxu0 0.0
    %7612 = vmatpush1.msra.mxu0 %v7294
    %7613 = vmatprep.subr.mxu0 0.0
    %7614 = vmatpush1.msra.mxu0 0.0
    %7615 = vmatprep.subr.mxu0 0.0
    %7616 = vmatpush1.msra.mxu0 0.0
    %7617 = vmatprep.subr.mxu0 0.0
    %7618 = vmatpush1.msra.mxu0 0.0
    %7619 = vmatprep.subr.mxu0 0.0
    %7620 = vmatpush1.msra.mxu0 0.0
    %7621 = vmatprep.subr.mxu0 0.0
    %7622 = vmatpush1.msra.mxu0 0.0
    %7623 = vmatprep.subr.mxu0 0.0
    %7624 = vmatpush1.msra.mxu0 0.0
    %7625 = vmatprep.subr.mxu0 0.0
    %7626 = vmatpush1.msra.mxu0 0.0
    %7627 = vmatprep.subr.mxu0 0.0
    %7628 = vmatpush1.msra.mxu0 0.0
    %7629 = vmatprep.subr.mxu0 0.0
    %7630 = vmatpush1.msra.mxu0 0.0
    %7631 = vmatprep.subr.mxu0 0.0
    %7632 = vmatpush1.msra.mxu0 0.0
    %7633 = vmatprep.subr.mxu0 0.0
    %7634 = vmatpush1.msra.mxu0 0.0
    %7635 = vmatprep.subr.mxu0 0.0
    %7636 = vmatpush1.msra.mxu0 0.0
    %7637 = vmatprep.subr.mxu0 0.0
    %7638 = vmatpush1.msra.mxu0 0.0
    %7639 = vmatprep.subr.mxu0 0.0
    %7640 = vmatpush1.msra.mxu0 0.0
    %7641 = vmatprep.subr.mxu0 0.0
    %7642 = vmatpush1.msra.mxu0 0.0
    %7643 = vmatprep.subr.mxu0 0.0
    %7644 = vmatpush1.msra.mxu0 0.0
    %7645 = vmatprep.subr.mxu0 0.0
    %7646 = vmatpush1.msra.mxu0 0.0
    %7647 = vmatprep.subr.mxu0 0.0
    %7648 = vmatpush1.msra.mxu0 0.0
    %7649 = vmatprep.subr.mxu0 0.0
    %7650 = vmatpush1.msra.mxu0 0.0
    %7651 = vmatprep.subr.mxu0 0.0
    %7652 = vmatpush1.msra.mxu0 0.0
    %7653 = vmatprep.subr.mxu0 0.0
    %7654 = vmatpush1.msra.mxu0 0.0
    %7655 = vmatprep.subr.mxu0 0.0
    %7656 = vmatpush1.msra.mxu0 0.0
    %7657 = vmatprep.subr.mxu0 0.0
    %7658 = vmatpush1.msra.mxu0 0.0
    %7659 = vmatprep.subr.mxu0 0.0
    %7660 = vmatpush1.msra.mxu0 0.0
    %7661 = vmatprep.subr.mxu0 0.0
    %7662 = vmatpush1.msra.mxu0 0.0
    %7663 = vmatprep.subr.mxu0 0.0
    %7664 = vmatpush1.msra.mxu0 0.0
    %7665 = vmatprep.subr.mxu0 0.0
    %7666 = vmatpush1.msra.mxu0 0.0
    %7667 = vmatprep.subr.mxu0 0.0
    %7668 = vmatpush1.msra.mxu0 0.0
    %7669 = vmatprep.mubr.f32.mxu0 0.0
    %7670 = vmatmul.mubr.f32.gmra.mrb[0].mxu0 %v7603
    %v7671 = vpop.f32.mrb[0].mxu0
    %v7672 = vadd.f32 0.0, %v7671
    %v7673 = vpop.f32.mrb[0].mxu0
    %7674 = vdwg.mxu0
    %s7675 = scalar_lea.vmem [#allocation17], 64
    %v7676 = vld [vmem:[%s7675] sm:$0xff]
    %v7677 = vld [vmem:[%s7675 + $0x8] sm:$0xff]
    %v7678 = vld [vmem:[%s7675 + $0x10] sm:$0xff]
    %v7679 = vld [vmem:[%s7675 + $0x18] sm:$0xff]
    %v7681 = vsel %vm7296, %v7672, 0
    %7683 = vmatprep.subr.mxu0 0.0
    %7684 = vmatpush1.msra.mxu0 %v7676
    %7685 = vmatprep.subr.mxu0 0.0
    %7686 = vmatpush1.msra.mxu0 %v7677
    %7687 = vmatprep.subr.mxu0 0.0
    %7688 = vmatpush1.msra.mxu0 %v7678
    %7689 = vmatprep.subr.mxu0 0.0
    %7690 = vmatpush1.msra.mxu0 %v7679
    %7691 = vmatprep.subr.mxu0 0.0
    %7692 = vmatpush1.msra.mxu0 0.0
    %7693 = vmatprep.subr.mxu0 0.0
    %7694 = vmatpush1.msra.mxu0 0.0
    %7695 = vmatprep.subr.mxu0 0.0
    %7696 = vmatpush1.msra.mxu0 0.0
    %7697 = vmatprep.subr.mxu0 0.0
    %7698 = vmatpush1.msra.mxu0 0.0
    %7699 = vmatprep.subr.mxu0 0.0
    %7700 = vmatpush1.msra.mxu0 0.0
    %7701 = vmatprep.subr.mxu0 0.0
    %7702 = vmatpush1.msra.mxu0 0.0
    %7703 = vmatprep.subr.mxu0 0.0
    %7704 = vmatpush1.msra.mxu0 0.0
    %7705 = vmatprep.subr.mxu0 0.0
    %7706 = vmatpush1.msra.mxu0 0.0
    %7707 = vmatprep.subr.mxu0 0.0
    %7708 = vmatpush1.msra.mxu0 0.0
    %7709 = vmatprep.subr.mxu0 0.0
    %7710 = vmatpush1.msra.mxu0 0.0
    %7711 = vmatprep.subr.mxu0 0.0
    %7712 = vmatpush1.msra.mxu0 0.0
    %7713 = vmatprep.subr.mxu0 0.0
    %7714 = vmatpush1.msra.mxu0 0.0
    %7715 = vmatprep.subr.mxu0 0.0
    %7716 = vmatpush1.msra.mxu0 0.0
    %7717 = vmatprep.subr.mxu0 0.0
    %7718 = vmatpush1.msra.mxu0 0.0
    %7719 = vmatprep.subr.mxu0 0.0
    %7720 = vmatpush1.msra.mxu0 0.0
    %7721 = vmatprep.subr.mxu0 0.0
    %7722 = vmatpush1.msra.mxu0 0.0
    %7723 = vmatprep.subr.mxu0 0.0
    %7724 = vmatpush1.msra.mxu0 0.0
    %7725 = vmatprep.subr.mxu0 0.0
    %7726 = vmatpush1.msra.mxu0 0.0
    %7727 = vmatprep.subr.mxu0 0.0
    %7728 = vmatpush1.msra.mxu0 0.0
    %7729 = vmatprep.subr.mxu0 0.0
    %7730 = vmatpush1.msra.mxu0 0.0
    %7731 = vmatprep.subr.mxu0 0.0
    %7732 = vmatpush1.msra.mxu0 0.0
    %7733 = vmatprep.subr.mxu0 0.0
    %7734 = vmatpush1.msra.mxu0 0.0
    %7735 = vmatprep.subr.mxu0 0.0
    %7736 = vmatpush1.msra.mxu0 0.0
    %7737 = vmatprep.subr.mxu0 0.0
    %7738 = vmatpush1.msra.mxu0 0.0
    %7739 = vmatprep.subr.mxu0 0.0
    %7740 = vmatpush1.msra.mxu0 0.0
    %7741 = vmatprep.subr.mxu0 0.0
    %7742 = vmatpush1.msra.mxu0 0.0
    %7743 = vmatprep.subr.mxu0 0.0
    %7744 = vmatpush1.msra.mxu0 0.0
    %7745 = vmatprep.subr.mxu0 0.0
    %7746 = vmatpush1.msra.mxu0 0.0
    %7747 = vmatprep.mubr.f32.mxu0 0.0
    %7748 = vmatmul.mubr.f32.gmra.mrb[0].mxu0 %v7681
    %v7749 = vpop.f32.mrb[0].mxu0
    %v7750 = vadd.f32 0.0, %v7749
    %v7751 = vpop.f32.mrb[0].mxu0
    %7752 = vdwg.mxu0
    %v7753 = vadd.f32 %v7597, %v7750
    %s7754 = scalar_lea.vmem [#allocation16], 24
    %v7755 = vld [vmem:[%s7754] sm:$0xff]
    %v7757 = vsel %vm7296, %v7755, 0
    %7759 = vmatprep.subr.mxu0 0.0
    %7760 = vmatpush1.msra.mxu0 %v7291
    %7761 = vmatprep.subr.mxu0 0.0
    %7762 = vmatpush1.msra.mxu0 %v7292
    %7763 = vmatprep.subr.mxu0 0.0
    %7764 = vmatpush1.msra.mxu0 %v7293
    %7765 = vmatprep.subr.mxu0 0.0
    %7766 = vmatpush1.msra.mxu0 %v7294
    %7767 = vmatprep.subr.mxu0 0.0
    %7768 = vmatpush1.msra.mxu0 0.0
    %7769 = vmatprep.subr.mxu0 0.0
    %7770 = vmatpush1.msra.mxu0 0.0
    %7771 = vmatprep.subr.mxu0 0.0
    %7772 = vmatpush1.msra.mxu0 0.0
    %7773 = vmatprep.subr.mxu0 0.0
    %7774 = vmatpush1.msra.mxu0 0.0
    %7775 = vmatprep.subr.mxu0 0.0
    %7776 = vmatpush1.msra.mxu0 0.0
    %7777 = vmatprep.subr.mxu0 0.0
    %7778 = vmatpush1.msra.mxu0 0.0
    %7779 = vmatprep.subr.mxu0 0.0
    %7780 = vmatpush1.msra.mxu0 0.0
    %7781 = vmatprep.subr.mxu0 0.0
    %7782 = vmatpush1.msra.mxu0 0.0
    %7783 = vmatprep.subr.mxu0 0.0
    %7784 = vmatpush1.msra.mxu0 0.0
    %7785 = vmatprep.subr.mxu0 0.0
    %7786 = vmatpush1.msra.mxu0 0.0
    %7787 = vmatprep.subr.mxu0 0.0
    %7788 = vmatpush1.msra.mxu0 0.0
    %7789 = vmatprep.subr.mxu0 0.0
    %7790 = vmatpush1.msra.mxu0 0.0
    %7791 = vmatprep.subr.mxu0 0.0
    %7792 = vmatpush1.msra.mxu0 0.0
    %7793 = vmatprep.subr.mxu0 0.0
    %7794 = vmatpush1.msra.mxu0 0.0
    %7795 = vmatprep.subr.mxu0 0.0
    %7796 = vmatpush1.msra.mxu0 0.0
    %7797 = vmatprep.subr.mxu0 0.0
    %7798 = vmatpush1.msra.mxu0 0.0
    %7799 = vmatprep.subr.mxu0 0.0
    %7800 = vmatpush1.msra.mxu0 0.0
    %7801 = vmatprep.subr.mxu0 0.0
    %7802 = vmatpush1.msra.mxu0 0.0
    %7803 = vmatprep.subr.mxu0 0.0
    %7804 = vmatpush1.msra.mxu0 0.0
    %7805 = vmatprep.subr.mxu0 0.0
    %7806 = vmatpush1.msra.mxu0 0.0
    %7807 = vmatprep.subr.mxu0 0.0
    %7808 = vmatpush1.msra.mxu0 0.0
    %7809 = vmatprep.subr.mxu0 0.0
    %7810 = vmatpush1.msra.mxu0 0.0
    %7811 = vmatprep.subr.mxu0 0.0
    %7812 = vmatpush1.msra.mxu0 0.0
    %7813 = vmatprep.subr.mxu0 0.0
    %7814 = vmatpush1.msra.mxu0 0.0
    %7815 = vmatprep.subr.mxu0 0.0
    %7816 = vmatpush1.msra.mxu0 0.0
    %7817 = vmatprep.subr.mxu0 0.0
    %7818 = vmatpush1.msra.mxu0 0.0
    %7819 = vmatprep.subr.mxu0 0.0
    %7820 = vmatpush1.msra.mxu0 0.0
    %7821 = vmatprep.subr.mxu0 0.0
    %7822 = vmatpush1.msra.mxu0 0.0
    %7823 = vmatprep.mubr.f32.mxu0 0.0
    %7824 = vmatmul.mubr.f32.gmra.mrb[0].mxu0 %v7757
    %v7825 = vpop.f32.mrb[0].mxu0
    %v7826 = vadd.f32 0.0, %v7825
    %v7827 = vpop.f32.mrb[0].mxu0
    %7828 = vdwg.mxu0
    %s7829 = scalar_lea.vmem [#allocation17], 96
    %v7830 = vld [vmem:[%s7829] sm:$0xff]
    %v7831 = vld [vmem:[%s7829 + $0x8] sm:$0xff]
    %v7832 = vld [vmem:[%s7829 + $0x10] sm:$0xff]
    %v7833 = vld [vmem:[%s7829 + $0x18] sm:$0xff]
    %v7835 = vsel %vm7296, %v7826, 0
    %7837 = vmatprep.subr.mxu0 0.0
    %7838 = vmatpush1.msra.mxu0 %v7830
    %7839 = vmatprep.subr.mxu0 0.0
    %7840 = vmatpush1.msra.mxu0 %v7831
    %7841 = vmatprep.subr.mxu0 0.0
    %7842 = vmatpush1.msra.mxu0 %v7832
    %7843 = vmatprep.subr.mxu0 0.0
    %7844 = vmatpush1.msra.mxu0 %v7833
    %7845 = vmatprep.subr.mxu0 0.0
    %7846 = vmatpush1.msra.mxu0 0.0
    %7847 = vmatprep.subr.mxu0 0.0
    %7848 = vmatpush1.msra.mxu0 0.0
    %7849 = vmatprep.subr.mxu0 0.0
    %7850 = vmatpush1.msra.mxu0 0.0
    %7851 = vmatprep.subr.mxu0 0.0
    %7852 = vmatpush1.msra.mxu0 0.0
    %7853 = vmatprep.subr.mxu0 0.0
    %7854 = vmatpush1.msra.mxu0 0.0
    %7855 = vmatprep.subr.mxu0 0.0
    %7856 = vmatpush1.msra.mxu0 0.0
    %7857 = vmatprep.subr.mxu0 0.0
    %7858 = vmatpush1.msra.mxu0 0.0
    %7859 = vmatprep.subr.mxu0 0.0
    %7860 = vmatpush1.msra.mxu0 0.0
    %7861 = vmatprep.subr.mxu0 0.0
    %7862 = vmatpush1.msra.mxu0 0.0
    %7863 = vmatprep.subr.mxu0 0.0
    %7864 = vmatpush1.msra.mxu0 0.0
    %7865 = vmatprep.subr.mxu0 0.0
    %7866 = vmatpush1.msra.mxu0 0.0
    %7867 = vmatprep.subr.mxu0 0.0
    %7868 = vmatpush1.msra.mxu0 0.0
    %7869 = vmatprep.subr.mxu0 0.0
    %7870 = vmatpush1.msra.mxu0 0.0
    %7871 = vmatprep.subr.mxu0 0.0
    %7872 = vmatpush1.msra.mxu0 0.0
    %7873 = vmatprep.subr.mxu0 0.0
    %7874 = vmatpush1.msra.mxu0 0.0
    %7875 = vmatprep.subr.mxu0 0.0
    %7876 = vmatpush1.msra.mxu0 0.0
    %7877 = vmatprep.subr.mxu0 0.0
    %7878 = vmatpush1.msra.mxu0 0.0
    %7879 = vmatprep.subr.mxu0 0.0
    %7880 = vmatpush1.msra.mxu0 0.0
    %7881 = vmatprep.subr.mxu0 0.0
    %7882 = vmatpush1.msra.mxu0 0.0
    %7883 = vmatprep.subr.mxu0 0.0
    %7884 = vmatpush1.msra.mxu0 0.0
    %7885 = vmatprep.subr.mxu0 0.0
    %7886 = vmatpush1.msra.mxu0 0.0
    %7887 = vmatprep.subr.mxu0 0.0
    %7888 = vmatpush1.msra.mxu0 0.0
    %7889 = vmatprep.subr.mxu0 0.0
    %7890 = vmatpush1.msra.mxu0 0.0
    %7891 = vmatprep.subr.mxu0 0.0
    %7892 = vmatpush1.msra.mxu0 0.0
    %7893 = vmatprep.subr.mxu0 0.0
    %7894 = vmatpush1.msra.mxu0 0.0
    %7895 = vmatprep.subr.mxu0 0.0
    %7896 = vmatpush1.msra.mxu0 0.0
    %7897 = vmatprep.subr.mxu0 0.0
    %7898 = vmatpush1.msra.mxu0 0.0
    %7899 = vmatprep.subr.mxu0 0.0
    %7900 = vmatpush1.msra.mxu0 0.0
    %7901 = vmatprep.mubr.f32.mxu0 0.0
    %7902 = vmatmul.mubr.f32.gmra.mrb[0].mxu0 %v7835
    %v7903 = vpop.f32.mrb[0].mxu0
    %v7904 = vadd.f32 0.0, %v7903
    %v7905 = vpop.f32.mrb[0].mxu0
    %7906 = vdwg.mxu0
    %v7907 = vadd.f32 %v7753, %v7904
    %s7908 = scalar_lea.vmem [#allocation16], 32
    %v7909 = vld [vmem:[%s7908] sm:$0xff]
    %v7911 = vsel %vm7296, %v7909, 0
    %7913 = vmatprep.subr.mxu0 0.0
    %7914 = vmatpush1.msra.mxu0 %v7291
    %7915 = vmatprep.subr.mxu0 0.0
    %7916 = vmatpush1.msra.mxu0 %v7292
    %7917 = vmatprep.subr.mxu0 0.0
    %7918 = vmatpush1.msra.mxu0 %v7293
    %7919 = vmatprep.subr.mxu0 0.0
    %7920 = vmatpush1.msra.mxu0 %v7294
    %7921 = vmatprep.subr.mxu0 0.0
    %7922 = vmatpush1.msra.mxu0 0.0
    %7923 = vmatprep.subr.mxu0 0.0
    %7924 = vmatpush1.msra.mxu0 0.0
    %7925 = vmatprep.subr.mxu0 0.0
    %7926 = vmatpush1.msra.mxu0 0.0
    %7927 = vmatprep.subr.mxu0 0.0
    %7928 = vmatpush1.msra.mxu0 0.0
    %7929 = vmatprep.subr.mxu0 0.0
    %7930 = vmatpush1.msra.mxu0 0.0
    %7931 = vmatprep.subr.mxu0 0.0
    %7932 = vmatpush1.msra.mxu0 0.0
    %7933 = vmatprep.subr.mxu0 0.0
    %7934 = vmatpush1.msra.mxu0 0.0
    %7935 = vmatprep.subr.mxu0 0.0
    %7936 = vmatpush1.msra.mxu0 0.0
    %7937 = vmatprep.subr.mxu0 0.0
    %7938 = vmatpush1.msra.mxu0 0.0
    %7939 = vmatprep.subr.mxu0 0.0
    %7940 = vmatpush1.msra.mxu0 0.0
    %7941 = vmatprep.subr.mxu0 0.0
    %7942 = vmatpush1.msra.mxu0 0.0
    %7943 = vmatprep.subr.mxu0 0.0
    %7944 = vmatpush1.msra.mxu0 0.0
    %7945 = vmatprep.subr.mxu0 0.0
    %7946 = vmatpush1.msra.mxu0 0.0
    %7947 = vmatprep.subr.mxu0 0.0
    %7948 = vmatpush1.msra.mxu0 0.0
    %7949 = vmatprep.subr.mxu0 0.0
    %7950 = vmatpush1.msra.mxu0 0.0
    %7951 = vmatprep.subr.mxu0 0.0
    %7952 = vmatpush1.msra.mxu0 0.0
    %7953 = vmatprep.subr.mxu0 0.0
    %7954 = vmatpush1.msra.mxu0 0.0
    %7955 = vmatprep.subr.mxu0 0.0
    %7956 = vmatpush1.msra.mxu0 0.0
    %7957 = vmatprep.subr.mxu0 0.0
    %7958 = vmatpush1.msra.mxu0 0.0
    %7959 = vmatprep.subr.mxu0 0.0
    %7960 = vmatpush1.msra.mxu0 0.0
    %7961 = vmatprep.subr.mxu0 0.0
    %7962 = vmatpush1.msra.mxu0 0.0
    %7963 = vmatprep.subr.mxu0 0.0
    %7964 = vmatpush1.msra.mxu0 0.0
    %7965 = vmatprep.subr.mxu0 0.0
    %7966 = vmatpush1.msra.mxu0 0.0
    %7967 = vmatprep.subr.mxu0 0.0
    %7968 = vmatpush1.msra.mxu0 0.0
    %7969 = vmatprep.subr.mxu0 0.0
    %7970 = vmatpush1.msra.mxu0 0.0
    %7971 = vmatprep.subr.mxu0 0.0
    %7972 = vmatpush1.msra.mxu0 0.0
    %7973 = vmatprep.subr.mxu0 0.0
    %7974 = vmatpush1.msra.mxu0 0.0
    %7975 = vmatprep.subr.mxu0 0.0
    %7976 = vmatpush1.msra.mxu0 0.0
    %7977 = vmatprep.mubr.f32.mxu0 0.0
    %7978 = vmatmul.mubr.f32.gmra.mrb[0].mxu0 %v7911
    %v7979 = vpop.f32.mrb[0].mxu0
    %v7980 = vadd.f32 0.0, %v7979
    %v7981 = vpop.f32.mrb[0].mxu0
    %7982 = vdwg.mxu0
    %s7983 = scalar_lea.vmem [#allocation17], 128
    %v7984 = vld [vmem:[%s7983] sm:$0xff]
    %v7985 = vld [vmem:[%s7983 + $0x8] sm:$0xff]
    %v7986 = vld [vmem:[%s7983 + $0x10] sm:$0xff]
    %v7987 = vld [vmem:[%s7983 + $0x18] sm:$0xff]
    %v7989 = vsel %vm7296, %v7980, 0
    %7991 = vmatprep.subr.mxu0 0.0
    %7992 = vmatpush1.msra.mxu0 %v7984
    %7993 = vmatprep.subr.mxu0 0.0
    %7994 = vmatpush1.msra.mxu0 %v7985
    %7995 = vmatprep.subr.mxu0 0.0
    %7996 = vmatpush1.msra.mxu0 %v7986
    %7997 = vmatprep.subr.mxu0 0.0
    %7998 = vmatpush1.msra.mxu0 %v7987
    %7999 = vmatprep.subr.mxu0 0.0
    %8000 = vmatpush1.msra.mxu0 0.0
    %8001 = vmatprep.subr.mxu0 0.0
    %8002 = vmatpush1.msra.mxu0 0.0
    %8003 = vmatprep.subr.mxu0 0.0
    %8004 = vmatpush1.msra.mxu0 0.0
    %8005 = vmatprep.subr.mxu0 0.0
    %8006 = vmatpush1.msra.mxu0 0.0
    %8007 = vmatprep.subr.mxu0 0.0
    %8008 = vmatpush1.msra.mxu0 0.0
    %8009 = vmatprep.subr.mxu0 0.0
    %8010 = vmatpush1.msra.mxu0 0.0
    %8011 = vmatprep.subr.mxu0 0.0
    %8012 = vmatpush1.msra.mxu0 0.0
    %8013 = vmatprep.subr.mxu0 0.0
    %8014 = vmatpush1.msra.mxu0 0.0
    %8015 = vmatprep.subr.mxu0 0.0
    %8016 = vmatpush1.msra.mxu0 0.0
    %8017 = vmatprep.subr.mxu0 0.0
    %8018 = vmatpush1.msra.mxu0 0.0
    %8019 = vmatprep.subr.mxu0 0.0
    %8020 = vmatpush1.msra.mxu0 0.0
    %8021 = vmatprep.subr.mxu0 0.0
    %8022 = vmatpush1.msra.mxu0 0.0
    %8023 = vmatprep.subr.mxu0 0.0
    %8024 = vmatpush1.msra.mxu0 0.0
    %8025 = vmatprep.subr.mxu0 0.0
    %8026 = vmatpush1.msra.mxu0 0.0
    %8027 = vmatprep.subr.mxu0 0.0
    %8028 = vmatpush1.msra.mxu0 0.0
    %8029 = vmatprep.subr.mxu0 0.0
    %8030 = vmatpush1.msra.mxu0 0.0
    %8031 = vmatprep.subr.mxu0 0.0
    %8032 = vmatpush1.msra.mxu0 0.0
    %8033 = vmatprep.subr.mxu0 0.0
    %8034 = vmatpush1.msra.mxu0 0.0
    %8035 = vmatprep.subr.mxu0 0.0
    %8036 = vmatpush1.msra.mxu0 0.0
    %8037 = vmatprep.subr.mxu0 0.0
    %8038 = vmatpush1.msra.mxu0 0.0
    %8039 = vmatprep.subr.mxu0 0.0
    %8040 = vmatpush1.msra.mxu0 0.0
    %8041 = vmatprep.subr.mxu0 0.0
    %8042 = vmatpush1.msra.mxu0 0.0
    %8043 = vmatprep.subr.mxu0 0.0
    %8044 = vmatpush1.msra.mxu0 0.0
    %8045 = vmatprep.subr.mxu0 0.0
    %8046 = vmatpush1.msra.mxu0 0.0
    %8047 = vmatprep.subr.mxu0 0.0
    %8048 = vmatpush1.msra.mxu0 0.0
    %8049 = vmatprep.subr.mxu0 0.0
    %8050 = vmatpush1.msra.mxu0 0.0
    %8051 = vmatprep.subr.mxu0 0.0
    %8052 = vmatpush1.msra.mxu0 0.0
    %8053 = vmatprep.subr.mxu0 0.0
    %8054 = vmatpush1.msra.mxu0 0.0
    %8055 = vmatprep.mubr.f32.mxu0 0.0
    %8056 = vmatmul.mubr.f32.gmra.mrb[0].mxu0 %v7989
    %v8057 = vpop.f32.mrb[0].mxu0
    %v8058 = vadd.f32 0.0, %v8057
    %v8059 = vpop.f32.mrb[0].mxu0
    %8060 = vdwg.mxu0
    %v8061 = vadd.f32 %v7907, %v8058
    %s8062 = scalar_lea.vmem [#allocation16], 40
    %v8063 = vld [vmem:[%s8062] sm:$0xff]
    %v8065 = vsel %vm7296, %v8063, 0
    %8067 = vmatprep.subr.mxu0 0.0
    %8068 = vmatpush1.msra.mxu0 %v7291
    %8069 = vmatprep.subr.mxu0 0.0
    %8070 = vmatpush1.msra.mxu0 %v7292
    %8071 = vmatprep.subr.mxu0 0.0
    %8072 = vmatpush1.msra.mxu0 %v7293
    %8073 = vmatprep.subr.mxu0 0.0
    %8074 = vmatpush1.msra.mxu0 %v7294
    %8075 = vmatprep.subr.mxu0 0.0
    %8076 = vmatpush1.msra.mxu0 0.0
    %8077 = vmatprep.subr.mxu0 0.0
    %8078 = vmatpush1.msra.mxu0 0.0
    %8079 = vmatprep.subr.mxu0 0.0
    %8080 = vmatpush1.msra.mxu0 0.0
    %8081 = vmatprep.subr.mxu0 0.0
    %8082 = vmatpush1.msra.mxu0 0.0
    %8083 = vmatprep.subr.mxu0 0.0
    %8084 = vmatpush1.msra.mxu0 0.0
    %8085 = vmatprep.subr.mxu0 0.0
    %8086 = vmatpush1.msra.mxu0 0.0
    %8087 = vmatprep.subr.mxu0 0.0
    %8088 = vmatpush1.msra.mxu0 0.0
    %8089 = vmatprep.subr.mxu0 0.0
    %8090 = vmatpush1.msra.mxu0 0.0
    %8091 = vmatprep.subr.mxu0 0.0
    %8092 = vmatpush1.msra.mxu0 0.0
    %8093 = vmatprep.subr.mxu0 0.0
    %8094 = vmatpush1.msra.mxu0 0.0
    %8095 = vmatprep.subr.mxu0 0.0
    %8096 = vmatpush1.msra.mxu0 0.0
    %8097 = vmatprep.subr.mxu0 0.0
    %8098 = vmatpush1.msra.mxu0 0.0
    %8099 = vmatprep.subr.mxu0 0.0
    %8100 = vmatpush1.msra.mxu0 0.0
    %8101 = vmatprep.subr.mxu0 0.0
    %8102 = vmatpush1.msra.mxu0 0.0
    %8103 = vmatprep.subr.mxu0 0.0
    %8104 = vmatpush1.msra.mxu0 0.0
    %8105 = vmatprep.subr.mxu0 0.0
    %8106 = vmatpush1.msra.mxu0 0.0
    %8107 = vmatprep.subr.mxu0 0.0
    %8108 = vmatpush1.msra.mxu0 0.0
    %8109 = vmatprep.subr.mxu0 0.0
    %8110 = vmatpush1.msra.mxu0 0.0
    %8111 = vmatprep.subr.mxu0 0.0
    %8112 = vmatpush1.msra.mxu0 0.0
    %8113 = vmatprep.subr.mxu0 0.0
    %8114 = vmatpush1.msra.mxu0 0.0
    %8115 = vmatprep.subr.mxu0 0.0
    %8116 = vmatpush1.msra.mxu0 0.0
    %8117 = vmatprep.subr.mxu0 0.0
    %8118 = vmatpush1.msra.mxu0 0.0
    %8119 = vmatprep.subr.mxu0 0.0
    %8120 = vmatpush1.msra.mxu0 0.0
    %8121 = vmatprep.subr.mxu0 0.0
    %8122 = vmatpush1.msra.mxu0 0.0
    %8123 = vmatprep.subr.mxu0 0.0
    %8124 = vmatpush1.msra.mxu0 0.0
    %8125 = vmatprep.subr.mxu0 0.0
    %8126 = vmatpush1.msra.mxu0 0.0
    %8127 = vmatprep.subr.mxu0 0.0
    %8128 = vmatpush1.msra.mxu0 0.0
    %8129 = vmatprep.subr.mxu0 0.0
    %8130 = vmatpush1.msra.mxu0 0.0
    %8131 = vmatprep.mubr.f32.mxu0 0.0
    %8132 = vmatmul.mubr.f32.gmra.mrb[0].mxu0 %v8065
    %v8133 = vpop.f32.mrb[0].mxu0
    %v8134 = vadd.f32 0.0, %v8133
    %v8135 = vpop.f32.mrb[0].mxu0
    %8136 = vdwg.mxu0
    %s8137 = scalar_lea.vmem [#allocation17], 160
    %v8138 = vld [vmem:[%s8137] sm:$0xff]
    %v8139 = vld [vmem:[%s8137 + $0x8] sm:$0xff]
    %v8140 = vld [vmem:[%s8137 + $0x10] sm:$0xff]
    %v8141 = vld [vmem:[%s8137 + $0x18] sm:$0xff]
    %v8143 = vsel %vm7296, %v8134, 0
    %8145 = vmatprep.subr.mxu0 0.0
    %8146 = vmatpush1.msra.mxu0 %v8138
    %8147 = vmatprep.subr.mxu0 0.0
    %8148 = vmatpush1.msra.mxu0 %v8139
    %8149 = vmatprep.subr.mxu0 0.0
    %8150 = vmatpush1.msra.mxu0 %v8140
    %8151 = vmatprep.subr.mxu0 0.0
    %8152 = vmatpush1.msra.mxu0 %v8141
    %8153 = vmatprep.subr.mxu0 0.0
    %8154 = vmatpush1.msra.mxu0 0.0
    %8155 = vmatprep.subr.mxu0 0.0
    %8156 = vmatpush1.msra.mxu0 0.0
    %8157 = vmatprep.subr.mxu0 0.0
    %8158 = vmatpush1.msra.mxu0 0.0
    %8159 = vmatprep.subr.mxu0 0.0
    %8160 = vmatpush1.msra.mxu0 0.0
    %8161 = vmatprep.subr.mxu0 0.0
    %8162 = vmatpush1.msra.mxu0 0.0
    %8163 = vmatprep.subr.mxu0 0.0
    %8164 = vmatpush1.msra.mxu0 0.0
    %8165 = vmatprep.subr.mxu0 0.0
    %8166 = vmatpush1.msra.mxu0 0.0
    %8167 = vmatprep.subr.mxu0 0.0
    %8168 = vmatpush1.msra.mxu0 0.0
    %8169 = vmatprep.subr.mxu0 0.0
    %8170 = vmatpush1.msra.mxu0 0.0
    %8171 = vmatprep.subr.mxu0 0.0
    %8172 = vmatpush1.msra.mxu0 0.0
    %8173 = vmatprep.subr.mxu0 0.0
    %8174 = vmatpush1.msra.mxu0 0.0
    %8175 = vmatprep.subr.mxu0 0.0
    %8176 = vmatpush1.msra.mxu0 0.0
    %8177 = vmatprep.subr.mxu0 0.0
    %8178 = vmatpush1.msra.mxu0 0.0
    %8179 = vmatprep.subr.mxu0 0.0
    %8180 = vmatpush1.msra.mxu0 0.0
    %8181 = vmatprep.subr.mxu0 0.0
    %8182 = vmatpush1.msra.mxu0 0.0
    %8183 = vmatprep.subr.mxu0 0.0
    %8184 = vmatpush1.msra.mxu0 0.0
    %8185 = vmatprep.subr.mxu0 0.0
    %8186 = vmatpush1.msra.mxu0 0.0
    %8187 = vmatprep.subr.mxu0 0.0
    %8188 = vmatpush1.msra.mxu0 0.0
    %8189 = vmatprep.subr.mxu0 0.0
    %8190 = vmatpush1.msra.mxu0 0.0
    %8191 = vmatprep.subr.mxu0 0.0
    %8192 = vmatpush1.msra.mxu0 0.0
    %8193 = vmatprep.subr.mxu0 0.0
    %8194 = vmatpush1.msra.mxu0 0.0
    %8195 = vmatprep.subr.mxu0 0.0
    %8196 = vmatpush1.msra.mxu0 0.0
    %8197 = vmatprep.subr.mxu0 0.0
    %8198 = vmatpush1.msra.mxu0 0.0
    %8199 = vmatprep.subr.mxu0 0.0
    %8200 = vmatpush1.msra.mxu0 0.0
    %8201 = vmatprep.subr.mxu0 0.0
    %8202 = vmatpush1.msra.mxu0 0.0
    %8203 = vmatprep.subr.mxu0 0.0
    %8204 = vmatpush1.msra.mxu0 0.0
    %8205 = vmatprep.subr.mxu0 0.0
    %8206 = vmatpush1.msra.mxu0 0.0
    %8207 = vmatprep.subr.mxu0 0.0
    %8208 = vmatpush1.msra.mxu0 0.0
    %8209 = vmatprep.mubr.f32.mxu0 0.0
    %8210 = vmatmul.mubr.f32.gmra.mrb[0].mxu0 %v8143
    %v8211 = vpop.f32.mrb[0].mxu0
    %v8212 = vadd.f32 0.0, %v8211
    %v8213 = vpop.f32.mrb[0].mxu0
    %8214 = vdwg.mxu0
    %v8215 = vadd.f32 %v8061, %v8212
    %s8216 = scalar_lea.vmem [#allocation16], 48
    %v8217 = vld [vmem:[%s8216] sm:$0xff]
    %v8219 = vsel %vm7296, %v8217, 0
    %8221 = vmatprep.subr.mxu0 0.0
    %8222 = vmatpush1.msra.mxu0 %v7291
    %8223 = vmatprep.subr.mxu0 0.0
    %8224 = vmatpush1.msra.mxu0 %v7292
    %8225 = vmatprep.subr.mxu0 0.0
    %8226 = vmatpush1.msra.mxu0 %v7293
    %8227 = vmatprep.subr.mxu0 0.0
    %8228 = vmatpush1.msra.mxu0 %v7294
    %8229 = vmatprep.subr.mxu0 0.0
    %8230 = vmatpush1.msra.mxu0 0.0
    %8231 = vmatprep.subr.mxu0 0.0
    %8232 = vmatpush1.msra.mxu0 0.0
    %8233 = vmatprep.subr.mxu0 0.0
    %8234 = vmatpush1.msra.mxu0 0.0
    %8235 = vmatprep.subr.mxu0 0.0
    %8236 = vmatpush1.msra.mxu0 0.0
    %8237 = vmatprep.subr.mxu0 0.0
    %8238 = vmatpush1.msra.mxu0 0.0
    %8239 = vmatprep.subr.mxu0 0.0
    %8240 = vmatpush1.msra.mxu0 0.0
    %8241 = vmatprep.subr.mxu0 0.0
    %8242 = vmatpush1.msra.mxu0 0.0
    %8243 = vmatprep.subr.mxu0 0.0
    %8244 = vmatpush1.msra.mxu0 0.0
    %8245 = vmatprep.subr.mxu0 0.0
    %8246 = vmatpush1.msra.mxu0 0.0
    %8247 = vmatprep.subr.mxu0 0.0
    %8248 = vmatpush1.msra.mxu0 0.0
    %8249 = vmatprep.subr.mxu0 0.0
    %8250 = vmatpush1.msra.mxu0 0.0
    %8251 = vmatprep.subr.mxu0 0.0
    %8252 = vmatpush1.msra.mxu0 0.0
    %8253 = vmatprep.subr.mxu0 0.0
    %8254 = vmatpush1.msra.mxu0 0.0
    %8255 = vmatprep.subr.mxu0 0.0
    %8256 = vmatpush1.msra.mxu0 0.0
    %8257 = vmatprep.subr.mxu0 0.0
    %8258 = vmatpush1.msra.mxu0 0.0
    %8259 = vmatprep.subr.mxu0 0.0
    %8260 = vmatpush1.msra.mxu0 0.0
    %8261 = vmatprep.subr.mxu0 0.0
    %8262 = vmatpush1.msra.mxu0 0.0
    %8263 = vmatprep.subr.mxu0 0.0
    %8264 = vmatpush1.msra.mxu0 0.0
    %8265 = vmatprep.subr.mxu0 0.0
    %8266 = vmatpush1.msra.mxu0 0.0
    %8267 = vmatprep.subr.mxu0 0.0
    %8268 = vmatpush1.msra.mxu0 0.0
    %8269 = vmatprep.subr.mxu0 0.0
    %8270 = vmatpush1.msra.mxu0 0.0
    %8271 = vmatprep.subr.mxu0 0.0
    %8272 = vmatpush1.msra.mxu0 0.0
    %8273 = vmatprep.subr.mxu0 0.0
    %8274 = vmatpush1.msra.mxu0 0.0
    %8275 = vmatprep.subr.mxu0 0.0
    %8276 = vmatpush1.msra.mxu0 0.0
    %8277 = vmatprep.subr.mxu0 0.0
    %8278 = vmatpush1.msra.mxu0 0.0
    %8279 = vmatprep.subr.mxu0 0.0
    %8280 = vmatpush1.msra.mxu0 0.0
    %8281 = vmatprep.subr.mxu0 0.0
    %8282 = vmatpush1.msra.mxu0 0.0
    %8283 = vmatprep.subr.mxu0 0.0
    %8284 = vmatpush1.msra.mxu0 0.0
    %8285 = vmatprep.mubr.f32.mxu0 0.0
    %8286 = vmatmul.mubr.f32.gmra.mrb[0].mxu0 %v8219
    %v8287 = vpop.f32.mrb[0].mxu0
    %v8288 = vadd.f32 0.0, %v8287
    %v8289 = vpop.f32.mrb[0].mxu0
    %8290 = vdwg.mxu0
    %s8291 = scalar_lea.vmem [#allocation17], 192
    %v8292 = vld [vmem:[%s8291] sm:$0xff]
    %v8293 = vld [vmem:[%s8291 + $0x8] sm:$0xff]
    %v8294 = vld [vmem:[%s8291 + $0x10] sm:$0xff]
    %v8295 = vld [vmem:[%s8291 + $0x18] sm:$0xff]
    %v8297 = vsel %vm7296, %v8288, 0
    %8299 = vmatprep.subr.mxu0 0.0
    %8300 = vmatpush1.msra.mxu0 %v8292
    %8301 = vmatprep.subr.mxu0 0.0
    %8302 = vmatpush1.msra.mxu0 %v8293
    %8303 = vmatprep.subr.mxu0 0.0
    %8304 = vmatpush1.msra.mxu0 %v8294
    %8305 = vmatprep.subr.mxu0 0.0
    %8306 = vmatpush1.msra.mxu0 %v8295
    %8307 = vmatprep.subr.mxu0 0.0
    %8308 = vmatpush1.msra.mxu0 0.0
    %8309 = vmatprep.subr.mxu0 0.0
    %8310 = vmatpush1.msra.mxu0 0.0
    %8311 = vmatprep.subr.mxu0 0.0
    %8312 = vmatpush1.msra.mxu0 0.0
    %8313 = vmatprep.subr.mxu0 0.0
    %8314 = vmatpush1.msra.mxu0 0.0
    %8315 = vmatprep.subr.mxu0 0.0
    %8316 = vmatpush1.msra.mxu0 0.0
    %8317 = vmatprep.subr.mxu0 0.0
    %8318 = vmatpush1.msra.mxu0 0.0
    %8319 = vmatprep.subr.mxu0 0.0
    %8320 = vmatpush1.msra.mxu0 0.0
    %8321 = vmatprep.subr.mxu0 0.0
    %8322 = vmatpush1.msra.mxu0 0.0
    %8323 = vmatprep.subr.mxu0 0.0
    %8324 = vmatpush1.msra.mxu0 0.0
    %8325 = vmatprep.subr.mxu0 0.0
    %8326 = vmatpush1.msra.mxu0 0.0
    %8327 = vmatprep.subr.mxu0 0.0
    %8328 = vmatpush1.msra.mxu0 0.0
    %8329 = vmatprep.subr.mxu0 0.0
    %8330 = vmatpush1.msra.mxu0 0.0
    %8331 = vmatprep.subr.mxu0 0.0
    %8332 = vmatpush1.msra.mxu0 0.0
    %8333 = vmatprep.subr.mxu0 0.0
    %8334 = vmatpush1.msra.mxu0 0.0
    %8335 = vmatprep.subr.mxu0 0.0
    %8336 = vmatpush1.msra.mxu0 0.0
    %8337 = vmatprep.subr.mxu0 0.0
    %8338 = vmatpush1.msra.mxu0 0.0
    %8339 = vmatprep.subr.mxu0 0.0
    %8340 = vmatpush1.msra.mxu0 0.0
    %8341 = vmatprep.subr.mxu0 0.0
    %8342 = vmatpush1.msra.mxu0 0.0
    %8343 = vmatprep.subr.mxu0 0.0
    %8344 = vmatpush1.msra.mxu0 0.0
    %8345 = vmatprep.subr.mxu0 0.0
    %8346 = vmatpush1.msra.mxu0 0.0
    %8347 = vmatprep.subr.mxu0 0.0
    %8348 = vmatpush1.msra.mxu0 0.0
    %8349 = vmatprep.subr.mxu0 0.0
    %8350 = vmatpush1.msra.mxu0 0.0
    %8351 = vmatprep.subr.mxu0 0.0
    %8352 = vmatpush1.msra.mxu0 0.0
    %8353 = vmatprep.subr.mxu0 0.0
    %8354 = vmatpush1.msra.mxu0 0.0
    %8355 = vmatprep.subr.mxu0 0.0
    %8356 = vmatpush1.msra.mxu0 0.0
    %8357 = vmatprep.subr.mxu0 0.0
    %8358 = vmatpush1.msra.mxu0 0.0
    %8359 = vmatprep.subr.mxu0 0.0
    %8360 = vmatpush1.msra.mxu0 0.0
    %8361 = vmatprep.subr.mxu0 0.0
    %8362 = vmatpush1.msra.mxu0 0.0
    %8363 = vmatprep.mubr.f32.mxu0 0.0
    %8364 = vmatmul.mubr.f32.gmra.mrb[0].mxu0 %v8297
    %v8365 = vpop.f32.mrb[0].mxu0
    %v8366 = vadd.f32 0.0, %v8365
    %v8367 = vpop.f32.mrb[0].mxu0
    %8368 = vdwg.mxu0
    %v8369 = vadd.f32 %v8215, %v8366
    %s8370 = scalar_lea.vmem [#allocation16], 56
    %v8371 = vld [vmem:[%s8370] sm:$0xff]
    %v8373 = vsel %vm7296, %v8371, 0
    %8375 = vmatprep.subr.mxu0 0.0
    %8376 = vmatpush1.msra.mxu0 %v7291
    %8377 = vmatprep.subr.mxu0 0.0
    %8378 = vmatpush1.msra.mxu0 %v7292
    %8379 = vmatprep.subr.mxu0 0.0
    %8380 = vmatpush1.msra.mxu0 %v7293
    %8381 = vmatprep.subr.mxu0 0.0
    %8382 = vmatpush1.msra.mxu0 %v7294
    %8383 = vmatprep.subr.mxu0 0.0
    %8384 = vmatpush1.msra.mxu0 0.0
    %8385 = vmatprep.subr.mxu0 0.0
    %8386 = vmatpush1.msra.mxu0 0.0
    %8387 = vmatprep.subr.mxu0 0.0
    %8388 = vmatpush1.msra.mxu0 0.0
    %8389 = vmatprep.subr.mxu0 0.0
    %8390 = vmatpush1.msra.mxu0 0.0
    %8391 = vmatprep.subr.mxu0 0.0
    %8392 = vmatpush1.msra.mxu0 0.0
    %8393 = vmatprep.subr.mxu0 0.0
    %8394 = vmatpush1.msra.mxu0 0.0
    %8395 = vmatprep.subr.mxu0 0.0
    %8396 = vmatpush1.msra.mxu0 0.0
    %8397 = vmatprep.subr.mxu0 0.0
    %8398 = vmatpush1.msra.mxu0 0.0
    %8399 = vmatprep.subr.mxu0 0.0
    %8400 = vmatpush1.msra.mxu0 0.0
    %8401 = vmatprep.subr.mxu0 0.0
    %8402 = vmatpush1.msra.mxu0 0.0
    %8403 = vmatprep.subr.mxu0 0.0
    %8404 = vmatpush1.msra.mxu0 0.0
    %8405 = vmatprep.subr.mxu0 0.0
    %8406 = vmatpush1.msra.mxu0 0.0
    %8407 = vmatprep.subr.mxu0 0.0
    %8408 = vmatpush1.msra.mxu0 0.0
    %8409 = vmatprep.subr.mxu0 0.0
    %8410 = vmatpush1.msra.mxu0 0.0
    %8411 = vmatprep.subr.mxu0 0.0
    %8412 = vmatpush1.msra.mxu0 0.0
    %8413 = vmatprep.subr.mxu0 0.0
    %8414 = vmatpush1.msra.mxu0 0.0
    %8415 = vmatprep.subr.mxu0 0.0
    %8416 = vmatpush1.msra.mxu0 0.0
    %8417 = vmatprep.subr.mxu0 0.0
    %8418 = vmatpush1.msra.mxu0 0.0
    %8419 = vmatprep.subr.mxu0 0.0
    %8420 = vmatpush1.msra.mxu0 0.0
    %8421 = vmatprep.subr.mxu0 0.0
    %8422 = vmatpush1.msra.mxu0 0.0
    %8423 = vmatprep.subr.mxu0 0.0
    %8424 = vmatpush1.msra.mxu0 0.0
    %8425 = vmatprep.subr.mxu0 0.0
    %8426 = vmatpush1.msra.mxu0 0.0
    %8427 = vmatprep.subr.mxu0 0.0
    %8428 = vmatpush1.msra.mxu0 0.0
    %8429 = vmatprep.subr.mxu0 0.0
    %8430 = vmatpush1.msra.mxu0 0.0
    %8431 = vmatprep.subr.mxu0 0.0
    %8432 = vmatpush1.msra.mxu0 0.0
    %8433 = vmatprep.subr.mxu0 0.0
    %8434 = vmatpush1.msra.mxu0 0.0
    %8435 = vmatprep.subr.mxu0 0.0
    %8436 = vmatpush1.msra.mxu0 0.0
    %8437 = vmatprep.subr.mxu0 0.0
    %8438 = vmatpush1.msra.mxu0 0.0
    %8439 = vmatprep.mubr.f32.mxu0 0.0
    %8440 = vmatmul.mubr.f32.gmra.mrb[0].mxu0 %v8373
    %v8441 = vpop.f32.mrb[0].mxu0
    %v8442 = vadd.f32 0.0, %v8441
    %v8443 = vpop.f32.mrb[0].mxu0
    %8444 = vdwg.mxu0
    %s8445 = scalar_lea.vmem [#allocation17], 224
    %v8446 = vld [vmem:[%s8445] sm:$0xff]
    %v8447 = vld [vmem:[%s8445 + $0x8] sm:$0xff]
    %v8448 = vld [vmem:[%s8445 + $0x10] sm:$0xff]
    %v8449 = vld [vmem:[%s8445 + $0x18] sm:$0xff]
    %v8451 = vsel %vm7296, %v8442, 0
    %8453 = vmatprep.subr.mxu0 0.0
    %8454 = vmatpush1.msra.mxu0 %v8446
    %8455 = vmatprep.subr.mxu0 0.0
    %8456 = vmatpush1.msra.mxu0 %v8447
    %8457 = vmatprep.subr.mxu0 0.0
    %8458 = vmatpush1.msra.mxu0 %v8448
    %8459 = vmatprep.subr.mxu0 0.0
    %8460 = vmatpush1.msra.mxu0 %v8449
    %8461 = vmatprep.subr.mxu0 0.0
    %8462 = vmatpush1.msra.mxu0 0.0
    %8463 = vmatprep.subr.mxu0 0.0
    %8464 = vmatpush1.msra.mxu0 0.0
    %8465 = vmatprep.subr.mxu0 0.0
    %8466 = vmatpush1.msra.mxu0 0.0
    %8467 = vmatprep.subr.mxu0 0.0
    %8468 = vmatpush1.msra.mxu0 0.0
    %8469 = vmatprep.subr.mxu0 0.0
    %8470 = vmatpush1.msra.mxu0 0.0
    %8471 = vmatprep.subr.mxu0 0.0
    %8472 = vmatpush1.msra.mxu0 0.0
    %8473 = vmatprep.subr.mxu0 0.0
    %8474 = vmatpush1.msra.mxu0 0.0
    %8475 = vmatprep.subr.mxu0 0.0
    %8476 = vmatpush1.msra.mxu0 0.0
    %8477 = vmatprep.subr.mxu0 0.0
    %8478 = vmatpush1.msra.mxu0 0.0
    %8479 = vmatprep.subr.mxu0 0.0
    %8480 = vmatpush1.msra.mxu0 0.0
    %8481 = vmatprep.subr.mxu0 0.0
    %8482 = vmatpush1.msra.mxu0 0.0
    %8483 = vmatprep.subr.mxu0 0.0
    %8484 = vmatpush1.msra.mxu0 0.0
    %8485 = vmatprep.subr.mxu0 0.0
    %8486 = vmatpush1.msra.mxu0 0.0
    %8487 = vmatprep.subr.mxu0 0.0
    %8488 = vmatpush1.msra.mxu0 0.0
    %8489 = vmatprep.subr.mxu0 0.0
    %8490 = vmatpush1.msra.mxu0 0.0
    %8491 = vmatprep.subr.mxu0 0.0
    %8492 = vmatpush1.msra.mxu0 0.0
    %8493 = vmatprep.subr.mxu0 0.0
    %8494 = vmatpush1.msra.mxu0 0.0
    %8495 = vmatprep.subr.mxu0 0.0
    %8496 = vmatpush1.msra.mxu0 0.0
    %8497 = vmatprep.subr.mxu0 0.0
    %8498 = vmatpush1.msra.mxu0 0.0
    %8499 = vmatprep.subr.mxu0 0.0
    %8500 = vmatpush1.msra.mxu0 0.0
    %8501 = vmatprep.subr.mxu0 0.0
    %8502 = vmatpush1.msra.mxu0 0.0
    %8503 = vmatprep.subr.mxu0 0.0
    %8504 = vmatpush1.msra.mxu0 0.0
    %8505 = vmatprep.subr.mxu0 0.0
    %8506 = vmatpush1.msra.mxu0 0.0
    %8507 = vmatprep.subr.mxu0 0.0
    %8508 = vmatpush1.msra.mxu0 0.0
    %8509 = vmatprep.subr.mxu0 0.0
    %8510 = vmatpush1.msra.mxu0 0.0
    %8511 = vmatprep.subr.mxu0 0.0
    %8512 = vmatpush1.msra.mxu0 0.0
    %8513 = vmatprep.subr.mxu0 0.0
    %8514 = vmatpush1.msra.mxu0 0.0
    %8515 = vmatprep.subr.mxu0 0.0
    %8516 = vmatpush1.msra.mxu0 0.0
    %8517 = vmatprep.mubr.f32.mxu0 0.0
    %8518 = vmatmul.mubr.f32.gmra.mrb[0].mxu0 %v8451
    %v8519 = vpop.f32.mrb[0].mxu0
    %v8520 = vadd.f32 0.0, %v8519
    %v8521 = vpop.f32.mrb[0].mxu0
    %8522 = vdwg.mxu0
    %v8523 = vadd.f32 %v8369, %v8520
    %s8524 = scalar_lea.vmem [#allocation16], 64
    %v8525 = vld [vmem:[%s8524] sm:$0xff]
    %v8527 = vsel %vm7296, %v8525, 0
    %8529 = vmatprep.subr.mxu0 0.0
    %8530 = vmatpush1.msra.mxu0 %v7291
    %8531 = vmatprep.subr.mxu0 0.0
    %8532 = vmatpush1.msra.mxu0 %v7292
    %8533 = vmatprep.subr.mxu0 0.0
    %8534 = vmatpush1.msra.mxu0 %v7293
    %8535 = vmatprep.subr.mxu0 0.0
    %8536 = vmatpush1.msra.mxu0 %v7294
    %8537 = vmatprep.subr.mxu0 0.0
    %8538 = vmatpush1.msra.mxu0 0.0
    %8539 = vmatprep.subr.mxu0 0.0
    %8540 = vmatpush1.msra.mxu0 0.0
    %8541 = vmatprep.subr.mxu0 0.0
    %8542 = vmatpush1.msra.mxu0 0.0
    %8543 = vmatprep.subr.mxu0 0.0
    %8544 = vmatpush1.msra.mxu0 0.0
    %8545 = vmatprep.subr.mxu0 0.0
    %8546 = vmatpush1.msra.mxu0 0.0
    %8547 = vmatprep.subr.mxu0 0.0
    %8548 = vmatpush1.msra.mxu0 0.0
    %8549 = vmatprep.subr.mxu0 0.0
    %8550 = vmatpush1.msra.mxu0 0.0
    %8551 = vmatprep.subr.mxu0 0.0
    %8552 = vmatpush1.msra.mxu0 0.0
    %8553 = vmatprep.subr.mxu0 0.0
    %8554 = vmatpush1.msra.mxu0 0.0
    %8555 = vmatprep.subr.mxu0 0.0
    %8556 = vmatpush1.msra.mxu0 0.0
    %8557 = vmatprep.subr.mxu0 0.0
    %8558 = vmatpush1.msra.mxu0 0.0
    %8559 = vmatprep.subr.mxu0 0.0
    %8560 = vmatpush1.msra.mxu0 0.0
    %8561 = vmatprep.subr.mxu0 0.0
    %8562 = vmatpush1.msra.mxu0 0.0
    %8563 = vmatprep.subr.mxu0 0.0
    %8564 = vmatpush1.msra.mxu0 0.0
    %8565 = vmatprep.subr.mxu0 0.0
    %8566 = vmatpush1.msra.mxu0 0.0
    %8567 = vmatprep.subr.mxu0 0.0
    %8568 = vmatpush1.msra.mxu0 0.0
    %8569 = vmatprep.subr.mxu0 0.0
    %8570 = vmatpush1.msra.mxu0 0.0
    %8571 = vmatprep.subr.mxu0 0.0
    %8572 = vmatpush1.msra.mxu0 0.0
    %8573 = vmatprep.subr.mxu0 0.0
    %8574 = vmatpush1.msra.mxu0 0.0
    %8575 = vmatprep.subr.mxu0 0.0
    %8576 = vmatpush1.msra.mxu0 0.0
    %8577 = vmatprep.subr.mxu0 0.0
    %8578 = vmatpush1.msra.mxu0 0.0
    %8579 = vmatprep.subr.mxu0 0.0
    %8580 = vmatpush1.msra.mxu0 0.0
    %8581 = vmatprep.subr.mxu0 0.0
    %8582 = vmatpush1.msra.mxu0 0.0
    %8583 = vmatprep.subr.mxu0 0.0
    %8584 = vmatpush1.msra.mxu0 0.0
    %8585 = vmatprep.subr.mxu0 0.0
    %8586 = vmatpush1.msra.mxu0 0.0
    %8587 = vmatprep.subr.mxu0 0.0
    %8588 = vmatpush1.msra.mxu0 0.0
    %8589 = vmatprep.subr.mxu0 0.0
    %8590 = vmatpush1.msra.mxu0 0.0
    %8591 = vmatprep.subr.mxu0 0.0
    %8592 = vmatpush1.msra.mxu0 0.0
    %8593 = vmatprep.mubr.f32.mxu0 0.0
    %8594 = vmatmul.mubr.f32.gmra.mrb[0].mxu0 %v8527
    %v8595 = vpop.f32.mrb[0].mxu0
    %v8596 = vadd.f32 0.0, %v8595
    %v8597 = vpop.f32.mrb[0].mxu0
    %8598 = vdwg.mxu0
    %s8599 = scalar_lea.vmem [#allocation17], 256
    %v8600 = vld [vmem:[%s8599] sm:$0xff]
    %v8601 = vld [vmem:[%s8599 + $0x8] sm:$0xff]
    %v8602 = vld [vmem:[%s8599 + $0x10] sm:$0xff]
    %v8603 = vld [vmem:[%s8599 + $0x18] sm:$0xff]
    %v8605 = vsel %vm7296, %v8596, 0
    %8607 = vmatprep.subr.mxu0 0.0
    %8608 = vmatpush1.msra.mxu0 %v8600
    %8609 = vmatprep.subr.mxu0 0.0
    %8610 = vmatpush1.msra.mxu0 %v8601
    %8611 = vmatprep.subr.mxu0 0.0
    %8612 = vmatpush1.msra.mxu0 %v8602
    %8613 = vmatprep.subr.mxu0 0.0
    %8614 = vmatpush1.msra.mxu0 %v8603
    %8615 = vmatprep.subr.mxu0 0.0
    %8616 = vmatpush1.msra.mxu0 0.0
    %8617 = vmatprep.subr.mxu0 0.0
    %8618 = vmatpush1.msra.mxu0 0.0
    %8619 = vmatprep.subr.mxu0 0.0
    %8620 = vmatpush1.msra.mxu0 0.0
    %8621 = vmatprep.subr.mxu0 0.0
    %8622 = vmatpush1.msra.mxu0 0.0
    %8623 = vmatprep.subr.mxu0 0.0
    %8624 = vmatpush1.msra.mxu0 0.0
    %8625 = vmatprep.subr.mxu0 0.0
    %8626 = vmatpush1.msra.mxu0 0.0
    %8627 = vmatprep.subr.mxu0 0.0
    %8628 = vmatpush1.msra.mxu0 0.0
    %8629 = vmatprep.subr.mxu0 0.0
    %8630 = vmatpush1.msra.mxu0 0.0
    %8631 = vmatprep.subr.mxu0 0.0
    %8632 = vmatpush1.msra.mxu0 0.0
    %8633 = vmatprep.subr.mxu0 0.0
    %8634 = vmatpush1.msra.mxu0 0.0
    %8635 = vmatprep.subr.mxu0 0.0
    %8636 = vmatpush1.msra.mxu0 0.0
    %8637 = vmatprep.subr.mxu0 0.0
    %8638 = vmatpush1.msra.mxu0 0.0
    %8639 = vmatprep.subr.mxu0 0.0
    %8640 = vmatpush1.msra.mxu0 0.0
    %8641 = vmatprep.subr.mxu0 0.0
    %8642 = vmatpush1.msra.mxu0 0.0
    %8643 = vmatprep.subr.mxu0 0.0
    %8644 = vmatpush1.msra.mxu0 0.0
    %8645 = vmatprep.subr.mxu0 0.0
    %8646 = vmatpush1.msra.mxu0 0.0
    %8647 = vmatprep.subr.mxu0 0.0
    %8648 = vmatpush1.msra.mxu0 0.0
    %8649 = vmatprep.subr.mxu0 0.0
    %8650 = vmatpush1.msra.mxu0 0.0
    %8651 = vmatprep.subr.mxu0 0.0
    %8652 = vmatpush1.msra.mxu0 0.0
    %8653 = vmatprep.subr.mxu0 0.0
    %8654 = vmatpush1.msra.mxu0 0.0
    %8655 = vmatprep.subr.mxu0 0.0
    %8656 = vmatpush1.msra.mxu0 0.0
    %8657 = vmatprep.subr.mxu0 0.0
    %8658 = vmatpush1.msra.mxu0 0.0
    %8659 = vmatprep.subr.mxu0 0.0
    %8660 = vmatpush1.msra.mxu0 0.0
    %8661 = vmatprep.subr.mxu0 0.0
    %8662 = vmatpush1.msra.mxu0 0.0
    %8663 = vmatprep.subr.mxu0 0.0
    %8664 = vmatpush1.msra.mxu0 0.0
    %8665 = vmatprep.subr.mxu0 0.0
    %8666 = vmatpush1.msra.mxu0 0.0
    %8667 = vmatprep.subr.mxu0 0.0
    %8668 = vmatpush1.msra.mxu0 0.0
    %8669 = vmatprep.subr.mxu0 0.0
    %8670 = vmatpush1.msra.mxu0 0.0
    %8671 = vmatprep.mubr.f32.mxu0 0.0
    %8672 = vmatmul.mubr.f32.gmra.mrb[0].mxu0 %v8605
    %v8673 = vpop.f32.mrb[0].mxu0
    %v8674 = vadd.f32 0.0, %v8673
    %v8675 = vpop.f32.mrb[0].mxu0
    %8676 = vdwg.mxu0
    %v8677 = vadd.f32 %v8523, %v8674
    %v8678 = vld [vmem:[#allocation19] sm:$0x1]
    %v8680 = vlaneseq
    %v8681 = vshrl.u32 %v8680, 7
    %v8682 = vsub.s32 0, %v8681
    %v8683 = vrot.slane %v8678, %v8682
    %v8685 = vadd.f32 %v8677, %v8683
    %vm8686 = vcmp.ge.f32.partialorder %v8685, 0.0
    %v8687 = vmul.f32 %v8685, 0.2
    %v8688 = vsel %vm8686, %v8685, %v8687
    %v8689 = vld [vmem:[#allocation20] sm:$0x1]
    %v8691 = vlaneseq
    %v8692 = vshrl.u32 %v8691, 7
    %v8693 = vsub.s32 0, %v8692
    %v8694 = vrot.slane %v8689, %v8693
    %v8696 = vadd.f32 %v8688, %v8694
    %v8697 = vld [vmem:[%s13] sm:$0x3]
    %vm8698 = vcmask 64512
    %v8700 = vsel %vm8698, %v8697, 0
    %8702 = vmatprep.subr.mxu0 0.0
    %8703 = vmatpush1.msra.mxu0 %v8696
    %8704 = vmatprep.subr.mxu0 0.0
    %8705 = vmatpush1.msra.mxu0 0.0
    %8706 = vmatprep.subr.mxu0 0.0
    %8707 = vmatpush1.msra.mxu0 0.0
    %8708 = vmatprep.subr.mxu0 0.0
    %8709 = vmatpush1.msra.mxu0 0.0
    %8710 = vmatprep.subr.mxu0 0.0
    %8711 = vmatpush1.msra.mxu0 0.0
    %8712 = vmatprep.subr.mxu0 0.0
    %8713 = vmatpush1.msra.mxu0 0.0
    %8714 = vmatprep.subr.mxu0 0.0
    %8715 = vmatpush1.msra.mxu0 0.0
    %8716 = vmatprep.subr.mxu0 0.0
    %8717 = vmatpush1.msra.mxu0 0.0
    %8718 = vmatprep.subr.mxu0 0.0
    %8719 = vmatpush1.msra.mxu0 0.0
    %8720 = vmatprep.subr.mxu0 0.0
    %8721 = vmatpush1.msra.mxu0 0.0
    %8722 = vmatprep.subr.mxu0 0.0
    %8723 = vmatpush1.msra.mxu0 0.0
    %8724 = vmatprep.subr.mxu0 0.0
    %8725 = vmatpush1.msra.mxu0 0.0
    %8726 = vmatprep.subr.mxu0 0.0
    %8727 = vmatpush1.msra.mxu0 0.0
    %8728 = vmatprep.subr.mxu0 0.0
    %8729 = vmatpush1.msra.mxu0 0.0
    %8730 = vmatprep.subr.mxu0 0.0
    %8731 = vmatpush1.msra.mxu0 0.0
    %8732 = vmatprep.subr.mxu0 0.0
    %8733 = vmatpush1.msra.mxu0 0.0
    %8734 = vmatprep.subr.mxu0 0.0
    %8735 = vmatpush1.msra.mxu0 0.0
    %8736 = vmatprep.subr.mxu0 0.0
    %8737 = vmatpush1.msra.mxu0 0.0
    %8738 = vmatprep.subr.mxu0 0.0
    %8739 = vmatpush1.msra.mxu0 0.0
    %8740 = vmatprep.subr.mxu0 0.0
    %8741 = vmatpush1.msra.mxu0 0.0
    %8742 = vmatprep.subr.mxu0 0.0
    %8743 = vmatpush1.msra.mxu0 0.0
    %8744 = vmatprep.subr.mxu0 0.0
    %8745 = vmatpush1.msra.mxu0 0.0
    %8746 = vmatprep.subr.mxu0 0.0
    %8747 = vmatpush1.msra.mxu0 0.0
    %8748 = vmatprep.subr.mxu0 0.0
    %8749 = vmatpush1.msra.mxu0 0.0
    %8750 = vmatprep.subr.mxu0 0.0
    %8751 = vmatpush1.msra.mxu0 0.0
    %8752 = vmatprep.subr.mxu0 0.0
    %8753 = vmatpush1.msra.mxu0 0.0
    %8754 = vmatprep.subr.mxu0 0.0
    %8755 = vmatpush1.msra.mxu0 0.0
    %8756 = vmatprep.subr.mxu0 0.0
    %8757 = vmatpush1.msra.mxu0 0.0
    %8758 = vmatprep.subr.mxu0 0.0
    %8759 = vmatpush1.msra.mxu0 0.0
    %8760 = vmatprep.subr.mxu0 0.0
    %8761 = vmatpush1.msra.mxu0 0.0
    %8762 = vmatprep.subr.mxu0 0.0
    %8763 = vmatpush1.msra.mxu0 0.0
    %8764 = vmatprep.subr.mxu0 0.0
    %8765 = vmatpush1.msra.mxu0 0.0
    %8766 = vmatprep.mubr.f32.mxu0 0.0
    %8767 = vmatmul.mubr.f32.gmra.mrb[0].mxu0 %v8700
    %v8768 = vpop.f32.mrb[0].mxu0
    %v8769 = vadd.f32 0.0, %v8768
    %v8770 = vpop.f32.mrb[0].mxu0
    %8771 = vdwg.mxu0
    %v8772 = vld [vmem:[#allocation22] sm:$0xff]
    %v8773 = vld [vmem:[#allocation22 + $0x8] sm:$0xff]
    %v8774 = vld [vmem:[#allocation22 + $0x10] sm:$0xff]
    %v8775 = vld [vmem:[#allocation22 + $0x18] sm:$0xff]
    %v8776 = vld [vmem:[#allocation22 + $0x20] sm:$0xff]
    %v8777 = vld [vmem:[#allocation22 + $0x28] sm:$0xff]
    %v8778 = vld [vmem:[#allocation22 + $0x30] sm:$0xff]
    %v8779 = vld [vmem:[#allocation22 + $0x38] sm:$0xff]
    %s8780 = scalar_lea.vmem %s13, 2
    %v8781 = vld [vmem:[%s8780] sm:$0x3]
    %v8783 = vsel %vm8698, %v8781, 0
    %8785 = vmatprep.subr.mxu0 0.0
    %8786 = vmatpush1.msra.mxu0 %v8696
    %8787 = vmatprep.subr.mxu0 0.0
    %8788 = vmatpush1.msra.mxu0 0.0
    %8789 = vmatprep.subr.mxu0 0.0
    %8790 = vmatpush1.msra.mxu0 0.0
    %8791 = vmatprep.subr.mxu0 0.0
    %8792 = vmatpush1.msra.mxu0 0.0
    %8793 = vmatprep.subr.mxu0 0.0
    %8794 = vmatpush1.msra.mxu0 0.0
    %8795 = vmatprep.subr.mxu0 0.0
    %8796 = vmatpush1.msra.mxu0 0.0
    %8797 = vmatprep.subr.mxu0 0.0
    %8798 = vmatpush1.msra.mxu0 0.0
    %8799 = vmatprep.subr.mxu0 0.0
    %8800 = vmatpush1.msra.mxu0 0.0
    %8801 = vmatprep.subr.mxu0 0.0
    %8802 = vmatpush1.msra.mxu0 0.0
    %8803 = vmatprep.subr.mxu0 0.0
    %8804 = vmatpush1.msra.mxu0 0.0
    %8805 = vmatprep.subr.mxu0 0.0
    %8806 = vmatpush1.msra.mxu0 0.0
    %8807 = vmatprep.subr.mxu0 0.0
    %8808 = vmatpush1.msra.mxu0 0.0
    %8809 = vmatprep.subr.mxu0 0.0
    %8810 = vmatpush1.msra.mxu0 0.0
    %8811 = vmatprep.subr.mxu0 0.0
    %8812 = vmatpush1.msra.mxu0 0.0
    %8813 = vmatprep.subr.mxu0 0.0
    %8814 = vmatpush1.msra.mxu0 0.0
    %8815 = vmatprep.subr.mxu0 0.0
    %8816 = vmatpush1.msra.mxu0 0.0
    %8817 = vmatprep.subr.mxu0 0.0
    %8818 = vmatpush1.msra.mxu0 0.0
    %8819 = vmatprep.subr.mxu0 0.0
    %8820 = vmatpush1.msra.mxu0 0.0
    %8821 = vmatprep.subr.mxu0 0.0
    %8822 = vmatpush1.msra.mxu0 0.0
    %8823 = vmatprep.subr.mxu0 0.0
    %8824 = vmatpush1.msra.mxu0 0.0
    %8825 = vmatprep.subr.mxu0 0.0
    %8826 = vmatpush1.msra.mxu0 0.0
    %8827 = vmatprep.subr.mxu0 0.0
    %8828 = vmatpush1.msra.mxu0 0.0
    %8829 = vmatprep.subr.mxu0 0.0
    %8830 = vmatpush1.msra.mxu0 0.0
    %8831 = vmatprep.subr.mxu0 0.0
    %8832 = vmatpush1.msra.mxu0 0.0
    %8833 = vmatprep.subr.mxu0 0.0
    %8834 = vmatpush1.msra.mxu0 0.0
    %8835 = vmatprep.subr.mxu0 0.0
    %8836 = vmatpush1.msra.mxu0 0.0
    %8837 = vmatprep.subr.mxu0 0.0
    %8838 = vmatpush1.msra.mxu0 0.0
    %8839 = vmatprep.subr.mxu0 0.0
    %8840 = vmatpush1.msra.mxu0 0.0
    %8841 = vmatprep.subr.mxu0 0.0
    %8842 = vmatpush1.msra.mxu0 0.0
    %8843 = vmatprep.subr.mxu0 0.0
    %8844 = vmatpush1.msra.mxu0 0.0
    %8845 = vmatprep.subr.mxu0 0.0
    %8846 = vmatpush1.msra.mxu0 0.0
    %8847 = vmatprep.subr.mxu0 0.0
    %8848 = vmatpush1.msra.mxu0 0.0
    %8849 = vmatprep.mubr.f32.mxu0 0.0
    %8850 = vmatmul.mubr.f32.gmra.mrb[0].mxu0 %v8783
    %v8851 = vpop.f32.mrb[0].mxu0
    %v8852 = vadd.f32 0.0, %v8851
    %v8853 = vpop.f32.mrb[0].mxu0
    %8854 = vdwg.mxu0
    %s8855 = scalar_lea.vmem [#allocation22], 64
    %v8856 = vld [vmem:[%s8855] sm:$0xff]
    %v8857 = vld [vmem:[%s8855 + $0x8] sm:$0xff]
    %v8858 = vld [vmem:[%s8855 + $0x10] sm:$0xff]
    %v8859 = vld [vmem:[%s8855 + $0x18] sm:$0xff]
    %v8860 = vld [vmem:[%s8855 + $0x20] sm:$0xff]
    %v8861 = vld [vmem:[%s8855 + $0x28] sm:$0xff]
    %v8862 = vld [vmem:[%s8855 + $0x30] sm:$0xff]
    %v8863 = vld [vmem:[%s8855 + $0x38] sm:$0xff]
    %vm8864 = vcmask 523264
    %v8866 = vsel %vm8864, %v8852, 0
    %8868 = vmatprep.subr.mxu0 0.0
    %8869 = vmatpush1.msra.mxu0 %v8856
    %8870 = vmatprep.subr.mxu0 0.0
    %8871 = vmatpush1.msra.mxu0 %v8857
    %8872 = vmatprep.subr.mxu0 0.0
    %8873 = vmatpush1.msra.mxu0 %v8858
    %8874 = vmatprep.subr.mxu0 0.0
    %8875 = vmatpush1.msra.mxu0 %v8859
    %8876 = vmatprep.subr.mxu0 0.0
    %8877 = vmatpush1.msra.mxu0 %v8860
    %8878 = vmatprep.subr.mxu0 0.0
    %8879 = vmatpush1.msra.mxu0 %v8861
    %8880 = vmatprep.subr.mxu0 0.0
    %8881 = vmatpush1.msra.mxu0 %v8862
    %8882 = vmatprep.subr.mxu0 0.0
    %8883 = vmatpush1.msra.mxu0 %v8863
    %8884 = vmatprep.subr.mxu0 0.0
    %8885 = vmatpush1.msra.mxu0 0.0
    %8886 = vmatprep.subr.mxu0 0.0
    %8887 = vmatpush1.msra.mxu0 0.0
    %8888 = vmatprep.subr.mxu0 0.0
    %8889 = vmatpush1.msra.mxu0 0.0
    %8890 = vmatprep.subr.mxu0 0.0
    %8891 = vmatpush1.msra.mxu0 0.0
    %8892 = vmatprep.subr.mxu0 0.0
    %8893 = vmatpush1.msra.mxu0 0.0
    %8894 = vmatprep.subr.mxu0 0.0
    %8895 = vmatpush1.msra.mxu0 0.0
    %8896 = vmatprep.subr.mxu0 0.0
    %8897 = vmatpush1.msra.mxu0 0.0
    %8898 = vmatprep.subr.mxu0 0.0
    %8899 = vmatpush1.msra.mxu0 0.0
    %8900 = vmatprep.subr.mxu0 0.0
    %8901 = vmatpush1.msra.mxu0 0.0
    %8902 = vmatprep.subr.mxu0 0.0
    %8903 = vmatpush1.msra.mxu0 0.0
    %8904 = vmatprep.subr.mxu0 0.0
    %8905 = vmatpush1.msra.mxu0 0.0
    %8906 = vmatprep.subr.mxu0 0.0
    %8907 = vmatpush1.msra.mxu0 0.0
    %8908 = vmatprep.subr.mxu0 0.0
    %8909 = vmatpush1.msra.mxu0 0.0
    %8910 = vmatprep.subr.mxu0 0.0
    %8911 = vmatpush1.msra.mxu0 0.0
    %8912 = vmatprep.subr.mxu0 0.0
    %8913 = vmatpush1.msra.mxu0 0.0
    %8914 = vmatprep.subr.mxu0 0.0
    %8915 = vmatpush1.msra.mxu0 0.0
    %8916 = vmatprep.subr.mxu0 0.0
    %8917 = vmatpush1.msra.mxu0 0.0
    %8918 = vmatprep.subr.mxu0 0.0
    %8919 = vmatpush1.msra.mxu0 0.0
    %8920 = vmatprep.subr.mxu0 0.0
    %8921 = vmatpush1.msra.mxu0 0.0
    %8922 = vmatprep.subr.mxu0 0.0
    %8923 = vmatpush1.msra.mxu0 0.0
    %8924 = vmatprep.subr.mxu0 0.0
    %8925 = vmatpush1.msra.mxu0 0.0
    %8926 = vmatprep.subr.mxu0 0.0
    %8927 = vmatpush1.msra.mxu0 0.0
    %8928 = vmatprep.subr.mxu0 0.0
    %8929 = vmatpush1.msra.mxu0 0.0
    %8930 = vmatprep.subr.mxu0 0.0
    %8931 = vmatpush1.msra.mxu0 0.0
    %8932 = vmatprep.mubr.f32.mxu0 0.0
    %8933 = vmatmul.mubr.f32.gmra.mrb[0].mxu0 %v8866
    %v8934 = vpop.f32.mrb[0].mxu0
    %v8935 = vadd.f32 0.0, %v8934
    %v8936 = vpop.f32.mrb[0].mxu0
    %8937 = vdwg.mxu0
    %v8939 = vsel %vm8864, %v8769, 0
    %8941 = vmatprep.subr.mxu0 0.0
    %8942 = vmatpush1.msra.mxu0 %v8772
    %8943 = vmatprep.subr.mxu0 0.0
    %8944 = vmatpush1.msra.mxu0 %v8773
    %8945 = vmatprep.subr.mxu0 0.0
    %8946 = vmatpush1.msra.mxu0 %v8774
    %8947 = vmatprep.subr.mxu0 0.0
    %8948 = vmatpush1.msra.mxu0 %v8775
    %8949 = vmatprep.subr.mxu0 0.0
    %8950 = vmatpush1.msra.mxu0 %v8776
    %8951 = vmatprep.subr.mxu0 0.0
    %8952 = vmatpush1.msra.mxu0 %v8777
    %8953 = vmatprep.subr.mxu0 0.0
    %8954 = vmatpush1.msra.mxu0 %v8778
    %8955 = vmatprep.subr.mxu0 0.0
    %8956 = vmatpush1.msra.mxu0 %v8779
    %8957 = vmatprep.subr.mxu0 0.0
    %8958 = vmatpush1.msra.mxu0 0.0
    %8959 = vmatprep.subr.mxu0 0.0
    %8960 = vmatpush1.msra.mxu0 0.0
    %8961 = vmatprep.subr.mxu0 0.0
    %8962 = vmatpush1.msra.mxu0 0.0
    %8963 = vmatprep.subr.mxu0 0.0
    %8964 = vmatpush1.msra.mxu0 0.0
    %8965 = vmatprep.subr.mxu0 0.0
    %8966 = vmatpush1.msra.mxu0 0.0
    %8967 = vmatprep.subr.mxu0 0.0
    %8968 = vmatpush1.msra.mxu0 0.0
    %8969 = vmatprep.subr.mxu0 0.0
    %8970 = vmatpush1.msra.mxu0 0.0
    %8971 = vmatprep.subr.mxu0 0.0
    %8972 = vmatpush1.msra.mxu0 0.0
    %8973 = vmatprep.subr.mxu0 0.0
    %8974 = vmatpush1.msra.mxu0 0.0
    %8975 = vmatprep.subr.mxu0 0.0
    %8976 = vmatpush1.msra.mxu0 0.0
    %8977 = vmatprep.subr.mxu0 0.0
    %8978 = vmatpush1.msra.mxu0 0.0
    %8979 = vmatprep.subr.mxu0 0.0
    %8980 = vmatpush1.msra.mxu0 0.0
    %8981 = vmatprep.subr.mxu0 0.0
    %8982 = vmatpush1.msra.mxu0 0.0
    %8983 = vmatprep.subr.mxu0 0.0
    %8984 = vmatpush1.msra.mxu0 0.0
    %8985 = vmatprep.subr.mxu0 0.0
    %8986 = vmatpush1.msra.mxu0 0.0
    %8987 = vmatprep.subr.mxu0 0.0
    %8988 = vmatpush1.msra.mxu0 0.0
    %8989 = vmatprep.subr.mxu0 0.0
    %8990 = vmatpush1.msra.mxu0 0.0
    %8991 = vmatprep.subr.mxu0 0.0
    %8992 = vmatpush1.msra.mxu0 0.0
    %8993 = vmatprep.subr.mxu0 0.0
    %8994 = vmatpush1.msra.mxu0 0.0
    %8995 = vmatprep.subr.mxu0 0.0
    %8996 = vmatpush1.msra.mxu0 0.0
    %8997 = vmatprep.subr.mxu0 0.0
    %8998 = vmatpush1.msra.mxu0 0.0
    %8999 = vmatprep.subr.mxu0 0.0
    %9000 = vmatpush1.msra.mxu0 0.0
    %9001 = vmatprep.subr.mxu0 0.0
    %9002 = vmatpush1.msra.mxu0 0.0
    %9003 = vmatprep.subr.mxu0 0.0
    %9004 = vmatpush1.msra.mxu0 0.0
    %9005 = vmatprep.mubr.f32.mxu0 0.0
    %9006 = vmatmul.mubr.f32.gmra.mrb[0].mxu0 %v8939
    %v9007 = vpop.f32.mrb[0].mxu0
    %v9008 = vadd.f32 %v8935, %v9007
    %v9009 = vpop.f32.mrb[0].mxu0
    %9010 = vdwg.mxu0
    %s9011 = scalar_lea.vmem %s13, 4
    %v9012 = vld [vmem:[%s9011] sm:$0x3]
    %v9014 = vsel %vm8698, %v9012, 0
    %9016 = vmatprep.subr.mxu0 0.0
    %9017 = vmatpush1.msra.mxu0 %v8696
    %9018 = vmatprep.subr.mxu0 0.0
    %9019 = vmatpush1.msra.mxu0 0.0
    %9020 = vmatprep.subr.mxu0 0.0
    %9021 = vmatpush1.msra.mxu0 0.0
    %9022 = vmatprep.subr.mxu0 0.0
    %9023 = vmatpush1.msra.mxu0 0.0
    %9024 = vmatprep.subr.mxu0 0.0
    %9025 = vmatpush1.msra.mxu0 0.0
    %9026 = vmatprep.subr.mxu0 0.0
    %9027 = vmatpush1.msra.mxu0 0.0
    %9028 = vmatprep.subr.mxu0 0.0
    %9029 = vmatpush1.msra.mxu0 0.0
    %9030 = vmatprep.subr.mxu0 0.0
    %9031 = vmatpush1.msra.mxu0 0.0
    %9032 = vmatprep.subr.mxu0 0.0
    %9033 = vmatpush1.msra.mxu0 0.0
    %9034 = vmatprep.subr.mxu0 0.0
    %9035 = vmatpush1.msra.mxu0 0.0
    %9036 = vmatprep.subr.mxu0 0.0
    %9037 = vmatpush1.msra.mxu0 0.0
    %9038 = vmatprep.subr.mxu0 0.0
    %9039 = vmatpush1.msra.mxu0 0.0
    %9040 = vmatprep.subr.mxu0 0.0
    %9041 = vmatpush1.msra.mxu0 0.0
    %9042 = vmatprep.subr.mxu0 0.0
    %9043 = vmatpush1.msra.mxu0 0.0
    %9044 = vmatprep.subr.mxu0 0.0
    %9045 = vmatpush1.msra.mxu0 0.0
    %9046 = vmatprep.subr.mxu0 0.0
    %9047 = vmatpush1.msra.mxu0 0.0
    %9048 = vmatprep.subr.mxu0 0.0
    %9049 = vmatpush1.msra.mxu0 0.0
    %9050 = vmatprep.subr.mxu0 0.0
    %9051 = vmatpush1.msra.mxu0 0.0
    %9052 = vmatprep.subr.mxu0 0.0
    %9053 = vmatpush1.msra.mxu0 0.0
    %9054 = vmatprep.subr.mxu0 0.0
    %9055 = vmatpush1.msra.mxu0 0.0
    %9056 = vmatprep.subr.mxu0 0.0
    %9057 = vmatpush1.msra.mxu0 0.0
    %9058 = vmatprep.subr.mxu0 0.0
    %9059 = vmatpush1.msra.mxu0 0.0
    %9060 = vmatprep.subr.mxu0 0.0
    %9061 = vmatpush1.msra.mxu0 0.0
    %9062 = vmatprep.subr.mxu0 0.0
    %9063 = vmatpush1.msra.mxu0 0.0
    %9064 = vmatprep.subr.mxu0 0.0
    %9065 = vmatpush1.msra.mxu0 0.0
    %9066 = vmatprep.subr.mxu0 0.0
    %9067 = vmatpush1.msra.mxu0 0.0
    %9068 = vmatprep.subr.mxu0 0.0
    %9069 = vmatpush1.msra.mxu0 0.0
    %9070 = vmatprep.subr.mxu0 0.0
    %9071 = vmatpush1.msra.mxu0 0.0
    %9072 = vmatprep.subr.mxu0 0.0
    %9073 = vmatpush1.msra.mxu0 0.0
    %9074 = vmatprep.subr.mxu0 0.0
    %9075 = vmatpush1.msra.mxu0 0.0
    %9076 = vmatprep.subr.mxu0 0.0
    %9077 = vmatpush1.msra.mxu0 0.0
    %9078 = vmatprep.subr.mxu0 0.0
    %9079 = vmatpush1.msra.mxu0 0.0
    %9080 = vmatprep.mubr.f32.mxu0 0.0
    %9081 = vmatmul.mubr.f32.gmra.mrb[0].mxu0 %v9014
    %v9082 = vpop.f32.mrb[0].mxu0
    %v9083 = vadd.f32 0.0, %v9082
    %v9084 = vpop.f32.mrb[0].mxu0
    %9085 = vdwg.mxu0
    %s9086 = scalar_lea.vmem [#allocation22], 128
    %v9087 = vld [vmem:[%s9086] sm:$0xff]
    %v9088 = vld [vmem:[%s9086 + $0x8] sm:$0xff]
    %v9089 = vld [vmem:[%s9086 + $0x10] sm:$0xff]
    %v9090 = vld [vmem:[%s9086 + $0x18] sm:$0xff]
    %v9091 = vld [vmem:[%s9086 + $0x20] sm:$0xff]
    %v9092 = vld [vmem:[%s9086 + $0x28] sm:$0xff]
    %v9093 = vld [vmem:[%s9086 + $0x30] sm:$0xff]
    %v9094 = vld [vmem:[%s9086 + $0x38] sm:$0xff]
    %v9096 = vsel %vm8864, %v9083, 0
    %9098 = vmatprep.subr.mxu0 0.0
    %9099 = vmatpush1.msra.mxu0 %v9087
    %9100 = vmatprep.subr.mxu0 0.0
    %9101 = vmatpush1.msra.mxu0 %v9088
    %9102 = vmatprep.subr.mxu0 0.0
    %9103 = vmatpush1.msra.mxu0 %v9089
    %9104 = vmatprep.subr.mxu0 0.0
    %9105 = vmatpush1.msra.mxu0 %v9090
    %9106 = vmatprep.subr.mxu0 0.0
    %9107 = vmatpush1.msra.mxu0 %v9091
    %9108 = vmatprep.subr.mxu0 0.0
    %9109 = vmatpush1.msra.mxu0 %v9092
    %9110 = vmatprep.subr.mxu0 0.0
    %9111 = vmatpush1.msra.mxu0 %v9093
    %9112 = vmatprep.subr.mxu0 0.0
    %9113 = vmatpush1.msra.mxu0 %v9094
    %9114 = vmatprep.subr.mxu0 0.0
    %9115 = vmatpush1.msra.mxu0 0.0
    %9116 = vmatprep.subr.mxu0 0.0
    %9117 = vmatpush1.msra.mxu0 0.0
    %9118 = vmatprep.subr.mxu0 0.0
    %9119 = vmatpush1.msra.mxu0 0.0
    %9120 = vmatprep.subr.mxu0 0.0
    %9121 = vmatpush1.msra.mxu0 0.0
    %9122 = vmatprep.subr.mxu0 0.0
    %9123 = vmatpush1.msra.mxu0 0.0
    %9124 = vmatprep.subr.mxu0 0.0
    %9125 = vmatpush1.msra.mxu0 0.0
    %9126 = vmatprep.subr.mxu0 0.0
    %9127 = vmatpush1.msra.mxu0 0.0
    %9128 = vmatprep.subr.mxu0 0.0
    %9129 = vmatpush1.msra.mxu0 0.0
    %9130 = vmatprep.subr.mxu0 0.0
    %9131 = vmatpush1.msra.mxu0 0.0
    %9132 = vmatprep.subr.mxu0 0.0
    %9133 = vmatpush1.msra.mxu0 0.0
    %9134 = vmatprep.subr.mxu0 0.0
    %9135 = vmatpush1.msra.mxu0 0.0
    %9136 = vmatprep.subr.mxu0 0.0
    %9137 = vmatpush1.msra.mxu0 0.0
    %9138 = vmatprep.subr.mxu0 0.0
    %9139 = vmatpush1.msra.mxu0 0.0
    %9140 = vmatprep.subr.mxu0 0.0
    %9141 = vmatpush1.msra.mxu0 0.0
    %9142 = vmatprep.subr.mxu0 0.0
    %9143 = vmatpush1.msra.mxu0 0.0
    %9144 = vmatprep.subr.mxu0 0.0
    %9145 = vmatpush1.msra.mxu0 0.0
    %9146 = vmatprep.subr.mxu0 0.0
    %9147 = vmatpush1.msra.mxu0 0.0
    %9148 = vmatprep.subr.mxu0 0.0
    %9149 = vmatpush1.msra.mxu0 0.0
    %9150 = vmatprep.subr.mxu0 0.0
    %9151 = vmatpush1.msra.mxu0 0.0
    %9152 = vmatprep.subr.mxu0 0.0
    %9153 = vmatpush1.msra.mxu0 0.0
    %9154 = vmatprep.subr.mxu0 0.0
    %9155 = vmatpush1.msra.mxu0 0.0
    %9156 = vmatprep.subr.mxu0 0.0
    %9157 = vmatpush1.msra.mxu0 0.0
    %9158 = vmatprep.subr.mxu0 0.0
    %9159 = vmatpush1.msra.mxu0 0.0
    %9160 = vmatprep.subr.mxu0 0.0
    %9161 = vmatpush1.msra.mxu0 0.0
    %9162 = vmatprep.mubr.f32.mxu0 0.0
    %9163 = vmatmul.mubr.f32.gmra.mrb[0].mxu0 %v9096
    %v9164 = vpop.f32.mrb[0].mxu0
    %v9165 = vadd.f32 0.0, %v9164
    %v9166 = vpop.f32.mrb[0].mxu0
    %9167 = vdwg.mxu0
    %v9168 = vadd.f32 %v9008, %v9165
    %s9169 = scalar_lea.vmem %s13, 6
    %v9170 = vld [vmem:[%s9169] sm:$0x3]
    %v9172 = vsel %vm8698, %v9170, 0
    %9174 = vmatprep.subr.mxu0 0.0
    %9175 = vmatpush1.msra.mxu0 %v8696
    %9176 = vmatprep.subr.mxu0 0.0
    %9177 = vmatpush1.msra.mxu0 0.0
    %9178 = vmatprep.subr.mxu0 0.0
    %9179 = vmatpush1.msra.mxu0 0.0
    %9180 = vmatprep.subr.mxu0 0.0
    %9181 = vmatpush1.msra.mxu0 0.0
    %9182 = vmatprep.subr.mxu0 0.0
    %9183 = vmatpush1.msra.mxu0 0.0
    %9184 = vmatprep.subr.mxu0 0.0
    %9185 = vmatpush1.msra.mxu0 0.0
    %9186 = vmatprep.subr.mxu0 0.0
    %9187 = vmatpush1.msra.mxu0 0.0
    %9188 = vmatprep.subr.mxu0 0.0
    %9189 = vmatpush1.msra.mxu0 0.0
    %9190 = vmatprep.subr.mxu0 0.0
    %9191 = vmatpush1.msra.mxu0 0.0
    %9192 = vmatprep.subr.mxu0 0.0
    %9193 = vmatpush1.msra.mxu0 0.0
    %9194 = vmatprep.subr.mxu0 0.0
    %9195 = vmatpush1.msra.mxu0 0.0
    %9196 = vmatprep.subr.mxu0 0.0
    %9197 = vmatpush1.msra.mxu0 0.0
    %9198 = vmatprep.subr.mxu0 0.0
    %9199 = vmatpush1.msra.mxu0 0.0
    %9200 = vmatprep.subr.mxu0 0.0
    %9201 = vmatpush1.msra.mxu0 0.0
    %9202 = vmatprep.subr.mxu0 0.0
    %9203 = vmatpush1.msra.mxu0 0.0
    %9204 = vmatprep.subr.mxu0 0.0
    %9205 = vmatpush1.msra.mxu0 0.0
    %9206 = vmatprep.subr.mxu0 0.0
    %9207 = vmatpush1.msra.mxu0 0.0
    %9208 = vmatprep.subr.mxu0 0.0
    %9209 = vmatpush1.msra.mxu0 0.0
    %9210 = vmatprep.subr.mxu0 0.0
    %9211 = vmatpush1.msra.mxu0 0.0
    %9212 = vmatprep.subr.mxu0 0.0
    %9213 = vmatpush1.msra.mxu0 0.0
    %9214 = vmatprep.subr.mxu0 0.0
    %9215 = vmatpush1.msra.mxu0 0.0
    %9216 = vmatprep.subr.mxu0 0.0
    %9217 = vmatpush1.msra.mxu0 0.0
    %9218 = vmatprep.subr.mxu0 0.0
    %9219 = vmatpush1.msra.mxu0 0.0
    %9220 = vmatprep.subr.mxu0 0.0
    %9221 = vmatpush1.msra.mxu0 0.0
    %9222 = vmatprep.subr.mxu0 0.0
    %9223 = vmatpush1.msra.mxu0 0.0
    %9224 = vmatprep.subr.mxu0 0.0
    %9225 = vmatpush1.msra.mxu0 0.0
    %9226 = vmatprep.subr.mxu0 0.0
    %9227 = vmatpush1.msra.mxu0 0.0
    %9228 = vmatprep.subr.mxu0 0.0
    %9229 = vmatpush1.msra.mxu0 0.0
    %9230 = vmatprep.subr.mxu0 0.0
    %9231 = vmatpush1.msra.mxu0 0.0
    %9232 = vmatprep.subr.mxu0 0.0
    %9233 = vmatpush1.msra.mxu0 0.0
    %9234 = vmatprep.subr.mxu0 0.0
    %9235 = vmatpush1.msra.mxu0 0.0
    %9236 = vmatprep.subr.mxu0 0.0
    %9237 = vmatpush1.msra.mxu0 0.0
    %9238 = vmatprep.mubr.f32.mxu0 0.0
    %9239 = vmatmul.mubr.f32.gmra.mrb[0].mxu0 %v9172
    %v9240 = vpop.f32.mrb[0].mxu0
    %v9241 = vadd.f32 0.0, %v9240
    %v9242 = vpop.f32.mrb[0].mxu0
    %9243 = vdwg.mxu0
    %s9244 = scalar_lea.vmem [#allocation22], 192
    %v9245 = vld [vmem:[%s9244] sm:$0xff]
    %v9246 = vld [vmem:[%s9244 + $0x8] sm:$0xff]
    %v9247 = vld [vmem:[%s9244 + $0x10] sm:$0xff]
    %v9248 = vld [vmem:[%s9244 + $0x18] sm:$0xff]
    %v9249 = vld [vmem:[%s9244 + $0x20] sm:$0xff]
    %v9250 = vld [vmem:[%s9244 + $0x28] sm:$0xff]
    %v9251 = vld [vmem:[%s9244 + $0x30] sm:$0xff]
    %v9252 = vld [vmem:[%s9244 + $0x38] sm:$0xff]
    %v9254 = vsel %vm8864, %v9241, 0
    %9256 = vmatprep.subr.mxu0 0.0
    %9257 = vmatpush1.msra.mxu0 %v9245
    %9258 = vmatprep.subr.mxu0 0.0
    %9259 = vmatpush1.msra.mxu0 %v9246
    %9260 = vmatprep.subr.mxu0 0.0
    %9261 = vmatpush1.msra.mxu0 %v9247
    %9262 = vmatprep.subr.mxu0 0.0
    %9263 = vmatpush1.msra.mxu0 %v9248
    %9264 = vmatprep.subr.mxu0 0.0
    %9265 = vmatpush1.msra.mxu0 %v9249
    %9266 = vmatprep.subr.mxu0 0.0
    %9267 = vmatpush1.msra.mxu0 %v9250
    %9268 = vmatprep.subr.mxu0 0.0
    %9269 = vmatpush1.msra.mxu0 %v9251
    %9270 = vmatprep.subr.mxu0 0.0
    %9271 = vmatpush1.msra.mxu0 %v9252
    %9272 = vmatprep.subr.mxu0 0.0
    %9273 = vmatpush1.msra.mxu0 0.0
    %9274 = vmatprep.subr.mxu0 0.0
    %9275 = vmatpush1.msra.mxu0 0.0
    %9276 = vmatprep.subr.mxu0 0.0
    %9277 = vmatpush1.msra.mxu0 0.0
    %9278 = vmatprep.subr.mxu0 0.0
    %9279 = vmatpush1.msra.mxu0 0.0
    %9280 = vmatprep.subr.mxu0 0.0
    %9281 = vmatpush1.msra.mxu0 0.0
    %9282 = vmatprep.subr.mxu0 0.0
    %9283 = vmatpush1.msra.mxu0 0.0
    %9284 = vmatprep.subr.mxu0 0.0
    %9285 = vmatpush1.msra.mxu0 0.0
    %9286 = vmatprep.subr.mxu0 0.0
    %9287 = vmatpush1.msra.mxu0 0.0
    %9288 = vmatprep.subr.mxu0 0.0
    %9289 = vmatpush1.msra.mxu0 0.0
    %9290 = vmatprep.subr.mxu0 0.0
    %9291 = vmatpush1.msra.mxu0 0.0
    %9292 = vmatprep.subr.mxu0 0.0
    %9293 = vmatpush1.msra.mxu0 0.0
    %9294 = vmatprep.subr.mxu0 0.0
    %9295 = vmatpush1.msra.mxu0 0.0
    %9296 = vmatprep.subr.mxu0 0.0
    %9297 = vmatpush1.msra.mxu0 0.0
    %9298 = vmatprep.subr.mxu0 0.0
    %9299 = vmatpush1.msra.mxu0 0.0
    %9300 = vmatprep.subr.mxu0 0.0
    %9301 = vmatpush1.msra.mxu0 0.0
    %9302 = vmatprep.subr.mxu0 0.0
    %9303 = vmatpush1.msra.mxu0 0.0
    %9304 = vmatprep.subr.mxu0 0.0
    %9305 = vmatpush1.msra.mxu0 0.0
    %9306 = vmatprep.subr.mxu0 0.0
    %9307 = vmatpush1.msra.mxu0 0.0
    %9308 = vmatprep.subr.mxu0 0.0
    %9309 = vmatpush1.msra.mxu0 0.0
    %9310 = vmatprep.subr.mxu0 0.0
    %9311 = vmatpush1.msra.mxu0 0.0
    %9312 = vmatprep.subr.mxu0 0.0
    %9313 = vmatpush1.msra.mxu0 0.0
    %9314 = vmatprep.subr.mxu0 0.0
    %9315 = vmatpush1.msra.mxu0 0.0
    %9316 = vmatprep.subr.mxu0 0.0
    %9317 = vmatpush1.msra.mxu0 0.0
    %9318 = vmatprep.subr.mxu0 0.0
    %9319 = vmatpush1.msra.mxu0 0.0
    %9320 = vmatprep.mubr.f32.mxu0 0.0
    %9321 = vmatmul.mubr.f32.gmra.mrb[0].mxu0 %v9254
    %v9322 = vpop.f32.mrb[0].mxu0
    %v9323 = vadd.f32 0.0, %v9322
    %v9324 = vpop.f32.mrb[0].mxu0
    %9325 = vdwg.mxu0
    %v9326 = vadd.f32 %v9168, %v9323
    %s9327 = scalar_lea.vmem %s13, 8
    %v9328 = vld [vmem:[%s9327] sm:$0x3]
    %v9330 = vsel %vm8698, %v9328, 0
    %9332 = vmatprep.subr.mxu0 0.0
    %9333 = vmatpush1.msra.mxu0 %v8696
    %9334 = vmatprep.subr.mxu0 0.0
    %9335 = vmatpush1.msra.mxu0 0.0
    %9336 = vmatprep.subr.mxu0 0.0
    %9337 = vmatpush1.msra.mxu0 0.0
    %9338 = vmatprep.subr.mxu0 0.0
    %9339 = vmatpush1.msra.mxu0 0.0
    %9340 = vmatprep.subr.mxu0 0.0
    %9341 = vmatpush1.msra.mxu0 0.0
    %9342 = vmatprep.subr.mxu0 0.0
    %9343 = vmatpush1.msra.mxu0 0.0
    %9344 = vmatprep.subr.mxu0 0.0
    %9345 = vmatpush1.msra.mxu0 0.0
    %9346 = vmatprep.subr.mxu0 0.0
    %9347 = vmatpush1.msra.mxu0 0.0
    %9348 = vmatprep.subr.mxu0 0.0
    %9349 = vmatpush1.msra.mxu0 0.0
    %9350 = vmatprep.subr.mxu0 0.0
    %9351 = vmatpush1.msra.mxu0 0.0
    %9352 = vmatprep.subr.mxu0 0.0
    %9353 = vmatpush1.msra.mxu0 0.0
    %9354 = vmatprep.subr.mxu0 0.0
    %9355 = vmatpush1.msra.mxu0 0.0
    %9356 = vmatprep.subr.mxu0 0.0
    %9357 = vmatpush1.msra.mxu0 0.0
    %9358 = vmatprep.subr.mxu0 0.0
    %9359 = vmatpush1.msra.mxu0 0.0
    %9360 = vmatprep.subr.mxu0 0.0
    %9361 = vmatpush1.msra.mxu0 0.0
    %9362 = vmatprep.subr.mxu0 0.0
    %9363 = vmatpush1.msra.mxu0 0.0
    %9364 = vmatprep.subr.mxu0 0.0
    %9365 = vmatpush1.msra.mxu0 0.0
    %9366 = vmatprep.subr.mxu0 0.0
    %9367 = vmatpush1.msra.mxu0 0.0
    %9368 = vmatprep.subr.mxu0 0.0
    %9369 = vmatpush1.msra.mxu0 0.0
    %9370 = vmatprep.subr.mxu0 0.0
    %9371 = vmatpush1.msra.mxu0 0.0
    %9372 = vmatprep.subr.mxu0 0.0
    %9373 = vmatpush1.msra.mxu0 0.0
    %9374 = vmatprep.subr.mxu0 0.0
    %9375 = vmatpush1.msra.mxu0 0.0
    %9376 = vmatprep.subr.mxu0 0.0
    %9377 = vmatpush1.msra.mxu0 0.0
    %9378 = vmatprep.subr.mxu0 0.0
    %9379 = vmatpush1.msra.mxu0 0.0
    %9380 = vmatprep.subr.mxu0 0.0
    %9381 = vmatpush1.msra.mxu0 0.0
    %9382 = vmatprep.subr.mxu0 0.0
    %9383 = vmatpush1.msra.mxu0 0.0
    %9384 = vmatprep.subr.mxu0 0.0
    %9385 = vmatpush1.msra.mxu0 0.0
    %9386 = vmatprep.subr.mxu0 0.0
    %9387 = vmatpush1.msra.mxu0 0.0
    %9388 = vmatprep.subr.mxu0 0.0
    %9389 = vmatpush1.msra.mxu0 0.0
    %9390 = vmatprep.subr.mxu0 0.0
    %9391 = vmatpush1.msra.mxu0 0.0
    %9392 = vmatprep.subr.mxu0 0.0
    %9393 = vmatpush1.msra.mxu0 0.0
    %9394 = vmatprep.subr.mxu0 0.0
    %9395 = vmatpush1.msra.mxu0 0.0
    %9396 = vmatprep.mubr.f32.mxu0 0.0
    %9397 = vmatmul.mubr.f32.gmra.mrb[0].mxu0 %v9330
    %v9398 = vpop.f32.mrb[0].mxu0
    %v9399 = vadd.f32 0.0, %v9398
    %v9400 = vpop.f32.mrb[0].mxu0
    %9401 = vdwg.mxu0
    %s9402 = scalar_lea.vmem [#allocation22], 256
    %v9403 = vld [vmem:[%s9402] sm:$0xff]
    %v9404 = vld [vmem:[%s9402 + $0x8] sm:$0xff]
    %v9405 = vld [vmem:[%s9402 + $0x10] sm:$0xff]
    %v9406 = vld [vmem:[%s9402 + $0x18] sm:$0xff]
    %v9407 = vld [vmem:[%s9402 + $0x20] sm:$0xff]
    %v9408 = vld [vmem:[%s9402 + $0x28] sm:$0xff]
    %v9409 = vld [vmem:[%s9402 + $0x30] sm:$0xff]
    %v9410 = vld [vmem:[%s9402 + $0x38] sm:$0xff]
    %v9412 = vsel %vm8864, %v9399, 0
    %9414 = vmatprep.subr.mxu0 0.0
    %9415 = vmatpush1.msra.mxu0 %v9403
    %9416 = vmatprep.subr.mxu0 0.0
    %9417 = vmatpush1.msra.mxu0 %v9404
    %9418 = vmatprep.subr.mxu0 0.0
    %9419 = vmatpush1.msra.mxu0 %v9405
    %9420 = vmatprep.subr.mxu0 0.0
    %9421 = vmatpush1.msra.mxu0 %v9406
    %9422 = vmatprep.subr.mxu0 0.0
    %9423 = vmatpush1.msra.mxu0 %v9407
    %9424 = vmatprep.subr.mxu0 0.0
    %9425 = vmatpush1.msra.mxu0 %v9408
    %9426 = vmatprep.subr.mxu0 0.0
    %9427 = vmatpush1.msra.mxu0 %v9409
    %9428 = vmatprep.subr.mxu0 0.0
    %9429 = vmatpush1.msra.mxu0 %v9410
    %9430 = vmatprep.subr.mxu0 0.0
    %9431 = vmatpush1.msra.mxu0 0.0
    %9432 = vmatprep.subr.mxu0 0.0
    %9433 = vmatpush1.msra.mxu0 0.0
    %9434 = vmatprep.subr.mxu0 0.0
    %9435 = vmatpush1.msra.mxu0 0.0
    %9436 = vmatprep.subr.mxu0 0.0
    %9437 = vmatpush1.msra.mxu0 0.0
    %9438 = vmatprep.subr.mxu0 0.0
    %9439 = vmatpush1.msra.mxu0 0.0
    %9440 = vmatprep.subr.mxu0 0.0
    %9441 = vmatpush1.msra.mxu0 0.0
    %9442 = vmatprep.subr.mxu0 0.0
    %9443 = vmatpush1.msra.mxu0 0.0
    %9444 = vmatprep.subr.mxu0 0.0
    %9445 = vmatpush1.msra.mxu0 0.0
    %9446 = vmatprep.subr.mxu0 0.0
    %9447 = vmatpush1.msra.mxu0 0.0
    %9448 = vmatprep.subr.mxu0 0.0
    %9449 = vmatpush1.msra.mxu0 0.0
    %9450 = vmatprep.subr.mxu0 0.0
    %9451 = vmatpush1.msra.mxu0 0.0
    %9452 = vmatprep.subr.mxu0 0.0
    %9453 = vmatpush1.msra.mxu0 0.0
    %9454 = vmatprep.subr.mxu0 0.0
    %9455 = vmatpush1.msra.mxu0 0.0
    %9456 = vmatprep.subr.mxu0 0.0
    %9457 = vmatpush1.msra.mxu0 0.0
    %9458 = vmatprep.subr.mxu0 0.0
    %9459 = vmatpush1.msra.mxu0 0.0
    %9460 = vmatprep.subr.mxu0 0.0
    %9461 = vmatpush1.msra.mxu0 0.0
    %9462 = vmatprep.subr.mxu0 0.0
    %9463 = vmatpush1.msra.mxu0 0.0
    %9464 = vmatprep.subr.mxu0 0.0
    %9465 = vmatpush1.msra.mxu0 0.0
    %9466 = vmatprep.subr.mxu0 0.0
    %9467 = vmatpush1.msra.mxu0 0.0
    %9468 = vmatprep.subr.mxu0 0.0
    %9469 = vmatpush1.msra.mxu0 0.0
    %9470 = vmatprep.subr.mxu0 0.0
    %9471 = vmatpush1.msra.mxu0 0.0
    %9472 = vmatprep.subr.mxu0 0.0
    %9473 = vmatpush1.msra.mxu0 0.0
    %9474 = vmatprep.subr.mxu0 0.0
    %9475 = vmatpush1.msra.mxu0 0.0
    %9476 = vmatprep.subr.mxu0 0.0
    %9477 = vmatpush1.msra.mxu0 0.0
    %9478 = vmatprep.mubr.f32.mxu0 0.0
    %9479 = vmatmul.mubr.f32.gmra.mrb[0].mxu0 %v9412
    %v9480 = vpop.f32.mrb[0].mxu0
    %v9481 = vadd.f32 0.0, %v9480
    %v9482 = vpop.f32.mrb[0].mxu0
    %9483 = vdwg.mxu0
    %v9484 = vadd.f32 %v9326, %v9481
    %s9485 = scalar_lea.vmem %s13, 10
    %v9486 = vld [vmem:[%s9485] sm:$0x3]
    %v9488 = vsel %vm8698, %v9486, 0
    %9490 = vmatprep.subr.mxu0 0.0
    %9491 = vmatpush1.msra.mxu0 %v8696
    %9492 = vmatprep.subr.mxu0 0.0
    %9493 = vmatpush1.msra.mxu0 0.0
    %9494 = vmatprep.subr.mxu0 0.0
    %9495 = vmatpush1.msra.mxu0 0.0
    %9496 = vmatprep.subr.mxu0 0.0
    %9497 = vmatpush1.msra.mxu0 0.0
    %9498 = vmatprep.subr.mxu0 0.0
    %9499 = vmatpush1.msra.mxu0 0.0
    %9500 = vmatprep.subr.mxu0 0.0
    %9501 = vmatpush1.msra.mxu0 0.0
    %9502 = vmatprep.subr.mxu0 0.0
    %9503 = vmatpush1.msra.mxu0 0.0
    %9504 = vmatprep.subr.mxu0 0.0
    %9505 = vmatpush1.msra.mxu0 0.0
    %9506 = vmatprep.subr.mxu0 0.0
    %9507 = vmatpush1.msra.mxu0 0.0
    %9508 = vmatprep.subr.mxu0 0.0
    %9509 = vmatpush1.msra.mxu0 0.0
    %9510 = vmatprep.subr.mxu0 0.0
    %9511 = vmatpush1.msra.mxu0 0.0
    %9512 = vmatprep.subr.mxu0 0.0
    %9513 = vmatpush1.msra.mxu0 0.0
    %9514 = vmatprep.subr.mxu0 0.0
    %9515 = vmatpush1.msra.mxu0 0.0
    %9516 = vmatprep.subr.mxu0 0.0
    %9517 = vmatpush1.msra.mxu0 0.0
    %9518 = vmatprep.subr.mxu0 0.0
    %9519 = vmatpush1.msra.mxu0 0.0
    %9520 = vmatprep.subr.mxu0 0.0
    %9521 = vmatpush1.msra.mxu0 0.0
    %9522 = vmatprep.subr.mxu0 0.0
    %9523 = vmatpush1.msra.mxu0 0.0
    %9524 = vmatprep.subr.mxu0 0.0
    %9525 = vmatpush1.msra.mxu0 0.0
    %9526 = vmatprep.subr.mxu0 0.0
    %9527 = vmatpush1.msra.mxu0 0.0
    %9528 = vmatprep.subr.mxu0 0.0
    %9529 = vmatpush1.msra.mxu0 0.0
    %9530 = vmatprep.subr.mxu0 0.0
    %9531 = vmatpush1.msra.mxu0 0.0
    %9532 = vmatprep.subr.mxu0 0.0
    %9533 = vmatpush1.msra.mxu0 0.0
    %9534 = vmatprep.subr.mxu0 0.0
    %9535 = vmatpush1.msra.mxu0 0.0
    %9536 = vmatprep.subr.mxu0 0.0
    %9537 = vmatpush1.msra.mxu0 0.0
    %9538 = vmatprep.subr.mxu0 0.0
    %9539 = vmatpush1.msra.mxu0 0.0
    %9540 = vmatprep.subr.mxu0 0.0
    %9541 = vmatpush1.msra.mxu0 0.0
    %9542 = vmatprep.subr.mxu0 0.0
    %9543 = vmatpush1.msra.mxu0 0.0
    %9544 = vmatprep.subr.mxu0 0.0
    %9545 = vmatpush1.msra.mxu0 0.0
    %9546 = vmatprep.subr.mxu0 0.0
    %9547 = vmatpush1.msra.mxu0 0.0
    %9548 = vmatprep.subr.mxu0 0.0
    %9549 = vmatpush1.msra.mxu0 0.0
    %9550 = vmatprep.subr.mxu0 0.0
    %9551 = vmatpush1.msra.mxu0 0.0
    %9552 = vmatprep.subr.mxu0 0.0
    %9553 = vmatpush1.msra.mxu0 0.0
    %9554 = vmatprep.mubr.f32.mxu0 0.0
    %9555 = vmatmul.mubr.f32.gmra.mrb[0].mxu0 %v9488
    %v9556 = vpop.f32.mrb[0].mxu0
    %v9557 = vadd.f32 0.0, %v9556
    %v9558 = vpop.f32.mrb[0].mxu0
    %9559 = vdwg.mxu0
    %s9560 = scalar_lea.vmem [#allocation22], 320
    %v9561 = vld [vmem:[%s9560] sm:$0xff]
    %v9562 = vld [vmem:[%s9560 + $0x8] sm:$0xff]
    %v9563 = vld [vmem:[%s9560 + $0x10] sm:$0xff]
    %v9564 = vld [vmem:[%s9560 + $0x18] sm:$0xff]
    %v9565 = vld [vmem:[%s9560 + $0x20] sm:$0xff]
    %v9566 = vld [vmem:[%s9560 + $0x28] sm:$0xff]
    %v9567 = vld [vmem:[%s9560 + $0x30] sm:$0xff]
    %v9568 = vld [vmem:[%s9560 + $0x38] sm:$0xff]
    %v9570 = vsel %vm8864, %v9557, 0
    %9572 = vmatprep.subr.mxu0 0.0
    %9573 = vmatpush1.msra.mxu0 %v9561
    %9574 = vmatprep.subr.mxu0 0.0
    %9575 = vmatpush1.msra.mxu0 %v9562
    %9576 = vmatprep.subr.mxu0 0.0
    %9577 = vmatpush1.msra.mxu0 %v9563
    %9578 = vmatprep.subr.mxu0 0.0
    %9579 = vmatpush1.msra.mxu0 %v9564
    %9580 = vmatprep.subr.mxu0 0.0
    %9581 = vmatpush1.msra.mxu0 %v9565
    %9582 = vmatprep.subr.mxu0 0.0
    %9583 = vmatpush1.msra.mxu0 %v9566
    %9584 = vmatprep.subr.mxu0 0.0
    %9585 = vmatpush1.msra.mxu0 %v9567
    %9586 = vmatprep.subr.mxu0 0.0
    %9587 = vmatpush1.msra.mxu0 %v9568
    %9588 = vmatprep.subr.mxu0 0.0
    %9589 = vmatpush1.msra.mxu0 0.0
    %9590 = vmatprep.subr.mxu0 0.0
    %9591 = vmatpush1.msra.mxu0 0.0
    %9592 = vmatprep.subr.mxu0 0.0
    %9593 = vmatpush1.msra.mxu0 0.0
    %9594 = vmatprep.subr.mxu0 0.0
    %9595 = vmatpush1.msra.mxu0 0.0
    %9596 = vmatprep.subr.mxu0 0.0
    %9597 = vmatpush1.msra.mxu0 0.0
    %9598 = vmatprep.subr.mxu0 0.0
    %9599 = vmatpush1.msra.mxu0 0.0
    %9600 = vmatprep.subr.mxu0 0.0
    %9601 = vmatpush1.msra.mxu0 0.0
    %9602 = vmatprep.subr.mxu0 0.0
    %9603 = vmatpush1.msra.mxu0 0.0
    %9604 = vmatprep.subr.mxu0 0.0
    %9605 = vmatpush1.msra.mxu0 0.0
    %9606 = vmatprep.subr.mxu0 0.0
    %9607 = vmatpush1.msra.mxu0 0.0
    %9608 = vmatprep.subr.mxu0 0.0
    %9609 = vmatpush1.msra.mxu0 0.0
    %9610 = vmatprep.subr.mxu0 0.0
    %9611 = vmatpush1.msra.mxu0 0.0
    %9612 = vmatprep.subr.mxu0 0.0
    %9613 = vmatpush1.msra.mxu0 0.0
    %9614 = vmatprep.subr.mxu0 0.0
    %9615 = vmatpush1.msra.mxu0 0.0
    %9616 = vmatprep.subr.mxu0 0.0
    %9617 = vmatpush1.msra.mxu0 0.0
    %9618 = vmatprep.subr.mxu0 0.0
    %9619 = vmatpush1.msra.mxu0 0.0
    %9620 = vmatprep.subr.mxu0 0.0
    %9621 = vmatpush1.msra.mxu0 0.0
    %9622 = vmatprep.subr.mxu0 0.0
    %9623 = vmatpush1.msra.mxu0 0.0
    %9624 = vmatprep.subr.mxu0 0.0
    %9625 = vmatpush1.msra.mxu0 0.0
    %9626 = vmatprep.subr.mxu0 0.0
    %9627 = vmatpush1.msra.mxu0 0.0
    %9628 = vmatprep.subr.mxu0 0.0
    %9629 = vmatpush1.msra.mxu0 0.0
    %9630 = vmatprep.subr.mxu0 0.0
    %9631 = vmatpush1.msra.mxu0 0.0
    %9632 = vmatprep.subr.mxu0 0.0
    %9633 = vmatpush1.msra.mxu0 0.0
    %9634 = vmatprep.subr.mxu0 0.0
    %9635 = vmatpush1.msra.mxu0 0.0
    %9636 = vmatprep.mubr.f32.mxu0 0.0
    %9637 = vmatmul.mubr.f32.gmra.mrb[0].mxu0 %v9570
    %v9638 = vpop.f32.mrb[0].mxu0
    %v9639 = vadd.f32 0.0, %v9638
    %v9640 = vpop.f32.mrb[0].mxu0
    %9641 = vdwg.mxu0
    %v9642 = vadd.f32 %v9484, %v9639
    %s9643 = scalar_lea.vmem %s13, 12
    %v9644 = vld [vmem:[%s9643] sm:$0x3]
    %v9646 = vsel %vm8698, %v9644, 0
    %9648 = vmatprep.subr.mxu0 0.0
    %9649 = vmatpush1.msra.mxu0 %v8696
    %9650 = vmatprep.subr.mxu0 0.0
    %9651 = vmatpush1.msra.mxu0 0.0
    %9652 = vmatprep.subr.mxu0 0.0
    %9653 = vmatpush1.msra.mxu0 0.0
    %9654 = vmatprep.subr.mxu0 0.0
    %9655 = vmatpush1.msra.mxu0 0.0
    %9656 = vmatprep.subr.mxu0 0.0
    %9657 = vmatpush1.msra.mxu0 0.0
    %9658 = vmatprep.subr.mxu0 0.0
    %9659 = vmatpush1.msra.mxu0 0.0
    %9660 = vmatprep.subr.mxu0 0.0
    %9661 = vmatpush1.msra.mxu0 0.0
    %9662 = vmatprep.subr.mxu0 0.0
    %9663 = vmatpush1.msra.mxu0 0.0
    %9664 = vmatprep.subr.mxu0 0.0
    %9665 = vmatpush1.msra.mxu0 0.0
    %9666 = vmatprep.subr.mxu0 0.0
    %9667 = vmatpush1.msra.mxu0 0.0
    %9668 = vmatprep.subr.mxu0 0.0
    %9669 = vmatpush1.msra.mxu0 0.0
    %9670 = vmatprep.subr.mxu0 0.0
    %9671 = vmatpush1.msra.mxu0 0.0
    %9672 = vmatprep.subr.mxu0 0.0
    %9673 = vmatpush1.msra.mxu0 0.0
    %9674 = vmatprep.subr.mxu0 0.0
    %9675 = vmatpush1.msra.mxu0 0.0
    %9676 = vmatprep.subr.mxu0 0.0
    %9677 = vmatpush1.msra.mxu0 0.0
    %9678 = vmatprep.subr.mxu0 0.0
    %9679 = vmatpush1.msra.mxu0 0.0
    %9680 = vmatprep.subr.mxu0 0.0
    %9681 = vmatpush1.msra.mxu0 0.0
    %9682 = vmatprep.subr.mxu0 0.0
    %9683 = vmatpush1.msra.mxu0 0.0
    %9684 = vmatprep.subr.mxu0 0.0
    %9685 = vmatpush1.msra.mxu0 0.0
    %9686 = vmatprep.subr.mxu0 0.0
    %9687 = vmatpush1.msra.mxu0 0.0
    %9688 = vmatprep.subr.mxu0 0.0
    %9689 = vmatpush1.msra.mxu0 0.0
    %9690 = vmatprep.subr.mxu0 0.0
    %9691 = vmatpush1.msra.mxu0 0.0
    %9692 = vmatprep.subr.mxu0 0.0
    %9693 = vmatpush1.msra.mxu0 0.0
    %9694 = vmatprep.subr.mxu0 0.0
    %9695 = vmatpush1.msra.mxu0 0.0
    %9696 = vmatprep.subr.mxu0 0.0
    %9697 = vmatpush1.msra.mxu0 0.0
    %9698 = vmatprep.subr.mxu0 0.0
    %9699 = vmatpush1.msra.mxu0 0.0
    %9700 = vmatprep.subr.mxu0 0.0
    %9701 = vmatpush1.msra.mxu0 0.0
    %9702 = vmatprep.subr.mxu0 0.0
    %9703 = vmatpush1.msra.mxu0 0.0
    %9704 = vmatprep.subr.mxu0 0.0
    %9705 = vmatpush1.msra.mxu0 0.0
    %9706 = vmatprep.subr.mxu0 0.0
    %9707 = vmatpush1.msra.mxu0 0.0
    %9708 = vmatprep.subr.mxu0 0.0
    %9709 = vmatpush1.msra.mxu0 0.0
    %9710 = vmatprep.subr.mxu0 0.0
    %9711 = vmatpush1.msra.mxu0 0.0
    %9712 = vmatprep.mubr.f32.mxu0 0.0
    %9713 = vmatmul.mubr.f32.gmra.mrb[0].mxu0 %v9646
    %v9714 = vpop.f32.mrb[0].mxu0
    %v9715 = vadd.f32 0.0, %v9714
    %v9716 = vpop.f32.mrb[0].mxu0
    %9717 = vdwg.mxu0
    %s9718 = scalar_lea.vmem [#allocation22], 384
    %v9719 = vld [vmem:[%s9718] sm:$0xff]
    %v9720 = vld [vmem:[%s9718 + $0x8] sm:$0xff]
    %v9721 = vld [vmem:[%s9718 + $0x10] sm:$0xff]
    %v9722 = vld [vmem:[%s9718 + $0x18] sm:$0xff]
    %v9723 = vld [vmem:[%s9718 + $0x20] sm:$0xff]
    %v9724 = vld [vmem:[%s9718 + $0x28] sm:$0xff]
    %v9725 = vld [vmem:[%s9718 + $0x30] sm:$0xff]
    %v9726 = vld [vmem:[%s9718 + $0x38] sm:$0xff]
    %v9728 = vsel %vm8864, %v9715, 0
    %9730 = vmatprep.subr.mxu0 0.0
    %9731 = vmatpush1.msra.mxu0 %v9719
    %9732 = vmatprep.subr.mxu0 0.0
    %9733 = vmatpush1.msra.mxu0 %v9720
    %9734 = vmatprep.subr.mxu0 0.0
    %9735 = vmatpush1.msra.mxu0 %v9721
    %9736 = vmatprep.subr.mxu0 0.0
    %9737 = vmatpush1.msra.mxu0 %v9722
    %9738 = vmatprep.subr.mxu0 0.0
    %9739 = vmatpush1.msra.mxu0 %v9723
    %9740 = vmatprep.subr.mxu0 0.0
    %9741 = vmatpush1.msra.mxu0 %v9724
    %9742 = vmatprep.subr.mxu0 0.0
    %9743 = vmatpush1.msra.mxu0 %v9725
    %9744 = vmatprep.subr.mxu0 0.0
    %9745 = vmatpush1.msra.mxu0 %v9726
    %9746 = vmatprep.subr.mxu0 0.0
    %9747 = vmatpush1.msra.mxu0 0.0
    %9748 = vmatprep.subr.mxu0 0.0
    %9749 = vmatpush1.msra.mxu0 0.0
    %9750 = vmatprep.subr.mxu0 0.0
    %9751 = vmatpush1.msra.mxu0 0.0
    %9752 = vmatprep.subr.mxu0 0.0
    %9753 = vmatpush1.msra.mxu0 0.0
    %9754 = vmatprep.subr.mxu0 0.0
    %9755 = vmatpush1.msra.mxu0 0.0
    %9756 = vmatprep.subr.mxu0 0.0
    %9757 = vmatpush1.msra.mxu0 0.0
    %9758 = vmatprep.subr.mxu0 0.0
    %9759 = vmatpush1.msra.mxu0 0.0
    %9760 = vmatprep.subr.mxu0 0.0
    %9761 = vmatpush1.msra.mxu0 0.0
    %9762 = vmatprep.subr.mxu0 0.0
    %9763 = vmatpush1.msra.mxu0 0.0
    %9764 = vmatprep.subr.mxu0 0.0
    %9765 = vmatpush1.msra.mxu0 0.0
    %9766 = vmatprep.subr.mxu0 0.0
    %9767 = vmatpush1.msra.mxu0 0.0
    %9768 = vmatprep.subr.mxu0 0.0
    %9769 = vmatpush1.msra.mxu0 0.0
    %9770 = vmatprep.subr.mxu0 0.0
    %9771 = vmatpush1.msra.mxu0 0.0
    %9772 = vmatprep.subr.mxu0 0.0
    %9773 = vmatpush1.msra.mxu0 0.0
    %9774 = vmatprep.subr.mxu0 0.0
    %9775 = vmatpush1.msra.mxu0 0.0
    %9776 = vmatprep.subr.mxu0 0.0
    %9777 = vmatpush1.msra.mxu0 0.0
    %9778 = vmatprep.subr.mxu0 0.0
    %9779 = vmatpush1.msra.mxu0 0.0
    %9780 = vmatprep.subr.mxu0 0.0
    %9781 = vmatpush1.msra.mxu0 0.0
    %9782 = vmatprep.subr.mxu0 0.0
    %9783 = vmatpush1.msra.mxu0 0.0
    %9784 = vmatprep.subr.mxu0 0.0
    %9785 = vmatpush1.msra.mxu0 0.0
    %9786 = vmatprep.subr.mxu0 0.0
    %9787 = vmatpush1.msra.mxu0 0.0
    %9788 = vmatprep.subr.mxu0 0.0
    %9789 = vmatpush1.msra.mxu0 0.0
    %9790 = vmatprep.subr.mxu0 0.0
    %9791 = vmatpush1.msra.mxu0 0.0
    %9792 = vmatprep.subr.mxu0 0.0
    %9793 = vmatpush1.msra.mxu0 0.0
    %9794 = vmatprep.mubr.f32.mxu0 0.0
    %9795 = vmatmul.mubr.f32.gmra.mrb[0].mxu0 %v9728
    %v9796 = vpop.f32.mrb[0].mxu0
    %v9797 = vadd.f32 0.0, %v9796
    %v9798 = vpop.f32.mrb[0].mxu0
    %9799 = vdwg.mxu0
    %v9800 = vadd.f32 %v9642, %v9797
    %s9801 = scalar_lea.vmem %s13, 14
    %v9802 = vld [vmem:[%s9801] sm:$0x3]
    %v9804 = vsel %vm8698, %v9802, 0
    %9806 = vmatprep.subr.mxu0 0.0
    %9807 = vmatpush1.msra.mxu0 %v8696
    %9808 = vmatprep.subr.mxu0 0.0
    %9809 = vmatpush1.msra.mxu0 0.0
    %9810 = vmatprep.subr.mxu0 0.0
    %9811 = vmatpush1.msra.mxu0 0.0
    %9812 = vmatprep.subr.mxu0 0.0
    %9813 = vmatpush1.msra.mxu0 0.0
    %9814 = vmatprep.subr.mxu0 0.0
    %9815 = vmatpush1.msra.mxu0 0.0
    %9816 = vmatprep.subr.mxu0 0.0
    %9817 = vmatpush1.msra.mxu0 0.0
    %9818 = vmatprep.subr.mxu0 0.0
    %9819 = vmatpush1.msra.mxu0 0.0
    %9820 = vmatprep.subr.mxu0 0.0
    %9821 = vmatpush1.msra.mxu0 0.0
    %9822 = vmatprep.subr.mxu0 0.0
    %9823 = vmatpush1.msra.mxu0 0.0
    %9824 = vmatprep.subr.mxu0 0.0
    %9825 = vmatpush1.msra.mxu0 0.0
    %9826 = vmatprep.subr.mxu0 0.0
    %9827 = vmatpush1.msra.mxu0 0.0
    %9828 = vmatprep.subr.mxu0 0.0
    %9829 = vmatpush1.msra.mxu0 0.0
    %9830 = vmatprep.subr.mxu0 0.0
    %9831 = vmatpush1.msra.mxu0 0.0
    %9832 = vmatprep.subr.mxu0 0.0
    %9833 = vmatpush1.msra.mxu0 0.0
    %9834 = vmatprep.subr.mxu0 0.0
    %9835 = vmatpush1.msra.mxu0 0.0
    %9836 = vmatprep.subr.mxu0 0.0
    %9837 = vmatpush1.msra.mxu0 0.0
    %9838 = vmatprep.subr.mxu0 0.0
    %9839 = vmatpush1.msra.mxu0 0.0
    %9840 = vmatprep.subr.mxu0 0.0
    %9841 = vmatpush1.msra.mxu0 0.0
    %9842 = vmatprep.subr.mxu0 0.0
    %9843 = vmatpush1.msra.mxu0 0.0
    %9844 = vmatprep.subr.mxu0 0.0
    %9845 = vmatpush1.msra.mxu0 0.0
    %9846 = vmatprep.subr.mxu0 0.0
    %9847 = vmatpush1.msra.mxu0 0.0
    %9848 = vmatprep.subr.mxu0 0.0
    %9849 = vmatpush1.msra.mxu0 0.0
    %9850 = vmatprep.subr.mxu0 0.0
    %9851 = vmatpush1.msra.mxu0 0.0
    %9852 = vmatprep.subr.mxu0 0.0
    %9853 = vmatpush1.msra.mxu0 0.0
    %9854 = vmatprep.subr.mxu0 0.0
    %9855 = vmatpush1.msra.mxu0 0.0
    %9856 = vmatprep.subr.mxu0 0.0
    %9857 = vmatpush1.msra.mxu0 0.0
    %9858 = vmatprep.subr.mxu0 0.0
    %9859 = vmatpush1.msra.mxu0 0.0
    %9860 = vmatprep.subr.mxu0 0.0
    %9861 = vmatpush1.msra.mxu0 0.0
    %9862 = vmatprep.subr.mxu0 0.0
    %9863 = vmatpush1.msra.mxu0 0.0
    %9864 = vmatprep.subr.mxu0 0.0
    %9865 = vmatpush1.msra.mxu0 0.0
    %9866 = vmatprep.subr.mxu0 0.0
    %9867 = vmatpush1.msra.mxu0 0.0
    %9868 = vmatprep.subr.mxu0 0.0
    %9869 = vmatpush1.msra.mxu0 0.0
    %9870 = vmatprep.mubr.f32.mxu0 0.0
    %9871 = vmatmul.mubr.f32.gmra.mrb[0].mxu0 %v9804
    %v9872 = vpop.f32.mrb[0].mxu0
    %v9873 = vadd.f32 0.0, %v9872
    %v9874 = vpop.f32.mrb[0].mxu0
    %9875 = vdwg.mxu0
    %s9876 = scalar_lea.vmem [#allocation22], 448
    %v9877 = vld [vmem:[%s9876] sm:$0xff]
    %v9878 = vld [vmem:[%s9876 + $0x8] sm:$0xff]
    %v9879 = vld [vmem:[%s9876 + $0x10] sm:$0xff]
    %v9880 = vld [vmem:[%s9876 + $0x18] sm:$0xff]
    %v9881 = vld [vmem:[%s9876 + $0x20] sm:$0xff]
    %v9882 = vld [vmem:[%s9876 + $0x28] sm:$0xff]
    %v9883 = vld [vmem:[%s9876 + $0x30] sm:$0xff]
    %v9884 = vld [vmem:[%s9876 + $0x38] sm:$0xff]
    %v9886 = vsel %vm8864, %v9873, 0
    %9888 = vmatprep.subr.mxu0 0.0
    %9889 = vmatpush1.msra.mxu0 %v9877
    %9890 = vmatprep.subr.mxu0 0.0
    %9891 = vmatpush1.msra.mxu0 %v9878
    %9892 = vmatprep.subr.mxu0 0.0
    %9893 = vmatpush1.msra.mxu0 %v9879
    %9894 = vmatprep.subr.mxu0 0.0
    %9895 = vmatpush1.msra.mxu0 %v9880
    %9896 = vmatprep.subr.mxu0 0.0
    %9897 = vmatpush1.msra.mxu0 %v9881
    %9898 = vmatprep.subr.mxu0 0.0
    %9899 = vmatpush1.msra.mxu0 %v9882
    %9900 = vmatprep.subr.mxu0 0.0
    %9901 = vmatpush1.msra.mxu0 %v9883
    %9902 = vmatprep.subr.mxu0 0.0
    %9903 = vmatpush1.msra.mxu0 %v9884
    %9904 = vmatprep.subr.mxu0 0.0
    %9905 = vmatpush1.msra.mxu0 0.0
    %9906 = vmatprep.subr.mxu0 0.0
    %9907 = vmatpush1.msra.mxu0 0.0
    %9908 = vmatprep.subr.mxu0 0.0
    %9909 = vmatpush1.msra.mxu0 0.0
    %9910 = vmatprep.subr.mxu0 0.0
    %9911 = vmatpush1.msra.mxu0 0.0
    %9912 = vmatprep.subr.mxu0 0.0
    %9913 = vmatpush1.msra.mxu0 0.0
    %9914 = vmatprep.subr.mxu0 0.0
    %9915 = vmatpush1.msra.mxu0 0.0
    %9916 = vmatprep.subr.mxu0 0.0
    %9917 = vmatpush1.msra.mxu0 0.0
    %9918 = vmatprep.subr.mxu0 0.0
    %9919 = vmatpush1.msra.mxu0 0.0
    %9920 = vmatprep.subr.mxu0 0.0
    %9921 = vmatpush1.msra.mxu0 0.0
    %9922 = vmatprep.subr.mxu0 0.0
    %9923 = vmatpush1.msra.mxu0 0.0
    %9924 = vmatprep.subr.mxu0 0.0
    %9925 = vmatpush1.msra.mxu0 0.0
    %9926 = vmatprep.subr.mxu0 0.0
    %9927 = vmatpush1.msra.mxu0 0.0
    %9928 = vmatprep.subr.mxu0 0.0
    %9929 = vmatpush1.msra.mxu0 0.0
    %9930 = vmatprep.subr.mxu0 0.0
    %9931 = vmatpush1.msra.mxu0 0.0
    %9932 = vmatprep.subr.mxu0 0.0
    %9933 = vmatpush1.msra.mxu0 0.0
    %9934 = vmatprep.subr.mxu0 0.0
    %9935 = vmatpush1.msra.mxu0 0.0
    %9936 = vmatprep.subr.mxu0 0.0
    %9937 = vmatpush1.msra.mxu0 0.0
    %9938 = vmatprep.subr.mxu0 0.0
    %9939 = vmatpush1.msra.mxu0 0.0
    %9940 = vmatprep.subr.mxu0 0.0
    %9941 = vmatpush1.msra.mxu0 0.0
    %9942 = vmatprep.subr.mxu0 0.0
    %9943 = vmatpush1.msra.mxu0 0.0
    %9944 = vmatprep.subr.mxu0 0.0
    %9945 = vmatpush1.msra.mxu0 0.0
    %9946 = vmatprep.subr.mxu0 0.0
    %9947 = vmatpush1.msra.mxu0 0.0
    %9948 = vmatprep.subr.mxu0 0.0
    %9949 = vmatpush1.msra.mxu0 0.0
    %9950 = vmatprep.subr.mxu0 0.0
    %9951 = vmatpush1.msra.mxu0 0.0
    %9952 = vmatprep.mubr.f32.mxu0 0.0
    %9953 = vmatmul.mubr.f32.gmra.mrb[0].mxu0 %v9886
    %v9954 = vpop.f32.mrb[0].mxu0
    %v9955 = vadd.f32 0.0, %v9954
    %v9956 = vpop.f32.mrb[0].mxu0
    %9957 = vdwg.mxu0
    %v9958 = vadd.f32 %v9800, %v9955
    %s9959 = scalar_lea.vmem %s13, 16
    %v9960 = vld [vmem:[%s9959] sm:$0x3]
    %v9962 = vsel %vm8698, %v9960, 0
    %9964 = vmatprep.subr.mxu0 0.0
    %9965 = vmatpush1.msra.mxu0 %v8696
    %9966 = vmatprep.subr.mxu0 0.0
    %9967 = vmatpush1.msra.mxu0 0.0
    %9968 = vmatprep.subr.mxu0 0.0
    %9969 = vmatpush1.msra.mxu0 0.0
    %9970 = vmatprep.subr.mxu0 0.0
    %9971 = vmatpush1.msra.mxu0 0.0
    %9972 = vmatprep.subr.mxu0 0.0
    %9973 = vmatpush1.msra.mxu0 0.0
    %9974 = vmatprep.subr.mxu0 0.0
    %9975 = vmatpush1.msra.mxu0 0.0
    %9976 = vmatprep.subr.mxu0 0.0
    %9977 = vmatpush1.msra.mxu0 0.0
    %9978 = vmatprep.subr.mxu0 0.0
    %9979 = vmatpush1.msra.mxu0 0.0
    %9980 = vmatprep.subr.mxu0 0.0
    %9981 = vmatpush1.msra.mxu0 0.0
    %9982 = vmatprep.subr.mxu0 0.0
    %9983 = vmatpush1.msra.mxu0 0.0
    %9984 = vmatprep.subr.mxu0 0.0
    %9985 = vmatpush1.msra.mxu0 0.0
    %9986 = vmatprep.subr.mxu0 0.0
    %9987 = vmatpush1.msra.mxu0 0.0
    %9988 = vmatprep.subr.mxu0 0.0
    %9989 = vmatpush1.msra.mxu0 0.0
    %9990 = vmatprep.subr.mxu0 0.0
    %9991 = vmatpush1.msra.mxu0 0.0
    %9992 = vmatprep.subr.mxu0 0.0
    %9993 = vmatpush1.msra.mxu0 0.0
    %9994 = vmatprep.subr.mxu0 0.0
    %9995 = vmatpush1.msra.mxu0 0.0
    %9996 = vmatprep.subr.mxu0 0.0
    %9997 = vmatpush1.msra.mxu0 0.0
    %9998 = vmatprep.subr.mxu0 0.0
    %9999 = vmatpush1.msra.mxu0 0.0
    %10000 = vmatprep.subr.mxu0 0.0
    %10001 = vmatpush1.msra.mxu0 0.0
    %10002 = vmatprep.subr.mxu0 0.0
    %10003 = vmatpush1.msra.mxu0 0.0
    %10004 = vmatprep.subr.mxu0 0.0
    %10005 = vmatpush1.msra.mxu0 0.0
    %10006 = vmatprep.subr.mxu0 0.0
    %10007 = vmatpush1.msra.mxu0 0.0
    %10008 = vmatprep.subr.mxu0 0.0
    %10009 = vmatpush1.msra.mxu0 0.0
    %10010 = vmatprep.subr.mxu0 0.0
    %10011 = vmatpush1.msra.mxu0 0.0
    %10012 = vmatprep.subr.mxu0 0.0
    %10013 = vmatpush1.msra.mxu0 0.0
    %10014 = vmatprep.subr.mxu0 0.0
    %10015 = vmatpush1.msra.mxu0 0.0
    %10016 = vmatprep.subr.mxu0 0.0
    %10017 = vmatpush1.msra.mxu0 0.0
    %10018 = vmatprep.subr.mxu0 0.0
    %10019 = vmatpush1.msra.mxu0 0.0
    %10020 = vmatprep.subr.mxu0 0.0
    %10021 = vmatpush1.msra.mxu0 0.0
    %10022 = vmatprep.subr.mxu0 0.0
    %10023 = vmatpush1.msra.mxu0 0.0
    %10024 = vmatprep.subr.mxu0 0.0
    %10025 = vmatpush1.msra.mxu0 0.0
    %10026 = vmatprep.subr.mxu0 0.0
    %10027 = vmatpush1.msra.mxu0 0.0
    %10028 = vmatprep.mubr.f32.mxu0 0.0
    %10029 = vmatmul.mubr.f32.gmra.mrb[0].mxu0 %v9962
    %v10030 = vpop.f32.mrb[0].mxu0
    %v10031 = vadd.f32 0.0, %v10030
    %v10032 = vpop.f32.mrb[0].mxu0
    %10033 = vdwg.mxu0
    %s10034 = scalar_lea.vmem [#allocation22], 512
    %v10035 = vld [vmem:[%s10034] sm:$0xff]
    %v10036 = vld [vmem:[%s10034 + $0x8] sm:$0xff]
    %v10037 = vld [vmem:[%s10034 + $0x10] sm:$0xff]
    %v10038 = vld [vmem:[%s10034 + $0x18] sm:$0xff]
    %v10039 = vld [vmem:[%s10034 + $0x20] sm:$0xff]
    %v10040 = vld [vmem:[%s10034 + $0x28] sm:$0xff]
    %v10041 = vld [vmem:[%s10034 + $0x30] sm:$0xff]
    %v10042 = vld [vmem:[%s10034 + $0x38] sm:$0xff]
    %v10044 = vsel %vm8864, %v10031, 0
    %10046 = vmatprep.subr.mxu0 0.0
    %10047 = vmatpush1.msra.mxu0 %v10035
    %10048 = vmatprep.subr.mxu0 0.0
    %10049 = vmatpush1.msra.mxu0 %v10036
    %10050 = vmatprep.subr.mxu0 0.0
    %10051 = vmatpush1.msra.mxu0 %v10037
    %10052 = vmatprep.subr.mxu0 0.0
    %10053 = vmatpush1.msra.mxu0 %v10038
    %10054 = vmatprep.subr.mxu0 0.0
    %10055 = vmatpush1.msra.mxu0 %v10039
    %10056 = vmatprep.subr.mxu0 0.0
    %10057 = vmatpush1.msra.mxu0 %v10040
    %10058 = vmatprep.subr.mxu0 0.0
    %10059 = vmatpush1.msra.mxu0 %v10041
    %10060 = vmatprep.subr.mxu0 0.0
    %10061 = vmatpush1.msra.mxu0 %v10042
    %10062 = vmatprep.subr.mxu0 0.0
    %10063 = vmatpush1.msra.mxu0 0.0
    %10064 = vmatprep.subr.mxu0 0.0
    %10065 = vmatpush1.msra.mxu0 0.0
    %10066 = vmatprep.subr.mxu0 0.0
    %10067 = vmatpush1.msra.mxu0 0.0
    %10068 = vmatprep.subr.mxu0 0.0
    %10069 = vmatpush1.msra.mxu0 0.0
    %10070 = vmatprep.subr.mxu0 0.0
    %10071 = vmatpush1.msra.mxu0 0.0
    %10072 = vmatprep.subr.mxu0 0.0
    %10073 = vmatpush1.msra.mxu0 0.0
    %10074 = vmatprep.subr.mxu0 0.0
    %10075 = vmatpush1.msra.mxu0 0.0
    %10076 = vmatprep.subr.mxu0 0.0
    %10077 = vmatpush1.msra.mxu0 0.0
    %10078 = vmatprep.subr.mxu0 0.0
    %10079 = vmatpush1.msra.mxu0 0.0
    %10080 = vmatprep.subr.mxu0 0.0
    %10081 = vmatpush1.msra.mxu0 0.0
    %10082 = vmatprep.subr.mxu0 0.0
    %10083 = vmatpush1.msra.mxu0 0.0
    %10084 = vmatprep.subr.mxu0 0.0
    %10085 = vmatpush1.msra.mxu0 0.0
    %10086 = vmatprep.subr.mxu0 0.0
    %10087 = vmatpush1.msra.mxu0 0.0
    %10088 = vmatprep.subr.mxu0 0.0
    %10089 = vmatpush1.msra.mxu0 0.0
    %10090 = vmatprep.subr.mxu0 0.0
    %10091 = vmatpush1.msra.mxu0 0.0
    %10092 = vmatprep.subr.mxu0 0.0
    %10093 = vmatpush1.msra.mxu0 0.0
    %10094 = vmatprep.subr.mxu0 0.0
    %10095 = vmatpush1.msra.mxu0 0.0
    %10096 = vmatprep.subr.mxu0 0.0
    %10097 = vmatpush1.msra.mxu0 0.0
    %10098 = vmatprep.subr.mxu0 0.0
    %10099 = vmatpush1.msra.mxu0 0.0
    %10100 = vmatprep.subr.mxu0 0.0
    %10101 = vmatpush1.msra.mxu0 0.0
    %10102 = vmatprep.subr.mxu0 0.0
    %10103 = vmatpush1.msra.mxu0 0.0
    %10104 = vmatprep.subr.mxu0 0.0
    %10105 = vmatpush1.msra.mxu0 0.0
    %10106 = vmatprep.subr.mxu0 0.0
    %10107 = vmatpush1.msra.mxu0 0.0
    %10108 = vmatprep.subr.mxu0 0.0
    %10109 = vmatpush1.msra.mxu0 0.0
    %10110 = vmatprep.mubr.f32.mxu0 0.0
    %10111 = vmatmul.mubr.f32.gmra.mrb[0].mxu0 %v10044
    %v10112 = vpop.f32.mrb[0].mxu0
    %v10113 = vadd.f32 0.0, %v10112
    %v10114 = vpop.f32.mrb[0].mxu0
    %10115 = vdwg.mxu0
    %v10116 = vadd.f32 %v9958, %v10113
    %v10117 = vld [vmem:[#allocation23] sm:$0x1]
    %v10119 = vlaneseq
    %v10120 = vshrl.u32 %v10119, 7
    %v10121 = vsub.s32 0, %v10120
    %v10122 = vrot.slane %v10117, %v10121
    %v10124 = vadd.f32 %v10116, %v10122
    %vm10125 = vcmp.ge.f32.partialorder %v10124, 0.0
    %v10126 = vmul.f32 %v10124, 0.2
    %v10127 = vsel %vm10125, %v10124, %v10126
    %v10128 = vld [vmem:[#allocation25] sm:$0x1]
    %v10130 = vlaneseq
    %v10131 = vshrl.u32 %v10130, 7
    %v10132 = vsub.s32 0, %v10131
    %v10133 = vrot.slane %v10128, %v10132
    %v10135 = vadd.f32 %v10127, %v10133
    %v10136 = vld [vmem:[#allocation26] sm:$0x3]
    %v10137 = vmul.f32 %v10135, %v10136
    %v10138 = vld [vmem:[#allocation28] sm:$0x3]
    %vm10139 = vcmask 15360
    %v10141 = vsel %vm10139, %v10138, 0
    %vm10143 = vcmask 1041408
    %v10145 = vsel %vm10143, %v10137, 0
    %10147 = vmatprep.subr.mxu0 0.0
    %10148 = vmatpush1.msra.mxu0 %v10145
    %10149 = vmatprep.subr.mxu0 0.0
    %10150 = vmatpush1.msra.mxu0 0.0
    %10151 = vmatprep.subr.mxu0 0.0
    %10152 = vmatpush1.msra.mxu0 0.0
    %10153 = vmatprep.subr.mxu0 0.0
    %10154 = vmatpush1.msra.mxu0 0.0
    %10155 = vmatprep.subr.mxu0 0.0
    %10156 = vmatpush1.msra.mxu0 0.0
    %10157 = vmatprep.subr.mxu0 0.0
    %10158 = vmatpush1.msra.mxu0 0.0
    %10159 = vmatprep.subr.mxu0 0.0
    %10160 = vmatpush1.msra.mxu0 0.0
    %10161 = vmatprep.subr.mxu0 0.0
    %10162 = vmatpush1.msra.mxu0 0.0
    %10163 = vmatprep.subr.mxu0 0.0
    %10164 = vmatpush1.msra.mxu0 0.0
    %10165 = vmatprep.subr.mxu0 0.0
    %10166 = vmatpush1.msra.mxu0 0.0
    %10167 = vmatprep.subr.mxu0 0.0
    %10168 = vmatpush1.msra.mxu0 0.0
    %10169 = vmatprep.subr.mxu0 0.0
    %10170 = vmatpush1.msra.mxu0 0.0
    %10171 = vmatprep.subr.mxu0 0.0
    %10172 = vmatpush1.msra.mxu0 0.0
    %10173 = vmatprep.subr.mxu0 0.0
    %10174 = vmatpush1.msra.mxu0 0.0
    %10175 = vmatprep.subr.mxu0 0.0
    %10176 = vmatpush1.msra.mxu0 0.0
    %10177 = vmatprep.subr.mxu0 0.0
    %10178 = vmatpush1.msra.mxu0 0.0
    %10179 = vmatprep.subr.mxu0 0.0
    %10180 = vmatpush1.msra.mxu0 0.0
    %10181 = vmatprep.subr.mxu0 0.0
    %10182 = vmatpush1.msra.mxu0 0.0
    %10183 = vmatprep.subr.mxu0 0.0
    %10184 = vmatpush1.msra.mxu0 0.0
    %10185 = vmatprep.subr.mxu0 0.0
    %10186 = vmatpush1.msra.mxu0 0.0
    %10187 = vmatprep.subr.mxu0 0.0
    %10188 = vmatpush1.msra.mxu0 0.0
    %10189 = vmatprep.subr.mxu0 0.0
    %10190 = vmatpush1.msra.mxu0 0.0
    %10191 = vmatprep.subr.mxu0 0.0
    %10192 = vmatpush1.msra.mxu0 0.0
    %10193 = vmatprep.subr.mxu0 0.0
    %10194 = vmatpush1.msra.mxu0 0.0
    %10195 = vmatprep.subr.mxu0 0.0
    %10196 = vmatpush1.msra.mxu0 0.0
    %10197 = vmatprep.subr.mxu0 0.0
    %10198 = vmatpush1.msra.mxu0 0.0
    %10199 = vmatprep.subr.mxu0 0.0
    %10200 = vmatpush1.msra.mxu0 0.0
    %10201 = vmatprep.subr.mxu0 0.0
    %10202 = vmatpush1.msra.mxu0 0.0
    %10203 = vmatprep.subr.mxu0 0.0
    %10204 = vmatpush1.msra.mxu0 0.0
    %10205 = vmatprep.subr.mxu0 0.0
    %10206 = vmatpush1.msra.mxu0 0.0
    %10207 = vmatprep.subr.mxu0 0.0
    %10208 = vmatpush1.msra.mxu0 0.0
    %10209 = vmatprep.subr.mxu0 0.0
    %10210 = vmatpush1.msra.mxu0 0.0
    %10211 = vmatprep.mubr.f32.mxu0 0.0
    %10212 = vmatmul.mubr.f32.gmra.mrb[0].mxu0 %v10141
    %v10213 = vpop.f32.mrb[0].mxu0
    %v10214 = vadd.f32 0.0, %v10213
    %v10215 = vpop.f32.mrb[0].mxu0
    %10216 = vdwg.mxu0
    %v10217 = vsel %vm10143, %v10214, 0.0
    %10218 = vadd.xlane.f32.xlu0 %v10217
    %v10219 = vpop.xlane.xlu0 %10218
    %v10220 = vld [vmem:[#allocation2] sm:$0x1]
    %v10222 = vlaneseq
    %v10223 = vshrl.u32 %v10222, 7
    %v10224 = vsub.s32 0, %v10223
    %v10225 = vrot.slane %v10220, %v10224
    %v10227 = vadd.f32 %v10219, %v10225
    %v10228 = vxor.u32 %v10227, 2147483648
    %v10229 = vmul.f32 %v10228, 1.442695
    %v10230 = vpow.pop %v10229
    %v10231 = vadd.f32 %v10230, 1.0
    %v10232 = vrcp.pop %v10231
    %v10233 = vmul.f32 1.0, %v10232
    %vm10234 = vcmask 1024
    %10235 = vst.msk [vmem:[%s20] sm:$0x3] %vm10234, %v10233
    // Predicated region
    $region150: #{discriminator_forward.1} parent=1 // pred_check
      _
    $region151: #{discriminator_forward.1} parent=1 // pred_check_branch
      %10237 = sbr.rel (0) target = $region153
    $region152: #{discriminator_forward.1} parent=1 // pred_region
      _
    $region153: #{discriminator_forward.1} parent=1 // pred_fallthru
      _
    // Predicated region
    $region154: #{discriminator_forward.1} parent=1 // pred_check
      _
    $region155: #{discriminator_forward.1} parent=1 // pred_check_branch
      %10239 = sbr.rel (0) target = $region157
    $region156: #{discriminator_forward.1} parent=1 // pred_region
      _
    $region157: #{discriminator_forward.1} parent=1 // pred_fallthru
      _
    %10240 = vsyncpa [#allocation4], 1
    %10241 = vsyncpa [#allocation6], 1
    %10242 = vsyncpa [#allocation9], 1
    %10243 = vsyncpa [#allocation12], 1
    %10244 = vsyncpa [#allocation15], 1
    %10245 = vsyncpa [#allocation18], 1
    %10246 = vsyncpa [#allocation21], 1
    %10247 = vsyncpa [#allocation24], 1
    %10248 = vsyncpa [#allocation27], 1

</llo_original>
